<compile_context>
chip_gen: v7x
topology: tpu7x:2x2x1
jax: 0.10.0
libtpu: 0.0.40
codegen_flags: <defaults>
</compile_context>

<pallas_src>
import jax
import jax.numpy as jnp
from jax.experimental import pallas as pl
from jax.experimental.pallas import tpu as pltpu

N_CLASSES = 6
BN_EPS = 1e-5
D_IN = 4096
TK = 2048  # fc1 reduction tile: bf16 w1 tile = 2048*1024*2 B = 4 MiB (x2 bufs)


def _mlp_kernel(x_ref, w1_ref, b1_ref,
                w2_ref, b2_ref,
                w3_ref, b3_ref,
                w4_ref, b4_ref,
                o_ref, acc_ref):
    """Streamed fc1 accumulation (bf16 MXU, f32 acc), then fused fc2/fc3/fc4
    + log_softmax on the last grid step."""
    k = pl.program_id(0)

    @pl.when(k == 0)
    def _():
        acc_ref[...] = jnp.zeros_like(acc_ref)

    # Partial fc1: x[:, k*TK:(k+1)*TK] @ w1[k*TK:(k+1)*TK, :]
    start = pl.multiple_of(k * TK, TK)
    x_tile = x_ref[:, pl.ds(start, TK)].astype(jnp.bfloat16)
    acc_ref[...] += jnp.dot(x_tile, w1_ref[...],
                            preferred_element_type=jnp.float32)

    @pl.when(k == pl.num_programs(0) - 1)
    def _():
        # fc1 bias (BN folded) + ReLU
        h = jnp.maximum(acc_ref[...] + b1_ref[...], 0.0)
        # fc2 (+folded BN) + ReLU
        h = jnp.maximum(
            jnp.dot(h.astype(jnp.bfloat16), w2_ref[...],
                    preferred_element_type=jnp.float32) + b2_ref[...], 0.0)
        # fc3 (+folded BN) + ReLU
        h = jnp.maximum(
            jnp.dot(h.astype(jnp.bfloat16), w3_ref[...],
                    preferred_element_type=jnp.float32) + b3_ref[...], 0.0)
        # fc4 + log_softmax over class axis
        logits = (jnp.dot(h.astype(jnp.bfloat16), w4_ref[...],
                          preferred_element_type=jnp.float32) + b4_ref[...])
        m = jnp.max(logits, axis=-1, keepdims=True)
        z = logits - m
        lse = jnp.log(jnp.sum(jnp.exp(z), axis=-1, keepdims=True))
        o_ref[...] = z - lse


def _const_spec(shape):
    # Whole-array block, same block for every grid step (resident in VMEM).
    return pl.BlockSpec(shape, lambda k: tuple(0 for _ in shape))


def classifer50_forward(x, params):
    """params: dict with w1..w4 ([in,out] bf16, BN pre-folded), b1..b4
    ([1,out] f32)."""
    B = x.shape[0]
    assert x.shape[1] == D_IN and D_IN % TK == 0
    n_k = D_IN // TK

    args = (
        x,
        params["w1"], params["b1"],
        params["w2"], params["b2"],
        params["w3"], params["b3"],
        params["w4"], params["b4"],
    )
    in_specs = [
        _const_spec((B, D_IN)),                         # x: resident, sliced in-kernel
        pl.BlockSpec((TK, 1024), lambda k: (k, 0)),     # w1: stream K tiles (bf16)
        _const_spec(params["b1"].shape),
        _const_spec(params["w2"].shape),
        _const_spec(params["b2"].shape),
        _const_spec(params["w3"].shape),
        _const_spec(params["b3"].shape),
        _const_spec(params["w4"].shape),
        _const_spec(params["b4"].shape),
    ]
    out_spec = pl.BlockSpec((B, N_CLASSES), lambda k: (0, 0))

    return pl.pallas_call(
        _mlp_kernel,
        out_shape=jax.ShapeDtypeStruct((B, N_CLASSES), jnp.float32),
        grid=(n_k,),
        in_specs=in_specs,
        out_specs=out_spec,
        scratch_shapes=[pltpu.VMEM((B, 1024), jnp.float32)],
        compiler_params=pltpu.CompilerParams(
            dimension_semantics=("arbitrary",),
        ),
    )(*args)


def init_params(key):
    """Deterministic init mirroring the PyTorch module, with BN (eval) folded
    into the Linear weights/biases: w' = w * scale, b' = b * scale + shift.
    Folding is done in f32; returns f32 params."""
    dims = [(D_IN, 1024), (1024, 256), (256, 64), (64, N_CLASSES)]
    params = {}
    keys = jax.random.split(key, len(dims))
    for i, ((fan_in, fan_out), k) in enumerate(zip(dims, keys), start=1):
        if i < 4:
            # kaiming_normal_(mode='fan_out', nonlinearity='relu')
            std = (2.0 / fan_out) ** 0.5
        else:
            # default nn.Linear init is uniform; use small normal (deterministic)
            std = (1.0 / fan_in) ** 0.5
        w = std * jax.random.normal(k, (fan_in, fan_out), dtype=jnp.float32)
        b = jnp.zeros((1, fan_out), dtype=jnp.float32)

        if i < 4:
            # BatchNorm1d eval-mode params: gamma=1, beta=0, mean=0, var=1
            gamma = jnp.ones((1, fan_out), dtype=jnp.float32)
            beta = jnp.zeros((1, fan_out), dtype=jnp.float32)
            running_mean = jnp.zeros((1, fan_out), dtype=jnp.float32)
            running_var = jnp.ones((1, fan_out), dtype=jnp.float32)
            scale = gamma / jnp.sqrt(running_var + BN_EPS)   # [1, out]
            shift = beta - running_mean * scale              # [1, out]
            w = w * scale          # broadcast over rows (out-feature axis)
            b = b * scale + shift

        params[f"w{i}"] = w
        params[f"b{i}"] = b
    return params


def quantize_params(params_f32):
    """Cast the (BN-folded) weights to bf16 for the kernel; keep biases f32."""
    q = {}
    for i in range(1, 5):
        q[f"w{i}"] = params_f32[f"w{i}"].astype(jnp.bfloat16)
        q[f"b{i}"] = params_f32[f"b{i}"]
    return q


def reference_forward(x, p_q):
    """Pure-JAX reference that mirrors the kernel's bf16 rounding points
    (weights bf16, activations cast to bf16 before each matmul, f32 accum)."""
    def bf(a):
        return a.astype(jnp.bfloat16).astype(jnp.float32)

    h = jnp.maximum(bf(x) @ p_q["w1"].astype(jnp.float32) + p_q["b1"], 0.0)
    h = jnp.maximum(bf(h) @ p_q["w2"].astype(jnp.float32) + p_q["b2"], 0.0)
    h = jnp.maximum(bf(h) @ p_q["w3"].astype(jnp.float32) + p_q["b3"], 0.0)
    logits = bf(h) @ p_q["w4"].astype(jnp.float32) + p_q["b4"]
    return jax.nn.log_softmax(logits, axis=1)


if __name__ == "__main__":
    key = jax.random.PRNGKey(0)
    k_x, k_p = jax.random.split(key)

    B = 2
    x = jax.random.normal(k_x, (B, D_IN), dtype=jnp.float32)
    params_f32 = init_params(k_p)
    params_q = quantize_params(params_f32)

    out = classifer50_forward(x, params_q)
    out = jax.block_until_ready(out)

    ref = reference_forward(x, params_q)
    assert out.shape == (B, N_CLASSES), out.shape
    assert jnp.allclose(out, ref, atol=1e-3, rtol=1e-3), "mismatch vs reference"

    print("KERNEL_OK")
</pallas_src>

<mosaic_0001>
module attributes {stable_mosaic.version = 11 : i64} {
  func.func @_mlp_kernel(%arg0: i32, %arg1: memref<2x4096xf32, #tpu.memory_space<vmem>>, %arg2: memref<2048x1024xbf16, #tpu.memory_space<vmem>>, %arg3: memref<1x1024xf32, #tpu.memory_space<vmem>>, %arg4: memref<1024x256xbf16, #tpu.memory_space<vmem>>, %arg5: memref<1x256xf32, #tpu.memory_space<vmem>>, %arg6: memref<256x64xbf16, #tpu.memory_space<vmem>>, %arg7: memref<1x64xf32, #tpu.memory_space<vmem>>, %arg8: memref<64x6xbf16, #tpu.memory_space<vmem>>, %arg9: memref<1x6xf32, #tpu.memory_space<vmem>>, %arg10: memref<2x6xf32, #tpu.memory_space<vmem>>, %arg11: memref<2x1024xf32, #tpu.memory_space<vmem>>) attributes {dimension_semantics = [#tpu.dimension_semantics<arbitrary>], iteration_bounds = array<i64: 2>, scalar_prefetch = 0 : i64, scratch_operands = 1 : i64, tpu.core_type = #tpu.core_type<tc>, window_params = [{pipeline_mode = #tpu.pipeline_mode<synchronous>, transform_indices = @transform_0, window_bounds = array<i64: 2, 4096>}, {transform_indices = @transform_1, window_bounds = array<i64: 2048, 1024>}, {pipeline_mode = #tpu.pipeline_mode<synchronous>, transform_indices = @transform_2, window_bounds = array<i64: 1, 1024>}, {pipeline_mode = #tpu.pipeline_mode<synchronous>, transform_indices = @transform_3, window_bounds = array<i64: 1024, 256>}, {pipeline_mode = #tpu.pipeline_mode<synchronous>, transform_indices = @transform_4, window_bounds = array<i64: 1, 256>}, {pipeline_mode = #tpu.pipeline_mode<synchronous>, transform_indices = @transform_5, window_bounds = array<i64: 256, 64>}, {pipeline_mode = #tpu.pipeline_mode<synchronous>, transform_indices = @transform_6, window_bounds = array<i64: 1, 64>}, {pipeline_mode = #tpu.pipeline_mode<synchronous>, transform_indices = @transform_7, window_bounds = array<i64: 64, 6>}, {pipeline_mode = #tpu.pipeline_mode<synchronous>, transform_indices = @transform_8, window_bounds = array<i64: 1, 6>}, {pipeline_mode = #tpu.pipeline_mode<synchronous>, transform_indices = @transform_9, window_bounds = array<i64: 2, 6>}]} {
    %c0_i32 = arith.constant 0 : i32
    %0 = arith.cmpi eq, %arg0, %c0_i32 : i32
    %1 = arith.extui %0 : i1 to i32
    %c0_i32_0 = arith.constant 0 : i32
    %2 = arith.cmpi ne, %1, %c0_i32_0 : i32
    scf.if %2 {
      %cst_8 = arith.constant 0.000000e+00 : f32
      %16 = vector.broadcast %cst_8 : f32 to vector<2x1024xf32>
      %c0_9 = arith.constant 0 : index
      %c0_10 = arith.constant 0 : index
      %17 = vector.load %arg11[%c0_9, %c0_10] : memref<2x1024xf32, #tpu.memory_space<vmem>>, vector<2x1024xf32>
      tpu.vector_store %arg11[%c0_9, %c0_10], %16 {strides = array<i32>} : memref<2x1024xf32, #tpu.memory_space<vmem>>, vector<2x1024xf32>,
    } else {
    }
    %c2048_i32 = arith.constant 2048 : i32
    %3 = arith.muli %arg0, %c2048_i32 : i32
    %4 = tpu.assume_multiple %3, 2048 : i32
    %c0 = arith.constant 0 : index
    %5 = arith.index_cast %4 : i32 to index
    %6 = vector.load %arg1[%c0, %5] : memref<2x4096xf32, #tpu.memory_space<vmem>>, vector<2x2048xf32>
    %7 = arith.truncf %6 : vector<2x2048xf32> to vector<2x2048xbf16>
    %c0_1 = arith.constant 0 : index
    %c0_2 = arith.constant 0 : index
    %8 = vector.load %arg11[%c0_1, %c0_2] : memref<2x1024xf32, #tpu.memory_space<vmem>>, vector<2x1024xf32>
    %c0_3 = arith.constant 0 : index
    %c0_4 = arith.constant 0 : index
    %9 = vector.load %arg2[%c0_3, %c0_4] : memref<2048x1024xbf16, #tpu.memory_space<vmem>>, vector<2048x1024xbf16>
    %cst = arith.constant dense<0.000000e+00> : vector<2x1024xf32>
    %10 = tpu.matmul %7, %9, %cst {dimension_numbers = #tpu.dot_dimension_numbers<[1], [0], [0], [1], [0, 0, 1, 1], [], []>} : vector<2x2048xbf16>, vector<2048x1024xbf16>, vector<2x1024xf32> -> vector<2x1024xf32>
    %11 = arith.addf %8, %10 : vector<2x1024xf32>
    %c0_5 = arith.constant 0 : index
    %c0_6 = arith.constant 0 : index
    %12 = vector.load %arg11[%c0_5, %c0_6] : memref<2x1024xf32, #tpu.memory_space<vmem>>, vector<2x1024xf32>
    tpu.vector_store %arg11[%c0_5, %c0_6], %11 {strides = array<i32>} : memref<2x1024xf32, #tpu.memory_space<vmem>>, vector<2x1024xf32>,
    %c1_i32 = arith.constant 1 : i32
    %13 = arith.cmpi eq, %arg0, %c1_i32 : i32
    %14 = arith.extui %13 : i1 to i32
    %c0_i32_7 = arith.constant 0 : i32
    %15 = arith.cmpi ne, %14, %c0_i32_7 : i32
    scf.if %15 {
      %c0_8 = arith.constant 0 : index
      %c0_9 = arith.constant 0 : index
      %16 = vector.load %arg11[%c0_8, %c0_9] : memref<2x1024xf32, #tpu.memory_space<vmem>>, vector<2x1024xf32>
      %c0_10 = arith.constant 0 : index
      %c0_11 = arith.constant 0 : index
      %17 = vector.load %arg3[%c0_10, %c0_11] : memref<1x1024xf32, #tpu.memory_space<vmem>>, vector<1x1024xf32>
      %18 = vector.broadcast %17 : vector<1x1024xf32> to vector<2x1024xf32>
      %19 = arith.addf %16, %18 : vector<2x1024xf32>
      %cst_12 = arith.constant 0.000000e+00 : f32
      %20 = vector.broadcast %cst_12 : f32 to vector<2x1024xf32>
      %21 = arith.maximumf %19, %20 : vector<2x1024xf32>
      %22 = arith.truncf %21 : vector<2x1024xf32> to vector<2x1024xbf16>
      %c0_13 = arith.constant 0 : index
      %c0_14 = arith.constant 0 : index
      %23 = vector.load %arg4[%c0_13, %c0_14] : memref<1024x256xbf16, #tpu.memory_space<vmem>>, vector<1024x256xbf16>
      %cst_15 = arith.constant dense<0.000000e+00> : vector<2x256xf32>
      %24 = tpu.matmul %22, %23, %cst_15 {dimension_numbers = #tpu.dot_dimension_numbers<[1], [0], [0], [1], [0, 0, 1, 1], [], []>} : vector<2x1024xbf16>, vector<1024x256xbf16>, vector<2x256xf32> -> vector<2x256xf32>
      %c0_16 = arith.constant 0 : index
      %c0_17 = arith.constant 0 : index
      %25 = vector.load %arg5[%c0_16, %c0_17] : memref<1x256xf32, #tpu.memory_space<vmem>>, vector<1x256xf32>
      %26 = vector.broadcast %25 : vector<1x256xf32> to vector<2x256xf32>
      %27 = arith.addf %24, %26 : vector<2x256xf32>
      %cst_18 = arith.constant 0.000000e+00 : f32
      %28 = vector.broadcast %cst_18 : f32 to vector<2x256xf32>
      %29 = arith.maximumf %27, %28 : vector<2x256xf32>
      %30 = arith.truncf %29 : vector<2x256xf32> to vector<2x256xbf16>
      %c0_19 = arith.constant 0 : index
      %c0_20 = arith.constant 0 : index
      %31 = vector.load %arg6[%c0_19, %c0_20] : memref<256x64xbf16, #tpu.memory_space<vmem>>, vector<256x64xbf16>
      %cst_21 = arith.constant dense<0.000000e+00> : vector<2x64xf32>
      %32 = tpu.matmul %30, %31, %cst_21 {dimension_numbers = #tpu.dot_dimension_numbers<[1], [0], [0], [1], [0, 0, 1, 1], [], []>} : vector<2x256xbf16>, vector<256x64xbf16>, vector<2x64xf32> -> vector<2x64xf32>
      %c0_22 = arith.constant 0 : index
      %c0_23 = arith.constant 0 : index
      %33 = vector.load %arg7[%c0_22, %c0_23] : memref<1x64xf32, #tpu.memory_space<vmem>>, vector<1x64xf32>
      %34 = vector.broadcast %33 : vector<1x64xf32> to vector<2x64xf32>
      %35 = arith.addf %32, %34 : vector<2x64xf32>
      %cst_24 = arith.constant 0.000000e+00 : f32
      %36 = vector.broadcast %cst_24 : f32 to vector<2x64xf32>
      %37 = arith.maximumf %35, %36 : vector<2x64xf32>
      %38 = arith.truncf %37 : vector<2x64xf32> to vector<2x64xbf16>
      %c0_25 = arith.constant 0 : index
      %c0_26 = arith.constant 0 : index
      %39 = vector.load %arg8[%c0_25, %c0_26] : memref<64x6xbf16, #tpu.memory_space<vmem>>, vector<64x6xbf16>
      %cst_27 = arith.constant dense<0.000000e+00> : vector<2x6xf32>
      %40 = tpu.matmul %38, %39, %cst_27 {dimension_numbers = #tpu.dot_dimension_numbers<[1], [0], [0], [1], [0, 0, 1, 1], [], []>} : vector<2x64xbf16>, vector<64x6xbf16>, vector<2x6xf32> -> vector<2x6xf32>
      %c0_28 = arith.constant 0 : index
      %c0_29 = arith.constant 0 : index
      %41 = vector.load %arg9[%c0_28, %c0_29] : memref<1x6xf32, #tpu.memory_space<vmem>>, vector<1x6xf32>
      %42 = vector.broadcast %41 : vector<1x6xf32> to vector<2x6xf32>
      %43 = arith.addf %40, %42 : vector<2x6xf32>
      %cst_30 = arith.constant dense<0xFF800000> : vector<2xf32>
      %44 = vector.multi_reduction <maximumf>, %43, %cst_30 [1] : vector<2x6xf32> to vector<2xf32>
      %45 = vector.shape_cast %44 : vector<2xf32> to vector<2x1xf32>
      %46 = vector.broadcast %45 : vector<2x1xf32> to vector<2x6xf32>
      %47 = arith.subf %43, %46 : vector<2x6xf32>
      %48 = math.exp %47 : vector<2x6xf32>
      %cst_31 = arith.constant dense<0.000000e+00> : vector<2xf32>
      %49 = vector.multi_reduction <add>, %48, %cst_31 [1] : vector<2x6xf32> to vector<2xf32>
      %50 = vector.shape_cast %49 : vector<2xf32> to vector<2x1xf32>
      %51 = math.log %50 : vector<2x1xf32>
      %52 = vector.broadcast %51 : vector<2x1xf32> to vector<2x6xf32>
      %53 = arith.subf %47, %52 : vector<2x6xf32>
      %c0_32 = arith.constant 0 : index
      %c0_33 = arith.constant 0 : index
      %54 = vector.load %arg10[%c0_32, %c0_33] : memref<2x6xf32, #tpu.memory_space<vmem>>, vector<2x6xf32>
      tpu.vector_store %arg10[%c0_32, %c0_33], %53 {strides = array<i32>} : memref<2x6xf32, #tpu.memory_space<vmem>>, vector<2x6xf32>,
    } else {
    }
    return
  }
  func.func @transform_0(%arg0: i32) -> (i32, i32) {
    %c0_i32 = arith.constant 0 : i32
    %c0_i32_0 = arith.constant 0 : i32
    %c0_i32_1 = arith.constant 0 : i32
    return %c0_i32, %c0_i32_0 : i32, i32
  }
  func.func @transform_1(%arg0: i32) -> (i32, i32) {
    %c0_i32 = arith.constant 0 : i32
    %c0_i32_0 = arith.constant 0 : i32
    return %arg0, %c0_i32 : i32, i32
  }
  func.func @transform_2(%arg0: i32) -> (i32, i32) {
    %c0_i32 = arith.constant 0 : i32
    %c0_i32_0 = arith.constant 0 : i32
    %c0_i32_1 = arith.constant 0 : i32
    return %c0_i32, %c0_i32_0 : i32, i32
  }
  func.func @transform_3(%arg0: i32) -> (i32, i32) {
    %c0_i32 = arith.constant 0 : i32
    %c0_i32_0 = arith.constant 0 : i32
    %c0_i32_1 = arith.constant 0 : i32
    return %c0_i32, %c0_i32_0 : i32, i32
  }
  func.func @transform_4(%arg0: i32) -> (i32, i32) {
    %c0_i32 = arith.constant 0 : i32
    %c0_i32_0 = arith.constant 0 : i32
    %c0_i32_1 = arith.constant 0 : i32
    return %c0_i32, %c0_i32_0 : i32, i32
  }
  func.func @transform_5(%arg0: i32) -> (i32, i32) {
    %c0_i32 = arith.constant 0 : i32
    %c0_i32_0 = arith.constant 0 : i32
    %c0_i32_1 = arith.constant 0 : i32
    return %c0_i32, %c0_i32_0 : i32, i32
  }
  func.func @transform_6(%arg0: i32) -> (i32, i32) {
    %c0_i32 = arith.constant 0 : i32
    %c0_i32_0 = arith.constant 0 : i32
    %c0_i32_1 = arith.constant 0 : i32
    return %c0_i32, %c0_i32_0 : i32, i32
  }
  func.func @transform_7(%arg0: i32) -> (i32, i32) {
    %c0_i32 = arith.constant 0 : i32
    %c0_i32_0 = arith.constant 0 : i32
    %c0_i32_1 = arith.constant 0 : i32
    return %c0_i32, %c0_i32_0 : i32, i32
  }
  func.func @transform_8(%arg0: i32) -> (i32, i32) {
    %c0_i32 = arith.constant 0 : i32
    %c0_i32_0 = arith.constant 0 : i32
    %c0_i32_1 = arith.constant 0 : i32
    return %c0_i32, %c0_i32_0 : i32, i32
  }
  func.func @transform_9(%arg0: i32) -> (i32, i32) {
    %c0_i32 = arith.constant 0 : i32
    %c0_i32_0 = arith.constant 0 : i32
    %c0_i32_1 = arith.constant 0 : i32
    return %c0_i32, %c0_i32_0 : i32, i32
  }
}

</mosaic_0001>

<llo_original>
// kernel: tpu_custom_call.1
$region0: #{tpu_custom_call.1}
  #allocation0 [shape = 'u32[]', space=smem, size = 0x4, offset = 0x4, fixed_abs, tag = 'smem constant byte address 0x4 - core index']
  #allocation1 [shape = 'u32[144,128]{1,0:T(1,128)}', space=vmem, size = 0x12000, scoped, tag = 'internal scratch']
  #allocation2 [shape = 'f32[2,1024]{1,0:T(2,128)}', space=vmem, size = 0x2000, scoped, tag = 'scratch operand']
  %s0 = inlined_call_operand.hbm [shape: f32[2,4096], index: 0, kind: input, shape index: {}]
  %s1 = inlined_call_operand.hbm [shape: bf16[4096,1024], index: 1, kind: input, shape index: {}]
  %s2 = inlined_call_operand.hbm [shape: f32[1,1024], index: 2, kind: input, shape index: {}]
  %s3 = inlined_call_operand.hbm [shape: bf16[1024,256], index: 3, kind: input, shape index: {}]
  %s4 = inlined_call_operand.hbm [shape: f32[1,256], index: 4, kind: input, shape index: {}]
  %s5 = inlined_call_operand.vmem [shape: bf16[256,64], index: 5, kind: input, shape index: {}]
  %s6 = inlined_call_operand.hbm [shape: f32[1,64], index: 6, kind: input, shape index: {}]
  %s7 = inlined_call_operand.vmem [shape: bf16[64,6], index: 7, kind: input, shape index: {}]
  %s8 = inlined_call_operand.hbm [shape: f32[1,6], index: 8, kind: input, shape index: {}]
  %s9 = inlined_call_operand.hbm [shape: f32[2,6], index: 9, kind: output, shape index: {}]
  %s10 = sld [smem:[#allocation0]]
  $region105: #{tpu_custom_call.1} parent=0
    _
  %s12 = ssub.s32 1, %s10
  %s13 = scalar_select 0, %s12, %s10
  $region1: #{tpu_custom_call.1} parent=0
    #allocation3 [shape = 'u8[32768]{0}', space=vmem, size = 0x8000, scoped, tag = 'input window, operand 0, single buffered']
    #allocation4 [shape = 's32[2]{0}', space=sflag, size = 0x8, scoped, tag = 'scoped memory for tpu_custom_call.1']
    #allocation5 [shape = 's32[2]{0}', space=sflag, size = 0x8, scoped, tag = 'scoped memory for tpu_custom_call.1']
    #allocation6 [shape = 'u8[8388608]{0}', space=vmem, size = 0x800000, scoped, tag = 'input window, operand 1']
    #allocation7 [shape = 's32[2]{0}', space=sflag, size = 0x8, scoped, tag = 'scoped memory for tpu_custom_call.1']
    #allocation8 [shape = 'u8[4096]{0}', space=vmem, size = 0x1000, scoped, tag = 'input window, operand 2, single buffered']
    #allocation9 [shape = 'u8[524288]{0}', space=vmem, size = 0x80000, scoped, tag = 'input window, operand 3, single buffered']
    #allocation10 [shape = 's32[1]{0}', space=sflag, size = 0x4, scoped, tag = 'scoped memory for tpu_custom_call.1']
    #allocation11 [shape = 'u8[1024]{0}', space=vmem, size = 0x400, scoped, tag = 'input window, operand 4, single buffered']
    #allocation12 [shape = 'u8[512]{0}', space=vmem, size = 0x400, scoped, tag = 'input window, operand 6, single buffered']
    #allocation13 [shape = 's32[1]{0}', space=sflag, size = 0x4, scoped, tag = 'scoped memory for tpu_custom_call.1']
    #allocation14 [shape = 'u8[512]{0}', space=vmem, size = 0x400, scoped, tag = 'input window, operand 8, single buffered']
    #allocation15 [shape = 'u8[1024]{0}', space=vmem, size = 0x400, scoped, tag = 'output window, operand 0, single buffered']
    %14 = vsyncpa [#allocation4], 0
    %15 = vsyncpa [#allocation7], 0
    %s16 = scalar_lea.sflag [#allocation7], 1
    %17 = vsyncpa %s16, 0
    %18 = vsyncpa [#allocation10], 0
    %19 = vsyncpa [#allocation13], 0
    %20 = vsyncpa [#allocation5], 0
    loop: start=0, step=1, limit=4
    $region2: #{tpu_custom_call.1} parent=1 // loop_pre_header
      _
    $region3: #{tpu_custom_call.1} parent=1 // loop_header
      %s22 = sphi 0, %s26
      %p23 = scmp.ge.s32.totalorder %s22, 4
      %s30 = sphi 0, %s30
      %s32 = sphi 0, %s30
      %s33 = sphi 0, %s32
      %s47 = sphi 0, %s33
      %s53 = sphi 0, %s55
      %s56 = sphi 0, %s53
      %s57 = sphi 0, %s56
      %s73 = sphi 0, %s57
      %s77 = sphi 0, %s77
      %s79 = sphi 0, %s77
      %s80 = sphi 0, %s79
      %s94 = sphi 0, %s80
      %s98 = sphi 0, %s98
      %s100 = sphi 0, %s98
      %s101 = sphi 0, %s100
      %s115 = sphi 0, %s101
      %s119 = sphi 0, %s119
      %s121 = sphi 0, %s119
      %s122 = sphi 0, %s121
      %s136 = sphi 0, %s122
      %s140 = sphi 0, %s140
      %s142 = sphi 0, %s140
      %s143 = sphi 0, %s142
      %s157 = sphi 0, %s143
      %s161 = sphi 0, %s161
      %s163 = sphi 0, %s161
      %s164 = sphi 0, %s163
      %s178 = sphi 0, %s164
      %s182 = sphi 0, %s182
      %s184 = sphi 0, %s182
      %s185 = sphi 0, %s184
      %s199 = sphi 0, %s185
      %s203 = sphi 0, %s203
      %s205 = sphi 0, %s203
      %s206 = sphi 0, %s205
      %s220 = sphi 0, %s206
      %s224 = sphi 0, %s224
      %s226 = sphi 0, %s224
      %s227 = sphi 0, %s226
      %s241 = sphi 0, %s227
    $region4: #{tpu_custom_call.1} parent=1 // loop_header_branch
      %25 = sbr.rel (%p23) target = $region8
    $region5: #{tpu_custom_call.1} parent=1 // loop_body
      %s27 = ssub.s32 %s22, 1
      %s28 = ssub.s32 %s22, 2
      %s29 = sadd.s32 %s22, 1
      %s31 = sadd.s32 %s30, 1
      %p34 = scmp.eq.s32.totalorder %s22, 1
      %p35 = scmp.ne.s32.totalorder %s30, %s32
      %p36 = scmp.eq.s32.totalorder %s22, 0
      %p37 = por %p35, %p36
      %p38 = scmp.ne.s32.totalorder %s30, %s32
      %p39 = scmp.eq.s32.totalorder %s27, 1
      %p40 = por %p38, %p39
      %p41 = scmp.ne.s32.totalorder %s32, %s33
      %p42 = scmp.eq.s32.totalorder %s27, 0
      %p43 = por %p41, %p42
      %p44 = scmp.ne.s32.totalorder %s32, %s33
      %p45 = scmp.eq.s32.totalorder %s28, 1
      %p46 = por %p44, %p45
      %p48 = scmp.ne.s32.totalorder %s33, %s47
      %p49 = scmp.eq.s32.totalorder %s28, 0
      %p50 = por %p48, %p49
      %s51 = ssub.s32 %s22, %s29
      %p52 = scmp.eq.s32.totalorder %s51, 0
      %s54 = sadd.s32 %s53, 1
      %s55 = scalar_select %p52, %s53, %s54
      %p58 = pneg %p52
      %p59 = scmp.eq.s32.totalorder %s22, 1
      %p60 = por %p58, %p59
      %p61 = scmp.ne.s32.totalorder %s53, %s56
      %p62 = scmp.eq.s32.totalorder %s22, 0
      %p63 = por %p61, %p62
      %p64 = scmp.ne.s32.totalorder %s53, %s56
      %p65 = scmp.eq.s32.totalorder %s27, 1
      %p66 = por %p64, %p65
      %p67 = scmp.ne.s32.totalorder %s56, %s57
      %p68 = scmp.eq.s32.totalorder %s27, 0
      %p69 = por %p67, %p68
      %p70 = scmp.ne.s32.totalorder %s56, %s57
      %p71 = scmp.eq.s32.totalorder %s28, 1
      %p72 = por %p70, %p71
      %p74 = scmp.ne.s32.totalorder %s57, %s73
      %p75 = scmp.eq.s32.totalorder %s28, 0
      %p76 = por %p74, %p75
      %s78 = sadd.s32 %s77, 1
      %p81 = scmp.eq.s32.totalorder %s22, 1
      %p82 = scmp.ne.s32.totalorder %s77, %s79
      %p83 = scmp.eq.s32.totalorder %s22, 0
      %p84 = por %p82, %p83
      %p85 = scmp.ne.s32.totalorder %s77, %s79
      %p86 = scmp.eq.s32.totalorder %s27, 1
      %p87 = por %p85, %p86
      %p88 = scmp.ne.s32.totalorder %s79, %s80
      %p89 = scmp.eq.s32.totalorder %s27, 0
      %p90 = por %p88, %p89
      %p91 = scmp.ne.s32.totalorder %s79, %s80
      %p92 = scmp.eq.s32.totalorder %s28, 1
      %p93 = por %p91, %p92
      %p95 = scmp.ne.s32.totalorder %s80, %s94
      %p96 = scmp.eq.s32.totalorder %s28, 0
      %p97 = por %p95, %p96
      %s99 = sadd.s32 %s98, 1
      %p102 = scmp.eq.s32.totalorder %s22, 1
      %p103 = scmp.ne.s32.totalorder %s98, %s100
      %p104 = scmp.eq.s32.totalorder %s22, 0
      %p105 = por %p103, %p104
      %p106 = scmp.ne.s32.totalorder %s98, %s100
      %p107 = scmp.eq.s32.totalorder %s27, 1
      %p108 = por %p106, %p107
      %p109 = scmp.ne.s32.totalorder %s100, %s101
      %p110 = scmp.eq.s32.totalorder %s27, 0
      %p111 = por %p109, %p110
      %p112 = scmp.ne.s32.totalorder %s100, %s101
      %p113 = scmp.eq.s32.totalorder %s28, 1
      %p114 = por %p112, %p113
      %p116 = scmp.ne.s32.totalorder %s101, %s115
      %p117 = scmp.eq.s32.totalorder %s28, 0
      %p118 = por %p116, %p117
      %s120 = sadd.s32 %s119, 1
      %p123 = scmp.eq.s32.totalorder %s22, 1
      %p124 = scmp.ne.s32.totalorder %s119, %s121
      %p125 = scmp.eq.s32.totalorder %s22, 0
      %p126 = por %p124, %p125
      %p127 = scmp.ne.s32.totalorder %s119, %s121
      %p128 = scmp.eq.s32.totalorder %s27, 1
      %p129 = por %p127, %p128
      %p130 = scmp.ne.s32.totalorder %s121, %s122
      %p131 = scmp.eq.s32.totalorder %s27, 0
      %p132 = por %p130, %p131
      %p133 = scmp.ne.s32.totalorder %s121, %s122
      %p134 = scmp.eq.s32.totalorder %s28, 1
      %p135 = por %p133, %p134
      %p137 = scmp.ne.s32.totalorder %s122, %s136
      %p138 = scmp.eq.s32.totalorder %s28, 0
      %p139 = por %p137, %p138
      %s141 = sadd.s32 %s140, 1
      %p144 = scmp.eq.s32.totalorder %s22, 1
      %p145 = scmp.ne.s32.totalorder %s140, %s142
      %p146 = scmp.eq.s32.totalorder %s22, 0
      %p147 = por %p145, %p146
      %p148 = scmp.ne.s32.totalorder %s140, %s142
      %p149 = scmp.eq.s32.totalorder %s27, 1
      %p150 = por %p148, %p149
      %p151 = scmp.ne.s32.totalorder %s142, %s143
      %p152 = scmp.eq.s32.totalorder %s27, 0
      %p153 = por %p151, %p152
      %p154 = scmp.ne.s32.totalorder %s142, %s143
      %p155 = scmp.eq.s32.totalorder %s28, 1
      %p156 = por %p154, %p155
      %p158 = scmp.ne.s32.totalorder %s143, %s157
      %p159 = scmp.eq.s32.totalorder %s28, 0
      %p160 = por %p158, %p159
      %s162 = sadd.s32 %s161, 1
      %p165 = scmp.eq.s32.totalorder %s22, 1
      %p166 = scmp.ne.s32.totalorder %s161, %s163
      %p167 = scmp.eq.s32.totalorder %s22, 0
      %p168 = por %p166, %p167
      %p169 = scmp.ne.s32.totalorder %s161, %s163
      %p170 = scmp.eq.s32.totalorder %s27, 1
      %p171 = por %p169, %p170
      %p172 = scmp.ne.s32.totalorder %s163, %s164
      %p173 = scmp.eq.s32.totalorder %s27, 0
      %p174 = por %p172, %p173
      %p175 = scmp.ne.s32.totalorder %s163, %s164
      %p176 = scmp.eq.s32.totalorder %s28, 1
      %p177 = por %p175, %p176
      %p179 = scmp.ne.s32.totalorder %s164, %s178
      %p180 = scmp.eq.s32.totalorder %s28, 0
      %p181 = por %p179, %p180
      %s183 = sadd.s32 %s182, 1
      %p186 = scmp.eq.s32.totalorder %s22, 1
      %p187 = scmp.ne.s32.totalorder %s182, %s184
      %p188 = scmp.eq.s32.totalorder %s22, 0
      %p189 = por %p187, %p188
      %p190 = scmp.ne.s32.totalorder %s182, %s184
      %p191 = scmp.eq.s32.totalorder %s27, 1
      %p192 = por %p190, %p191
      %p193 = scmp.ne.s32.totalorder %s184, %s185
      %p194 = scmp.eq.s32.totalorder %s27, 0
      %p195 = por %p193, %p194
      %p196 = scmp.ne.s32.totalorder %s184, %s185
      %p197 = scmp.eq.s32.totalorder %s28, 1
      %p198 = por %p196, %p197
      %p200 = scmp.ne.s32.totalorder %s185, %s199
      %p201 = scmp.eq.s32.totalorder %s28, 0
      %p202 = por %p200, %p201
      %s204 = sadd.s32 %s203, 1
      %p207 = scmp.eq.s32.totalorder %s22, 1
      %p208 = scmp.ne.s32.totalorder %s203, %s205
      %p209 = scmp.eq.s32.totalorder %s22, 0
      %p210 = por %p208, %p209
      %p211 = scmp.ne.s32.totalorder %s203, %s205
      %p212 = scmp.eq.s32.totalorder %s27, 1
      %p213 = por %p211, %p212
      %p214 = scmp.ne.s32.totalorder %s205, %s206
      %p215 = scmp.eq.s32.totalorder %s27, 0
      %p216 = por %p214, %p215
      %p217 = scmp.ne.s32.totalorder %s205, %s206
      %p218 = scmp.eq.s32.totalorder %s28, 1
      %p219 = por %p217, %p218
      %p221 = scmp.ne.s32.totalorder %s206, %s220
      %p222 = scmp.eq.s32.totalorder %s28, 0
      %p223 = por %p221, %p222
      %s225 = sadd.s32 %s224, 1
      %p228 = scmp.eq.s32.totalorder %s22, 1
      %p229 = scmp.ne.s32.totalorder %s224, %s226
      %p230 = scmp.eq.s32.totalorder %s22, 0
      %p231 = por %p229, %p230
      %p232 = scmp.ne.s32.totalorder %s224, %s226
      %p233 = scmp.eq.s32.totalorder %s27, 1
      %p234 = por %p232, %p233
      %p235 = scmp.ne.s32.totalorder %s226, %s227
      %p236 = scmp.eq.s32.totalorder %s27, 0
      %p237 = por %p235, %p236
      %p238 = scmp.ne.s32.totalorder %s226, %s227
      %p239 = scmp.eq.s32.totalorder %s28, 1
      %p240 = por %p238, %p239
      %p242 = scmp.ne.s32.totalorder %s227, %s241
      %p243 = scmp.eq.s32.totalorder %s28, 0
      %p244 = por %p242, %p243
      %p245 = scmp.le.s32.totalorder 1, %s22
      %p246 = scmp.lt.s32.totalorder %s22, 3
      %p247 = pnand %p245, %p246
      %p248 = pneg %p247
      // Predicated region
      $region9: #{tpu_custom_call.1} parent=5 // pred_check
        _
      $region10: #{tpu_custom_call.1} parent=5 // pred_check_branch
        %250 = sbr.rel (%p247) target = $region12
      $region11: #{tpu_custom_call.1} parent=5 // pred_region
        %s251 = ssub.s32 %s22, 1
        // Predicated region
        $region13: #{tpu_custom_call.1} parent=11 // pred_check
          %p252 = pneg %p43
        $region14: #{tpu_custom_call.1} parent=11 // pred_check_branch
          %254 = sbr.rel (%p252) target = $region16
        $region15: #{tpu_custom_call.1} parent=11 // pred_region
          %s256 = ssub.s32 1024, 1024
          %257 = vsyncadd [#allocation4], %s256
          %s259 = sshll.u32 [#allocation3], 4
          %s260 = int_to_ptr.vmem [resolvable:$true] %s259
          %262 = dma.hbm_to_vmem [thread:$0]  %s0, 1024, %s260, [#allocation4]
        $region16: #{tpu_custom_call.1} parent=11 // pred_fallthru
          _
        // Predicated region
        $region17: #{tpu_custom_call.1} parent=11 // pred_check
          %p263 = pneg %p90
        $region18: #{tpu_custom_call.1} parent=11 // pred_check_branch
          %265 = sbr.rel (%p263) target = $region20
        $region19: #{tpu_custom_call.1} parent=11 // pred_region
          %s267 = ssub.s32 128, 128
          %268 = vsyncadd [#allocation7], %s267
          %s270 = sshll.u32 [#allocation8], 4
          %s271 = int_to_ptr.vmem [resolvable:$true] %s270
          %273 = dma.hbm_to_vmem [thread:$0]  %s2, 128, %s271, [#allocation7]
        $region20: #{tpu_custom_call.1} parent=11 // pred_fallthru
          _
        // Predicated region
        $region21: #{tpu_custom_call.1} parent=11 // pred_check
          %p274 = pneg %p111
        $region22: #{tpu_custom_call.1} parent=11 // pred_check_branch
          %276 = sbr.rel (%p274) target = $region24
        $region23: #{tpu_custom_call.1} parent=11 // pred_region
          %s278 = ssub.s32 16384, 16384
          %279 = vsyncadd [#allocation10], %s278
          %s280 = sshll.u32 [#allocation9], 4
          %s281 = int_to_ptr.vmem [resolvable:$true] %s280
          %286 = dma.hbm_to_vmem [thread:$0]  %s3, 16384, %s281, [#allocation10], 128, 128, 8
        $region24: #{tpu_custom_call.1} parent=11 // pred_fallthru
          _
        // Predicated region
        $region25: #{tpu_custom_call.1} parent=11 // pred_check
          %p287 = pneg %p132
        $region26: #{tpu_custom_call.1} parent=11 // pred_check_branch
          %289 = sbr.rel (%p287) target = $region28
        $region27: #{tpu_custom_call.1} parent=11 // pred_region
          %s291 = ssub.s32 32, 32
          %292 = vsyncadd [#allocation10], %s291
          %s294 = sshll.u32 [#allocation11], 4
          %s295 = int_to_ptr.vmem [resolvable:$true] %s294
          %297 = dma.hbm_to_vmem [thread:$0]  %s4, 32, %s295, [#allocation10]
        $region28: #{tpu_custom_call.1} parent=11 // pred_fallthru
          _
        // Predicated region
        $region29: #{tpu_custom_call.1} parent=11 // pred_check
          %p298 = pneg %p153
        $region30: #{tpu_custom_call.1} parent=11 // pred_check_branch
          %300 = sbr.rel (%p298) target = $region32
        $region31: #{tpu_custom_call.1} parent=11 // pred_region
          _
        $region32: #{tpu_custom_call.1} parent=11 // pred_fallthru
          _
        // Predicated region
        $region33: #{tpu_custom_call.1} parent=11 // pred_check
          %p301 = pneg %p174
        $region34: #{tpu_custom_call.1} parent=11 // pred_check_branch
          %303 = sbr.rel (%p301) target = $region36
        $region35: #{tpu_custom_call.1} parent=11 // pred_region
          %s305 = ssub.s32 16, 16
          %306 = vsyncadd [#allocation13], %s305
          %s308 = sshll.u32 [#allocation12], 4
          %s309 = int_to_ptr.vmem [resolvable:$true] %s308
          %311 = dma.hbm_to_vmem [thread:$0]  %s6, 16, %s309, [#allocation13]
        $region36: #{tpu_custom_call.1} parent=11 // pred_fallthru
          _
        // Predicated region
        $region37: #{tpu_custom_call.1} parent=11 // pred_check
          %p312 = pneg %p195
        $region38: #{tpu_custom_call.1} parent=11 // pred_check_branch
          %314 = sbr.rel (%p312) target = $region40
        $region39: #{tpu_custom_call.1} parent=11 // pred_region
          _
        $region40: #{tpu_custom_call.1} parent=11 // pred_fallthru
          _
        // Predicated region
        $region41: #{tpu_custom_call.1} parent=11 // pred_check
          %p315 = pneg %p216
        $region42: #{tpu_custom_call.1} parent=11 // pred_check_branch
          %317 = sbr.rel (%p315) target = $region44
        $region43: #{tpu_custom_call.1} parent=11 // pred_region
          %s319 = ssub.s32 16, 16
          %320 = vsyncadd [#allocation13], %s319
          %s322 = sshll.u32 [#allocation14], 4
          %s323 = int_to_ptr.vmem [resolvable:$true] %s322
          %325 = dma.hbm_to_vmem [thread:$0]  %s8, 16, %s323, [#allocation13]
        $region44: #{tpu_custom_call.1} parent=11 // pred_fallthru
          _
      $region12: #{tpu_custom_call.1} parent=5 // pred_fallthru
        _
      %p326 = scmp.lt.s32.totalorder %s22, 2
      // Predicated region
      $region45: #{tpu_custom_call.1} parent=5 // pred_check
        %p327 = pneg %p326
      $region46: #{tpu_custom_call.1} parent=5 // pred_check_branch
        %329 = sbr.rel (%p327) target = $region48
      $region47: #{tpu_custom_call.1} parent=5 // pred_region
        // Predicated region
        $region49: #{tpu_custom_call.1} parent=47 // pred_check
          %p330 = pneg %p63
        $region50: #{tpu_custom_call.1} parent=47 // pred_check_branch
          %332 = sbr.rel (%p330) target = $region52
        $region51: #{tpu_custom_call.1} parent=47 // pred_region
          %s333 = sand.u32 %s22, 1
          %s334 = scalar_lea.sflag [#allocation7], %s333
          %s335 = sand.u32 %s53, 1
          %s336 = smul.addr %s335, 8192
          %s337 = scalar_lea.vmem [#allocation6], %s336
          %s338 = smul.u32 256, %s22
          %s340 = ssub.s32 131072, 131072
          %341 = vsyncadd %s334, %s340
          %s342 = smul.addr %s338, 8
          %s343 = smul.addr %s342, 64
          %s344 = scalar_lea.hbm %s1, %s343
          %s345 = sshll.u32 %s337, 4
          %s346 = int_to_ptr.vmem [resolvable:$true] %s345
          %351 = dma.hbm_to_vmem [thread:$0]  %s344, 131072, %s346, %s334, 512, 512, 32
        $region52: #{tpu_custom_call.1} parent=47 // pred_fallthru
          _
      $region48: #{tpu_custom_call.1} parent=5 // pred_fallthru
        _
      %p352 = scmp.le.s32.totalorder 1, %s22
      %p353 = scmp.lt.s32.totalorder %s22, 3
      %p354 = pnand %p352, %p353
      %p355 = pneg %p354
      // Predicated region
      $region53: #{tpu_custom_call.1} parent=5 // pred_check
        _
      $region54: #{tpu_custom_call.1} parent=5 // pred_check_branch
        %357 = sbr.rel (%p354) target = $region56
      $region55: #{tpu_custom_call.1} parent=5 // pred_region
        %s358 = ssub.s32 %s22, 1
        // Predicated region
        $region57: #{tpu_custom_call.1} parent=55 // pred_check
          %p359 = pneg %p43
        $region58: #{tpu_custom_call.1} parent=55 // pred_check_branch
          %361 = sbr.rel (%p359) target = $region60
        $region59: #{tpu_custom_call.1} parent=55 // pred_region
          %362 = dma.done [#allocation4], 1024
        $region60: #{tpu_custom_call.1} parent=55 // pred_fallthru
          _
        %s363 = sand.u32 %s27, 1
        %s364 = scalar_lea.sflag [#allocation7], %s363
        %s365 = sand.u32 %s56, 1
        %s366 = smul.addr %s365, 8192
        %s367 = scalar_lea.vmem [#allocation6], %s366
        // Predicated region
        $region61: #{tpu_custom_call.1} parent=55 // pred_check
          %p368 = pneg %p69
        $region62: #{tpu_custom_call.1} parent=55 // pred_check_branch
          %370 = sbr.rel (%p368) target = $region64
        $region63: #{tpu_custom_call.1} parent=55 // pred_region
          %371 = dma.done %s364, 131072
        $region64: #{tpu_custom_call.1} parent=55 // pred_fallthru
          _
        // Predicated region
        $region65: #{tpu_custom_call.1} parent=55 // pred_check
          %p372 = pneg %p90
        $region66: #{tpu_custom_call.1} parent=55 // pred_check_branch
          %374 = sbr.rel (%p372) target = $region68
        $region67: #{tpu_custom_call.1} parent=55 // pred_region
          %375 = dma.done [#allocation7], 128
        $region68: #{tpu_custom_call.1} parent=55 // pred_fallthru
          _
        // Predicated region
        $region69: #{tpu_custom_call.1} parent=55 // pred_check
          %p376 = pneg %p111
        $region70: #{tpu_custom_call.1} parent=55 // pred_check_branch
          %378 = sbr.rel (%p376) target = $region72
        $region71: #{tpu_custom_call.1} parent=55 // pred_region
          %379 = dma.done [#allocation10], 16384
        $region72: #{tpu_custom_call.1} parent=55 // pred_fallthru
          _
        // Predicated region
        $region73: #{tpu_custom_call.1} parent=55 // pred_check
          %p380 = pneg %p132
        $region74: #{tpu_custom_call.1} parent=55 // pred_check_branch
          %382 = sbr.rel (%p380) target = $region76
        $region75: #{tpu_custom_call.1} parent=55 // pred_region
          %383 = dma.done [#allocation10], 32
        $region76: #{tpu_custom_call.1} parent=55 // pred_fallthru
          _
        // Predicated region
        $region77: #{tpu_custom_call.1} parent=55 // pred_check
          %p384 = pneg %p174
        $region78: #{tpu_custom_call.1} parent=55 // pred_check_branch
          %386 = sbr.rel (%p384) target = $region80
        $region79: #{tpu_custom_call.1} parent=55 // pred_region
          %387 = dma.done [#allocation13], 16
        $region80: #{tpu_custom_call.1} parent=55 // pred_fallthru
          _
        // Predicated region
        $region81: #{tpu_custom_call.1} parent=55 // pred_check
          %p388 = pneg %p216
        $region82: #{tpu_custom_call.1} parent=55 // pred_check_branch
          %390 = sbr.rel (%p388) target = $region84
        $region83: #{tpu_custom_call.1} parent=55 // pred_region
          %391 = dma.done [#allocation13], 16
        $region84: #{tpu_custom_call.1} parent=55 // pred_fallthru
          _
        %p392 = pneg %p43
        %p393 = pneg %p40
        %s394 = sand.u32 %s27, 1
        %s395 = scalar_lea.sflag [#allocation7], %s394
        %s396 = sand.u32 %s56, 1
        %s397 = smul.addr %s396, 8192
        %s398 = scalar_lea.vmem [#allocation6], %s397
        %p399 = pneg %p69
        %p400 = pneg %p66
        %p401 = pneg %p90
        %p402 = pneg %p87
        %p403 = pneg %p111
        %p404 = pneg %p108
        %p405 = pneg %p132
        %p406 = pneg %p129
        %p407 = pneg %p153
        %p408 = pneg %p150
        %p409 = pneg %p174
        %p410 = pneg %p171
        %p411 = pneg %p195
        %p412 = pneg %p192
        %p413 = pneg %p216
        %p414 = pneg %p213
        %p415 = pneg %p237
        %p416 = pneg %p234
        %s417 = smul.u32 256, %s27
        %p419 = scmp.eq.s32.totalorder %s27, 0
        // Predicated region
        $region85: #{tpu_custom_call.1} parent=55 // pred_check
          %p420 = pneg %p419
        $region86: #{tpu_custom_call.1} parent=55 // pred_check_branch
          %422 = sbr.rel (%p420) target = $region88
        $region87: #{tpu_custom_call.1} parent=55 // pred_region
          %423 = vst [vmem:[#allocation2] sm:$0xff] 0.0
          %424 = vst [vmem:[#allocation2 + $0x8] sm:$0xff] 0.0
        $region88: #{tpu_custom_call.1} parent=55 // pred_fallthru
          _
        %s425 = smul.u32 %s27, 2048
        %s426 = sshra.s32 %s425, 7
        %s427 = sand.u32 %s425, 127
        %s428 = smul.addr %s426, 2
        %s429 = scalar_lea.vmem [#allocation3], %s428
        %v430 = vld [vmem:[%s429] sm:$0xff]
        %v431 = vld [vmem:[%s429 + $0x8] sm:$0xff]
        %v432 = vld [vmem:[%s429 + $0x10] sm:$0xff]
        %v433 = vld [vmem:[%s429 + $0x18] sm:$0xff]
        %v438 = vcombine.high %v430, %v430
        %v440 = vunpack.c.l.s4 1983009808
        %v441 = vunpack.c.0.s8 %v440
        %v442 = vlaneseq
        %v443 = vshrl.u32 %v442, 7
        %v444 = vsub.s32 %v441, %v443
        %v445 = vrot.slane %v430, %v444
        %v447 = vunpack.c.l.s4 1983009808
        %v448 = vunpack.c.0.s8 %v447
        %v449 = vlaneseq
        %v450 = vshrl.u32 %v449, 7
        %v451 = vsub.s32 %v448, %v450
        %v452 = vrot.slane %v438, %v451
        %v453 = vcombine.high %v445, %v445
        %v454 = vcombine.high %v452, %v452
        %v455 = vcombine.high %v431, %v431
        %v457 = vunpack.c.l.s4 1983009808
        %v458 = vunpack.c.0.s8 %v457
        %v459 = vlaneseq
        %v460 = vshrl.u32 %v459, 7
        %v461 = vsub.s32 %v458, %v460
        %v462 = vrot.slane %v431, %v461
        %v464 = vunpack.c.l.s4 1983009808
        %v465 = vunpack.c.0.s8 %v464
        %v466 = vlaneseq
        %v467 = vshrl.u32 %v466, 7
        %v468 = vsub.s32 %v465, %v467
        %v469 = vrot.slane %v455, %v468
        %v470 = vcombine.high %v462, %v462
        %v471 = vcombine.high %v469, %v469
        %v472 = vcombine.high %v432, %v432
        %v474 = vunpack.c.l.s4 1983009808
        %v475 = vunpack.c.0.s8 %v474
        %v476 = vlaneseq
        %v477 = vshrl.u32 %v476, 7
        %v478 = vsub.s32 %v475, %v477
        %v479 = vrot.slane %v432, %v478
        %v481 = vunpack.c.l.s4 1983009808
        %v482 = vunpack.c.0.s8 %v481
        %v483 = vlaneseq
        %v484 = vshrl.u32 %v483, 7
        %v485 = vsub.s32 %v482, %v484
        %v486 = vrot.slane %v472, %v485
        %v487 = vcombine.high %v479, %v479
        %v488 = vcombine.high %v486, %v486
        %v489 = vcombine.high %v433, %v433
        %v491 = vunpack.c.l.s4 1983009808
        %v492 = vunpack.c.0.s8 %v491
        %v493 = vlaneseq
        %v494 = vshrl.u32 %v493, 7
        %v495 = vsub.s32 %v492, %v494
        %v496 = vrot.slane %v433, %v495
        %v498 = vunpack.c.l.s4 1983009808
        %v499 = vunpack.c.0.s8 %v498
        %v500 = vlaneseq
        %v501 = vshrl.u32 %v500, 7
        %v502 = vsub.s32 %v499, %v501
        %v503 = vrot.slane %v489, %v502
        %v504 = vcombine.high %v496, %v496
        %v505 = vcombine.high %v503, %v503
        %v522 = vpack.c.bf16 %v445, %v445
        %v523 = vpack.c.bf16 %v453, %v453
        %v524 = vpack.c.bf16 %v452, %v452
        %v525 = vpack.c.bf16 %v454, %v454
        %v526 = vpack.c.bf16 %v462, %v462
        %v527 = vpack.c.bf16 %v470, %v470
        %v528 = vpack.c.bf16 %v469, %v469
        %v529 = vpack.c.bf16 %v471, %v471
        %v530 = vpack.c.bf16 %v479, %v479
        %v531 = vpack.c.bf16 %v487, %v487
        %v532 = vpack.c.bf16 %v486, %v486
        %v533 = vpack.c.bf16 %v488, %v488
        %v534 = vpack.c.bf16 %v496, %v496
        %v535 = vpack.c.bf16 %v504, %v504
        %v536 = vpack.c.bf16 %v503, %v503
        %v537 = vpack.c.bf16 %v505, %v505
        %v538 = vld [vmem:[#allocation2] sm:$0xff]
        %v539 = vld [vmem:[#allocation2 + $0x8] sm:$0xff]
        %v540 = vld [vmem:[%s367] sm:$0xff]
        %v541 = vld [vmem:[%s367 + $0x8] sm:$0xff]
        %v542 = vld [vmem:[%s367 + $0x10] sm:$0xff]
        %v543 = vld [vmem:[%s367 + $0x18] sm:$0xff]
        %v544 = vld [vmem:[%s367 + $0x20] sm:$0xff]
        %v545 = vld [vmem:[%s367 + $0x28] sm:$0xff]
        %v546 = vld [vmem:[%s367 + $0x30] sm:$0xff]
        %v547 = vld [vmem:[%s367 + $0x38] sm:$0xff]
        %v548 = vld [vmem:[%s367 + $0x40] sm:$0xff]
        %v549 = vld [vmem:[%s367 + $0x48] sm:$0xff]
        %v550 = vld [vmem:[%s367 + $0x50] sm:$0xff]
        %v551 = vld [vmem:[%s367 + $0x58] sm:$0xff]
        %v552 = vld [vmem:[%s367 + $0x60] sm:$0xff]
        %v553 = vld [vmem:[%s367 + $0x68] sm:$0xff]
        %v554 = vld [vmem:[%s367 + $0x70] sm:$0xff]
        %v555 = vld [vmem:[%s367 + $0x78] sm:$0xff]
        %v556 = vld [vmem:[%s367 + $0x80] sm:$0xff]
        %v557 = vld [vmem:[%s367 + $0x88] sm:$0xff]
        %v558 = vld [vmem:[%s367 + $0x90] sm:$0xff]
        %v559 = vld [vmem:[%s367 + $0x98] sm:$0xff]
        %v560 = vld [vmem:[%s367 + $0xa0] sm:$0xff]
        %v561 = vld [vmem:[%s367 + $0xa8] sm:$0xff]
        %v562 = vld [vmem:[%s367 + $0xb0] sm:$0xff]
        %v563 = vld [vmem:[%s367 + $0xb8] sm:$0xff]
        %v564 = vld [vmem:[%s367 + $0xc0] sm:$0xff]
        %v565 = vld [vmem:[%s367 + $0xc8] sm:$0xff]
        %v566 = vld [vmem:[%s367 + $0xd0] sm:$0xff]
        %v567 = vld [vmem:[%s367 + $0xd8] sm:$0xff]
        %v568 = vld [vmem:[%s367 + $0xe0] sm:$0xff]
        %v569 = vld [vmem:[%s367 + $0xe8] sm:$0xff]
        %v570 = vld [vmem:[%s367 + $0xf0] sm:$0xff]
        %v571 = vld [vmem:[%s367 + $0xf8] sm:$0xff]
        %v572 = vld [vmem:[%s367 + $0x100] sm:$0xff]
        %v573 = vld [vmem:[%s367 + $0x108] sm:$0xff]
        %v574 = vld [vmem:[%s367 + $0x110] sm:$0xff]
        %v575 = vld [vmem:[%s367 + $0x118] sm:$0xff]
        %v576 = vld [vmem:[%s367 + $0x120] sm:$0xff]
        %v577 = vld [vmem:[%s367 + $0x128] sm:$0xff]
        %v578 = vld [vmem:[%s367 + $0x130] sm:$0xff]
        %v579 = vld [vmem:[%s367 + $0x138] sm:$0xff]
        %v580 = vld [vmem:[%s367 + $0x140] sm:$0xff]
        %v581 = vld [vmem:[%s367 + $0x148] sm:$0xff]
        %v582 = vld [vmem:[%s367 + $0x150] sm:$0xff]
        %v583 = vld [vmem:[%s367 + $0x158] sm:$0xff]
        %v584 = vld [vmem:[%s367 + $0x160] sm:$0xff]
        %v585 = vld [vmem:[%s367 + $0x168] sm:$0xff]
        %v586 = vld [vmem:[%s367 + $0x170] sm:$0xff]
        %v587 = vld [vmem:[%s367 + $0x178] sm:$0xff]
        %v588 = vld [vmem:[%s367 + $0x180] sm:$0xff]
        %v589 = vld [vmem:[%s367 + $0x188] sm:$0xff]
        %v590 = vld [vmem:[%s367 + $0x190] sm:$0xff]
        %v591 = vld [vmem:[%s367 + $0x198] sm:$0xff]
        %v592 = vld [vmem:[%s367 + $0x1a0] sm:$0xff]
        %v593 = vld [vmem:[%s367 + $0x1a8] sm:$0xff]
        %v594 = vld [vmem:[%s367 + $0x1b0] sm:$0xff]
        %v595 = vld [vmem:[%s367 + $0x1b8] sm:$0xff]
        %v596 = vld [vmem:[%s367 + $0x1c0] sm:$0xff]
        %v597 = vld [vmem:[%s367 + $0x1c8] sm:$0xff]
        %v598 = vld [vmem:[%s367 + $0x1d0] sm:$0xff]
        %v599 = vld [vmem:[%s367 + $0x1d8] sm:$0xff]
        %v600 = vld [vmem:[%s367 + $0x1e0] sm:$0xff]
        %v601 = vld [vmem:[%s367 + $0x1e8] sm:$0xff]
        %v602 = vld [vmem:[%s367 + $0x1f0] sm:$0xff]
        %v603 = vld [vmem:[%s367 + $0x1f8] sm:$0xff]
        %v604 = vld [vmem:[%s367 + $0x200] sm:$0xff]
        %v605 = vld [vmem:[%s367 + $0x208] sm:$0xff]
        %v606 = vld [vmem:[%s367 + $0x210] sm:$0xff]
        %v607 = vld [vmem:[%s367 + $0x218] sm:$0xff]
        %v608 = vld [vmem:[%s367 + $0x220] sm:$0xff]
        %v609 = vld [vmem:[%s367 + $0x228] sm:$0xff]
        %v610 = vld [vmem:[%s367 + $0x230] sm:$0xff]
        %v611 = vld [vmem:[%s367 + $0x238] sm:$0xff]
        %v612 = vld [vmem:[%s367 + $0x240] sm:$0xff]
        %v613 = vld [vmem:[%s367 + $0x248] sm:$0xff]
        %v614 = vld [vmem:[%s367 + $0x250] sm:$0xff]
        %v615 = vld [vmem:[%s367 + $0x258] sm:$0xff]
        %v616 = vld [vmem:[%s367 + $0x260] sm:$0xff]
        %v617 = vld [vmem:[%s367 + $0x268] sm:$0xff]
        %v618 = vld [vmem:[%s367 + $0x270] sm:$0xff]
        %v619 = vld [vmem:[%s367 + $0x278] sm:$0xff]
        %v620 = vld [vmem:[%s367 + $0x280] sm:$0xff]
        %v621 = vld [vmem:[%s367 + $0x288] sm:$0xff]
        %v622 = vld [vmem:[%s367 + $0x290] sm:$0xff]
        %v623 = vld [vmem:[%s367 + $0x298] sm:$0xff]
        %v624 = vld [vmem:[%s367 + $0x2a0] sm:$0xff]
        %v625 = vld [vmem:[%s367 + $0x2a8] sm:$0xff]
        %v626 = vld [vmem:[%s367 + $0x2b0] sm:$0xff]
        %v627 = vld [vmem:[%s367 + $0x2b8] sm:$0xff]
        %v628 = vld [vmem:[%s367 + $0x2c0] sm:$0xff]
        %v629 = vld [vmem:[%s367 + $0x2c8] sm:$0xff]
        %v630 = vld [vmem:[%s367 + $0x2d0] sm:$0xff]
        %v631 = vld [vmem:[%s367 + $0x2d8] sm:$0xff]
        %v632 = vld [vmem:[%s367 + $0x2e0] sm:$0xff]
        %v633 = vld [vmem:[%s367 + $0x2e8] sm:$0xff]
        %v634 = vld [vmem:[%s367 + $0x2f0] sm:$0xff]
        %v635 = vld [vmem:[%s367 + $0x2f8] sm:$0xff]
        %v636 = vld [vmem:[%s367 + $0x300] sm:$0xff]
        %v637 = vld [vmem:[%s367 + $0x308] sm:$0xff]
        %v638 = vld [vmem:[%s367 + $0x310] sm:$0xff]
        %v639 = vld [vmem:[%s367 + $0x318] sm:$0xff]
        %v640 = vld [vmem:[%s367 + $0x320] sm:$0xff]
        %v641 = vld [vmem:[%s367 + $0x328] sm:$0xff]
        %v642 = vld [vmem:[%s367 + $0x330] sm:$0xff]
        %v643 = vld [vmem:[%s367 + $0x338] sm:$0xff]
        %v644 = vld [vmem:[%s367 + $0x340] sm:$0xff]
        %v645 = vld [vmem:[%s367 + $0x348] sm:$0xff]
        %v646 = vld [vmem:[%s367 + $0x350] sm:$0xff]
        %v647 = vld [vmem:[%s367 + $0x358] sm:$0xff]
        %v648 = vld [vmem:[%s367 + $0x360] sm:$0xff]
        %v649 = vld [vmem:[%s367 + $0x368] sm:$0xff]
        %v650 = vld [vmem:[%s367 + $0x370] sm:$0xff]
        %v651 = vld [vmem:[%s367 + $0x378] sm:$0xff]
        %v652 = vld [vmem:[%s367 + $0x380] sm:$0xff]
        %v653 = vld [vmem:[%s367 + $0x388] sm:$0xff]
        %v654 = vld [vmem:[%s367 + $0x390] sm:$0xff]
        %v655 = vld [vmem:[%s367 + $0x398] sm:$0xff]
        %v656 = vld [vmem:[%s367 + $0x3a0] sm:$0xff]
        %v657 = vld [vmem:[%s367 + $0x3a8] sm:$0xff]
        %v658 = vld [vmem:[%s367 + $0x3b0] sm:$0xff]
        %v659 = vld [vmem:[%s367 + $0x3b8] sm:$0xff]
        %v660 = vld [vmem:[%s367 + $0x3c0] sm:$0xff]
        %v661 = vld [vmem:[%s367 + $0x3c8] sm:$0xff]
        %v662 = vld [vmem:[%s367 + $0x3d0] sm:$0xff]
        %v663 = vld [vmem:[%s367 + $0x3d8] sm:$0xff]
        %v664 = vld [vmem:[%s367 + $0x3e0] sm:$0xff]
        %v665 = vld [vmem:[%s367 + $0x3e8] sm:$0xff]
        %v666 = vld [vmem:[%s367 + $0x3f0] sm:$0xff]
        %v667 = vld [vmem:[%s367 + $0x3f8] sm:$0xff]
        %v668 = vld [vmem:[%s367 + $0x400] sm:$0xff]
        %v669 = vld [vmem:[%s367 + $0x408] sm:$0xff]
        %v670 = vld [vmem:[%s367 + $0x410] sm:$0xff]
        %v671 = vld [vmem:[%s367 + $0x418] sm:$0xff]
        %v672 = vld [vmem:[%s367 + $0x420] sm:$0xff]
        %v673 = vld [vmem:[%s367 + $0x428] sm:$0xff]
        %v674 = vld [vmem:[%s367 + $0x430] sm:$0xff]
        %v675 = vld [vmem:[%s367 + $0x438] sm:$0xff]
        %v676 = vld [vmem:[%s367 + $0x440] sm:$0xff]
        %v677 = vld [vmem:[%s367 + $0x448] sm:$0xff]
        %v678 = vld [vmem:[%s367 + $0x450] sm:$0xff]
        %v679 = vld [vmem:[%s367 + $0x458] sm:$0xff]
        %v680 = vld [vmem:[%s367 + $0x460] sm:$0xff]
        %v681 = vld [vmem:[%s367 + $0x468] sm:$0xff]
        %v682 = vld [vmem:[%s367 + $0x470] sm:$0xff]
        %v683 = vld [vmem:[%s367 + $0x478] sm:$0xff]
        %v684 = vld [vmem:[%s367 + $0x480] sm:$0xff]
        %v685 = vld [vmem:[%s367 + $0x488] sm:$0xff]
        %v686 = vld [vmem:[%s367 + $0x490] sm:$0xff]
        %v687 = vld [vmem:[%s367 + $0x498] sm:$0xff]
        %v688 = vld [vmem:[%s367 + $0x4a0] sm:$0xff]
        %v689 = vld [vmem:[%s367 + $0x4a8] sm:$0xff]
        %v690 = vld [vmem:[%s367 + $0x4b0] sm:$0xff]
        %v691 = vld [vmem:[%s367 + $0x4b8] sm:$0xff]
        %v692 = vld [vmem:[%s367 + $0x4c0] sm:$0xff]
        %v693 = vld [vmem:[%s367 + $0x4c8] sm:$0xff]
        %v694 = vld [vmem:[%s367 + $0x4d0] sm:$0xff]
        %v695 = vld [vmem:[%s367 + $0x4d8] sm:$0xff]
        %v696 = vld [vmem:[%s367 + $0x4e0] sm:$0xff]
        %v697 = vld [vmem:[%s367 + $0x4e8] sm:$0xff]
        %v698 = vld [vmem:[%s367 + $0x4f0] sm:$0xff]
        %v699 = vld [vmem:[%s367 + $0x4f8] sm:$0xff]
        %v700 = vld [vmem:[%s367 + $0x500] sm:$0xff]
        %v701 = vld [vmem:[%s367 + $0x508] sm:$0xff]
        %v702 = vld [vmem:[%s367 + $0x510] sm:$0xff]
        %v703 = vld [vmem:[%s367 + $0x518] sm:$0xff]
        %v704 = vld [vmem:[%s367 + $0x520] sm:$0xff]
        %v705 = vld [vmem:[%s367 + $0x528] sm:$0xff]
        %v706 = vld [vmem:[%s367 + $0x530] sm:$0xff]
        %v707 = vld [vmem:[%s367 + $0x538] sm:$0xff]
        %v708 = vld [vmem:[%s367 + $0x540] sm:$0xff]
        %v709 = vld [vmem:[%s367 + $0x548] sm:$0xff]
        %v710 = vld [vmem:[%s367 + $0x550] sm:$0xff]
        %v711 = vld [vmem:[%s367 + $0x558] sm:$0xff]
        %v712 = vld [vmem:[%s367 + $0x560] sm:$0xff]
        %v713 = vld [vmem:[%s367 + $0x568] sm:$0xff]
        %v714 = vld [vmem:[%s367 + $0x570] sm:$0xff]
        %v715 = vld [vmem:[%s367 + $0x578] sm:$0xff]
        %v716 = vld [vmem:[%s367 + $0x580] sm:$0xff]
        %v717 = vld [vmem:[%s367 + $0x588] sm:$0xff]
        %v718 = vld [vmem:[%s367 + $0x590] sm:$0xff]
        %v719 = vld [vmem:[%s367 + $0x598] sm:$0xff]
        %v720 = vld [vmem:[%s367 + $0x5a0] sm:$0xff]
        %v721 = vld [vmem:[%s367 + $0x5a8] sm:$0xff]
        %v722 = vld [vmem:[%s367 + $0x5b0] sm:$0xff]
        %v723 = vld [vmem:[%s367 + $0x5b8] sm:$0xff]
        %v724 = vld [vmem:[%s367 + $0x5c0] sm:$0xff]
        %v725 = vld [vmem:[%s367 + $0x5c8] sm:$0xff]
        %v726 = vld [vmem:[%s367 + $0x5d0] sm:$0xff]
        %v727 = vld [vmem:[%s367 + $0x5d8] sm:$0xff]
        %v728 = vld [vmem:[%s367 + $0x5e0] sm:$0xff]
        %v729 = vld [vmem:[%s367 + $0x5e8] sm:$0xff]
        %v730 = vld [vmem:[%s367 + $0x5f0] sm:$0xff]
        %v731 = vld [vmem:[%s367 + $0x5f8] sm:$0xff]
        %v732 = vld [vmem:[%s367 + $0x600] sm:$0xff]
        %v733 = vld [vmem:[%s367 + $0x608] sm:$0xff]
        %v734 = vld [vmem:[%s367 + $0x610] sm:$0xff]
        %v735 = vld [vmem:[%s367 + $0x618] sm:$0xff]
        %v736 = vld [vmem:[%s367 + $0x620] sm:$0xff]
        %v737 = vld [vmem:[%s367 + $0x628] sm:$0xff]
        %v738 = vld [vmem:[%s367 + $0x630] sm:$0xff]
        %v739 = vld [vmem:[%s367 + $0x638] sm:$0xff]
        %v740 = vld [vmem:[%s367 + $0x640] sm:$0xff]
        %v741 = vld [vmem:[%s367 + $0x648] sm:$0xff]
        %v742 = vld [vmem:[%s367 + $0x650] sm:$0xff]
        %v743 = vld [vmem:[%s367 + $0x658] sm:$0xff]
        %v744 = vld [vmem:[%s367 + $0x660] sm:$0xff]
        %v745 = vld [vmem:[%s367 + $0x668] sm:$0xff]
        %v746 = vld [vmem:[%s367 + $0x670] sm:$0xff]
        %v747 = vld [vmem:[%s367 + $0x678] sm:$0xff]
        %v748 = vld [vmem:[%s367 + $0x680] sm:$0xff]
        %v749 = vld [vmem:[%s367 + $0x688] sm:$0xff]
        %v750 = vld [vmem:[%s367 + $0x690] sm:$0xff]
        %v751 = vld [vmem:[%s367 + $0x698] sm:$0xff]
        %v752 = vld [vmem:[%s367 + $0x6a0] sm:$0xff]
        %v753 = vld [vmem:[%s367 + $0x6a8] sm:$0xff]
        %v754 = vld [vmem:[%s367 + $0x6b0] sm:$0xff]
        %v755 = vld [vmem:[%s367 + $0x6b8] sm:$0xff]
        %v756 = vld [vmem:[%s367 + $0x6c0] sm:$0xff]
        %v757 = vld [vmem:[%s367 + $0x6c8] sm:$0xff]
        %v758 = vld [vmem:[%s367 + $0x6d0] sm:$0xff]
        %v759 = vld [vmem:[%s367 + $0x6d8] sm:$0xff]
        %v760 = vld [vmem:[%s367 + $0x6e0] sm:$0xff]
        %v761 = vld [vmem:[%s367 + $0x6e8] sm:$0xff]
        %v762 = vld [vmem:[%s367 + $0x6f0] sm:$0xff]
        %v763 = vld [vmem:[%s367 + $0x6f8] sm:$0xff]
        %v764 = vld [vmem:[%s367 + $0x700] sm:$0xff]
        %v765 = vld [vmem:[%s367 + $0x708] sm:$0xff]
        %v766 = vld [vmem:[%s367 + $0x710] sm:$0xff]
        %v767 = vld [vmem:[%s367 + $0x718] sm:$0xff]
        %v768 = vld [vmem:[%s367 + $0x720] sm:$0xff]
        %v769 = vld [vmem:[%s367 + $0x728] sm:$0xff]
        %v770 = vld [vmem:[%s367 + $0x730] sm:$0xff]
        %v771 = vld [vmem:[%s367 + $0x738] sm:$0xff]
        %v772 = vld [vmem:[%s367 + $0x740] sm:$0xff]
        %v773 = vld [vmem:[%s367 + $0x748] sm:$0xff]
        %v774 = vld [vmem:[%s367 + $0x750] sm:$0xff]
        %v775 = vld [vmem:[%s367 + $0x758] sm:$0xff]
        %v776 = vld [vmem:[%s367 + $0x760] sm:$0xff]
        %v777 = vld [vmem:[%s367 + $0x768] sm:$0xff]
        %v778 = vld [vmem:[%s367 + $0x770] sm:$0xff]
        %v779 = vld [vmem:[%s367 + $0x778] sm:$0xff]
        %v780 = vld [vmem:[%s367 + $0x780] sm:$0xff]
        %v781 = vld [vmem:[%s367 + $0x788] sm:$0xff]
        %v782 = vld [vmem:[%s367 + $0x790] sm:$0xff]
        %v783 = vld [vmem:[%s367 + $0x798] sm:$0xff]
        %v784 = vld [vmem:[%s367 + $0x7a0] sm:$0xff]
        %v785 = vld [vmem:[%s367 + $0x7a8] sm:$0xff]
        %v786 = vld [vmem:[%s367 + $0x7b0] sm:$0xff]
        %v787 = vld [vmem:[%s367 + $0x7b8] sm:$0xff]
        %v788 = vld [vmem:[%s367 + $0x7c0] sm:$0xff]
        %v789 = vld [vmem:[%s367 + $0x7c8] sm:$0xff]
        %v790 = vld [vmem:[%s367 + $0x7d0] sm:$0xff]
        %v791 = vld [vmem:[%s367 + $0x7d8] sm:$0xff]
        %v792 = vld [vmem:[%s367 + $0x7e0] sm:$0xff]
        %v793 = vld [vmem:[%s367 + $0x7e8] sm:$0xff]
        %v794 = vld [vmem:[%s367 + $0x7f0] sm:$0xff]
        %v795 = vld [vmem:[%s367 + $0x7f8] sm:$0xff]
        %v796 = vld [vmem:[%s367 + $0x800] sm:$0xff]
        %v797 = vld [vmem:[%s367 + $0x808] sm:$0xff]
        %v798 = vld [vmem:[%s367 + $0x810] sm:$0xff]
        %v799 = vld [vmem:[%s367 + $0x818] sm:$0xff]
        %v800 = vld [vmem:[%s367 + $0x820] sm:$0xff]
        %v801 = vld [vmem:[%s367 + $0x828] sm:$0xff]
        %v802 = vld [vmem:[%s367 + $0x830] sm:$0xff]
        %v803 = vld [vmem:[%s367 + $0x838] sm:$0xff]
        %v804 = vld [vmem:[%s367 + $0x840] sm:$0xff]
        %v805 = vld [vmem:[%s367 + $0x848] sm:$0xff]
        %v806 = vld [vmem:[%s367 + $0x850] sm:$0xff]
        %v807 = vld [vmem:[%s367 + $0x858] sm:$0xff]
        %v808 = vld [vmem:[%s367 + $0x860] sm:$0xff]
        %v809 = vld [vmem:[%s367 + $0x868] sm:$0xff]
        %v810 = vld [vmem:[%s367 + $0x870] sm:$0xff]
        %v811 = vld [vmem:[%s367 + $0x878] sm:$0xff]
        %v812 = vld [vmem:[%s367 + $0x880] sm:$0xff]
        %v813 = vld [vmem:[%s367 + $0x888] sm:$0xff]
        %v814 = vld [vmem:[%s367 + $0x890] sm:$0xff]
        %v815 = vld [vmem:[%s367 + $0x898] sm:$0xff]
        %v816 = vld [vmem:[%s367 + $0x8a0] sm:$0xff]
        %v817 = vld [vmem:[%s367 + $0x8a8] sm:$0xff]
        %v818 = vld [vmem:[%s367 + $0x8b0] sm:$0xff]
        %v819 = vld [vmem:[%s367 + $0x8b8] sm:$0xff]
        %v820 = vld [vmem:[%s367 + $0x8c0] sm:$0xff]
        %v821 = vld [vmem:[%s367 + $0x8c8] sm:$0xff]
        %v822 = vld [vmem:[%s367 + $0x8d0] sm:$0xff]
        %v823 = vld [vmem:[%s367 + $0x8d8] sm:$0xff]
        %v824 = vld [vmem:[%s367 + $0x8e0] sm:$0xff]
        %v825 = vld [vmem:[%s367 + $0x8e8] sm:$0xff]
        %v826 = vld [vmem:[%s367 + $0x8f0] sm:$0xff]
        %v827 = vld [vmem:[%s367 + $0x8f8] sm:$0xff]
        %v828 = vld [vmem:[%s367 + $0x900] sm:$0xff]
        %v829 = vld [vmem:[%s367 + $0x908] sm:$0xff]
        %v830 = vld [vmem:[%s367 + $0x910] sm:$0xff]
        %v831 = vld [vmem:[%s367 + $0x918] sm:$0xff]
        %v832 = vld [vmem:[%s367 + $0x920] sm:$0xff]
        %v833 = vld [vmem:[%s367 + $0x928] sm:$0xff]
        %v834 = vld [vmem:[%s367 + $0x930] sm:$0xff]
        %v835 = vld [vmem:[%s367 + $0x938] sm:$0xff]
        %v836 = vld [vmem:[%s367 + $0x940] sm:$0xff]
        %v837 = vld [vmem:[%s367 + $0x948] sm:$0xff]
        %v838 = vld [vmem:[%s367 + $0x950] sm:$0xff]
        %v839 = vld [vmem:[%s367 + $0x958] sm:$0xff]
        %v840 = vld [vmem:[%s367 + $0x960] sm:$0xff]
        %v841 = vld [vmem:[%s367 + $0x968] sm:$0xff]
        %v842 = vld [vmem:[%s367 + $0x970] sm:$0xff]
        %v843 = vld [vmem:[%s367 + $0x978] sm:$0xff]
        %v844 = vld [vmem:[%s367 + $0x980] sm:$0xff]
        %v845 = vld [vmem:[%s367 + $0x988] sm:$0xff]
        %v846 = vld [vmem:[%s367 + $0x990] sm:$0xff]
        %v847 = vld [vmem:[%s367 + $0x998] sm:$0xff]
        %v848 = vld [vmem:[%s367 + $0x9a0] sm:$0xff]
        %v849 = vld [vmem:[%s367 + $0x9a8] sm:$0xff]
        %v850 = vld [vmem:[%s367 + $0x9b0] sm:$0xff]
        %v851 = vld [vmem:[%s367 + $0x9b8] sm:$0xff]
        %v852 = vld [vmem:[%s367 + $0x9c0] sm:$0xff]
        %v853 = vld [vmem:[%s367 + $0x9c8] sm:$0xff]
        %v854 = vld [vmem:[%s367 + $0x9d0] sm:$0xff]
        %v855 = vld [vmem:[%s367 + $0x9d8] sm:$0xff]
        %v856 = vld [vmem:[%s367 + $0x9e0] sm:$0xff]
        %v857 = vld [vmem:[%s367 + $0x9e8] sm:$0xff]
        %v858 = vld [vmem:[%s367 + $0x9f0] sm:$0xff]
        %v859 = vld [vmem:[%s367 + $0x9f8] sm:$0xff]
        %v860 = vld [vmem:[%s367 + $0xa00] sm:$0xff]
        %v861 = vld [vmem:[%s367 + $0xa08] sm:$0xff]
        %v862 = vld [vmem:[%s367 + $0xa10] sm:$0xff]
        %v863 = vld [vmem:[%s367 + $0xa18] sm:$0xff]
        %v864 = vld [vmem:[%s367 + $0xa20] sm:$0xff]
        %v865 = vld [vmem:[%s367 + $0xa28] sm:$0xff]
        %v866 = vld [vmem:[%s367 + $0xa30] sm:$0xff]
        %v867 = vld [vmem:[%s367 + $0xa38] sm:$0xff]
        %v868 = vld [vmem:[%s367 + $0xa40] sm:$0xff]
        %v869 = vld [vmem:[%s367 + $0xa48] sm:$0xff]
        %v870 = vld [vmem:[%s367 + $0xa50] sm:$0xff]
        %v871 = vld [vmem:[%s367 + $0xa58] sm:$0xff]
        %v872 = vld [vmem:[%s367 + $0xa60] sm:$0xff]
        %v873 = vld [vmem:[%s367 + $0xa68] sm:$0xff]
        %v874 = vld [vmem:[%s367 + $0xa70] sm:$0xff]
        %v875 = vld [vmem:[%s367 + $0xa78] sm:$0xff]
        %v876 = vld [vmem:[%s367 + $0xa80] sm:$0xff]
        %v877 = vld [vmem:[%s367 + $0xa88] sm:$0xff]
        %v878 = vld [vmem:[%s367 + $0xa90] sm:$0xff]
        %v879 = vld [vmem:[%s367 + $0xa98] sm:$0xff]
        %v880 = vld [vmem:[%s367 + $0xaa0] sm:$0xff]
        %v881 = vld [vmem:[%s367 + $0xaa8] sm:$0xff]
        %v882 = vld [vmem:[%s367 + $0xab0] sm:$0xff]
        %v883 = vld [vmem:[%s367 + $0xab8] sm:$0xff]
        %v884 = vld [vmem:[%s367 + $0xac0] sm:$0xff]
        %v885 = vld [vmem:[%s367 + $0xac8] sm:$0xff]
        %v886 = vld [vmem:[%s367 + $0xad0] sm:$0xff]
        %v887 = vld [vmem:[%s367 + $0xad8] sm:$0xff]
        %v888 = vld [vmem:[%s367 + $0xae0] sm:$0xff]
        %v889 = vld [vmem:[%s367 + $0xae8] sm:$0xff]
        %v890 = vld [vmem:[%s367 + $0xaf0] sm:$0xff]
        %v891 = vld [vmem:[%s367 + $0xaf8] sm:$0xff]
        %v892 = vld [vmem:[%s367 + $0xb00] sm:$0xff]
        %v893 = vld [vmem:[%s367 + $0xb08] sm:$0xff]
        %v894 = vld [vmem:[%s367 + $0xb10] sm:$0xff]
        %v895 = vld [vmem:[%s367 + $0xb18] sm:$0xff]
        %v896 = vld [vmem:[%s367 + $0xb20] sm:$0xff]
        %v897 = vld [vmem:[%s367 + $0xb28] sm:$0xff]
        %v898 = vld [vmem:[%s367 + $0xb30] sm:$0xff]
        %v899 = vld [vmem:[%s367 + $0xb38] sm:$0xff]
        %v900 = vld [vmem:[%s367 + $0xb40] sm:$0xff]
        %v901 = vld [vmem:[%s367 + $0xb48] sm:$0xff]
        %v902 = vld [vmem:[%s367 + $0xb50] sm:$0xff]
        %v903 = vld [vmem:[%s367 + $0xb58] sm:$0xff]
        %v904 = vld [vmem:[%s367 + $0xb60] sm:$0xff]
        %v905 = vld [vmem:[%s367 + $0xb68] sm:$0xff]
        %v906 = vld [vmem:[%s367 + $0xb70] sm:$0xff]
        %v907 = vld [vmem:[%s367 + $0xb78] sm:$0xff]
        %v908 = vld [vmem:[%s367 + $0xb80] sm:$0xff]
        %v909 = vld [vmem:[%s367 + $0xb88] sm:$0xff]
        %v910 = vld [vmem:[%s367 + $0xb90] sm:$0xff]
        %v911 = vld [vmem:[%s367 + $0xb98] sm:$0xff]
        %v912 = vld [vmem:[%s367 + $0xba0] sm:$0xff]
        %v913 = vld [vmem:[%s367 + $0xba8] sm:$0xff]
        %v914 = vld [vmem:[%s367 + $0xbb0] sm:$0xff]
        %v915 = vld [vmem:[%s367 + $0xbb8] sm:$0xff]
        %v916 = vld [vmem:[%s367 + $0xbc0] sm:$0xff]
        %v917 = vld [vmem:[%s367 + $0xbc8] sm:$0xff]
        %v918 = vld [vmem:[%s367 + $0xbd0] sm:$0xff]
        %v919 = vld [vmem:[%s367 + $0xbd8] sm:$0xff]
        %v920 = vld [vmem:[%s367 + $0xbe0] sm:$0xff]
        %v921 = vld [vmem:[%s367 + $0xbe8] sm:$0xff]
        %v922 = vld [vmem:[%s367 + $0xbf0] sm:$0xff]
        %v923 = vld [vmem:[%s367 + $0xbf8] sm:$0xff]
        %v924 = vld [vmem:[%s367 + $0xc00] sm:$0xff]
        %v925 = vld [vmem:[%s367 + $0xc08] sm:$0xff]
        %v926 = vld [vmem:[%s367 + $0xc10] sm:$0xff]
        %v927 = vld [vmem:[%s367 + $0xc18] sm:$0xff]
        %v928 = vld [vmem:[%s367 + $0xc20] sm:$0xff]
        %v929 = vld [vmem:[%s367 + $0xc28] sm:$0xff]
        %v930 = vld [vmem:[%s367 + $0xc30] sm:$0xff]
        %v931 = vld [vmem:[%s367 + $0xc38] sm:$0xff]
        %v932 = vld [vmem:[%s367 + $0xc40] sm:$0xff]
        %v933 = vld [vmem:[%s367 + $0xc48] sm:$0xff]
        %v934 = vld [vmem:[%s367 + $0xc50] sm:$0xff]
        %v935 = vld [vmem:[%s367 + $0xc58] sm:$0xff]
        %v936 = vld [vmem:[%s367 + $0xc60] sm:$0xff]
        %v937 = vld [vmem:[%s367 + $0xc68] sm:$0xff]
        %v938 = vld [vmem:[%s367 + $0xc70] sm:$0xff]
        %v939 = vld [vmem:[%s367 + $0xc78] sm:$0xff]
        %v940 = vld [vmem:[%s367 + $0xc80] sm:$0xff]
        %v941 = vld [vmem:[%s367 + $0xc88] sm:$0xff]
        %v942 = vld [vmem:[%s367 + $0xc90] sm:$0xff]
        %v943 = vld [vmem:[%s367 + $0xc98] sm:$0xff]
        %v944 = vld [vmem:[%s367 + $0xca0] sm:$0xff]
        %v945 = vld [vmem:[%s367 + $0xca8] sm:$0xff]
        %v946 = vld [vmem:[%s367 + $0xcb0] sm:$0xff]
        %v947 = vld [vmem:[%s367 + $0xcb8] sm:$0xff]
        %v948 = vld [vmem:[%s367 + $0xcc0] sm:$0xff]
        %v949 = vld [vmem:[%s367 + $0xcc8] sm:$0xff]
        %v950 = vld [vmem:[%s367 + $0xcd0] sm:$0xff]
        %v951 = vld [vmem:[%s367 + $0xcd8] sm:$0xff]
        %v952 = vld [vmem:[%s367 + $0xce0] sm:$0xff]
        %v953 = vld [vmem:[%s367 + $0xce8] sm:$0xff]
        %v954 = vld [vmem:[%s367 + $0xcf0] sm:$0xff]
        %v955 = vld [vmem:[%s367 + $0xcf8] sm:$0xff]
        %v956 = vld [vmem:[%s367 + $0xd00] sm:$0xff]
        %v957 = vld [vmem:[%s367 + $0xd08] sm:$0xff]
        %v958 = vld [vmem:[%s367 + $0xd10] sm:$0xff]
        %v959 = vld [vmem:[%s367 + $0xd18] sm:$0xff]
        %v960 = vld [vmem:[%s367 + $0xd20] sm:$0xff]
        %v961 = vld [vmem:[%s367 + $0xd28] sm:$0xff]
        %v962 = vld [vmem:[%s367 + $0xd30] sm:$0xff]
        %v963 = vld [vmem:[%s367 + $0xd38] sm:$0xff]
        %v964 = vld [vmem:[%s367 + $0xd40] sm:$0xff]
        %v965 = vld [vmem:[%s367 + $0xd48] sm:$0xff]
        %v966 = vld [vmem:[%s367 + $0xd50] sm:$0xff]
        %v967 = vld [vmem:[%s367 + $0xd58] sm:$0xff]
        %v968 = vld [vmem:[%s367 + $0xd60] sm:$0xff]
        %v969 = vld [vmem:[%s367 + $0xd68] sm:$0xff]
        %v970 = vld [vmem:[%s367 + $0xd70] sm:$0xff]
        %v971 = vld [vmem:[%s367 + $0xd78] sm:$0xff]
        %v972 = vld [vmem:[%s367 + $0xd80] sm:$0xff]
        %v973 = vld [vmem:[%s367 + $0xd88] sm:$0xff]
        %v974 = vld [vmem:[%s367 + $0xd90] sm:$0xff]
        %v975 = vld [vmem:[%s367 + $0xd98] sm:$0xff]
        %v976 = vld [vmem:[%s367 + $0xda0] sm:$0xff]
        %v977 = vld [vmem:[%s367 + $0xda8] sm:$0xff]
        %v978 = vld [vmem:[%s367 + $0xdb0] sm:$0xff]
        %v979 = vld [vmem:[%s367 + $0xdb8] sm:$0xff]
        %v980 = vld [vmem:[%s367 + $0xdc0] sm:$0xff]
        %v981 = vld [vmem:[%s367 + $0xdc8] sm:$0xff]
        %v982 = vld [vmem:[%s367 + $0xdd0] sm:$0xff]
        %v983 = vld [vmem:[%s367 + $0xdd8] sm:$0xff]
        %v984 = vld [vmem:[%s367 + $0xde0] sm:$0xff]
        %v985 = vld [vmem:[%s367 + $0xde8] sm:$0xff]
        %v986 = vld [vmem:[%s367 + $0xdf0] sm:$0xff]
        %v987 = vld [vmem:[%s367 + $0xdf8] sm:$0xff]
        %v988 = vld [vmem:[%s367 + $0xe00] sm:$0xff]
        %v989 = vld [vmem:[%s367 + $0xe08] sm:$0xff]
        %v990 = vld [vmem:[%s367 + $0xe10] sm:$0xff]
        %v991 = vld [vmem:[%s367 + $0xe18] sm:$0xff]
        %v992 = vld [vmem:[%s367 + $0xe20] sm:$0xff]
        %v993 = vld [vmem:[%s367 + $0xe28] sm:$0xff]
        %v994 = vld [vmem:[%s367 + $0xe30] sm:$0xff]
        %v995 = vld [vmem:[%s367 + $0xe38] sm:$0xff]
        %v996 = vld [vmem:[%s367 + $0xe40] sm:$0xff]
        %v997 = vld [vmem:[%s367 + $0xe48] sm:$0xff]
        %v998 = vld [vmem:[%s367 + $0xe50] sm:$0xff]
        %v999 = vld [vmem:[%s367 + $0xe58] sm:$0xff]
        %v1000 = vld [vmem:[%s367 + $0xe60] sm:$0xff]
        %v1001 = vld [vmem:[%s367 + $0xe68] sm:$0xff]
        %v1002 = vld [vmem:[%s367 + $0xe70] sm:$0xff]
        %v1003 = vld [vmem:[%s367 + $0xe78] sm:$0xff]
        %v1004 = vld [vmem:[%s367 + $0xe80] sm:$0xff]
        %v1005 = vld [vmem:[%s367 + $0xe88] sm:$0xff]
        %v1006 = vld [vmem:[%s367 + $0xe90] sm:$0xff]
        %v1007 = vld [vmem:[%s367 + $0xe98] sm:$0xff]
        %v1008 = vld [vmem:[%s367 + $0xea0] sm:$0xff]
        %v1009 = vld [vmem:[%s367 + $0xea8] sm:$0xff]
        %v1010 = vld [vmem:[%s367 + $0xeb0] sm:$0xff]
        %v1011 = vld [vmem:[%s367 + $0xeb8] sm:$0xff]
        %v1012 = vld [vmem:[%s367 + $0xec0] sm:$0xff]
        %v1013 = vld [vmem:[%s367 + $0xec8] sm:$0xff]
        %v1014 = vld [vmem:[%s367 + $0xed0] sm:$0xff]
        %v1015 = vld [vmem:[%s367 + $0xed8] sm:$0xff]
        %v1016 = vld [vmem:[%s367 + $0xee0] sm:$0xff]
        %v1017 = vld [vmem:[%s367 + $0xee8] sm:$0xff]
        %v1018 = vld [vmem:[%s367 + $0xef0] sm:$0xff]
        %v1019 = vld [vmem:[%s367 + $0xef8] sm:$0xff]
        %v1020 = vld [vmem:[%s367 + $0xf00] sm:$0xff]
        %v1021 = vld [vmem:[%s367 + $0xf08] sm:$0xff]
        %v1022 = vld [vmem:[%s367 + $0xf10] sm:$0xff]
        %v1023 = vld [vmem:[%s367 + $0xf18] sm:$0xff]
        %v1024 = vld [vmem:[%s367 + $0xf20] sm:$0xff]
        %v1025 = vld [vmem:[%s367 + $0xf28] sm:$0xff]
        %v1026 = vld [vmem:[%s367 + $0xf30] sm:$0xff]
        %v1027 = vld [vmem:[%s367 + $0xf38] sm:$0xff]
        %v1028 = vld [vmem:[%s367 + $0xf40] sm:$0xff]
        %v1029 = vld [vmem:[%s367 + $0xf48] sm:$0xff]
        %v1030 = vld [vmem:[%s367 + $0xf50] sm:$0xff]
        %v1031 = vld [vmem:[%s367 + $0xf58] sm:$0xff]
        %v1032 = vld [vmem:[%s367 + $0xf60] sm:$0xff]
        %v1033 = vld [vmem:[%s367 + $0xf68] sm:$0xff]
        %v1034 = vld [vmem:[%s367 + $0xf70] sm:$0xff]
        %v1035 = vld [vmem:[%s367 + $0xf78] sm:$0xff]
        %v1036 = vld [vmem:[%s367 + $0xf80] sm:$0xff]
        %v1037 = vld [vmem:[%s367 + $0xf88] sm:$0xff]
        %v1038 = vld [vmem:[%s367 + $0xf90] sm:$0xff]
        %v1039 = vld [vmem:[%s367 + $0xf98] sm:$0xff]
        %v1040 = vld [vmem:[%s367 + $0xfa0] sm:$0xff]
        %v1041 = vld [vmem:[%s367 + $0xfa8] sm:$0xff]
        %v1042 = vld [vmem:[%s367 + $0xfb0] sm:$0xff]
        %v1043 = vld [vmem:[%s367 + $0xfb8] sm:$0xff]
        %v1044 = vld [vmem:[%s367 + $0xfc0] sm:$0xff]
        %v1045 = vld [vmem:[%s367 + $0xfc8] sm:$0xff]
        %v1046 = vld [vmem:[%s367 + $0xfd0] sm:$0xff]
        %v1047 = vld [vmem:[%s367 + $0xfd8] sm:$0xff]
        %v1048 = vld [vmem:[%s367 + $0xfe0] sm:$0xff]
        %v1049 = vld [vmem:[%s367 + $0xfe8] sm:$0xff]
        %v1050 = vld [vmem:[%s367 + $0xff0] sm:$0xff]
        %v1051 = vld [vmem:[%s367 + $0xff8] sm:$0xff]
        %v1052 = vld [vmem:[%s367 + $0x1000] sm:$0xff]
        %v1053 = vld [vmem:[%s367 + $0x1008] sm:$0xff]
        %v1054 = vld [vmem:[%s367 + $0x1010] sm:$0xff]
        %v1055 = vld [vmem:[%s367 + $0x1018] sm:$0xff]
        %v1056 = vld [vmem:[%s367 + $0x1020] sm:$0xff]
        %v1057 = vld [vmem:[%s367 + $0x1028] sm:$0xff]
        %v1058 = vld [vmem:[%s367 + $0x1030] sm:$0xff]
        %v1059 = vld [vmem:[%s367 + $0x1038] sm:$0xff]
        %v1060 = vld [vmem:[%s367 + $0x1040] sm:$0xff]
        %v1061 = vld [vmem:[%s367 + $0x1048] sm:$0xff]
        %v1062 = vld [vmem:[%s367 + $0x1050] sm:$0xff]
        %v1063 = vld [vmem:[%s367 + $0x1058] sm:$0xff]
        %v1064 = vld [vmem:[%s367 + $0x1060] sm:$0xff]
        %v1065 = vld [vmem:[%s367 + $0x1068] sm:$0xff]
        %v1066 = vld [vmem:[%s367 + $0x1070] sm:$0xff]
        %v1067 = vld [vmem:[%s367 + $0x1078] sm:$0xff]
        %v1068 = vld [vmem:[%s367 + $0x1080] sm:$0xff]
        %v1069 = vld [vmem:[%s367 + $0x1088] sm:$0xff]
        %v1070 = vld [vmem:[%s367 + $0x1090] sm:$0xff]
        %v1071 = vld [vmem:[%s367 + $0x1098] sm:$0xff]
        %v1072 = vld [vmem:[%s367 + $0x10a0] sm:$0xff]
        %v1073 = vld [vmem:[%s367 + $0x10a8] sm:$0xff]
        %v1074 = vld [vmem:[%s367 + $0x10b0] sm:$0xff]
        %v1075 = vld [vmem:[%s367 + $0x10b8] sm:$0xff]
        %v1076 = vld [vmem:[%s367 + $0x10c0] sm:$0xff]
        %v1077 = vld [vmem:[%s367 + $0x10c8] sm:$0xff]
        %v1078 = vld [vmem:[%s367 + $0x10d0] sm:$0xff]
        %v1079 = vld [vmem:[%s367 + $0x10d8] sm:$0xff]
        %v1080 = vld [vmem:[%s367 + $0x10e0] sm:$0xff]
        %v1081 = vld [vmem:[%s367 + $0x10e8] sm:$0xff]
        %v1082 = vld [vmem:[%s367 + $0x10f0] sm:$0xff]
        %v1083 = vld [vmem:[%s367 + $0x10f8] sm:$0xff]
        %v1084 = vld [vmem:[%s367 + $0x1100] sm:$0xff]
        %v1085 = vld [vmem:[%s367 + $0x1108] sm:$0xff]
        %v1086 = vld [vmem:[%s367 + $0x1110] sm:$0xff]
        %v1087 = vld [vmem:[%s367 + $0x1118] sm:$0xff]
        %v1088 = vld [vmem:[%s367 + $0x1120] sm:$0xff]
        %v1089 = vld [vmem:[%s367 + $0x1128] sm:$0xff]
        %v1090 = vld [vmem:[%s367 + $0x1130] sm:$0xff]
        %v1091 = vld [vmem:[%s367 + $0x1138] sm:$0xff]
        %v1092 = vld [vmem:[%s367 + $0x1140] sm:$0xff]
        %v1093 = vld [vmem:[%s367 + $0x1148] sm:$0xff]
        %v1094 = vld [vmem:[%s367 + $0x1150] sm:$0xff]
        %v1095 = vld [vmem:[%s367 + $0x1158] sm:$0xff]
        %v1096 = vld [vmem:[%s367 + $0x1160] sm:$0xff]
        %v1097 = vld [vmem:[%s367 + $0x1168] sm:$0xff]
        %v1098 = vld [vmem:[%s367 + $0x1170] sm:$0xff]
        %v1099 = vld [vmem:[%s367 + $0x1178] sm:$0xff]
        %v1100 = vld [vmem:[%s367 + $0x1180] sm:$0xff]
        %v1101 = vld [vmem:[%s367 + $0x1188] sm:$0xff]
        %v1102 = vld [vmem:[%s367 + $0x1190] sm:$0xff]
        %v1103 = vld [vmem:[%s367 + $0x1198] sm:$0xff]
        %v1104 = vld [vmem:[%s367 + $0x11a0] sm:$0xff]
        %v1105 = vld [vmem:[%s367 + $0x11a8] sm:$0xff]
        %v1106 = vld [vmem:[%s367 + $0x11b0] sm:$0xff]
        %v1107 = vld [vmem:[%s367 + $0x11b8] sm:$0xff]
        %v1108 = vld [vmem:[%s367 + $0x11c0] sm:$0xff]
        %v1109 = vld [vmem:[%s367 + $0x11c8] sm:$0xff]
        %v1110 = vld [vmem:[%s367 + $0x11d0] sm:$0xff]
        %v1111 = vld [vmem:[%s367 + $0x11d8] sm:$0xff]
        %v1112 = vld [vmem:[%s367 + $0x11e0] sm:$0xff]
        %v1113 = vld [vmem:[%s367 + $0x11e8] sm:$0xff]
        %v1114 = vld [vmem:[%s367 + $0x11f0] sm:$0xff]
        %v1115 = vld [vmem:[%s367 + $0x11f8] sm:$0xff]
        %v1116 = vld [vmem:[%s367 + $0x1200] sm:$0xff]
        %v1117 = vld [vmem:[%s367 + $0x1208] sm:$0xff]
        %v1118 = vld [vmem:[%s367 + $0x1210] sm:$0xff]
        %v1119 = vld [vmem:[%s367 + $0x1218] sm:$0xff]
        %v1120 = vld [vmem:[%s367 + $0x1220] sm:$0xff]
        %v1121 = vld [vmem:[%s367 + $0x1228] sm:$0xff]
        %v1122 = vld [vmem:[%s367 + $0x1230] sm:$0xff]
        %v1123 = vld [vmem:[%s367 + $0x1238] sm:$0xff]
        %v1124 = vld [vmem:[%s367 + $0x1240] sm:$0xff]
        %v1125 = vld [vmem:[%s367 + $0x1248] sm:$0xff]
        %v1126 = vld [vmem:[%s367 + $0x1250] sm:$0xff]
        %v1127 = vld [vmem:[%s367 + $0x1258] sm:$0xff]
        %v1128 = vld [vmem:[%s367 + $0x1260] sm:$0xff]
        %v1129 = vld [vmem:[%s367 + $0x1268] sm:$0xff]
        %v1130 = vld [vmem:[%s367 + $0x1270] sm:$0xff]
        %v1131 = vld [vmem:[%s367 + $0x1278] sm:$0xff]
        %v1132 = vld [vmem:[%s367 + $0x1280] sm:$0xff]
        %v1133 = vld [vmem:[%s367 + $0x1288] sm:$0xff]
        %v1134 = vld [vmem:[%s367 + $0x1290] sm:$0xff]
        %v1135 = vld [vmem:[%s367 + $0x1298] sm:$0xff]
        %v1136 = vld [vmem:[%s367 + $0x12a0] sm:$0xff]
        %v1137 = vld [vmem:[%s367 + $0x12a8] sm:$0xff]
        %v1138 = vld [vmem:[%s367 + $0x12b0] sm:$0xff]
        %v1139 = vld [vmem:[%s367 + $0x12b8] sm:$0xff]
        %v1140 = vld [vmem:[%s367 + $0x12c0] sm:$0xff]
        %v1141 = vld [vmem:[%s367 + $0x12c8] sm:$0xff]
        %v1142 = vld [vmem:[%s367 + $0x12d0] sm:$0xff]
        %v1143 = vld [vmem:[%s367 + $0x12d8] sm:$0xff]
        %v1144 = vld [vmem:[%s367 + $0x12e0] sm:$0xff]
        %v1145 = vld [vmem:[%s367 + $0x12e8] sm:$0xff]
        %v1146 = vld [vmem:[%s367 + $0x12f0] sm:$0xff]
        %v1147 = vld [vmem:[%s367 + $0x12f8] sm:$0xff]
        %v1148 = vld [vmem:[%s367 + $0x1300] sm:$0xff]
        %v1149 = vld [vmem:[%s367 + $0x1308] sm:$0xff]
        %v1150 = vld [vmem:[%s367 + $0x1310] sm:$0xff]
        %v1151 = vld [vmem:[%s367 + $0x1318] sm:$0xff]
        %v1152 = vld [vmem:[%s367 + $0x1320] sm:$0xff]
        %v1153 = vld [vmem:[%s367 + $0x1328] sm:$0xff]
        %v1154 = vld [vmem:[%s367 + $0x1330] sm:$0xff]
        %v1155 = vld [vmem:[%s367 + $0x1338] sm:$0xff]
        %v1156 = vld [vmem:[%s367 + $0x1340] sm:$0xff]
        %v1157 = vld [vmem:[%s367 + $0x1348] sm:$0xff]
        %v1158 = vld [vmem:[%s367 + $0x1350] sm:$0xff]
        %v1159 = vld [vmem:[%s367 + $0x1358] sm:$0xff]
        %v1160 = vld [vmem:[%s367 + $0x1360] sm:$0xff]
        %v1161 = vld [vmem:[%s367 + $0x1368] sm:$0xff]
        %v1162 = vld [vmem:[%s367 + $0x1370] sm:$0xff]
        %v1163 = vld [vmem:[%s367 + $0x1378] sm:$0xff]
        %v1164 = vld [vmem:[%s367 + $0x1380] sm:$0xff]
        %v1165 = vld [vmem:[%s367 + $0x1388] sm:$0xff]
        %v1166 = vld [vmem:[%s367 + $0x1390] sm:$0xff]
        %v1167 = vld [vmem:[%s367 + $0x1398] sm:$0xff]
        %v1168 = vld [vmem:[%s367 + $0x13a0] sm:$0xff]
        %v1169 = vld [vmem:[%s367 + $0x13a8] sm:$0xff]
        %v1170 = vld [vmem:[%s367 + $0x13b0] sm:$0xff]
        %v1171 = vld [vmem:[%s367 + $0x13b8] sm:$0xff]
        %v1172 = vld [vmem:[%s367 + $0x13c0] sm:$0xff]
        %v1173 = vld [vmem:[%s367 + $0x13c8] sm:$0xff]
        %v1174 = vld [vmem:[%s367 + $0x13d0] sm:$0xff]
        %v1175 = vld [vmem:[%s367 + $0x13d8] sm:$0xff]
        %v1176 = vld [vmem:[%s367 + $0x13e0] sm:$0xff]
        %v1177 = vld [vmem:[%s367 + $0x13e8] sm:$0xff]
        %v1178 = vld [vmem:[%s367 + $0x13f0] sm:$0xff]
        %v1179 = vld [vmem:[%s367 + $0x13f8] sm:$0xff]
        %v1180 = vld [vmem:[%s367 + $0x1400] sm:$0xff]
        %v1181 = vld [vmem:[%s367 + $0x1408] sm:$0xff]
        %v1182 = vld [vmem:[%s367 + $0x1410] sm:$0xff]
        %v1183 = vld [vmem:[%s367 + $0x1418] sm:$0xff]
        %v1184 = vld [vmem:[%s367 + $0x1420] sm:$0xff]
        %v1185 = vld [vmem:[%s367 + $0x1428] sm:$0xff]
        %v1186 = vld [vmem:[%s367 + $0x1430] sm:$0xff]
        %v1187 = vld [vmem:[%s367 + $0x1438] sm:$0xff]
        %v1188 = vld [vmem:[%s367 + $0x1440] sm:$0xff]
        %v1189 = vld [vmem:[%s367 + $0x1448] sm:$0xff]
        %v1190 = vld [vmem:[%s367 + $0x1450] sm:$0xff]
        %v1191 = vld [vmem:[%s367 + $0x1458] sm:$0xff]
        %v1192 = vld [vmem:[%s367 + $0x1460] sm:$0xff]
        %v1193 = vld [vmem:[%s367 + $0x1468] sm:$0xff]
        %v1194 = vld [vmem:[%s367 + $0x1470] sm:$0xff]
        %v1195 = vld [vmem:[%s367 + $0x1478] sm:$0xff]
        %v1196 = vld [vmem:[%s367 + $0x1480] sm:$0xff]
        %v1197 = vld [vmem:[%s367 + $0x1488] sm:$0xff]
        %v1198 = vld [vmem:[%s367 + $0x1490] sm:$0xff]
        %v1199 = vld [vmem:[%s367 + $0x1498] sm:$0xff]
        %v1200 = vld [vmem:[%s367 + $0x14a0] sm:$0xff]
        %v1201 = vld [vmem:[%s367 + $0x14a8] sm:$0xff]
        %v1202 = vld [vmem:[%s367 + $0x14b0] sm:$0xff]
        %v1203 = vld [vmem:[%s367 + $0x14b8] sm:$0xff]
        %v1204 = vld [vmem:[%s367 + $0x14c0] sm:$0xff]
        %v1205 = vld [vmem:[%s367 + $0x14c8] sm:$0xff]
        %v1206 = vld [vmem:[%s367 + $0x14d0] sm:$0xff]
        %v1207 = vld [vmem:[%s367 + $0x14d8] sm:$0xff]
        %v1208 = vld [vmem:[%s367 + $0x14e0] sm:$0xff]
        %v1209 = vld [vmem:[%s367 + $0x14e8] sm:$0xff]
        %v1210 = vld [vmem:[%s367 + $0x14f0] sm:$0xff]
        %v1211 = vld [vmem:[%s367 + $0x14f8] sm:$0xff]
        %v1212 = vld [vmem:[%s367 + $0x1500] sm:$0xff]
        %v1213 = vld [vmem:[%s367 + $0x1508] sm:$0xff]
        %v1214 = vld [vmem:[%s367 + $0x1510] sm:$0xff]
        %v1215 = vld [vmem:[%s367 + $0x1518] sm:$0xff]
        %v1216 = vld [vmem:[%s367 + $0x1520] sm:$0xff]
        %v1217 = vld [vmem:[%s367 + $0x1528] sm:$0xff]
        %v1218 = vld [vmem:[%s367 + $0x1530] sm:$0xff]
        %v1219 = vld [vmem:[%s367 + $0x1538] sm:$0xff]
        %v1220 = vld [vmem:[%s367 + $0x1540] sm:$0xff]
        %v1221 = vld [vmem:[%s367 + $0x1548] sm:$0xff]
        %v1222 = vld [vmem:[%s367 + $0x1550] sm:$0xff]
        %v1223 = vld [vmem:[%s367 + $0x1558] sm:$0xff]
        %v1224 = vld [vmem:[%s367 + $0x1560] sm:$0xff]
        %v1225 = vld [vmem:[%s367 + $0x1568] sm:$0xff]
        %v1226 = vld [vmem:[%s367 + $0x1570] sm:$0xff]
        %v1227 = vld [vmem:[%s367 + $0x1578] sm:$0xff]
        %v1228 = vld [vmem:[%s367 + $0x1580] sm:$0xff]
        %v1229 = vld [vmem:[%s367 + $0x1588] sm:$0xff]
        %v1230 = vld [vmem:[%s367 + $0x1590] sm:$0xff]
        %v1231 = vld [vmem:[%s367 + $0x1598] sm:$0xff]
        %v1232 = vld [vmem:[%s367 + $0x15a0] sm:$0xff]
        %v1233 = vld [vmem:[%s367 + $0x15a8] sm:$0xff]
        %v1234 = vld [vmem:[%s367 + $0x15b0] sm:$0xff]
        %v1235 = vld [vmem:[%s367 + $0x15b8] sm:$0xff]
        %v1236 = vld [vmem:[%s367 + $0x15c0] sm:$0xff]
        %v1237 = vld [vmem:[%s367 + $0x15c8] sm:$0xff]
        %v1238 = vld [vmem:[%s367 + $0x15d0] sm:$0xff]
        %v1239 = vld [vmem:[%s367 + $0x15d8] sm:$0xff]
        %v1240 = vld [vmem:[%s367 + $0x15e0] sm:$0xff]
        %v1241 = vld [vmem:[%s367 + $0x15e8] sm:$0xff]
        %v1242 = vld [vmem:[%s367 + $0x15f0] sm:$0xff]
        %v1243 = vld [vmem:[%s367 + $0x15f8] sm:$0xff]
        %v1244 = vld [vmem:[%s367 + $0x1600] sm:$0xff]
        %v1245 = vld [vmem:[%s367 + $0x1608] sm:$0xff]
        %v1246 = vld [vmem:[%s367 + $0x1610] sm:$0xff]
        %v1247 = vld [vmem:[%s367 + $0x1618] sm:$0xff]
        %v1248 = vld [vmem:[%s367 + $0x1620] sm:$0xff]
        %v1249 = vld [vmem:[%s367 + $0x1628] sm:$0xff]
        %v1250 = vld [vmem:[%s367 + $0x1630] sm:$0xff]
        %v1251 = vld [vmem:[%s367 + $0x1638] sm:$0xff]
        %v1252 = vld [vmem:[%s367 + $0x1640] sm:$0xff]
        %v1253 = vld [vmem:[%s367 + $0x1648] sm:$0xff]
        %v1254 = vld [vmem:[%s367 + $0x1650] sm:$0xff]
        %v1255 = vld [vmem:[%s367 + $0x1658] sm:$0xff]
        %v1256 = vld [vmem:[%s367 + $0x1660] sm:$0xff]
        %v1257 = vld [vmem:[%s367 + $0x1668] sm:$0xff]
        %v1258 = vld [vmem:[%s367 + $0x1670] sm:$0xff]
        %v1259 = vld [vmem:[%s367 + $0x1678] sm:$0xff]
        %v1260 = vld [vmem:[%s367 + $0x1680] sm:$0xff]
        %v1261 = vld [vmem:[%s367 + $0x1688] sm:$0xff]
        %v1262 = vld [vmem:[%s367 + $0x1690] sm:$0xff]
        %v1263 = vld [vmem:[%s367 + $0x1698] sm:$0xff]
        %v1264 = vld [vmem:[%s367 + $0x16a0] sm:$0xff]
        %v1265 = vld [vmem:[%s367 + $0x16a8] sm:$0xff]
        %v1266 = vld [vmem:[%s367 + $0x16b0] sm:$0xff]
        %v1267 = vld [vmem:[%s367 + $0x16b8] sm:$0xff]
        %v1268 = vld [vmem:[%s367 + $0x16c0] sm:$0xff]
        %v1269 = vld [vmem:[%s367 + $0x16c8] sm:$0xff]
        %v1270 = vld [vmem:[%s367 + $0x16d0] sm:$0xff]
        %v1271 = vld [vmem:[%s367 + $0x16d8] sm:$0xff]
        %v1272 = vld [vmem:[%s367 + $0x16e0] sm:$0xff]
        %v1273 = vld [vmem:[%s367 + $0x16e8] sm:$0xff]
        %v1274 = vld [vmem:[%s367 + $0x16f0] sm:$0xff]
        %v1275 = vld [vmem:[%s367 + $0x16f8] sm:$0xff]
        %v1276 = vld [vmem:[%s367 + $0x1700] sm:$0xff]
        %v1277 = vld [vmem:[%s367 + $0x1708] sm:$0xff]
        %v1278 = vld [vmem:[%s367 + $0x1710] sm:$0xff]
        %v1279 = vld [vmem:[%s367 + $0x1718] sm:$0xff]
        %v1280 = vld [vmem:[%s367 + $0x1720] sm:$0xff]
        %v1281 = vld [vmem:[%s367 + $0x1728] sm:$0xff]
        %v1282 = vld [vmem:[%s367 + $0x1730] sm:$0xff]
        %v1283 = vld [vmem:[%s367 + $0x1738] sm:$0xff]
        %v1284 = vld [vmem:[%s367 + $0x1740] sm:$0xff]
        %v1285 = vld [vmem:[%s367 + $0x1748] sm:$0xff]
        %v1286 = vld [vmem:[%s367 + $0x1750] sm:$0xff]
        %v1287 = vld [vmem:[%s367 + $0x1758] sm:$0xff]
        %v1288 = vld [vmem:[%s367 + $0x1760] sm:$0xff]
        %v1289 = vld [vmem:[%s367 + $0x1768] sm:$0xff]
        %v1290 = vld [vmem:[%s367 + $0x1770] sm:$0xff]
        %v1291 = vld [vmem:[%s367 + $0x1778] sm:$0xff]
        %v1292 = vld [vmem:[%s367 + $0x1780] sm:$0xff]
        %v1293 = vld [vmem:[%s367 + $0x1788] sm:$0xff]
        %v1294 = vld [vmem:[%s367 + $0x1790] sm:$0xff]
        %v1295 = vld [vmem:[%s367 + $0x1798] sm:$0xff]
        %v1296 = vld [vmem:[%s367 + $0x17a0] sm:$0xff]
        %v1297 = vld [vmem:[%s367 + $0x17a8] sm:$0xff]
        %v1298 = vld [vmem:[%s367 + $0x17b0] sm:$0xff]
        %v1299 = vld [vmem:[%s367 + $0x17b8] sm:$0xff]
        %v1300 = vld [vmem:[%s367 + $0x17c0] sm:$0xff]
        %v1301 = vld [vmem:[%s367 + $0x17c8] sm:$0xff]
        %v1302 = vld [vmem:[%s367 + $0x17d0] sm:$0xff]
        %v1303 = vld [vmem:[%s367 + $0x17d8] sm:$0xff]
        %v1304 = vld [vmem:[%s367 + $0x17e0] sm:$0xff]
        %v1305 = vld [vmem:[%s367 + $0x17e8] sm:$0xff]
        %v1306 = vld [vmem:[%s367 + $0x17f0] sm:$0xff]
        %v1307 = vld [vmem:[%s367 + $0x17f8] sm:$0xff]
        %v1308 = vld [vmem:[%s367 + $0x1800] sm:$0xff]
        %v1309 = vld [vmem:[%s367 + $0x1808] sm:$0xff]
        %v1310 = vld [vmem:[%s367 + $0x1810] sm:$0xff]
        %v1311 = vld [vmem:[%s367 + $0x1818] sm:$0xff]
        %v1312 = vld [vmem:[%s367 + $0x1820] sm:$0xff]
        %v1313 = vld [vmem:[%s367 + $0x1828] sm:$0xff]
        %v1314 = vld [vmem:[%s367 + $0x1830] sm:$0xff]
        %v1315 = vld [vmem:[%s367 + $0x1838] sm:$0xff]
        %v1316 = vld [vmem:[%s367 + $0x1840] sm:$0xff]
        %v1317 = vld [vmem:[%s367 + $0x1848] sm:$0xff]
        %v1318 = vld [vmem:[%s367 + $0x1850] sm:$0xff]
        %v1319 = vld [vmem:[%s367 + $0x1858] sm:$0xff]
        %v1320 = vld [vmem:[%s367 + $0x1860] sm:$0xff]
        %v1321 = vld [vmem:[%s367 + $0x1868] sm:$0xff]
        %v1322 = vld [vmem:[%s367 + $0x1870] sm:$0xff]
        %v1323 = vld [vmem:[%s367 + $0x1878] sm:$0xff]
        %v1324 = vld [vmem:[%s367 + $0x1880] sm:$0xff]
        %v1325 = vld [vmem:[%s367 + $0x1888] sm:$0xff]
        %v1326 = vld [vmem:[%s367 + $0x1890] sm:$0xff]
        %v1327 = vld [vmem:[%s367 + $0x1898] sm:$0xff]
        %v1328 = vld [vmem:[%s367 + $0x18a0] sm:$0xff]
        %v1329 = vld [vmem:[%s367 + $0x18a8] sm:$0xff]
        %v1330 = vld [vmem:[%s367 + $0x18b0] sm:$0xff]
        %v1331 = vld [vmem:[%s367 + $0x18b8] sm:$0xff]
        %v1332 = vld [vmem:[%s367 + $0x18c0] sm:$0xff]
        %v1333 = vld [vmem:[%s367 + $0x18c8] sm:$0xff]
        %v1334 = vld [vmem:[%s367 + $0x18d0] sm:$0xff]
        %v1335 = vld [vmem:[%s367 + $0x18d8] sm:$0xff]
        %v1336 = vld [vmem:[%s367 + $0x18e0] sm:$0xff]
        %v1337 = vld [vmem:[%s367 + $0x18e8] sm:$0xff]
        %v1338 = vld [vmem:[%s367 + $0x18f0] sm:$0xff]
        %v1339 = vld [vmem:[%s367 + $0x18f8] sm:$0xff]
        %v1340 = vld [vmem:[%s367 + $0x1900] sm:$0xff]
        %v1341 = vld [vmem:[%s367 + $0x1908] sm:$0xff]
        %v1342 = vld [vmem:[%s367 + $0x1910] sm:$0xff]
        %v1343 = vld [vmem:[%s367 + $0x1918] sm:$0xff]
        %v1344 = vld [vmem:[%s367 + $0x1920] sm:$0xff]
        %v1345 = vld [vmem:[%s367 + $0x1928] sm:$0xff]
        %v1346 = vld [vmem:[%s367 + $0x1930] sm:$0xff]
        %v1347 = vld [vmem:[%s367 + $0x1938] sm:$0xff]
        %v1348 = vld [vmem:[%s367 + $0x1940] sm:$0xff]
        %v1349 = vld [vmem:[%s367 + $0x1948] sm:$0xff]
        %v1350 = vld [vmem:[%s367 + $0x1950] sm:$0xff]
        %v1351 = vld [vmem:[%s367 + $0x1958] sm:$0xff]
        %v1352 = vld [vmem:[%s367 + $0x1960] sm:$0xff]
        %v1353 = vld [vmem:[%s367 + $0x1968] sm:$0xff]
        %v1354 = vld [vmem:[%s367 + $0x1970] sm:$0xff]
        %v1355 = vld [vmem:[%s367 + $0x1978] sm:$0xff]
        %v1356 = vld [vmem:[%s367 + $0x1980] sm:$0xff]
        %v1357 = vld [vmem:[%s367 + $0x1988] sm:$0xff]
        %v1358 = vld [vmem:[%s367 + $0x1990] sm:$0xff]
        %v1359 = vld [vmem:[%s367 + $0x1998] sm:$0xff]
        %v1360 = vld [vmem:[%s367 + $0x19a0] sm:$0xff]
        %v1361 = vld [vmem:[%s367 + $0x19a8] sm:$0xff]
        %v1362 = vld [vmem:[%s367 + $0x19b0] sm:$0xff]
        %v1363 = vld [vmem:[%s367 + $0x19b8] sm:$0xff]
        %v1364 = vld [vmem:[%s367 + $0x19c0] sm:$0xff]
        %v1365 = vld [vmem:[%s367 + $0x19c8] sm:$0xff]
        %v1366 = vld [vmem:[%s367 + $0x19d0] sm:$0xff]
        %v1367 = vld [vmem:[%s367 + $0x19d8] sm:$0xff]
        %v1368 = vld [vmem:[%s367 + $0x19e0] sm:$0xff]
        %v1369 = vld [vmem:[%s367 + $0x19e8] sm:$0xff]
        %v1370 = vld [vmem:[%s367 + $0x19f0] sm:$0xff]
        %v1371 = vld [vmem:[%s367 + $0x19f8] sm:$0xff]
        %v1372 = vld [vmem:[%s367 + $0x1a00] sm:$0xff]
        %v1373 = vld [vmem:[%s367 + $0x1a08] sm:$0xff]
        %v1374 = vld [vmem:[%s367 + $0x1a10] sm:$0xff]
        %v1375 = vld [vmem:[%s367 + $0x1a18] sm:$0xff]
        %v1376 = vld [vmem:[%s367 + $0x1a20] sm:$0xff]
        %v1377 = vld [vmem:[%s367 + $0x1a28] sm:$0xff]
        %v1378 = vld [vmem:[%s367 + $0x1a30] sm:$0xff]
        %v1379 = vld [vmem:[%s367 + $0x1a38] sm:$0xff]
        %v1380 = vld [vmem:[%s367 + $0x1a40] sm:$0xff]
        %v1381 = vld [vmem:[%s367 + $0x1a48] sm:$0xff]
        %v1382 = vld [vmem:[%s367 + $0x1a50] sm:$0xff]
        %v1383 = vld [vmem:[%s367 + $0x1a58] sm:$0xff]
        %v1384 = vld [vmem:[%s367 + $0x1a60] sm:$0xff]
        %v1385 = vld [vmem:[%s367 + $0x1a68] sm:$0xff]
        %v1386 = vld [vmem:[%s367 + $0x1a70] sm:$0xff]
        %v1387 = vld [vmem:[%s367 + $0x1a78] sm:$0xff]
        %v1388 = vld [vmem:[%s367 + $0x1a80] sm:$0xff]
        %v1389 = vld [vmem:[%s367 + $0x1a88] sm:$0xff]
        %v1390 = vld [vmem:[%s367 + $0x1a90] sm:$0xff]
        %v1391 = vld [vmem:[%s367 + $0x1a98] sm:$0xff]
        %v1392 = vld [vmem:[%s367 + $0x1aa0] sm:$0xff]
        %v1393 = vld [vmem:[%s367 + $0x1aa8] sm:$0xff]
        %v1394 = vld [vmem:[%s367 + $0x1ab0] sm:$0xff]
        %v1395 = vld [vmem:[%s367 + $0x1ab8] sm:$0xff]
        %v1396 = vld [vmem:[%s367 + $0x1ac0] sm:$0xff]
        %v1397 = vld [vmem:[%s367 + $0x1ac8] sm:$0xff]
        %v1398 = vld [vmem:[%s367 + $0x1ad0] sm:$0xff]
        %v1399 = vld [vmem:[%s367 + $0x1ad8] sm:$0xff]
        %v1400 = vld [vmem:[%s367 + $0x1ae0] sm:$0xff]
        %v1401 = vld [vmem:[%s367 + $0x1ae8] sm:$0xff]
        %v1402 = vld [vmem:[%s367 + $0x1af0] sm:$0xff]
        %v1403 = vld [vmem:[%s367 + $0x1af8] sm:$0xff]
        %v1404 = vld [vmem:[%s367 + $0x1b00] sm:$0xff]
        %v1405 = vld [vmem:[%s367 + $0x1b08] sm:$0xff]
        %v1406 = vld [vmem:[%s367 + $0x1b10] sm:$0xff]
        %v1407 = vld [vmem:[%s367 + $0x1b18] sm:$0xff]
        %v1408 = vld [vmem:[%s367 + $0x1b20] sm:$0xff]
        %v1409 = vld [vmem:[%s367 + $0x1b28] sm:$0xff]
        %v1410 = vld [vmem:[%s367 + $0x1b30] sm:$0xff]
        %v1411 = vld [vmem:[%s367 + $0x1b38] sm:$0xff]
        %v1412 = vld [vmem:[%s367 + $0x1b40] sm:$0xff]
        %v1413 = vld [vmem:[%s367 + $0x1b48] sm:$0xff]
        %v1414 = vld [vmem:[%s367 + $0x1b50] sm:$0xff]
        %v1415 = vld [vmem:[%s367 + $0x1b58] sm:$0xff]
        %v1416 = vld [vmem:[%s367 + $0x1b60] sm:$0xff]
        %v1417 = vld [vmem:[%s367 + $0x1b68] sm:$0xff]
        %v1418 = vld [vmem:[%s367 + $0x1b70] sm:$0xff]
        %v1419 = vld [vmem:[%s367 + $0x1b78] sm:$0xff]
        %v1420 = vld [vmem:[%s367 + $0x1b80] sm:$0xff]
        %v1421 = vld [vmem:[%s367 + $0x1b88] sm:$0xff]
        %v1422 = vld [vmem:[%s367 + $0x1b90] sm:$0xff]
        %v1423 = vld [vmem:[%s367 + $0x1b98] sm:$0xff]
        %v1424 = vld [vmem:[%s367 + $0x1ba0] sm:$0xff]
        %v1425 = vld [vmem:[%s367 + $0x1ba8] sm:$0xff]
        %v1426 = vld [vmem:[%s367 + $0x1bb0] sm:$0xff]
        %v1427 = vld [vmem:[%s367 + $0x1bb8] sm:$0xff]
        %v1428 = vld [vmem:[%s367 + $0x1bc0] sm:$0xff]
        %v1429 = vld [vmem:[%s367 + $0x1bc8] sm:$0xff]
        %v1430 = vld [vmem:[%s367 + $0x1bd0] sm:$0xff]
        %v1431 = vld [vmem:[%s367 + $0x1bd8] sm:$0xff]
        %v1432 = vld [vmem:[%s367 + $0x1be0] sm:$0xff]
        %v1433 = vld [vmem:[%s367 + $0x1be8] sm:$0xff]
        %v1434 = vld [vmem:[%s367 + $0x1bf0] sm:$0xff]
        %v1435 = vld [vmem:[%s367 + $0x1bf8] sm:$0xff]
        %v1436 = vld [vmem:[%s367 + $0x1c00] sm:$0xff]
        %v1437 = vld [vmem:[%s367 + $0x1c08] sm:$0xff]
        %v1438 = vld [vmem:[%s367 + $0x1c10] sm:$0xff]
        %v1439 = vld [vmem:[%s367 + $0x1c18] sm:$0xff]
        %v1440 = vld [vmem:[%s367 + $0x1c20] sm:$0xff]
        %v1441 = vld [vmem:[%s367 + $0x1c28] sm:$0xff]
        %v1442 = vld [vmem:[%s367 + $0x1c30] sm:$0xff]
        %v1443 = vld [vmem:[%s367 + $0x1c38] sm:$0xff]
        %v1444 = vld [vmem:[%s367 + $0x1c40] sm:$0xff]
        %v1445 = vld [vmem:[%s367 + $0x1c48] sm:$0xff]
        %v1446 = vld [vmem:[%s367 + $0x1c50] sm:$0xff]
        %v1447 = vld [vmem:[%s367 + $0x1c58] sm:$0xff]
        %v1448 = vld [vmem:[%s367 + $0x1c60] sm:$0xff]
        %v1449 = vld [vmem:[%s367 + $0x1c68] sm:$0xff]
        %v1450 = vld [vmem:[%s367 + $0x1c70] sm:$0xff]
        %v1451 = vld [vmem:[%s367 + $0x1c78] sm:$0xff]
        %v1452 = vld [vmem:[%s367 + $0x1c80] sm:$0xff]
        %v1453 = vld [vmem:[%s367 + $0x1c88] sm:$0xff]
        %v1454 = vld [vmem:[%s367 + $0x1c90] sm:$0xff]
        %v1455 = vld [vmem:[%s367 + $0x1c98] sm:$0xff]
        %v1456 = vld [vmem:[%s367 + $0x1ca0] sm:$0xff]
        %v1457 = vld [vmem:[%s367 + $0x1ca8] sm:$0xff]
        %v1458 = vld [vmem:[%s367 + $0x1cb0] sm:$0xff]
        %v1459 = vld [vmem:[%s367 + $0x1cb8] sm:$0xff]
        %v1460 = vld [vmem:[%s367 + $0x1cc0] sm:$0xff]
        %v1461 = vld [vmem:[%s367 + $0x1cc8] sm:$0xff]
        %v1462 = vld [vmem:[%s367 + $0x1cd0] sm:$0xff]
        %v1463 = vld [vmem:[%s367 + $0x1cd8] sm:$0xff]
        %v1464 = vld [vmem:[%s367 + $0x1ce0] sm:$0xff]
        %v1465 = vld [vmem:[%s367 + $0x1ce8] sm:$0xff]
        %v1466 = vld [vmem:[%s367 + $0x1cf0] sm:$0xff]
        %v1467 = vld [vmem:[%s367 + $0x1cf8] sm:$0xff]
        %v1468 = vld [vmem:[%s367 + $0x1d00] sm:$0xff]
        %v1469 = vld [vmem:[%s367 + $0x1d08] sm:$0xff]
        %v1470 = vld [vmem:[%s367 + $0x1d10] sm:$0xff]
        %v1471 = vld [vmem:[%s367 + $0x1d18] sm:$0xff]
        %v1472 = vld [vmem:[%s367 + $0x1d20] sm:$0xff]
        %v1473 = vld [vmem:[%s367 + $0x1d28] sm:$0xff]
        %v1474 = vld [vmem:[%s367 + $0x1d30] sm:$0xff]
        %v1475 = vld [vmem:[%s367 + $0x1d38] sm:$0xff]
        %v1476 = vld [vmem:[%s367 + $0x1d40] sm:$0xff]
        %v1477 = vld [vmem:[%s367 + $0x1d48] sm:$0xff]
        %v1478 = vld [vmem:[%s367 + $0x1d50] sm:$0xff]
        %v1479 = vld [vmem:[%s367 + $0x1d58] sm:$0xff]
        %v1480 = vld [vmem:[%s367 + $0x1d60] sm:$0xff]
        %v1481 = vld [vmem:[%s367 + $0x1d68] sm:$0xff]
        %v1482 = vld [vmem:[%s367 + $0x1d70] sm:$0xff]
        %v1483 = vld [vmem:[%s367 + $0x1d78] sm:$0xff]
        %v1484 = vld [vmem:[%s367 + $0x1d80] sm:$0xff]
        %v1485 = vld [vmem:[%s367 + $0x1d88] sm:$0xff]
        %v1486 = vld [vmem:[%s367 + $0x1d90] sm:$0xff]
        %v1487 = vld [vmem:[%s367 + $0x1d98] sm:$0xff]
        %v1488 = vld [vmem:[%s367 + $0x1da0] sm:$0xff]
        %v1489 = vld [vmem:[%s367 + $0x1da8] sm:$0xff]
        %v1490 = vld [vmem:[%s367 + $0x1db0] sm:$0xff]
        %v1491 = vld [vmem:[%s367 + $0x1db8] sm:$0xff]
        %v1492 = vld [vmem:[%s367 + $0x1dc0] sm:$0xff]
        %v1493 = vld [vmem:[%s367 + $0x1dc8] sm:$0xff]
        %v1494 = vld [vmem:[%s367 + $0x1dd0] sm:$0xff]
        %v1495 = vld [vmem:[%s367 + $0x1dd8] sm:$0xff]
        %v1496 = vld [vmem:[%s367 + $0x1de0] sm:$0xff]
        %v1497 = vld [vmem:[%s367 + $0x1de8] sm:$0xff]
        %v1498 = vld [vmem:[%s367 + $0x1df0] sm:$0xff]
        %v1499 = vld [vmem:[%s367 + $0x1df8] sm:$0xff]
        %v1500 = vld [vmem:[%s367 + $0x1e00] sm:$0xff]
        %v1501 = vld [vmem:[%s367 + $0x1e08] sm:$0xff]
        %v1502 = vld [vmem:[%s367 + $0x1e10] sm:$0xff]
        %v1503 = vld [vmem:[%s367 + $0x1e18] sm:$0xff]
        %v1504 = vld [vmem:[%s367 + $0x1e20] sm:$0xff]
        %v1505 = vld [vmem:[%s367 + $0x1e28] sm:$0xff]
        %v1506 = vld [vmem:[%s367 + $0x1e30] sm:$0xff]
        %v1507 = vld [vmem:[%s367 + $0x1e38] sm:$0xff]
        %v1508 = vld [vmem:[%s367 + $0x1e40] sm:$0xff]
        %v1509 = vld [vmem:[%s367 + $0x1e48] sm:$0xff]
        %v1510 = vld [vmem:[%s367 + $0x1e50] sm:$0xff]
        %v1511 = vld [vmem:[%s367 + $0x1e58] sm:$0xff]
        %v1512 = vld [vmem:[%s367 + $0x1e60] sm:$0xff]
        %v1513 = vld [vmem:[%s367 + $0x1e68] sm:$0xff]
        %v1514 = vld [vmem:[%s367 + $0x1e70] sm:$0xff]
        %v1515 = vld [vmem:[%s367 + $0x1e78] sm:$0xff]
        %v1516 = vld [vmem:[%s367 + $0x1e80] sm:$0xff]
        %v1517 = vld [vmem:[%s367 + $0x1e88] sm:$0xff]
        %v1518 = vld [vmem:[%s367 + $0x1e90] sm:$0xff]
        %v1519 = vld [vmem:[%s367 + $0x1e98] sm:$0xff]
        %v1520 = vld [vmem:[%s367 + $0x1ea0] sm:$0xff]
        %v1521 = vld [vmem:[%s367 + $0x1ea8] sm:$0xff]
        %v1522 = vld [vmem:[%s367 + $0x1eb0] sm:$0xff]
        %v1523 = vld [vmem:[%s367 + $0x1eb8] sm:$0xff]
        %v1524 = vld [vmem:[%s367 + $0x1ec0] sm:$0xff]
        %v1525 = vld [vmem:[%s367 + $0x1ec8] sm:$0xff]
        %v1526 = vld [vmem:[%s367 + $0x1ed0] sm:$0xff]
        %v1527 = vld [vmem:[%s367 + $0x1ed8] sm:$0xff]
        %v1528 = vld [vmem:[%s367 + $0x1ee0] sm:$0xff]
        %v1529 = vld [vmem:[%s367 + $0x1ee8] sm:$0xff]
        %v1530 = vld [vmem:[%s367 + $0x1ef0] sm:$0xff]
        %v1531 = vld [vmem:[%s367 + $0x1ef8] sm:$0xff]
        %v1532 = vld [vmem:[%s367 + $0x1f00] sm:$0xff]
        %v1533 = vld [vmem:[%s367 + $0x1f08] sm:$0xff]
        %v1534 = vld [vmem:[%s367 + $0x1f10] sm:$0xff]
        %v1535 = vld [vmem:[%s367 + $0x1f18] sm:$0xff]
        %v1536 = vld [vmem:[%s367 + $0x1f20] sm:$0xff]
        %v1537 = vld [vmem:[%s367 + $0x1f28] sm:$0xff]
        %v1538 = vld [vmem:[%s367 + $0x1f30] sm:$0xff]
        %v1539 = vld [vmem:[%s367 + $0x1f38] sm:$0xff]
        %v1540 = vld [vmem:[%s367 + $0x1f40] sm:$0xff]
        %v1541 = vld [vmem:[%s367 + $0x1f48] sm:$0xff]
        %v1542 = vld [vmem:[%s367 + $0x1f50] sm:$0xff]
        %v1543 = vld [vmem:[%s367 + $0x1f58] sm:$0xff]
        %v1544 = vld [vmem:[%s367 + $0x1f60] sm:$0xff]
        %v1545 = vld [vmem:[%s367 + $0x1f68] sm:$0xff]
        %v1546 = vld [vmem:[%s367 + $0x1f70] sm:$0xff]
        %v1547 = vld [vmem:[%s367 + $0x1f78] sm:$0xff]
        %v1548 = vld [vmem:[%s367 + $0x1f80] sm:$0xff]
        %v1549 = vld [vmem:[%s367 + $0x1f88] sm:$0xff]
        %v1550 = vld [vmem:[%s367 + $0x1f90] sm:$0xff]
        %v1551 = vld [vmem:[%s367 + $0x1f98] sm:$0xff]
        %v1552 = vld [vmem:[%s367 + $0x1fa0] sm:$0xff]
        %v1553 = vld [vmem:[%s367 + $0x1fa8] sm:$0xff]
        %v1554 = vld [vmem:[%s367 + $0x1fb0] sm:$0xff]
        %v1555 = vld [vmem:[%s367 + $0x1fb8] sm:$0xff]
        %v1556 = vld [vmem:[%s367 + $0x1fc0] sm:$0xff]
        %v1557 = vld [vmem:[%s367 + $0x1fc8] sm:$0xff]
        %v1558 = vld [vmem:[%s367 + $0x1fd0] sm:$0xff]
        %v1559 = vld [vmem:[%s367 + $0x1fd8] sm:$0xff]
        %v1560 = vld [vmem:[%s367 + $0x1fe0] sm:$0xff]
        %v1561 = vld [vmem:[%s367 + $0x1fe8] sm:$0xff]
        %v1562 = vld [vmem:[%s367 + $0x1ff0] sm:$0xff]
        %v1563 = vld [vmem:[%s367 + $0x1ff8] sm:$0xff]
        %v2588 = vunpack.c.l.b16 %v540
        %v2589 = vunpack.c.h.b16 %v540
        %v2590 = vunpack.c.l.b16 %v541
        %v2591 = vunpack.c.h.b16 %v541
        %v2592 = vunpack.c.l.b16 %v542
        %v2593 = vunpack.c.h.b16 %v542
        %v2594 = vunpack.c.l.b16 %v543
        %v2595 = vunpack.c.h.b16 %v543
        %v2596 = vunpack.c.l.b16 %v544
        %v2597 = vunpack.c.h.b16 %v544
        %v2598 = vunpack.c.l.b16 %v545
        %v2599 = vunpack.c.h.b16 %v545
        %v2600 = vunpack.c.l.b16 %v546
        %v2601 = vunpack.c.h.b16 %v546
        %v2602 = vunpack.c.l.b16 %v547
        %v2603 = vunpack.c.h.b16 %v547
        %v2604 = vunpack.c.l.b16 %v548
        %v2605 = vunpack.c.h.b16 %v548
        %v2606 = vunpack.c.l.b16 %v549
        %v2607 = vunpack.c.h.b16 %v549
        %v2608 = vunpack.c.l.b16 %v550
        %v2609 = vunpack.c.h.b16 %v550
        %v2610 = vunpack.c.l.b16 %v551
        %v2611 = vunpack.c.h.b16 %v551
        %v2612 = vunpack.c.l.b16 %v552
        %v2613 = vunpack.c.h.b16 %v552
        %v2614 = vunpack.c.l.b16 %v553
        %v2615 = vunpack.c.h.b16 %v553
        %v2616 = vunpack.c.l.b16 %v554
        %v2617 = vunpack.c.h.b16 %v554
        %v2618 = vunpack.c.l.b16 %v555
        %v2619 = vunpack.c.h.b16 %v555
        %v2620 = vunpack.c.l.b16 %v556
        %v2621 = vunpack.c.h.b16 %v556
        %v2622 = vunpack.c.l.b16 %v557
        %v2623 = vunpack.c.h.b16 %v557
        %v2624 = vunpack.c.l.b16 %v558
        %v2625 = vunpack.c.h.b16 %v558
        %v2626 = vunpack.c.l.b16 %v559
        %v2627 = vunpack.c.h.b16 %v559
        %v2628 = vunpack.c.l.b16 %v560
        %v2629 = vunpack.c.h.b16 %v560
        %v2630 = vunpack.c.l.b16 %v561
        %v2631 = vunpack.c.h.b16 %v561
        %v2632 = vunpack.c.l.b16 %v562
        %v2633 = vunpack.c.h.b16 %v562
        %v2634 = vunpack.c.l.b16 %v563
        %v2635 = vunpack.c.h.b16 %v563
        %v2636 = vunpack.c.l.b16 %v564
        %v2637 = vunpack.c.h.b16 %v564
        %v2638 = vunpack.c.l.b16 %v565
        %v2639 = vunpack.c.h.b16 %v565
        %v2640 = vunpack.c.l.b16 %v566
        %v2641 = vunpack.c.h.b16 %v566
        %v2642 = vunpack.c.l.b16 %v567
        %v2643 = vunpack.c.h.b16 %v567
        %v2644 = vunpack.c.l.b16 %v568
        %v2645 = vunpack.c.h.b16 %v568
        %v2646 = vunpack.c.l.b16 %v569
        %v2647 = vunpack.c.h.b16 %v569
        %v2648 = vunpack.c.l.b16 %v570
        %v2649 = vunpack.c.h.b16 %v570
        %v2650 = vunpack.c.l.b16 %v571
        %v2651 = vunpack.c.h.b16 %v571
        %v2652 = vunpack.c.l.b16 %v572
        %v2653 = vunpack.c.h.b16 %v572
        %v2654 = vunpack.c.l.b16 %v573
        %v2655 = vunpack.c.h.b16 %v573
        %v2656 = vunpack.c.l.b16 %v574
        %v2657 = vunpack.c.h.b16 %v574
        %v2658 = vunpack.c.l.b16 %v575
        %v2659 = vunpack.c.h.b16 %v575
        %v2660 = vunpack.c.l.b16 %v576
        %v2661 = vunpack.c.h.b16 %v576
        %v2662 = vunpack.c.l.b16 %v577
        %v2663 = vunpack.c.h.b16 %v577
        %v2664 = vunpack.c.l.b16 %v578
        %v2665 = vunpack.c.h.b16 %v578
        %v2666 = vunpack.c.l.b16 %v579
        %v2667 = vunpack.c.h.b16 %v579
        %v2668 = vunpack.c.l.b16 %v580
        %v2669 = vunpack.c.h.b16 %v580
        %v2670 = vunpack.c.l.b16 %v581
        %v2671 = vunpack.c.h.b16 %v581
        %v2672 = vunpack.c.l.b16 %v582
        %v2673 = vunpack.c.h.b16 %v582
        %v2674 = vunpack.c.l.b16 %v583
        %v2675 = vunpack.c.h.b16 %v583
        %v2676 = vunpack.c.l.b16 %v584
        %v2677 = vunpack.c.h.b16 %v584
        %v2678 = vunpack.c.l.b16 %v585
        %v2679 = vunpack.c.h.b16 %v585
        %v2680 = vunpack.c.l.b16 %v586
        %v2681 = vunpack.c.h.b16 %v586
        %v2682 = vunpack.c.l.b16 %v587
        %v2683 = vunpack.c.h.b16 %v587
        %v2684 = vunpack.c.l.b16 %v588
        %v2685 = vunpack.c.h.b16 %v588
        %v2686 = vunpack.c.l.b16 %v589
        %v2687 = vunpack.c.h.b16 %v589
        %v2688 = vunpack.c.l.b16 %v590
        %v2689 = vunpack.c.h.b16 %v590
        %v2690 = vunpack.c.l.b16 %v591
        %v2691 = vunpack.c.h.b16 %v591
        %v2692 = vunpack.c.l.b16 %v592
        %v2693 = vunpack.c.h.b16 %v592
        %v2694 = vunpack.c.l.b16 %v593
        %v2695 = vunpack.c.h.b16 %v593
        %v2696 = vunpack.c.l.b16 %v594
        %v2697 = vunpack.c.h.b16 %v594
        %v2698 = vunpack.c.l.b16 %v595
        %v2699 = vunpack.c.h.b16 %v595
        %v2700 = vunpack.c.l.b16 %v596
        %v2701 = vunpack.c.h.b16 %v596
        %v2702 = vunpack.c.l.b16 %v597
        %v2703 = vunpack.c.h.b16 %v597
        %v2704 = vunpack.c.l.b16 %v598
        %v2705 = vunpack.c.h.b16 %v598
        %v2706 = vunpack.c.l.b16 %v599
        %v2707 = vunpack.c.h.b16 %v599
        %v2708 = vunpack.c.l.b16 %v600
        %v2709 = vunpack.c.h.b16 %v600
        %v2710 = vunpack.c.l.b16 %v601
        %v2711 = vunpack.c.h.b16 %v601
        %v2712 = vunpack.c.l.b16 %v602
        %v2713 = vunpack.c.h.b16 %v602
        %v2714 = vunpack.c.l.b16 %v603
        %v2715 = vunpack.c.h.b16 %v603
        %v2716 = vunpack.c.l.b16 %v604
        %v2717 = vunpack.c.h.b16 %v604
        %v2718 = vunpack.c.l.b16 %v605
        %v2719 = vunpack.c.h.b16 %v605
        %v2720 = vunpack.c.l.b16 %v606
        %v2721 = vunpack.c.h.b16 %v606
        %v2722 = vunpack.c.l.b16 %v607
        %v2723 = vunpack.c.h.b16 %v607
        %v2724 = vunpack.c.l.b16 %v608
        %v2725 = vunpack.c.h.b16 %v608
        %v2726 = vunpack.c.l.b16 %v609
        %v2727 = vunpack.c.h.b16 %v609
        %v2728 = vunpack.c.l.b16 %v610
        %v2729 = vunpack.c.h.b16 %v610
        %v2730 = vunpack.c.l.b16 %v611
        %v2731 = vunpack.c.h.b16 %v611
        %v2732 = vunpack.c.l.b16 %v612
        %v2733 = vunpack.c.h.b16 %v612
        %v2734 = vunpack.c.l.b16 %v613
        %v2735 = vunpack.c.h.b16 %v613
        %v2736 = vunpack.c.l.b16 %v614
        %v2737 = vunpack.c.h.b16 %v614
        %v2738 = vunpack.c.l.b16 %v615
        %v2739 = vunpack.c.h.b16 %v615
        %v2740 = vunpack.c.l.b16 %v616
        %v2741 = vunpack.c.h.b16 %v616
        %v2742 = vunpack.c.l.b16 %v617
        %v2743 = vunpack.c.h.b16 %v617
        %v2744 = vunpack.c.l.b16 %v618
        %v2745 = vunpack.c.h.b16 %v618
        %v2746 = vunpack.c.l.b16 %v619
        %v2747 = vunpack.c.h.b16 %v619
        %v2748 = vunpack.c.l.b16 %v620
        %v2749 = vunpack.c.h.b16 %v620
        %v2750 = vunpack.c.l.b16 %v621
        %v2751 = vunpack.c.h.b16 %v621
        %v2752 = vunpack.c.l.b16 %v622
        %v2753 = vunpack.c.h.b16 %v622
        %v2754 = vunpack.c.l.b16 %v623
        %v2755 = vunpack.c.h.b16 %v623
        %v2756 = vunpack.c.l.b16 %v624
        %v2757 = vunpack.c.h.b16 %v624
        %v2758 = vunpack.c.l.b16 %v625
        %v2759 = vunpack.c.h.b16 %v625
        %v2760 = vunpack.c.l.b16 %v626
        %v2761 = vunpack.c.h.b16 %v626
        %v2762 = vunpack.c.l.b16 %v627
        %v2763 = vunpack.c.h.b16 %v627
        %v2764 = vunpack.c.l.b16 %v628
        %v2765 = vunpack.c.h.b16 %v628
        %v2766 = vunpack.c.l.b16 %v629
        %v2767 = vunpack.c.h.b16 %v629
        %v2768 = vunpack.c.l.b16 %v630
        %v2769 = vunpack.c.h.b16 %v630
        %v2770 = vunpack.c.l.b16 %v631
        %v2771 = vunpack.c.h.b16 %v631
        %v2772 = vunpack.c.l.b16 %v632
        %v2773 = vunpack.c.h.b16 %v632
        %v2774 = vunpack.c.l.b16 %v633
        %v2775 = vunpack.c.h.b16 %v633
        %v2776 = vunpack.c.l.b16 %v634
        %v2777 = vunpack.c.h.b16 %v634
        %v2778 = vunpack.c.l.b16 %v635
        %v2779 = vunpack.c.h.b16 %v635
        %v2780 = vunpack.c.l.b16 %v636
        %v2781 = vunpack.c.h.b16 %v636
        %v2782 = vunpack.c.l.b16 %v637
        %v2783 = vunpack.c.h.b16 %v637
        %v2784 = vunpack.c.l.b16 %v638
        %v2785 = vunpack.c.h.b16 %v638
        %v2786 = vunpack.c.l.b16 %v639
        %v2787 = vunpack.c.h.b16 %v639
        %v2788 = vunpack.c.l.b16 %v640
        %v2789 = vunpack.c.h.b16 %v640
        %v2790 = vunpack.c.l.b16 %v641
        %v2791 = vunpack.c.h.b16 %v641
        %v2792 = vunpack.c.l.b16 %v642
        %v2793 = vunpack.c.h.b16 %v642
        %v2794 = vunpack.c.l.b16 %v643
        %v2795 = vunpack.c.h.b16 %v643
        %v2796 = vunpack.c.l.b16 %v644
        %v2797 = vunpack.c.h.b16 %v644
        %v2798 = vunpack.c.l.b16 %v645
        %v2799 = vunpack.c.h.b16 %v645
        %v2800 = vunpack.c.l.b16 %v646
        %v2801 = vunpack.c.h.b16 %v646
        %v2802 = vunpack.c.l.b16 %v647
        %v2803 = vunpack.c.h.b16 %v647
        %v2804 = vunpack.c.l.b16 %v648
        %v2805 = vunpack.c.h.b16 %v648
        %v2806 = vunpack.c.l.b16 %v649
        %v2807 = vunpack.c.h.b16 %v649
        %v2808 = vunpack.c.l.b16 %v650
        %v2809 = vunpack.c.h.b16 %v650
        %v2810 = vunpack.c.l.b16 %v651
        %v2811 = vunpack.c.h.b16 %v651
        %v2812 = vunpack.c.l.b16 %v652
        %v2813 = vunpack.c.h.b16 %v652
        %v2814 = vunpack.c.l.b16 %v653
        %v2815 = vunpack.c.h.b16 %v653
        %v2816 = vunpack.c.l.b16 %v654
        %v2817 = vunpack.c.h.b16 %v654
        %v2818 = vunpack.c.l.b16 %v655
        %v2819 = vunpack.c.h.b16 %v655
        %v2820 = vunpack.c.l.b16 %v656
        %v2821 = vunpack.c.h.b16 %v656
        %v2822 = vunpack.c.l.b16 %v657
        %v2823 = vunpack.c.h.b16 %v657
        %v2824 = vunpack.c.l.b16 %v658
        %v2825 = vunpack.c.h.b16 %v658
        %v2826 = vunpack.c.l.b16 %v659
        %v2827 = vunpack.c.h.b16 %v659
        %v2828 = vunpack.c.l.b16 %v660
        %v2829 = vunpack.c.h.b16 %v660
        %v2830 = vunpack.c.l.b16 %v661
        %v2831 = vunpack.c.h.b16 %v661
        %v2832 = vunpack.c.l.b16 %v662
        %v2833 = vunpack.c.h.b16 %v662
        %v2834 = vunpack.c.l.b16 %v663
        %v2835 = vunpack.c.h.b16 %v663
        %v2836 = vunpack.c.l.b16 %v664
        %v2837 = vunpack.c.h.b16 %v664
        %v2838 = vunpack.c.l.b16 %v665
        %v2839 = vunpack.c.h.b16 %v665
        %v2840 = vunpack.c.l.b16 %v666
        %v2841 = vunpack.c.h.b16 %v666
        %v2842 = vunpack.c.l.b16 %v667
        %v2843 = vunpack.c.h.b16 %v667
        %v2844 = vunpack.c.l.b16 %v668
        %v2845 = vunpack.c.h.b16 %v668
        %v2846 = vunpack.c.l.b16 %v669
        %v2847 = vunpack.c.h.b16 %v669
        %v2848 = vunpack.c.l.b16 %v670
        %v2849 = vunpack.c.h.b16 %v670
        %v2850 = vunpack.c.l.b16 %v671
        %v2851 = vunpack.c.h.b16 %v671
        %v2852 = vunpack.c.l.b16 %v672
        %v2853 = vunpack.c.h.b16 %v672
        %v2854 = vunpack.c.l.b16 %v673
        %v2855 = vunpack.c.h.b16 %v673
        %v2856 = vunpack.c.l.b16 %v674
        %v2857 = vunpack.c.h.b16 %v674
        %v2858 = vunpack.c.l.b16 %v675
        %v2859 = vunpack.c.h.b16 %v675
        %v2860 = vunpack.c.l.b16 %v676
        %v2861 = vunpack.c.h.b16 %v676
        %v2862 = vunpack.c.l.b16 %v677
        %v2863 = vunpack.c.h.b16 %v677
        %v2864 = vunpack.c.l.b16 %v678
        %v2865 = vunpack.c.h.b16 %v678
        %v2866 = vunpack.c.l.b16 %v679
        %v2867 = vunpack.c.h.b16 %v679
        %v2868 = vunpack.c.l.b16 %v680
        %v2869 = vunpack.c.h.b16 %v680
        %v2870 = vunpack.c.l.b16 %v681
        %v2871 = vunpack.c.h.b16 %v681
        %v2872 = vunpack.c.l.b16 %v682
        %v2873 = vunpack.c.h.b16 %v682
        %v2874 = vunpack.c.l.b16 %v683
        %v2875 = vunpack.c.h.b16 %v683
        %v2876 = vunpack.c.l.b16 %v684
        %v2877 = vunpack.c.h.b16 %v684
        %v2878 = vunpack.c.l.b16 %v685
        %v2879 = vunpack.c.h.b16 %v685
        %v2880 = vunpack.c.l.b16 %v686
        %v2881 = vunpack.c.h.b16 %v686
        %v2882 = vunpack.c.l.b16 %v687
        %v2883 = vunpack.c.h.b16 %v687
        %v2884 = vunpack.c.l.b16 %v688
        %v2885 = vunpack.c.h.b16 %v688
        %v2886 = vunpack.c.l.b16 %v689
        %v2887 = vunpack.c.h.b16 %v689
        %v2888 = vunpack.c.l.b16 %v690
        %v2889 = vunpack.c.h.b16 %v690
        %v2890 = vunpack.c.l.b16 %v691
        %v2891 = vunpack.c.h.b16 %v691
        %v2892 = vunpack.c.l.b16 %v692
        %v2893 = vunpack.c.h.b16 %v692
        %v2894 = vunpack.c.l.b16 %v693
        %v2895 = vunpack.c.h.b16 %v693
        %v2896 = vunpack.c.l.b16 %v694
        %v2897 = vunpack.c.h.b16 %v694
        %v2898 = vunpack.c.l.b16 %v695
        %v2899 = vunpack.c.h.b16 %v695
        %v2900 = vunpack.c.l.b16 %v696
        %v2901 = vunpack.c.h.b16 %v696
        %v2902 = vunpack.c.l.b16 %v697
        %v2903 = vunpack.c.h.b16 %v697
        %v2904 = vunpack.c.l.b16 %v698
        %v2905 = vunpack.c.h.b16 %v698
        %v2906 = vunpack.c.l.b16 %v699
        %v2907 = vunpack.c.h.b16 %v699
        %v2908 = vunpack.c.l.b16 %v700
        %v2909 = vunpack.c.h.b16 %v700
        %v2910 = vunpack.c.l.b16 %v701
        %v2911 = vunpack.c.h.b16 %v701
        %v2912 = vunpack.c.l.b16 %v702
        %v2913 = vunpack.c.h.b16 %v702
        %v2914 = vunpack.c.l.b16 %v703
        %v2915 = vunpack.c.h.b16 %v703
        %v2916 = vunpack.c.l.b16 %v704
        %v2917 = vunpack.c.h.b16 %v704
        %v2918 = vunpack.c.l.b16 %v705
        %v2919 = vunpack.c.h.b16 %v705
        %v2920 = vunpack.c.l.b16 %v706
        %v2921 = vunpack.c.h.b16 %v706
        %v2922 = vunpack.c.l.b16 %v707
        %v2923 = vunpack.c.h.b16 %v707
        %v2924 = vunpack.c.l.b16 %v708
        %v2925 = vunpack.c.h.b16 %v708
        %v2926 = vunpack.c.l.b16 %v709
        %v2927 = vunpack.c.h.b16 %v709
        %v2928 = vunpack.c.l.b16 %v710
        %v2929 = vunpack.c.h.b16 %v710
        %v2930 = vunpack.c.l.b16 %v711
        %v2931 = vunpack.c.h.b16 %v711
        %v2932 = vunpack.c.l.b16 %v712
        %v2933 = vunpack.c.h.b16 %v712
        %v2934 = vunpack.c.l.b16 %v713
        %v2935 = vunpack.c.h.b16 %v713
        %v2936 = vunpack.c.l.b16 %v714
        %v2937 = vunpack.c.h.b16 %v714
        %v2938 = vunpack.c.l.b16 %v715
        %v2939 = vunpack.c.h.b16 %v715
        %v2940 = vunpack.c.l.b16 %v716
        %v2941 = vunpack.c.h.b16 %v716
        %v2942 = vunpack.c.l.b16 %v717
        %v2943 = vunpack.c.h.b16 %v717
        %v2944 = vunpack.c.l.b16 %v718
        %v2945 = vunpack.c.h.b16 %v718
        %v2946 = vunpack.c.l.b16 %v719
        %v2947 = vunpack.c.h.b16 %v719
        %v2948 = vunpack.c.l.b16 %v720
        %v2949 = vunpack.c.h.b16 %v720
        %v2950 = vunpack.c.l.b16 %v721
        %v2951 = vunpack.c.h.b16 %v721
        %v2952 = vunpack.c.l.b16 %v722
        %v2953 = vunpack.c.h.b16 %v722
        %v2954 = vunpack.c.l.b16 %v723
        %v2955 = vunpack.c.h.b16 %v723
        %v2956 = vunpack.c.l.b16 %v724
        %v2957 = vunpack.c.h.b16 %v724
        %v2958 = vunpack.c.l.b16 %v725
        %v2959 = vunpack.c.h.b16 %v725
        %v2960 = vunpack.c.l.b16 %v726
        %v2961 = vunpack.c.h.b16 %v726
        %v2962 = vunpack.c.l.b16 %v727
        %v2963 = vunpack.c.h.b16 %v727
        %v2964 = vunpack.c.l.b16 %v728
        %v2965 = vunpack.c.h.b16 %v728
        %v2966 = vunpack.c.l.b16 %v729
        %v2967 = vunpack.c.h.b16 %v729
        %v2968 = vunpack.c.l.b16 %v730
        %v2969 = vunpack.c.h.b16 %v730
        %v2970 = vunpack.c.l.b16 %v731
        %v2971 = vunpack.c.h.b16 %v731
        %v2972 = vunpack.c.l.b16 %v732
        %v2973 = vunpack.c.h.b16 %v732
        %v2974 = vunpack.c.l.b16 %v733
        %v2975 = vunpack.c.h.b16 %v733
        %v2976 = vunpack.c.l.b16 %v734
        %v2977 = vunpack.c.h.b16 %v734
        %v2978 = vunpack.c.l.b16 %v735
        %v2979 = vunpack.c.h.b16 %v735
        %v2980 = vunpack.c.l.b16 %v736
        %v2981 = vunpack.c.h.b16 %v736
        %v2982 = vunpack.c.l.b16 %v737
        %v2983 = vunpack.c.h.b16 %v737
        %v2984 = vunpack.c.l.b16 %v738
        %v2985 = vunpack.c.h.b16 %v738
        %v2986 = vunpack.c.l.b16 %v739
        %v2987 = vunpack.c.h.b16 %v739
        %v2988 = vunpack.c.l.b16 %v740
        %v2989 = vunpack.c.h.b16 %v740
        %v2990 = vunpack.c.l.b16 %v741
        %v2991 = vunpack.c.h.b16 %v741
        %v2992 = vunpack.c.l.b16 %v742
        %v2993 = vunpack.c.h.b16 %v742
        %v2994 = vunpack.c.l.b16 %v743
        %v2995 = vunpack.c.h.b16 %v743
        %v2996 = vunpack.c.l.b16 %v744
        %v2997 = vunpack.c.h.b16 %v744
        %v2998 = vunpack.c.l.b16 %v745
        %v2999 = vunpack.c.h.b16 %v745
        %v3000 = vunpack.c.l.b16 %v746
        %v3001 = vunpack.c.h.b16 %v746
        %v3002 = vunpack.c.l.b16 %v747
        %v3003 = vunpack.c.h.b16 %v747
        %v3004 = vunpack.c.l.b16 %v748
        %v3005 = vunpack.c.h.b16 %v748
        %v3006 = vunpack.c.l.b16 %v749
        %v3007 = vunpack.c.h.b16 %v749
        %v3008 = vunpack.c.l.b16 %v750
        %v3009 = vunpack.c.h.b16 %v750
        %v3010 = vunpack.c.l.b16 %v751
        %v3011 = vunpack.c.h.b16 %v751
        %v3012 = vunpack.c.l.b16 %v752
        %v3013 = vunpack.c.h.b16 %v752
        %v3014 = vunpack.c.l.b16 %v753
        %v3015 = vunpack.c.h.b16 %v753
        %v3016 = vunpack.c.l.b16 %v754
        %v3017 = vunpack.c.h.b16 %v754
        %v3018 = vunpack.c.l.b16 %v755
        %v3019 = vunpack.c.h.b16 %v755
        %v3020 = vunpack.c.l.b16 %v756
        %v3021 = vunpack.c.h.b16 %v756
        %v3022 = vunpack.c.l.b16 %v757
        %v3023 = vunpack.c.h.b16 %v757
        %v3024 = vunpack.c.l.b16 %v758
        %v3025 = vunpack.c.h.b16 %v758
        %v3026 = vunpack.c.l.b16 %v759
        %v3027 = vunpack.c.h.b16 %v759
        %v3028 = vunpack.c.l.b16 %v760
        %v3029 = vunpack.c.h.b16 %v760
        %v3030 = vunpack.c.l.b16 %v761
        %v3031 = vunpack.c.h.b16 %v761
        %v3032 = vunpack.c.l.b16 %v762
        %v3033 = vunpack.c.h.b16 %v762
        %v3034 = vunpack.c.l.b16 %v763
        %v3035 = vunpack.c.h.b16 %v763
        %v3036 = vunpack.c.l.b16 %v764
        %v3037 = vunpack.c.h.b16 %v764
        %v3038 = vunpack.c.l.b16 %v765
        %v3039 = vunpack.c.h.b16 %v765
        %v3040 = vunpack.c.l.b16 %v766
        %v3041 = vunpack.c.h.b16 %v766
        %v3042 = vunpack.c.l.b16 %v767
        %v3043 = vunpack.c.h.b16 %v767
        %v3044 = vunpack.c.l.b16 %v768
        %v3045 = vunpack.c.h.b16 %v768
        %v3046 = vunpack.c.l.b16 %v769
        %v3047 = vunpack.c.h.b16 %v769
        %v3048 = vunpack.c.l.b16 %v770
        %v3049 = vunpack.c.h.b16 %v770
        %v3050 = vunpack.c.l.b16 %v771
        %v3051 = vunpack.c.h.b16 %v771
        %v3052 = vunpack.c.l.b16 %v772
        %v3053 = vunpack.c.h.b16 %v772
        %v3054 = vunpack.c.l.b16 %v773
        %v3055 = vunpack.c.h.b16 %v773
        %v3056 = vunpack.c.l.b16 %v774
        %v3057 = vunpack.c.h.b16 %v774
        %v3058 = vunpack.c.l.b16 %v775
        %v3059 = vunpack.c.h.b16 %v775
        %v3060 = vunpack.c.l.b16 %v776
        %v3061 = vunpack.c.h.b16 %v776
        %v3062 = vunpack.c.l.b16 %v777
        %v3063 = vunpack.c.h.b16 %v777
        %v3064 = vunpack.c.l.b16 %v778
        %v3065 = vunpack.c.h.b16 %v778
        %v3066 = vunpack.c.l.b16 %v779
        %v3067 = vunpack.c.h.b16 %v779
        %v3068 = vunpack.c.l.b16 %v780
        %v3069 = vunpack.c.h.b16 %v780
        %v3070 = vunpack.c.l.b16 %v781
        %v3071 = vunpack.c.h.b16 %v781
        %v3072 = vunpack.c.l.b16 %v782
        %v3073 = vunpack.c.h.b16 %v782
        %v3074 = vunpack.c.l.b16 %v783
        %v3075 = vunpack.c.h.b16 %v783
        %v3076 = vunpack.c.l.b16 %v784
        %v3077 = vunpack.c.h.b16 %v784
        %v3078 = vunpack.c.l.b16 %v785
        %v3079 = vunpack.c.h.b16 %v785
        %v3080 = vunpack.c.l.b16 %v786
        %v3081 = vunpack.c.h.b16 %v786
        %v3082 = vunpack.c.l.b16 %v787
        %v3083 = vunpack.c.h.b16 %v787
        %v3084 = vunpack.c.l.b16 %v788
        %v3085 = vunpack.c.h.b16 %v788
        %v3086 = vunpack.c.l.b16 %v789
        %v3087 = vunpack.c.h.b16 %v789
        %v3088 = vunpack.c.l.b16 %v790
        %v3089 = vunpack.c.h.b16 %v790
        %v3090 = vunpack.c.l.b16 %v791
        %v3091 = vunpack.c.h.b16 %v791
        %v3092 = vunpack.c.l.b16 %v792
        %v3093 = vunpack.c.h.b16 %v792
        %v3094 = vunpack.c.l.b16 %v793
        %v3095 = vunpack.c.h.b16 %v793
        %v3096 = vunpack.c.l.b16 %v794
        %v3097 = vunpack.c.h.b16 %v794
        %v3098 = vunpack.c.l.b16 %v795
        %v3099 = vunpack.c.h.b16 %v795
        %v3100 = vunpack.c.l.b16 %v796
        %v3101 = vunpack.c.h.b16 %v796
        %v3102 = vunpack.c.l.b16 %v797
        %v3103 = vunpack.c.h.b16 %v797
        %v3104 = vunpack.c.l.b16 %v798
        %v3105 = vunpack.c.h.b16 %v798
        %v3106 = vunpack.c.l.b16 %v799
        %v3107 = vunpack.c.h.b16 %v799
        %v3108 = vunpack.c.l.b16 %v800
        %v3109 = vunpack.c.h.b16 %v800
        %v3110 = vunpack.c.l.b16 %v801
        %v3111 = vunpack.c.h.b16 %v801
        %v3112 = vunpack.c.l.b16 %v802
        %v3113 = vunpack.c.h.b16 %v802
        %v3114 = vunpack.c.l.b16 %v803
        %v3115 = vunpack.c.h.b16 %v803
        %v3116 = vunpack.c.l.b16 %v804
        %v3117 = vunpack.c.h.b16 %v804
        %v3118 = vunpack.c.l.b16 %v805
        %v3119 = vunpack.c.h.b16 %v805
        %v3120 = vunpack.c.l.b16 %v806
        %v3121 = vunpack.c.h.b16 %v806
        %v3122 = vunpack.c.l.b16 %v807
        %v3123 = vunpack.c.h.b16 %v807
        %v3124 = vunpack.c.l.b16 %v808
        %v3125 = vunpack.c.h.b16 %v808
        %v3126 = vunpack.c.l.b16 %v809
        %v3127 = vunpack.c.h.b16 %v809
        %v3128 = vunpack.c.l.b16 %v810
        %v3129 = vunpack.c.h.b16 %v810
        %v3130 = vunpack.c.l.b16 %v811
        %v3131 = vunpack.c.h.b16 %v811
        %v3132 = vunpack.c.l.b16 %v812
        %v3133 = vunpack.c.h.b16 %v812
        %v3134 = vunpack.c.l.b16 %v813
        %v3135 = vunpack.c.h.b16 %v813
        %v3136 = vunpack.c.l.b16 %v814
        %v3137 = vunpack.c.h.b16 %v814
        %v3138 = vunpack.c.l.b16 %v815
        %v3139 = vunpack.c.h.b16 %v815
        %v3140 = vunpack.c.l.b16 %v816
        %v3141 = vunpack.c.h.b16 %v816
        %v3142 = vunpack.c.l.b16 %v817
        %v3143 = vunpack.c.h.b16 %v817
        %v3144 = vunpack.c.l.b16 %v818
        %v3145 = vunpack.c.h.b16 %v818
        %v3146 = vunpack.c.l.b16 %v819
        %v3147 = vunpack.c.h.b16 %v819
        %v3148 = vunpack.c.l.b16 %v820
        %v3149 = vunpack.c.h.b16 %v820
        %v3150 = vunpack.c.l.b16 %v821
        %v3151 = vunpack.c.h.b16 %v821
        %v3152 = vunpack.c.l.b16 %v822
        %v3153 = vunpack.c.h.b16 %v822
        %v3154 = vunpack.c.l.b16 %v823
        %v3155 = vunpack.c.h.b16 %v823
        %v3156 = vunpack.c.l.b16 %v824
        %v3157 = vunpack.c.h.b16 %v824
        %v3158 = vunpack.c.l.b16 %v825
        %v3159 = vunpack.c.h.b16 %v825
        %v3160 = vunpack.c.l.b16 %v826
        %v3161 = vunpack.c.h.b16 %v826
        %v3162 = vunpack.c.l.b16 %v827
        %v3163 = vunpack.c.h.b16 %v827
        %v3164 = vunpack.c.l.b16 %v828
        %v3165 = vunpack.c.h.b16 %v828
        %v3166 = vunpack.c.l.b16 %v829
        %v3167 = vunpack.c.h.b16 %v829
        %v3168 = vunpack.c.l.b16 %v830
        %v3169 = vunpack.c.h.b16 %v830
        %v3170 = vunpack.c.l.b16 %v831
        %v3171 = vunpack.c.h.b16 %v831
        %v3172 = vunpack.c.l.b16 %v832
        %v3173 = vunpack.c.h.b16 %v832
        %v3174 = vunpack.c.l.b16 %v833
        %v3175 = vunpack.c.h.b16 %v833
        %v3176 = vunpack.c.l.b16 %v834
        %v3177 = vunpack.c.h.b16 %v834
        %v3178 = vunpack.c.l.b16 %v835
        %v3179 = vunpack.c.h.b16 %v835
        %v3180 = vunpack.c.l.b16 %v836
        %v3181 = vunpack.c.h.b16 %v836
        %v3182 = vunpack.c.l.b16 %v837
        %v3183 = vunpack.c.h.b16 %v837
        %v3184 = vunpack.c.l.b16 %v838
        %v3185 = vunpack.c.h.b16 %v838
        %v3186 = vunpack.c.l.b16 %v839
        %v3187 = vunpack.c.h.b16 %v839
        %v3188 = vunpack.c.l.b16 %v840
        %v3189 = vunpack.c.h.b16 %v840
        %v3190 = vunpack.c.l.b16 %v841
        %v3191 = vunpack.c.h.b16 %v841
        %v3192 = vunpack.c.l.b16 %v842
        %v3193 = vunpack.c.h.b16 %v842
        %v3194 = vunpack.c.l.b16 %v843
        %v3195 = vunpack.c.h.b16 %v843
        %v3196 = vunpack.c.l.b16 %v844
        %v3197 = vunpack.c.h.b16 %v844
        %v3198 = vunpack.c.l.b16 %v845
        %v3199 = vunpack.c.h.b16 %v845
        %v3200 = vunpack.c.l.b16 %v846
        %v3201 = vunpack.c.h.b16 %v846
        %v3202 = vunpack.c.l.b16 %v847
        %v3203 = vunpack.c.h.b16 %v847
        %v3204 = vunpack.c.l.b16 %v848
        %v3205 = vunpack.c.h.b16 %v848
        %v3206 = vunpack.c.l.b16 %v849
        %v3207 = vunpack.c.h.b16 %v849
        %v3208 = vunpack.c.l.b16 %v850
        %v3209 = vunpack.c.h.b16 %v850
        %v3210 = vunpack.c.l.b16 %v851
        %v3211 = vunpack.c.h.b16 %v851
        %v3212 = vunpack.c.l.b16 %v852
        %v3213 = vunpack.c.h.b16 %v852
        %v3214 = vunpack.c.l.b16 %v853
        %v3215 = vunpack.c.h.b16 %v853
        %v3216 = vunpack.c.l.b16 %v854
        %v3217 = vunpack.c.h.b16 %v854
        %v3218 = vunpack.c.l.b16 %v855
        %v3219 = vunpack.c.h.b16 %v855
        %v3220 = vunpack.c.l.b16 %v856
        %v3221 = vunpack.c.h.b16 %v856
        %v3222 = vunpack.c.l.b16 %v857
        %v3223 = vunpack.c.h.b16 %v857
        %v3224 = vunpack.c.l.b16 %v858
        %v3225 = vunpack.c.h.b16 %v858
        %v3226 = vunpack.c.l.b16 %v859
        %v3227 = vunpack.c.h.b16 %v859
        %v3228 = vunpack.c.l.b16 %v860
        %v3229 = vunpack.c.h.b16 %v860
        %v3230 = vunpack.c.l.b16 %v861
        %v3231 = vunpack.c.h.b16 %v861
        %v3232 = vunpack.c.l.b16 %v862
        %v3233 = vunpack.c.h.b16 %v862
        %v3234 = vunpack.c.l.b16 %v863
        %v3235 = vunpack.c.h.b16 %v863
        %v3236 = vunpack.c.l.b16 %v864
        %v3237 = vunpack.c.h.b16 %v864
        %v3238 = vunpack.c.l.b16 %v865
        %v3239 = vunpack.c.h.b16 %v865
        %v3240 = vunpack.c.l.b16 %v866
        %v3241 = vunpack.c.h.b16 %v866
        %v3242 = vunpack.c.l.b16 %v867
        %v3243 = vunpack.c.h.b16 %v867
        %v3244 = vunpack.c.l.b16 %v868
        %v3245 = vunpack.c.h.b16 %v868
        %v3246 = vunpack.c.l.b16 %v869
        %v3247 = vunpack.c.h.b16 %v869
        %v3248 = vunpack.c.l.b16 %v870
        %v3249 = vunpack.c.h.b16 %v870
        %v3250 = vunpack.c.l.b16 %v871
        %v3251 = vunpack.c.h.b16 %v871
        %v3252 = vunpack.c.l.b16 %v872
        %v3253 = vunpack.c.h.b16 %v872
        %v3254 = vunpack.c.l.b16 %v873
        %v3255 = vunpack.c.h.b16 %v873
        %v3256 = vunpack.c.l.b16 %v874
        %v3257 = vunpack.c.h.b16 %v874
        %v3258 = vunpack.c.l.b16 %v875
        %v3259 = vunpack.c.h.b16 %v875
        %v3260 = vunpack.c.l.b16 %v876
        %v3261 = vunpack.c.h.b16 %v876
        %v3262 = vunpack.c.l.b16 %v877
        %v3263 = vunpack.c.h.b16 %v877
        %v3264 = vunpack.c.l.b16 %v878
        %v3265 = vunpack.c.h.b16 %v878
        %v3266 = vunpack.c.l.b16 %v879
        %v3267 = vunpack.c.h.b16 %v879
        %v3268 = vunpack.c.l.b16 %v880
        %v3269 = vunpack.c.h.b16 %v880
        %v3270 = vunpack.c.l.b16 %v881
        %v3271 = vunpack.c.h.b16 %v881
        %v3272 = vunpack.c.l.b16 %v882
        %v3273 = vunpack.c.h.b16 %v882
        %v3274 = vunpack.c.l.b16 %v883
        %v3275 = vunpack.c.h.b16 %v883
        %v3276 = vunpack.c.l.b16 %v884
        %v3277 = vunpack.c.h.b16 %v884
        %v3278 = vunpack.c.l.b16 %v885
        %v3279 = vunpack.c.h.b16 %v885
        %v3280 = vunpack.c.l.b16 %v886
        %v3281 = vunpack.c.h.b16 %v886
        %v3282 = vunpack.c.l.b16 %v887
        %v3283 = vunpack.c.h.b16 %v887
        %v3284 = vunpack.c.l.b16 %v888
        %v3285 = vunpack.c.h.b16 %v888
        %v3286 = vunpack.c.l.b16 %v889
        %v3287 = vunpack.c.h.b16 %v889
        %v3288 = vunpack.c.l.b16 %v890
        %v3289 = vunpack.c.h.b16 %v890
        %v3290 = vunpack.c.l.b16 %v891
        %v3291 = vunpack.c.h.b16 %v891
        %v3292 = vunpack.c.l.b16 %v892
        %v3293 = vunpack.c.h.b16 %v892
        %v3294 = vunpack.c.l.b16 %v893
        %v3295 = vunpack.c.h.b16 %v893
        %v3296 = vunpack.c.l.b16 %v894
        %v3297 = vunpack.c.h.b16 %v894
        %v3298 = vunpack.c.l.b16 %v895
        %v3299 = vunpack.c.h.b16 %v895
        %v3300 = vunpack.c.l.b16 %v896
        %v3301 = vunpack.c.h.b16 %v896
        %v3302 = vunpack.c.l.b16 %v897
        %v3303 = vunpack.c.h.b16 %v897
        %v3304 = vunpack.c.l.b16 %v898
        %v3305 = vunpack.c.h.b16 %v898
        %v3306 = vunpack.c.l.b16 %v899
        %v3307 = vunpack.c.h.b16 %v899
        %v3308 = vunpack.c.l.b16 %v900
        %v3309 = vunpack.c.h.b16 %v900
        %v3310 = vunpack.c.l.b16 %v901
        %v3311 = vunpack.c.h.b16 %v901
        %v3312 = vunpack.c.l.b16 %v902
        %v3313 = vunpack.c.h.b16 %v902
        %v3314 = vunpack.c.l.b16 %v903
        %v3315 = vunpack.c.h.b16 %v903
        %v3316 = vunpack.c.l.b16 %v904
        %v3317 = vunpack.c.h.b16 %v904
        %v3318 = vunpack.c.l.b16 %v905
        %v3319 = vunpack.c.h.b16 %v905
        %v3320 = vunpack.c.l.b16 %v906
        %v3321 = vunpack.c.h.b16 %v906
        %v3322 = vunpack.c.l.b16 %v907
        %v3323 = vunpack.c.h.b16 %v907
        %v3324 = vunpack.c.l.b16 %v908
        %v3325 = vunpack.c.h.b16 %v908
        %v3326 = vunpack.c.l.b16 %v909
        %v3327 = vunpack.c.h.b16 %v909
        %v3328 = vunpack.c.l.b16 %v910
        %v3329 = vunpack.c.h.b16 %v910
        %v3330 = vunpack.c.l.b16 %v911
        %v3331 = vunpack.c.h.b16 %v911
        %v3332 = vunpack.c.l.b16 %v912
        %v3333 = vunpack.c.h.b16 %v912
        %v3334 = vunpack.c.l.b16 %v913
        %v3335 = vunpack.c.h.b16 %v913
        %v3336 = vunpack.c.l.b16 %v914
        %v3337 = vunpack.c.h.b16 %v914
        %v3338 = vunpack.c.l.b16 %v915
        %v3339 = vunpack.c.h.b16 %v915
        %v3340 = vunpack.c.l.b16 %v916
        %v3341 = vunpack.c.h.b16 %v916
        %v3342 = vunpack.c.l.b16 %v917
        %v3343 = vunpack.c.h.b16 %v917
        %v3344 = vunpack.c.l.b16 %v918
        %v3345 = vunpack.c.h.b16 %v918
        %v3346 = vunpack.c.l.b16 %v919
        %v3347 = vunpack.c.h.b16 %v919
        %v3348 = vunpack.c.l.b16 %v920
        %v3349 = vunpack.c.h.b16 %v920
        %v3350 = vunpack.c.l.b16 %v921
        %v3351 = vunpack.c.h.b16 %v921
        %v3352 = vunpack.c.l.b16 %v922
        %v3353 = vunpack.c.h.b16 %v922
        %v3354 = vunpack.c.l.b16 %v923
        %v3355 = vunpack.c.h.b16 %v923
        %v3356 = vunpack.c.l.b16 %v924
        %v3357 = vunpack.c.h.b16 %v924
        %v3358 = vunpack.c.l.b16 %v925
        %v3359 = vunpack.c.h.b16 %v925
        %v3360 = vunpack.c.l.b16 %v926
        %v3361 = vunpack.c.h.b16 %v926
        %v3362 = vunpack.c.l.b16 %v927
        %v3363 = vunpack.c.h.b16 %v927
        %v3364 = vunpack.c.l.b16 %v928
        %v3365 = vunpack.c.h.b16 %v928
        %v3366 = vunpack.c.l.b16 %v929
        %v3367 = vunpack.c.h.b16 %v929
        %v3368 = vunpack.c.l.b16 %v930
        %v3369 = vunpack.c.h.b16 %v930
        %v3370 = vunpack.c.l.b16 %v931
        %v3371 = vunpack.c.h.b16 %v931
        %v3372 = vunpack.c.l.b16 %v932
        %v3373 = vunpack.c.h.b16 %v932
        %v3374 = vunpack.c.l.b16 %v933
        %v3375 = vunpack.c.h.b16 %v933
        %v3376 = vunpack.c.l.b16 %v934
        %v3377 = vunpack.c.h.b16 %v934
        %v3378 = vunpack.c.l.b16 %v935
        %v3379 = vunpack.c.h.b16 %v935
        %v3380 = vunpack.c.l.b16 %v936
        %v3381 = vunpack.c.h.b16 %v936
        %v3382 = vunpack.c.l.b16 %v937
        %v3383 = vunpack.c.h.b16 %v937
        %v3384 = vunpack.c.l.b16 %v938
        %v3385 = vunpack.c.h.b16 %v938
        %v3386 = vunpack.c.l.b16 %v939
        %v3387 = vunpack.c.h.b16 %v939
        %v3388 = vunpack.c.l.b16 %v940
        %v3389 = vunpack.c.h.b16 %v940
        %v3390 = vunpack.c.l.b16 %v941
        %v3391 = vunpack.c.h.b16 %v941
        %v3392 = vunpack.c.l.b16 %v942
        %v3393 = vunpack.c.h.b16 %v942
        %v3394 = vunpack.c.l.b16 %v943
        %v3395 = vunpack.c.h.b16 %v943
        %v3396 = vunpack.c.l.b16 %v944
        %v3397 = vunpack.c.h.b16 %v944
        %v3398 = vunpack.c.l.b16 %v945
        %v3399 = vunpack.c.h.b16 %v945
        %v3400 = vunpack.c.l.b16 %v946
        %v3401 = vunpack.c.h.b16 %v946
        %v3402 = vunpack.c.l.b16 %v947
        %v3403 = vunpack.c.h.b16 %v947
        %v3404 = vunpack.c.l.b16 %v948
        %v3405 = vunpack.c.h.b16 %v948
        %v3406 = vunpack.c.l.b16 %v949
        %v3407 = vunpack.c.h.b16 %v949
        %v3408 = vunpack.c.l.b16 %v950
        %v3409 = vunpack.c.h.b16 %v950
        %v3410 = vunpack.c.l.b16 %v951
        %v3411 = vunpack.c.h.b16 %v951
        %v3412 = vunpack.c.l.b16 %v952
        %v3413 = vunpack.c.h.b16 %v952
        %v3414 = vunpack.c.l.b16 %v953
        %v3415 = vunpack.c.h.b16 %v953
        %v3416 = vunpack.c.l.b16 %v954
        %v3417 = vunpack.c.h.b16 %v954
        %v3418 = vunpack.c.l.b16 %v955
        %v3419 = vunpack.c.h.b16 %v955
        %v3420 = vunpack.c.l.b16 %v956
        %v3421 = vunpack.c.h.b16 %v956
        %v3422 = vunpack.c.l.b16 %v957
        %v3423 = vunpack.c.h.b16 %v957
        %v3424 = vunpack.c.l.b16 %v958
        %v3425 = vunpack.c.h.b16 %v958
        %v3426 = vunpack.c.l.b16 %v959
        %v3427 = vunpack.c.h.b16 %v959
        %v3428 = vunpack.c.l.b16 %v960
        %v3429 = vunpack.c.h.b16 %v960
        %v3430 = vunpack.c.l.b16 %v961
        %v3431 = vunpack.c.h.b16 %v961
        %v3432 = vunpack.c.l.b16 %v962
        %v3433 = vunpack.c.h.b16 %v962
        %v3434 = vunpack.c.l.b16 %v963
        %v3435 = vunpack.c.h.b16 %v963
        %v3436 = vunpack.c.l.b16 %v964
        %v3437 = vunpack.c.h.b16 %v964
        %v3438 = vunpack.c.l.b16 %v965
        %v3439 = vunpack.c.h.b16 %v965
        %v3440 = vunpack.c.l.b16 %v966
        %v3441 = vunpack.c.h.b16 %v966
        %v3442 = vunpack.c.l.b16 %v967
        %v3443 = vunpack.c.h.b16 %v967
        %v3444 = vunpack.c.l.b16 %v968
        %v3445 = vunpack.c.h.b16 %v968
        %v3446 = vunpack.c.l.b16 %v969
        %v3447 = vunpack.c.h.b16 %v969
        %v3448 = vunpack.c.l.b16 %v970
        %v3449 = vunpack.c.h.b16 %v970
        %v3450 = vunpack.c.l.b16 %v971
        %v3451 = vunpack.c.h.b16 %v971
        %v3452 = vunpack.c.l.b16 %v972
        %v3453 = vunpack.c.h.b16 %v972
        %v3454 = vunpack.c.l.b16 %v973
        %v3455 = vunpack.c.h.b16 %v973
        %v3456 = vunpack.c.l.b16 %v974
        %v3457 = vunpack.c.h.b16 %v974
        %v3458 = vunpack.c.l.b16 %v975
        %v3459 = vunpack.c.h.b16 %v975
        %v3460 = vunpack.c.l.b16 %v976
        %v3461 = vunpack.c.h.b16 %v976
        %v3462 = vunpack.c.l.b16 %v977
        %v3463 = vunpack.c.h.b16 %v977
        %v3464 = vunpack.c.l.b16 %v978
        %v3465 = vunpack.c.h.b16 %v978
        %v3466 = vunpack.c.l.b16 %v979
        %v3467 = vunpack.c.h.b16 %v979
        %v3468 = vunpack.c.l.b16 %v980
        %v3469 = vunpack.c.h.b16 %v980
        %v3470 = vunpack.c.l.b16 %v981
        %v3471 = vunpack.c.h.b16 %v981
        %v3472 = vunpack.c.l.b16 %v982
        %v3473 = vunpack.c.h.b16 %v982
        %v3474 = vunpack.c.l.b16 %v983
        %v3475 = vunpack.c.h.b16 %v983
        %v3476 = vunpack.c.l.b16 %v984
        %v3477 = vunpack.c.h.b16 %v984
        %v3478 = vunpack.c.l.b16 %v985
        %v3479 = vunpack.c.h.b16 %v985
        %v3480 = vunpack.c.l.b16 %v986
        %v3481 = vunpack.c.h.b16 %v986
        %v3482 = vunpack.c.l.b16 %v987
        %v3483 = vunpack.c.h.b16 %v987
        %v3484 = vunpack.c.l.b16 %v988
        %v3485 = vunpack.c.h.b16 %v988
        %v3486 = vunpack.c.l.b16 %v989
        %v3487 = vunpack.c.h.b16 %v989
        %v3488 = vunpack.c.l.b16 %v990
        %v3489 = vunpack.c.h.b16 %v990
        %v3490 = vunpack.c.l.b16 %v991
        %v3491 = vunpack.c.h.b16 %v991
        %v3492 = vunpack.c.l.b16 %v992
        %v3493 = vunpack.c.h.b16 %v992
        %v3494 = vunpack.c.l.b16 %v993
        %v3495 = vunpack.c.h.b16 %v993
        %v3496 = vunpack.c.l.b16 %v994
        %v3497 = vunpack.c.h.b16 %v994
        %v3498 = vunpack.c.l.b16 %v995
        %v3499 = vunpack.c.h.b16 %v995
        %v3500 = vunpack.c.l.b16 %v996
        %v3501 = vunpack.c.h.b16 %v996
        %v3502 = vunpack.c.l.b16 %v997
        %v3503 = vunpack.c.h.b16 %v997
        %v3504 = vunpack.c.l.b16 %v998
        %v3505 = vunpack.c.h.b16 %v998
        %v3506 = vunpack.c.l.b16 %v999
        %v3507 = vunpack.c.h.b16 %v999
        %v3508 = vunpack.c.l.b16 %v1000
        %v3509 = vunpack.c.h.b16 %v1000
        %v3510 = vunpack.c.l.b16 %v1001
        %v3511 = vunpack.c.h.b16 %v1001
        %v3512 = vunpack.c.l.b16 %v1002
        %v3513 = vunpack.c.h.b16 %v1002
        %v3514 = vunpack.c.l.b16 %v1003
        %v3515 = vunpack.c.h.b16 %v1003
        %v3516 = vunpack.c.l.b16 %v1004
        %v3517 = vunpack.c.h.b16 %v1004
        %v3518 = vunpack.c.l.b16 %v1005
        %v3519 = vunpack.c.h.b16 %v1005
        %v3520 = vunpack.c.l.b16 %v1006
        %v3521 = vunpack.c.h.b16 %v1006
        %v3522 = vunpack.c.l.b16 %v1007
        %v3523 = vunpack.c.h.b16 %v1007
        %v3524 = vunpack.c.l.b16 %v1008
        %v3525 = vunpack.c.h.b16 %v1008
        %v3526 = vunpack.c.l.b16 %v1009
        %v3527 = vunpack.c.h.b16 %v1009
        %v3528 = vunpack.c.l.b16 %v1010
        %v3529 = vunpack.c.h.b16 %v1010
        %v3530 = vunpack.c.l.b16 %v1011
        %v3531 = vunpack.c.h.b16 %v1011
        %v3532 = vunpack.c.l.b16 %v1012
        %v3533 = vunpack.c.h.b16 %v1012
        %v3534 = vunpack.c.l.b16 %v1013
        %v3535 = vunpack.c.h.b16 %v1013
        %v3536 = vunpack.c.l.b16 %v1014
        %v3537 = vunpack.c.h.b16 %v1014
        %v3538 = vunpack.c.l.b16 %v1015
        %v3539 = vunpack.c.h.b16 %v1015
        %v3540 = vunpack.c.l.b16 %v1016
        %v3541 = vunpack.c.h.b16 %v1016
        %v3542 = vunpack.c.l.b16 %v1017
        %v3543 = vunpack.c.h.b16 %v1017
        %v3544 = vunpack.c.l.b16 %v1018
        %v3545 = vunpack.c.h.b16 %v1018
        %v3546 = vunpack.c.l.b16 %v1019
        %v3547 = vunpack.c.h.b16 %v1019
        %v3548 = vunpack.c.l.b16 %v1020
        %v3549 = vunpack.c.h.b16 %v1020
        %v3550 = vunpack.c.l.b16 %v1021
        %v3551 = vunpack.c.h.b16 %v1021
        %v3552 = vunpack.c.l.b16 %v1022
        %v3553 = vunpack.c.h.b16 %v1022
        %v3554 = vunpack.c.l.b16 %v1023
        %v3555 = vunpack.c.h.b16 %v1023
        %v3556 = vunpack.c.l.b16 %v1024
        %v3557 = vunpack.c.h.b16 %v1024
        %v3558 = vunpack.c.l.b16 %v1025
        %v3559 = vunpack.c.h.b16 %v1025
        %v3560 = vunpack.c.l.b16 %v1026
        %v3561 = vunpack.c.h.b16 %v1026
        %v3562 = vunpack.c.l.b16 %v1027
        %v3563 = vunpack.c.h.b16 %v1027
        %v3564 = vunpack.c.l.b16 %v1028
        %v3565 = vunpack.c.h.b16 %v1028
        %v3566 = vunpack.c.l.b16 %v1029
        %v3567 = vunpack.c.h.b16 %v1029
        %v3568 = vunpack.c.l.b16 %v1030
        %v3569 = vunpack.c.h.b16 %v1030
        %v3570 = vunpack.c.l.b16 %v1031
        %v3571 = vunpack.c.h.b16 %v1031
        %v3572 = vunpack.c.l.b16 %v1032
        %v3573 = vunpack.c.h.b16 %v1032
        %v3574 = vunpack.c.l.b16 %v1033
        %v3575 = vunpack.c.h.b16 %v1033
        %v3576 = vunpack.c.l.b16 %v1034
        %v3577 = vunpack.c.h.b16 %v1034
        %v3578 = vunpack.c.l.b16 %v1035
        %v3579 = vunpack.c.h.b16 %v1035
        %v3580 = vunpack.c.l.b16 %v1036
        %v3581 = vunpack.c.h.b16 %v1036
        %v3582 = vunpack.c.l.b16 %v1037
        %v3583 = vunpack.c.h.b16 %v1037
        %v3584 = vunpack.c.l.b16 %v1038
        %v3585 = vunpack.c.h.b16 %v1038
        %v3586 = vunpack.c.l.b16 %v1039
        %v3587 = vunpack.c.h.b16 %v1039
        %v3588 = vunpack.c.l.b16 %v1040
        %v3589 = vunpack.c.h.b16 %v1040
        %v3590 = vunpack.c.l.b16 %v1041
        %v3591 = vunpack.c.h.b16 %v1041
        %v3592 = vunpack.c.l.b16 %v1042
        %v3593 = vunpack.c.h.b16 %v1042
        %v3594 = vunpack.c.l.b16 %v1043
        %v3595 = vunpack.c.h.b16 %v1043
        %v3596 = vunpack.c.l.b16 %v1044
        %v3597 = vunpack.c.h.b16 %v1044
        %v3598 = vunpack.c.l.b16 %v1045
        %v3599 = vunpack.c.h.b16 %v1045
        %v3600 = vunpack.c.l.b16 %v1046
        %v3601 = vunpack.c.h.b16 %v1046
        %v3602 = vunpack.c.l.b16 %v1047
        %v3603 = vunpack.c.h.b16 %v1047
        %v3604 = vunpack.c.l.b16 %v1048
        %v3605 = vunpack.c.h.b16 %v1048
        %v3606 = vunpack.c.l.b16 %v1049
        %v3607 = vunpack.c.h.b16 %v1049
        %v3608 = vunpack.c.l.b16 %v1050
        %v3609 = vunpack.c.h.b16 %v1050
        %v3610 = vunpack.c.l.b16 %v1051
        %v3611 = vunpack.c.h.b16 %v1051
        %v3612 = vunpack.c.l.b16 %v1052
        %v3613 = vunpack.c.h.b16 %v1052
        %v3614 = vunpack.c.l.b16 %v1053
        %v3615 = vunpack.c.h.b16 %v1053
        %v3616 = vunpack.c.l.b16 %v1054
        %v3617 = vunpack.c.h.b16 %v1054
        %v3618 = vunpack.c.l.b16 %v1055
        %v3619 = vunpack.c.h.b16 %v1055
        %v3620 = vunpack.c.l.b16 %v1056
        %v3621 = vunpack.c.h.b16 %v1056
        %v3622 = vunpack.c.l.b16 %v1057
        %v3623 = vunpack.c.h.b16 %v1057
        %v3624 = vunpack.c.l.b16 %v1058
        %v3625 = vunpack.c.h.b16 %v1058
        %v3626 = vunpack.c.l.b16 %v1059
        %v3627 = vunpack.c.h.b16 %v1059
        %v3628 = vunpack.c.l.b16 %v1060
        %v3629 = vunpack.c.h.b16 %v1060
        %v3630 = vunpack.c.l.b16 %v1061
        %v3631 = vunpack.c.h.b16 %v1061
        %v3632 = vunpack.c.l.b16 %v1062
        %v3633 = vunpack.c.h.b16 %v1062
        %v3634 = vunpack.c.l.b16 %v1063
        %v3635 = vunpack.c.h.b16 %v1063
        %v3636 = vunpack.c.l.b16 %v1064
        %v3637 = vunpack.c.h.b16 %v1064
        %v3638 = vunpack.c.l.b16 %v1065
        %v3639 = vunpack.c.h.b16 %v1065
        %v3640 = vunpack.c.l.b16 %v1066
        %v3641 = vunpack.c.h.b16 %v1066
        %v3642 = vunpack.c.l.b16 %v1067
        %v3643 = vunpack.c.h.b16 %v1067
        %v3644 = vunpack.c.l.b16 %v1068
        %v3645 = vunpack.c.h.b16 %v1068
        %v3646 = vunpack.c.l.b16 %v1069
        %v3647 = vunpack.c.h.b16 %v1069
        %v3648 = vunpack.c.l.b16 %v1070
        %v3649 = vunpack.c.h.b16 %v1070
        %v3650 = vunpack.c.l.b16 %v1071
        %v3651 = vunpack.c.h.b16 %v1071
        %v3652 = vunpack.c.l.b16 %v1072
        %v3653 = vunpack.c.h.b16 %v1072
        %v3654 = vunpack.c.l.b16 %v1073
        %v3655 = vunpack.c.h.b16 %v1073
        %v3656 = vunpack.c.l.b16 %v1074
        %v3657 = vunpack.c.h.b16 %v1074
        %v3658 = vunpack.c.l.b16 %v1075
        %v3659 = vunpack.c.h.b16 %v1075
        %v3660 = vunpack.c.l.b16 %v1076
        %v3661 = vunpack.c.h.b16 %v1076
        %v3662 = vunpack.c.l.b16 %v1077
        %v3663 = vunpack.c.h.b16 %v1077
        %v3664 = vunpack.c.l.b16 %v1078
        %v3665 = vunpack.c.h.b16 %v1078
        %v3666 = vunpack.c.l.b16 %v1079
        %v3667 = vunpack.c.h.b16 %v1079
        %v3668 = vunpack.c.l.b16 %v1080
        %v3669 = vunpack.c.h.b16 %v1080
        %v3670 = vunpack.c.l.b16 %v1081
        %v3671 = vunpack.c.h.b16 %v1081
        %v3672 = vunpack.c.l.b16 %v1082
        %v3673 = vunpack.c.h.b16 %v1082
        %v3674 = vunpack.c.l.b16 %v1083
        %v3675 = vunpack.c.h.b16 %v1083
        %v3676 = vunpack.c.l.b16 %v1084
        %v3677 = vunpack.c.h.b16 %v1084
        %v3678 = vunpack.c.l.b16 %v1085
        %v3679 = vunpack.c.h.b16 %v1085
        %v3680 = vunpack.c.l.b16 %v1086
        %v3681 = vunpack.c.h.b16 %v1086
        %v3682 = vunpack.c.l.b16 %v1087
        %v3683 = vunpack.c.h.b16 %v1087
        %v3684 = vunpack.c.l.b16 %v1088
        %v3685 = vunpack.c.h.b16 %v1088
        %v3686 = vunpack.c.l.b16 %v1089
        %v3687 = vunpack.c.h.b16 %v1089
        %v3688 = vunpack.c.l.b16 %v1090
        %v3689 = vunpack.c.h.b16 %v1090
        %v3690 = vunpack.c.l.b16 %v1091
        %v3691 = vunpack.c.h.b16 %v1091
        %v3692 = vunpack.c.l.b16 %v1092
        %v3693 = vunpack.c.h.b16 %v1092
        %v3694 = vunpack.c.l.b16 %v1093
        %v3695 = vunpack.c.h.b16 %v1093
        %v3696 = vunpack.c.l.b16 %v1094
        %v3697 = vunpack.c.h.b16 %v1094
        %v3698 = vunpack.c.l.b16 %v1095
        %v3699 = vunpack.c.h.b16 %v1095
        %v3700 = vunpack.c.l.b16 %v1096
        %v3701 = vunpack.c.h.b16 %v1096
        %v3702 = vunpack.c.l.b16 %v1097
        %v3703 = vunpack.c.h.b16 %v1097
        %v3704 = vunpack.c.l.b16 %v1098
        %v3705 = vunpack.c.h.b16 %v1098
        %v3706 = vunpack.c.l.b16 %v1099
        %v3707 = vunpack.c.h.b16 %v1099
        %v3708 = vunpack.c.l.b16 %v1100
        %v3709 = vunpack.c.h.b16 %v1100
        %v3710 = vunpack.c.l.b16 %v1101
        %v3711 = vunpack.c.h.b16 %v1101
        %v3712 = vunpack.c.l.b16 %v1102
        %v3713 = vunpack.c.h.b16 %v1102
        %v3714 = vunpack.c.l.b16 %v1103
        %v3715 = vunpack.c.h.b16 %v1103
        %v3716 = vunpack.c.l.b16 %v1104
        %v3717 = vunpack.c.h.b16 %v1104
        %v3718 = vunpack.c.l.b16 %v1105
        %v3719 = vunpack.c.h.b16 %v1105
        %v3720 = vunpack.c.l.b16 %v1106
        %v3721 = vunpack.c.h.b16 %v1106
        %v3722 = vunpack.c.l.b16 %v1107
        %v3723 = vunpack.c.h.b16 %v1107
        %v3724 = vunpack.c.l.b16 %v1108
        %v3725 = vunpack.c.h.b16 %v1108
        %v3726 = vunpack.c.l.b16 %v1109
        %v3727 = vunpack.c.h.b16 %v1109
        %v3728 = vunpack.c.l.b16 %v1110
        %v3729 = vunpack.c.h.b16 %v1110
        %v3730 = vunpack.c.l.b16 %v1111
        %v3731 = vunpack.c.h.b16 %v1111
        %v3732 = vunpack.c.l.b16 %v1112
        %v3733 = vunpack.c.h.b16 %v1112
        %v3734 = vunpack.c.l.b16 %v1113
        %v3735 = vunpack.c.h.b16 %v1113
        %v3736 = vunpack.c.l.b16 %v1114
        %v3737 = vunpack.c.h.b16 %v1114
        %v3738 = vunpack.c.l.b16 %v1115
        %v3739 = vunpack.c.h.b16 %v1115
        %v3740 = vunpack.c.l.b16 %v1116
        %v3741 = vunpack.c.h.b16 %v1116
        %v3742 = vunpack.c.l.b16 %v1117
        %v3743 = vunpack.c.h.b16 %v1117
        %v3744 = vunpack.c.l.b16 %v1118
        %v3745 = vunpack.c.h.b16 %v1118
        %v3746 = vunpack.c.l.b16 %v1119
        %v3747 = vunpack.c.h.b16 %v1119
        %v3748 = vunpack.c.l.b16 %v1120
        %v3749 = vunpack.c.h.b16 %v1120
        %v3750 = vunpack.c.l.b16 %v1121
        %v3751 = vunpack.c.h.b16 %v1121
        %v3752 = vunpack.c.l.b16 %v1122
        %v3753 = vunpack.c.h.b16 %v1122
        %v3754 = vunpack.c.l.b16 %v1123
        %v3755 = vunpack.c.h.b16 %v1123
        %v3756 = vunpack.c.l.b16 %v1124
        %v3757 = vunpack.c.h.b16 %v1124
        %v3758 = vunpack.c.l.b16 %v1125
        %v3759 = vunpack.c.h.b16 %v1125
        %v3760 = vunpack.c.l.b16 %v1126
        %v3761 = vunpack.c.h.b16 %v1126
        %v3762 = vunpack.c.l.b16 %v1127
        %v3763 = vunpack.c.h.b16 %v1127
        %v3764 = vunpack.c.l.b16 %v1128
        %v3765 = vunpack.c.h.b16 %v1128
        %v3766 = vunpack.c.l.b16 %v1129
        %v3767 = vunpack.c.h.b16 %v1129
        %v3768 = vunpack.c.l.b16 %v1130
        %v3769 = vunpack.c.h.b16 %v1130
        %v3770 = vunpack.c.l.b16 %v1131
        %v3771 = vunpack.c.h.b16 %v1131
        %v3772 = vunpack.c.l.b16 %v1132
        %v3773 = vunpack.c.h.b16 %v1132
        %v3774 = vunpack.c.l.b16 %v1133
        %v3775 = vunpack.c.h.b16 %v1133
        %v3776 = vunpack.c.l.b16 %v1134
        %v3777 = vunpack.c.h.b16 %v1134
        %v3778 = vunpack.c.l.b16 %v1135
        %v3779 = vunpack.c.h.b16 %v1135
        %v3780 = vunpack.c.l.b16 %v1136
        %v3781 = vunpack.c.h.b16 %v1136
        %v3782 = vunpack.c.l.b16 %v1137
        %v3783 = vunpack.c.h.b16 %v1137
        %v3784 = vunpack.c.l.b16 %v1138
        %v3785 = vunpack.c.h.b16 %v1138
        %v3786 = vunpack.c.l.b16 %v1139
        %v3787 = vunpack.c.h.b16 %v1139
        %v3788 = vunpack.c.l.b16 %v1140
        %v3789 = vunpack.c.h.b16 %v1140
        %v3790 = vunpack.c.l.b16 %v1141
        %v3791 = vunpack.c.h.b16 %v1141
        %v3792 = vunpack.c.l.b16 %v1142
        %v3793 = vunpack.c.h.b16 %v1142
        %v3794 = vunpack.c.l.b16 %v1143
        %v3795 = vunpack.c.h.b16 %v1143
        %v3796 = vunpack.c.l.b16 %v1144
        %v3797 = vunpack.c.h.b16 %v1144
        %v3798 = vunpack.c.l.b16 %v1145
        %v3799 = vunpack.c.h.b16 %v1145
        %v3800 = vunpack.c.l.b16 %v1146
        %v3801 = vunpack.c.h.b16 %v1146
        %v3802 = vunpack.c.l.b16 %v1147
        %v3803 = vunpack.c.h.b16 %v1147
        %v3804 = vunpack.c.l.b16 %v1148
        %v3805 = vunpack.c.h.b16 %v1148
        %v3806 = vunpack.c.l.b16 %v1149
        %v3807 = vunpack.c.h.b16 %v1149
        %v3808 = vunpack.c.l.b16 %v1150
        %v3809 = vunpack.c.h.b16 %v1150
        %v3810 = vunpack.c.l.b16 %v1151
        %v3811 = vunpack.c.h.b16 %v1151
        %v3812 = vunpack.c.l.b16 %v1152
        %v3813 = vunpack.c.h.b16 %v1152
        %v3814 = vunpack.c.l.b16 %v1153
        %v3815 = vunpack.c.h.b16 %v1153
        %v3816 = vunpack.c.l.b16 %v1154
        %v3817 = vunpack.c.h.b16 %v1154
        %v3818 = vunpack.c.l.b16 %v1155
        %v3819 = vunpack.c.h.b16 %v1155
        %v3820 = vunpack.c.l.b16 %v1156
        %v3821 = vunpack.c.h.b16 %v1156
        %v3822 = vunpack.c.l.b16 %v1157
        %v3823 = vunpack.c.h.b16 %v1157
        %v3824 = vunpack.c.l.b16 %v1158
        %v3825 = vunpack.c.h.b16 %v1158
        %v3826 = vunpack.c.l.b16 %v1159
        %v3827 = vunpack.c.h.b16 %v1159
        %v3828 = vunpack.c.l.b16 %v1160
        %v3829 = vunpack.c.h.b16 %v1160
        %v3830 = vunpack.c.l.b16 %v1161
        %v3831 = vunpack.c.h.b16 %v1161
        %v3832 = vunpack.c.l.b16 %v1162
        %v3833 = vunpack.c.h.b16 %v1162
        %v3834 = vunpack.c.l.b16 %v1163
        %v3835 = vunpack.c.h.b16 %v1163
        %v3836 = vunpack.c.l.b16 %v1164
        %v3837 = vunpack.c.h.b16 %v1164
        %v3838 = vunpack.c.l.b16 %v1165
        %v3839 = vunpack.c.h.b16 %v1165
        %v3840 = vunpack.c.l.b16 %v1166
        %v3841 = vunpack.c.h.b16 %v1166
        %v3842 = vunpack.c.l.b16 %v1167
        %v3843 = vunpack.c.h.b16 %v1167
        %v3844 = vunpack.c.l.b16 %v1168
        %v3845 = vunpack.c.h.b16 %v1168
        %v3846 = vunpack.c.l.b16 %v1169
        %v3847 = vunpack.c.h.b16 %v1169
        %v3848 = vunpack.c.l.b16 %v1170
        %v3849 = vunpack.c.h.b16 %v1170
        %v3850 = vunpack.c.l.b16 %v1171
        %v3851 = vunpack.c.h.b16 %v1171
        %v3852 = vunpack.c.l.b16 %v1172
        %v3853 = vunpack.c.h.b16 %v1172
        %v3854 = vunpack.c.l.b16 %v1173
        %v3855 = vunpack.c.h.b16 %v1173
        %v3856 = vunpack.c.l.b16 %v1174
        %v3857 = vunpack.c.h.b16 %v1174
        %v3858 = vunpack.c.l.b16 %v1175
        %v3859 = vunpack.c.h.b16 %v1175
        %v3860 = vunpack.c.l.b16 %v1176
        %v3861 = vunpack.c.h.b16 %v1176
        %v3862 = vunpack.c.l.b16 %v1177
        %v3863 = vunpack.c.h.b16 %v1177
        %v3864 = vunpack.c.l.b16 %v1178
        %v3865 = vunpack.c.h.b16 %v1178
        %v3866 = vunpack.c.l.b16 %v1179
        %v3867 = vunpack.c.h.b16 %v1179
        %v3868 = vunpack.c.l.b16 %v1180
        %v3869 = vunpack.c.h.b16 %v1180
        %v3870 = vunpack.c.l.b16 %v1181
        %v3871 = vunpack.c.h.b16 %v1181
        %v3872 = vunpack.c.l.b16 %v1182
        %v3873 = vunpack.c.h.b16 %v1182
        %v3874 = vunpack.c.l.b16 %v1183
        %v3875 = vunpack.c.h.b16 %v1183
        %v3876 = vunpack.c.l.b16 %v1184
        %v3877 = vunpack.c.h.b16 %v1184
        %v3878 = vunpack.c.l.b16 %v1185
        %v3879 = vunpack.c.h.b16 %v1185
        %v3880 = vunpack.c.l.b16 %v1186
        %v3881 = vunpack.c.h.b16 %v1186
        %v3882 = vunpack.c.l.b16 %v1187
        %v3883 = vunpack.c.h.b16 %v1187
        %v3884 = vunpack.c.l.b16 %v1188
        %v3885 = vunpack.c.h.b16 %v1188
        %v3886 = vunpack.c.l.b16 %v1189
        %v3887 = vunpack.c.h.b16 %v1189
        %v3888 = vunpack.c.l.b16 %v1190
        %v3889 = vunpack.c.h.b16 %v1190
        %v3890 = vunpack.c.l.b16 %v1191
        %v3891 = vunpack.c.h.b16 %v1191
        %v3892 = vunpack.c.l.b16 %v1192
        %v3893 = vunpack.c.h.b16 %v1192
        %v3894 = vunpack.c.l.b16 %v1193
        %v3895 = vunpack.c.h.b16 %v1193
        %v3896 = vunpack.c.l.b16 %v1194
        %v3897 = vunpack.c.h.b16 %v1194
        %v3898 = vunpack.c.l.b16 %v1195
        %v3899 = vunpack.c.h.b16 %v1195
        %v3900 = vunpack.c.l.b16 %v1196
        %v3901 = vunpack.c.h.b16 %v1196
        %v3902 = vunpack.c.l.b16 %v1197
        %v3903 = vunpack.c.h.b16 %v1197
        %v3904 = vunpack.c.l.b16 %v1198
        %v3905 = vunpack.c.h.b16 %v1198
        %v3906 = vunpack.c.l.b16 %v1199
        %v3907 = vunpack.c.h.b16 %v1199
        %v3908 = vunpack.c.l.b16 %v1200
        %v3909 = vunpack.c.h.b16 %v1200
        %v3910 = vunpack.c.l.b16 %v1201
        %v3911 = vunpack.c.h.b16 %v1201
        %v3912 = vunpack.c.l.b16 %v1202
        %v3913 = vunpack.c.h.b16 %v1202
        %v3914 = vunpack.c.l.b16 %v1203
        %v3915 = vunpack.c.h.b16 %v1203
        %v3916 = vunpack.c.l.b16 %v1204
        %v3917 = vunpack.c.h.b16 %v1204
        %v3918 = vunpack.c.l.b16 %v1205
        %v3919 = vunpack.c.h.b16 %v1205
        %v3920 = vunpack.c.l.b16 %v1206
        %v3921 = vunpack.c.h.b16 %v1206
        %v3922 = vunpack.c.l.b16 %v1207
        %v3923 = vunpack.c.h.b16 %v1207
        %v3924 = vunpack.c.l.b16 %v1208
        %v3925 = vunpack.c.h.b16 %v1208
        %v3926 = vunpack.c.l.b16 %v1209
        %v3927 = vunpack.c.h.b16 %v1209
        %v3928 = vunpack.c.l.b16 %v1210
        %v3929 = vunpack.c.h.b16 %v1210
        %v3930 = vunpack.c.l.b16 %v1211
        %v3931 = vunpack.c.h.b16 %v1211
        %v3932 = vunpack.c.l.b16 %v1212
        %v3933 = vunpack.c.h.b16 %v1212
        %v3934 = vunpack.c.l.b16 %v1213
        %v3935 = vunpack.c.h.b16 %v1213
        %v3936 = vunpack.c.l.b16 %v1214
        %v3937 = vunpack.c.h.b16 %v1214
        %v3938 = vunpack.c.l.b16 %v1215
        %v3939 = vunpack.c.h.b16 %v1215
        %v3940 = vunpack.c.l.b16 %v1216
        %v3941 = vunpack.c.h.b16 %v1216
        %v3942 = vunpack.c.l.b16 %v1217
        %v3943 = vunpack.c.h.b16 %v1217
        %v3944 = vunpack.c.l.b16 %v1218
        %v3945 = vunpack.c.h.b16 %v1218
        %v3946 = vunpack.c.l.b16 %v1219
        %v3947 = vunpack.c.h.b16 %v1219
        %v3948 = vunpack.c.l.b16 %v1220
        %v3949 = vunpack.c.h.b16 %v1220
        %v3950 = vunpack.c.l.b16 %v1221
        %v3951 = vunpack.c.h.b16 %v1221
        %v3952 = vunpack.c.l.b16 %v1222
        %v3953 = vunpack.c.h.b16 %v1222
        %v3954 = vunpack.c.l.b16 %v1223
        %v3955 = vunpack.c.h.b16 %v1223
        %v3956 = vunpack.c.l.b16 %v1224
        %v3957 = vunpack.c.h.b16 %v1224
        %v3958 = vunpack.c.l.b16 %v1225
        %v3959 = vunpack.c.h.b16 %v1225
        %v3960 = vunpack.c.l.b16 %v1226
        %v3961 = vunpack.c.h.b16 %v1226
        %v3962 = vunpack.c.l.b16 %v1227
        %v3963 = vunpack.c.h.b16 %v1227
        %v3964 = vunpack.c.l.b16 %v1228
        %v3965 = vunpack.c.h.b16 %v1228
        %v3966 = vunpack.c.l.b16 %v1229
        %v3967 = vunpack.c.h.b16 %v1229
        %v3968 = vunpack.c.l.b16 %v1230
        %v3969 = vunpack.c.h.b16 %v1230
        %v3970 = vunpack.c.l.b16 %v1231
        %v3971 = vunpack.c.h.b16 %v1231
        %v3972 = vunpack.c.l.b16 %v1232
        %v3973 = vunpack.c.h.b16 %v1232
        %v3974 = vunpack.c.l.b16 %v1233
        %v3975 = vunpack.c.h.b16 %v1233
        %v3976 = vunpack.c.l.b16 %v1234
        %v3977 = vunpack.c.h.b16 %v1234
        %v3978 = vunpack.c.l.b16 %v1235
        %v3979 = vunpack.c.h.b16 %v1235
        %v3980 = vunpack.c.l.b16 %v1236
        %v3981 = vunpack.c.h.b16 %v1236
        %v3982 = vunpack.c.l.b16 %v1237
        %v3983 = vunpack.c.h.b16 %v1237
        %v3984 = vunpack.c.l.b16 %v1238
        %v3985 = vunpack.c.h.b16 %v1238
        %v3986 = vunpack.c.l.b16 %v1239
        %v3987 = vunpack.c.h.b16 %v1239
        %v3988 = vunpack.c.l.b16 %v1240
        %v3989 = vunpack.c.h.b16 %v1240
        %v3990 = vunpack.c.l.b16 %v1241
        %v3991 = vunpack.c.h.b16 %v1241
        %v3992 = vunpack.c.l.b16 %v1242
        %v3993 = vunpack.c.h.b16 %v1242
        %v3994 = vunpack.c.l.b16 %v1243
        %v3995 = vunpack.c.h.b16 %v1243
        %v3996 = vunpack.c.l.b16 %v1244
        %v3997 = vunpack.c.h.b16 %v1244
        %v3998 = vunpack.c.l.b16 %v1245
        %v3999 = vunpack.c.h.b16 %v1245
        %v4000 = vunpack.c.l.b16 %v1246
        %v4001 = vunpack.c.h.b16 %v1246
        %v4002 = vunpack.c.l.b16 %v1247
        %v4003 = vunpack.c.h.b16 %v1247
        %v4004 = vunpack.c.l.b16 %v1248
        %v4005 = vunpack.c.h.b16 %v1248
        %v4006 = vunpack.c.l.b16 %v1249
        %v4007 = vunpack.c.h.b16 %v1249
        %v4008 = vunpack.c.l.b16 %v1250
        %v4009 = vunpack.c.h.b16 %v1250
        %v4010 = vunpack.c.l.b16 %v1251
        %v4011 = vunpack.c.h.b16 %v1251
        %v4012 = vunpack.c.l.b16 %v1252
        %v4013 = vunpack.c.h.b16 %v1252
        %v4014 = vunpack.c.l.b16 %v1253
        %v4015 = vunpack.c.h.b16 %v1253
        %v4016 = vunpack.c.l.b16 %v1254
        %v4017 = vunpack.c.h.b16 %v1254
        %v4018 = vunpack.c.l.b16 %v1255
        %v4019 = vunpack.c.h.b16 %v1255
        %v4020 = vunpack.c.l.b16 %v1256
        %v4021 = vunpack.c.h.b16 %v1256
        %v4022 = vunpack.c.l.b16 %v1257
        %v4023 = vunpack.c.h.b16 %v1257
        %v4024 = vunpack.c.l.b16 %v1258
        %v4025 = vunpack.c.h.b16 %v1258
        %v4026 = vunpack.c.l.b16 %v1259
        %v4027 = vunpack.c.h.b16 %v1259
        %v4028 = vunpack.c.l.b16 %v1260
        %v4029 = vunpack.c.h.b16 %v1260
        %v4030 = vunpack.c.l.b16 %v1261
        %v4031 = vunpack.c.h.b16 %v1261
        %v4032 = vunpack.c.l.b16 %v1262
        %v4033 = vunpack.c.h.b16 %v1262
        %v4034 = vunpack.c.l.b16 %v1263
        %v4035 = vunpack.c.h.b16 %v1263
        %v4036 = vunpack.c.l.b16 %v1264
        %v4037 = vunpack.c.h.b16 %v1264
        %v4038 = vunpack.c.l.b16 %v1265
        %v4039 = vunpack.c.h.b16 %v1265
        %v4040 = vunpack.c.l.b16 %v1266
        %v4041 = vunpack.c.h.b16 %v1266
        %v4042 = vunpack.c.l.b16 %v1267
        %v4043 = vunpack.c.h.b16 %v1267
        %v4044 = vunpack.c.l.b16 %v1268
        %v4045 = vunpack.c.h.b16 %v1268
        %v4046 = vunpack.c.l.b16 %v1269
        %v4047 = vunpack.c.h.b16 %v1269
        %v4048 = vunpack.c.l.b16 %v1270
        %v4049 = vunpack.c.h.b16 %v1270
        %v4050 = vunpack.c.l.b16 %v1271
        %v4051 = vunpack.c.h.b16 %v1271
        %v4052 = vunpack.c.l.b16 %v1272
        %v4053 = vunpack.c.h.b16 %v1272
        %v4054 = vunpack.c.l.b16 %v1273
        %v4055 = vunpack.c.h.b16 %v1273
        %v4056 = vunpack.c.l.b16 %v1274
        %v4057 = vunpack.c.h.b16 %v1274
        %v4058 = vunpack.c.l.b16 %v1275
        %v4059 = vunpack.c.h.b16 %v1275
        %v4060 = vunpack.c.l.b16 %v1276
        %v4061 = vunpack.c.h.b16 %v1276
        %v4062 = vunpack.c.l.b16 %v1277
        %v4063 = vunpack.c.h.b16 %v1277
        %v4064 = vunpack.c.l.b16 %v1278
        %v4065 = vunpack.c.h.b16 %v1278
        %v4066 = vunpack.c.l.b16 %v1279
        %v4067 = vunpack.c.h.b16 %v1279
        %v4068 = vunpack.c.l.b16 %v1280
        %v4069 = vunpack.c.h.b16 %v1280
        %v4070 = vunpack.c.l.b16 %v1281
        %v4071 = vunpack.c.h.b16 %v1281
        %v4072 = vunpack.c.l.b16 %v1282
        %v4073 = vunpack.c.h.b16 %v1282
        %v4074 = vunpack.c.l.b16 %v1283
        %v4075 = vunpack.c.h.b16 %v1283
        %v4076 = vunpack.c.l.b16 %v1284
        %v4077 = vunpack.c.h.b16 %v1284
        %v4078 = vunpack.c.l.b16 %v1285
        %v4079 = vunpack.c.h.b16 %v1285
        %v4080 = vunpack.c.l.b16 %v1286
        %v4081 = vunpack.c.h.b16 %v1286
        %v4082 = vunpack.c.l.b16 %v1287
        %v4083 = vunpack.c.h.b16 %v1287
        %v4084 = vunpack.c.l.b16 %v1288
        %v4085 = vunpack.c.h.b16 %v1288
        %v4086 = vunpack.c.l.b16 %v1289
        %v4087 = vunpack.c.h.b16 %v1289
        %v4088 = vunpack.c.l.b16 %v1290
        %v4089 = vunpack.c.h.b16 %v1290
        %v4090 = vunpack.c.l.b16 %v1291
        %v4091 = vunpack.c.h.b16 %v1291
        %v4092 = vunpack.c.l.b16 %v1292
        %v4093 = vunpack.c.h.b16 %v1292
        %v4094 = vunpack.c.l.b16 %v1293
        %v4095 = vunpack.c.h.b16 %v1293
        %v4096 = vunpack.c.l.b16 %v1294
        %v4097 = vunpack.c.h.b16 %v1294
        %v4098 = vunpack.c.l.b16 %v1295
        %v4099 = vunpack.c.h.b16 %v1295
        %v4100 = vunpack.c.l.b16 %v1296
        %v4101 = vunpack.c.h.b16 %v1296
        %v4102 = vunpack.c.l.b16 %v1297
        %v4103 = vunpack.c.h.b16 %v1297
        %v4104 = vunpack.c.l.b16 %v1298
        %v4105 = vunpack.c.h.b16 %v1298
        %v4106 = vunpack.c.l.b16 %v1299
        %v4107 = vunpack.c.h.b16 %v1299
        %v4108 = vunpack.c.l.b16 %v1300
        %v4109 = vunpack.c.h.b16 %v1300
        %v4110 = vunpack.c.l.b16 %v1301
        %v4111 = vunpack.c.h.b16 %v1301
        %v4112 = vunpack.c.l.b16 %v1302
        %v4113 = vunpack.c.h.b16 %v1302
        %v4114 = vunpack.c.l.b16 %v1303
        %v4115 = vunpack.c.h.b16 %v1303
        %v4116 = vunpack.c.l.b16 %v1304
        %v4117 = vunpack.c.h.b16 %v1304
        %v4118 = vunpack.c.l.b16 %v1305
        %v4119 = vunpack.c.h.b16 %v1305
        %v4120 = vunpack.c.l.b16 %v1306
        %v4121 = vunpack.c.h.b16 %v1306
        %v4122 = vunpack.c.l.b16 %v1307
        %v4123 = vunpack.c.h.b16 %v1307
        %v4124 = vunpack.c.l.b16 %v1308
        %v4125 = vunpack.c.h.b16 %v1308
        %v4126 = vunpack.c.l.b16 %v1309
        %v4127 = vunpack.c.h.b16 %v1309
        %v4128 = vunpack.c.l.b16 %v1310
        %v4129 = vunpack.c.h.b16 %v1310
        %v4130 = vunpack.c.l.b16 %v1311
        %v4131 = vunpack.c.h.b16 %v1311
        %v4132 = vunpack.c.l.b16 %v1312
        %v4133 = vunpack.c.h.b16 %v1312
        %v4134 = vunpack.c.l.b16 %v1313
        %v4135 = vunpack.c.h.b16 %v1313
        %v4136 = vunpack.c.l.b16 %v1314
        %v4137 = vunpack.c.h.b16 %v1314
        %v4138 = vunpack.c.l.b16 %v1315
        %v4139 = vunpack.c.h.b16 %v1315
        %v4140 = vunpack.c.l.b16 %v1316
        %v4141 = vunpack.c.h.b16 %v1316
        %v4142 = vunpack.c.l.b16 %v1317
        %v4143 = vunpack.c.h.b16 %v1317
        %v4144 = vunpack.c.l.b16 %v1318
        %v4145 = vunpack.c.h.b16 %v1318
        %v4146 = vunpack.c.l.b16 %v1319
        %v4147 = vunpack.c.h.b16 %v1319
        %v4148 = vunpack.c.l.b16 %v1320
        %v4149 = vunpack.c.h.b16 %v1320
        %v4150 = vunpack.c.l.b16 %v1321
        %v4151 = vunpack.c.h.b16 %v1321
        %v4152 = vunpack.c.l.b16 %v1322
        %v4153 = vunpack.c.h.b16 %v1322
        %v4154 = vunpack.c.l.b16 %v1323
        %v4155 = vunpack.c.h.b16 %v1323
        %v4156 = vunpack.c.l.b16 %v1324
        %v4157 = vunpack.c.h.b16 %v1324
        %v4158 = vunpack.c.l.b16 %v1325
        %v4159 = vunpack.c.h.b16 %v1325
        %v4160 = vunpack.c.l.b16 %v1326
        %v4161 = vunpack.c.h.b16 %v1326
        %v4162 = vunpack.c.l.b16 %v1327
        %v4163 = vunpack.c.h.b16 %v1327
        %v4164 = vunpack.c.l.b16 %v1328
        %v4165 = vunpack.c.h.b16 %v1328
        %v4166 = vunpack.c.l.b16 %v1329
        %v4167 = vunpack.c.h.b16 %v1329
        %v4168 = vunpack.c.l.b16 %v1330
        %v4169 = vunpack.c.h.b16 %v1330
        %v4170 = vunpack.c.l.b16 %v1331
        %v4171 = vunpack.c.h.b16 %v1331
        %v4172 = vunpack.c.l.b16 %v1332
        %v4173 = vunpack.c.h.b16 %v1332
        %v4174 = vunpack.c.l.b16 %v1333
        %v4175 = vunpack.c.h.b16 %v1333
        %v4176 = vunpack.c.l.b16 %v1334
        %v4177 = vunpack.c.h.b16 %v1334
        %v4178 = vunpack.c.l.b16 %v1335
        %v4179 = vunpack.c.h.b16 %v1335
        %v4180 = vunpack.c.l.b16 %v1336
        %v4181 = vunpack.c.h.b16 %v1336
        %v4182 = vunpack.c.l.b16 %v1337
        %v4183 = vunpack.c.h.b16 %v1337
        %v4184 = vunpack.c.l.b16 %v1338
        %v4185 = vunpack.c.h.b16 %v1338
        %v4186 = vunpack.c.l.b16 %v1339
        %v4187 = vunpack.c.h.b16 %v1339
        %v4188 = vunpack.c.l.b16 %v1340
        %v4189 = vunpack.c.h.b16 %v1340
        %v4190 = vunpack.c.l.b16 %v1341
        %v4191 = vunpack.c.h.b16 %v1341
        %v4192 = vunpack.c.l.b16 %v1342
        %v4193 = vunpack.c.h.b16 %v1342
        %v4194 = vunpack.c.l.b16 %v1343
        %v4195 = vunpack.c.h.b16 %v1343
        %v4196 = vunpack.c.l.b16 %v1344
        %v4197 = vunpack.c.h.b16 %v1344
        %v4198 = vunpack.c.l.b16 %v1345
        %v4199 = vunpack.c.h.b16 %v1345
        %v4200 = vunpack.c.l.b16 %v1346
        %v4201 = vunpack.c.h.b16 %v1346
        %v4202 = vunpack.c.l.b16 %v1347
        %v4203 = vunpack.c.h.b16 %v1347
        %v4204 = vunpack.c.l.b16 %v1348
        %v4205 = vunpack.c.h.b16 %v1348
        %v4206 = vunpack.c.l.b16 %v1349
        %v4207 = vunpack.c.h.b16 %v1349
        %v4208 = vunpack.c.l.b16 %v1350
        %v4209 = vunpack.c.h.b16 %v1350
        %v4210 = vunpack.c.l.b16 %v1351
        %v4211 = vunpack.c.h.b16 %v1351
        %v4212 = vunpack.c.l.b16 %v1352
        %v4213 = vunpack.c.h.b16 %v1352
        %v4214 = vunpack.c.l.b16 %v1353
        %v4215 = vunpack.c.h.b16 %v1353
        %v4216 = vunpack.c.l.b16 %v1354
        %v4217 = vunpack.c.h.b16 %v1354
        %v4218 = vunpack.c.l.b16 %v1355
        %v4219 = vunpack.c.h.b16 %v1355
        %v4220 = vunpack.c.l.b16 %v1356
        %v4221 = vunpack.c.h.b16 %v1356
        %v4222 = vunpack.c.l.b16 %v1357
        %v4223 = vunpack.c.h.b16 %v1357
        %v4224 = vunpack.c.l.b16 %v1358
        %v4225 = vunpack.c.h.b16 %v1358
        %v4226 = vunpack.c.l.b16 %v1359
        %v4227 = vunpack.c.h.b16 %v1359
        %v4228 = vunpack.c.l.b16 %v1360
        %v4229 = vunpack.c.h.b16 %v1360
        %v4230 = vunpack.c.l.b16 %v1361
        %v4231 = vunpack.c.h.b16 %v1361
        %v4232 = vunpack.c.l.b16 %v1362
        %v4233 = vunpack.c.h.b16 %v1362
        %v4234 = vunpack.c.l.b16 %v1363
        %v4235 = vunpack.c.h.b16 %v1363
        %v4236 = vunpack.c.l.b16 %v1364
        %v4237 = vunpack.c.h.b16 %v1364
        %v4238 = vunpack.c.l.b16 %v1365
        %v4239 = vunpack.c.h.b16 %v1365
        %v4240 = vunpack.c.l.b16 %v1366
        %v4241 = vunpack.c.h.b16 %v1366
        %v4242 = vunpack.c.l.b16 %v1367
        %v4243 = vunpack.c.h.b16 %v1367
        %v4244 = vunpack.c.l.b16 %v1368
        %v4245 = vunpack.c.h.b16 %v1368
        %v4246 = vunpack.c.l.b16 %v1369
        %v4247 = vunpack.c.h.b16 %v1369
        %v4248 = vunpack.c.l.b16 %v1370
        %v4249 = vunpack.c.h.b16 %v1370
        %v4250 = vunpack.c.l.b16 %v1371
        %v4251 = vunpack.c.h.b16 %v1371
        %v4252 = vunpack.c.l.b16 %v1372
        %v4253 = vunpack.c.h.b16 %v1372
        %v4254 = vunpack.c.l.b16 %v1373
        %v4255 = vunpack.c.h.b16 %v1373
        %v4256 = vunpack.c.l.b16 %v1374
        %v4257 = vunpack.c.h.b16 %v1374
        %v4258 = vunpack.c.l.b16 %v1375
        %v4259 = vunpack.c.h.b16 %v1375
        %v4260 = vunpack.c.l.b16 %v1376
        %v4261 = vunpack.c.h.b16 %v1376
        %v4262 = vunpack.c.l.b16 %v1377
        %v4263 = vunpack.c.h.b16 %v1377
        %v4264 = vunpack.c.l.b16 %v1378
        %v4265 = vunpack.c.h.b16 %v1378
        %v4266 = vunpack.c.l.b16 %v1379
        %v4267 = vunpack.c.h.b16 %v1379
        %v4268 = vunpack.c.l.b16 %v1380
        %v4269 = vunpack.c.h.b16 %v1380
        %v4270 = vunpack.c.l.b16 %v1381
        %v4271 = vunpack.c.h.b16 %v1381
        %v4272 = vunpack.c.l.b16 %v1382
        %v4273 = vunpack.c.h.b16 %v1382
        %v4274 = vunpack.c.l.b16 %v1383
        %v4275 = vunpack.c.h.b16 %v1383
        %v4276 = vunpack.c.l.b16 %v1384
        %v4277 = vunpack.c.h.b16 %v1384
        %v4278 = vunpack.c.l.b16 %v1385
        %v4279 = vunpack.c.h.b16 %v1385
        %v4280 = vunpack.c.l.b16 %v1386
        %v4281 = vunpack.c.h.b16 %v1386
        %v4282 = vunpack.c.l.b16 %v1387
        %v4283 = vunpack.c.h.b16 %v1387
        %v4284 = vunpack.c.l.b16 %v1388
        %v4285 = vunpack.c.h.b16 %v1388
        %v4286 = vunpack.c.l.b16 %v1389
        %v4287 = vunpack.c.h.b16 %v1389
        %v4288 = vunpack.c.l.b16 %v1390
        %v4289 = vunpack.c.h.b16 %v1390
        %v4290 = vunpack.c.l.b16 %v1391
        %v4291 = vunpack.c.h.b16 %v1391
        %v4292 = vunpack.c.l.b16 %v1392
        %v4293 = vunpack.c.h.b16 %v1392
        %v4294 = vunpack.c.l.b16 %v1393
        %v4295 = vunpack.c.h.b16 %v1393
        %v4296 = vunpack.c.l.b16 %v1394
        %v4297 = vunpack.c.h.b16 %v1394
        %v4298 = vunpack.c.l.b16 %v1395
        %v4299 = vunpack.c.h.b16 %v1395
        %v4300 = vunpack.c.l.b16 %v1396
        %v4301 = vunpack.c.h.b16 %v1396
        %v4302 = vunpack.c.l.b16 %v1397
        %v4303 = vunpack.c.h.b16 %v1397
        %v4304 = vunpack.c.l.b16 %v1398
        %v4305 = vunpack.c.h.b16 %v1398
        %v4306 = vunpack.c.l.b16 %v1399
        %v4307 = vunpack.c.h.b16 %v1399
        %v4308 = vunpack.c.l.b16 %v1400
        %v4309 = vunpack.c.h.b16 %v1400
        %v4310 = vunpack.c.l.b16 %v1401
        %v4311 = vunpack.c.h.b16 %v1401
        %v4312 = vunpack.c.l.b16 %v1402
        %v4313 = vunpack.c.h.b16 %v1402
        %v4314 = vunpack.c.l.b16 %v1403
        %v4315 = vunpack.c.h.b16 %v1403
        %v4316 = vunpack.c.l.b16 %v1404
        %v4317 = vunpack.c.h.b16 %v1404
        %v4318 = vunpack.c.l.b16 %v1405
        %v4319 = vunpack.c.h.b16 %v1405
        %v4320 = vunpack.c.l.b16 %v1406
        %v4321 = vunpack.c.h.b16 %v1406
        %v4322 = vunpack.c.l.b16 %v1407
        %v4323 = vunpack.c.h.b16 %v1407
        %v4324 = vunpack.c.l.b16 %v1408
        %v4325 = vunpack.c.h.b16 %v1408
        %v4326 = vunpack.c.l.b16 %v1409
        %v4327 = vunpack.c.h.b16 %v1409
        %v4328 = vunpack.c.l.b16 %v1410
        %v4329 = vunpack.c.h.b16 %v1410
        %v4330 = vunpack.c.l.b16 %v1411
        %v4331 = vunpack.c.h.b16 %v1411
        %v4332 = vunpack.c.l.b16 %v1412
        %v4333 = vunpack.c.h.b16 %v1412
        %v4334 = vunpack.c.l.b16 %v1413
        %v4335 = vunpack.c.h.b16 %v1413
        %v4336 = vunpack.c.l.b16 %v1414
        %v4337 = vunpack.c.h.b16 %v1414
        %v4338 = vunpack.c.l.b16 %v1415
        %v4339 = vunpack.c.h.b16 %v1415
        %v4340 = vunpack.c.l.b16 %v1416
        %v4341 = vunpack.c.h.b16 %v1416
        %v4342 = vunpack.c.l.b16 %v1417
        %v4343 = vunpack.c.h.b16 %v1417
        %v4344 = vunpack.c.l.b16 %v1418
        %v4345 = vunpack.c.h.b16 %v1418
        %v4346 = vunpack.c.l.b16 %v1419
        %v4347 = vunpack.c.h.b16 %v1419
        %v4348 = vunpack.c.l.b16 %v1420
        %v4349 = vunpack.c.h.b16 %v1420
        %v4350 = vunpack.c.l.b16 %v1421
        %v4351 = vunpack.c.h.b16 %v1421
        %v4352 = vunpack.c.l.b16 %v1422
        %v4353 = vunpack.c.h.b16 %v1422
        %v4354 = vunpack.c.l.b16 %v1423
        %v4355 = vunpack.c.h.b16 %v1423
        %v4356 = vunpack.c.l.b16 %v1424
        %v4357 = vunpack.c.h.b16 %v1424
        %v4358 = vunpack.c.l.b16 %v1425
        %v4359 = vunpack.c.h.b16 %v1425
        %v4360 = vunpack.c.l.b16 %v1426
        %v4361 = vunpack.c.h.b16 %v1426
        %v4362 = vunpack.c.l.b16 %v1427
        %v4363 = vunpack.c.h.b16 %v1427
        %v4364 = vunpack.c.l.b16 %v1428
        %v4365 = vunpack.c.h.b16 %v1428
        %v4366 = vunpack.c.l.b16 %v1429
        %v4367 = vunpack.c.h.b16 %v1429
        %v4368 = vunpack.c.l.b16 %v1430
        %v4369 = vunpack.c.h.b16 %v1430
        %v4370 = vunpack.c.l.b16 %v1431
        %v4371 = vunpack.c.h.b16 %v1431
        %v4372 = vunpack.c.l.b16 %v1432
        %v4373 = vunpack.c.h.b16 %v1432
        %v4374 = vunpack.c.l.b16 %v1433
        %v4375 = vunpack.c.h.b16 %v1433
        %v4376 = vunpack.c.l.b16 %v1434
        %v4377 = vunpack.c.h.b16 %v1434
        %v4378 = vunpack.c.l.b16 %v1435
        %v4379 = vunpack.c.h.b16 %v1435
        %v4380 = vunpack.c.l.b16 %v1436
        %v4381 = vunpack.c.h.b16 %v1436
        %v4382 = vunpack.c.l.b16 %v1437
        %v4383 = vunpack.c.h.b16 %v1437
        %v4384 = vunpack.c.l.b16 %v1438
        %v4385 = vunpack.c.h.b16 %v1438
        %v4386 = vunpack.c.l.b16 %v1439
        %v4387 = vunpack.c.h.b16 %v1439
        %v4388 = vunpack.c.l.b16 %v1440
        %v4389 = vunpack.c.h.b16 %v1440
        %v4390 = vunpack.c.l.b16 %v1441
        %v4391 = vunpack.c.h.b16 %v1441
        %v4392 = vunpack.c.l.b16 %v1442
        %v4393 = vunpack.c.h.b16 %v1442
        %v4394 = vunpack.c.l.b16 %v1443
        %v4395 = vunpack.c.h.b16 %v1443
        %v4396 = vunpack.c.l.b16 %v1444
        %v4397 = vunpack.c.h.b16 %v1444
        %v4398 = vunpack.c.l.b16 %v1445
        %v4399 = vunpack.c.h.b16 %v1445
        %v4400 = vunpack.c.l.b16 %v1446
        %v4401 = vunpack.c.h.b16 %v1446
        %v4402 = vunpack.c.l.b16 %v1447
        %v4403 = vunpack.c.h.b16 %v1447
        %v4404 = vunpack.c.l.b16 %v1448
        %v4405 = vunpack.c.h.b16 %v1448
        %v4406 = vunpack.c.l.b16 %v1449
        %v4407 = vunpack.c.h.b16 %v1449
        %v4408 = vunpack.c.l.b16 %v1450
        %v4409 = vunpack.c.h.b16 %v1450
        %v4410 = vunpack.c.l.b16 %v1451
        %v4411 = vunpack.c.h.b16 %v1451
        %v4412 = vunpack.c.l.b16 %v1452
        %v4413 = vunpack.c.h.b16 %v1452
        %v4414 = vunpack.c.l.b16 %v1453
        %v4415 = vunpack.c.h.b16 %v1453
        %v4416 = vunpack.c.l.b16 %v1454
        %v4417 = vunpack.c.h.b16 %v1454
        %v4418 = vunpack.c.l.b16 %v1455
        %v4419 = vunpack.c.h.b16 %v1455
        %v4420 = vunpack.c.l.b16 %v1456
        %v4421 = vunpack.c.h.b16 %v1456
        %v4422 = vunpack.c.l.b16 %v1457
        %v4423 = vunpack.c.h.b16 %v1457
        %v4424 = vunpack.c.l.b16 %v1458
        %v4425 = vunpack.c.h.b16 %v1458
        %v4426 = vunpack.c.l.b16 %v1459
        %v4427 = vunpack.c.h.b16 %v1459
        %v4428 = vunpack.c.l.b16 %v1460
        %v4429 = vunpack.c.h.b16 %v1460
        %v4430 = vunpack.c.l.b16 %v1461
        %v4431 = vunpack.c.h.b16 %v1461
        %v4432 = vunpack.c.l.b16 %v1462
        %v4433 = vunpack.c.h.b16 %v1462
        %v4434 = vunpack.c.l.b16 %v1463
        %v4435 = vunpack.c.h.b16 %v1463
        %v4436 = vunpack.c.l.b16 %v1464
        %v4437 = vunpack.c.h.b16 %v1464
        %v4438 = vunpack.c.l.b16 %v1465
        %v4439 = vunpack.c.h.b16 %v1465
        %v4440 = vunpack.c.l.b16 %v1466
        %v4441 = vunpack.c.h.b16 %v1466
        %v4442 = vunpack.c.l.b16 %v1467
        %v4443 = vunpack.c.h.b16 %v1467
        %v4444 = vunpack.c.l.b16 %v1468
        %v4445 = vunpack.c.h.b16 %v1468
        %v4446 = vunpack.c.l.b16 %v1469
        %v4447 = vunpack.c.h.b16 %v1469
        %v4448 = vunpack.c.l.b16 %v1470
        %v4449 = vunpack.c.h.b16 %v1470
        %v4450 = vunpack.c.l.b16 %v1471
        %v4451 = vunpack.c.h.b16 %v1471
        %v4452 = vunpack.c.l.b16 %v1472
        %v4453 = vunpack.c.h.b16 %v1472
        %v4454 = vunpack.c.l.b16 %v1473
        %v4455 = vunpack.c.h.b16 %v1473
        %v4456 = vunpack.c.l.b16 %v1474
        %v4457 = vunpack.c.h.b16 %v1474
        %v4458 = vunpack.c.l.b16 %v1475
        %v4459 = vunpack.c.h.b16 %v1475
        %v4460 = vunpack.c.l.b16 %v1476
        %v4461 = vunpack.c.h.b16 %v1476
        %v4462 = vunpack.c.l.b16 %v1477
        %v4463 = vunpack.c.h.b16 %v1477
        %v4464 = vunpack.c.l.b16 %v1478
        %v4465 = vunpack.c.h.b16 %v1478
        %v4466 = vunpack.c.l.b16 %v1479
        %v4467 = vunpack.c.h.b16 %v1479
        %v4468 = vunpack.c.l.b16 %v1480
        %v4469 = vunpack.c.h.b16 %v1480
        %v4470 = vunpack.c.l.b16 %v1481
        %v4471 = vunpack.c.h.b16 %v1481
        %v4472 = vunpack.c.l.b16 %v1482
        %v4473 = vunpack.c.h.b16 %v1482
        %v4474 = vunpack.c.l.b16 %v1483
        %v4475 = vunpack.c.h.b16 %v1483
        %v4476 = vunpack.c.l.b16 %v1484
        %v4477 = vunpack.c.h.b16 %v1484
        %v4478 = vunpack.c.l.b16 %v1485
        %v4479 = vunpack.c.h.b16 %v1485
        %v4480 = vunpack.c.l.b16 %v1486
        %v4481 = vunpack.c.h.b16 %v1486
        %v4482 = vunpack.c.l.b16 %v1487
        %v4483 = vunpack.c.h.b16 %v1487
        %v4484 = vunpack.c.l.b16 %v1488
        %v4485 = vunpack.c.h.b16 %v1488
        %v4486 = vunpack.c.l.b16 %v1489
        %v4487 = vunpack.c.h.b16 %v1489
        %v4488 = vunpack.c.l.b16 %v1490
        %v4489 = vunpack.c.h.b16 %v1490
        %v4490 = vunpack.c.l.b16 %v1491
        %v4491 = vunpack.c.h.b16 %v1491
        %v4492 = vunpack.c.l.b16 %v1492
        %v4493 = vunpack.c.h.b16 %v1492
        %v4494 = vunpack.c.l.b16 %v1493
        %v4495 = vunpack.c.h.b16 %v1493
        %v4496 = vunpack.c.l.b16 %v1494
        %v4497 = vunpack.c.h.b16 %v1494
        %v4498 = vunpack.c.l.b16 %v1495
        %v4499 = vunpack.c.h.b16 %v1495
        %v4500 = vunpack.c.l.b16 %v1496
        %v4501 = vunpack.c.h.b16 %v1496
        %v4502 = vunpack.c.l.b16 %v1497
        %v4503 = vunpack.c.h.b16 %v1497
        %v4504 = vunpack.c.l.b16 %v1498
        %v4505 = vunpack.c.h.b16 %v1498
        %v4506 = vunpack.c.l.b16 %v1499
        %v4507 = vunpack.c.h.b16 %v1499
        %v4508 = vunpack.c.l.b16 %v1500
        %v4509 = vunpack.c.h.b16 %v1500
        %v4510 = vunpack.c.l.b16 %v1501
        %v4511 = vunpack.c.h.b16 %v1501
        %v4512 = vunpack.c.l.b16 %v1502
        %v4513 = vunpack.c.h.b16 %v1502
        %v4514 = vunpack.c.l.b16 %v1503
        %v4515 = vunpack.c.h.b16 %v1503
        %v4516 = vunpack.c.l.b16 %v1504
        %v4517 = vunpack.c.h.b16 %v1504
        %v4518 = vunpack.c.l.b16 %v1505
        %v4519 = vunpack.c.h.b16 %v1505
        %v4520 = vunpack.c.l.b16 %v1506
        %v4521 = vunpack.c.h.b16 %v1506
        %v4522 = vunpack.c.l.b16 %v1507
        %v4523 = vunpack.c.h.b16 %v1507
        %v4524 = vunpack.c.l.b16 %v1508
        %v4525 = vunpack.c.h.b16 %v1508
        %v4526 = vunpack.c.l.b16 %v1509
        %v4527 = vunpack.c.h.b16 %v1509
        %v4528 = vunpack.c.l.b16 %v1510
        %v4529 = vunpack.c.h.b16 %v1510
        %v4530 = vunpack.c.l.b16 %v1511
        %v4531 = vunpack.c.h.b16 %v1511
        %v4532 = vunpack.c.l.b16 %v1512
        %v4533 = vunpack.c.h.b16 %v1512
        %v4534 = vunpack.c.l.b16 %v1513
        %v4535 = vunpack.c.h.b16 %v1513
        %v4536 = vunpack.c.l.b16 %v1514
        %v4537 = vunpack.c.h.b16 %v1514
        %v4538 = vunpack.c.l.b16 %v1515
        %v4539 = vunpack.c.h.b16 %v1515
        %v4540 = vunpack.c.l.b16 %v1516
        %v4541 = vunpack.c.h.b16 %v1516
        %v4542 = vunpack.c.l.b16 %v1517
        %v4543 = vunpack.c.h.b16 %v1517
        %v4544 = vunpack.c.l.b16 %v1518
        %v4545 = vunpack.c.h.b16 %v1518
        %v4546 = vunpack.c.l.b16 %v1519
        %v4547 = vunpack.c.h.b16 %v1519
        %v4548 = vunpack.c.l.b16 %v1520
        %v4549 = vunpack.c.h.b16 %v1520
        %v4550 = vunpack.c.l.b16 %v1521
        %v4551 = vunpack.c.h.b16 %v1521
        %v4552 = vunpack.c.l.b16 %v1522
        %v4553 = vunpack.c.h.b16 %v1522
        %v4554 = vunpack.c.l.b16 %v1523
        %v4555 = vunpack.c.h.b16 %v1523
        %v4556 = vunpack.c.l.b16 %v1524
        %v4557 = vunpack.c.h.b16 %v1524
        %v4558 = vunpack.c.l.b16 %v1525
        %v4559 = vunpack.c.h.b16 %v1525
        %v4560 = vunpack.c.l.b16 %v1526
        %v4561 = vunpack.c.h.b16 %v1526
        %v4562 = vunpack.c.l.b16 %v1527
        %v4563 = vunpack.c.h.b16 %v1527
        %v4564 = vunpack.c.l.b16 %v1528
        %v4565 = vunpack.c.h.b16 %v1528
        %v4566 = vunpack.c.l.b16 %v1529
        %v4567 = vunpack.c.h.b16 %v1529
        %v4568 = vunpack.c.l.b16 %v1530
        %v4569 = vunpack.c.h.b16 %v1530
        %v4570 = vunpack.c.l.b16 %v1531
        %v4571 = vunpack.c.h.b16 %v1531
        %v4572 = vunpack.c.l.b16 %v1532
        %v4573 = vunpack.c.h.b16 %v1532
        %v4574 = vunpack.c.l.b16 %v1533
        %v4575 = vunpack.c.h.b16 %v1533
        %v4576 = vunpack.c.l.b16 %v1534
        %v4577 = vunpack.c.h.b16 %v1534
        %v4578 = vunpack.c.l.b16 %v1535
        %v4579 = vunpack.c.h.b16 %v1535
        %v4580 = vunpack.c.l.b16 %v1536
        %v4581 = vunpack.c.h.b16 %v1536
        %v4582 = vunpack.c.l.b16 %v1537
        %v4583 = vunpack.c.h.b16 %v1537
        %v4584 = vunpack.c.l.b16 %v1538
        %v4585 = vunpack.c.h.b16 %v1538
        %v4586 = vunpack.c.l.b16 %v1539
        %v4587 = vunpack.c.h.b16 %v1539
        %v4588 = vunpack.c.l.b16 %v1540
        %v4589 = vunpack.c.h.b16 %v1540
        %v4590 = vunpack.c.l.b16 %v1541
        %v4591 = vunpack.c.h.b16 %v1541
        %v4592 = vunpack.c.l.b16 %v1542
        %v4593 = vunpack.c.h.b16 %v1542
        %v4594 = vunpack.c.l.b16 %v1543
        %v4595 = vunpack.c.h.b16 %v1543
        %v4596 = vunpack.c.l.b16 %v1544
        %v4597 = vunpack.c.h.b16 %v1544
        %v4598 = vunpack.c.l.b16 %v1545
        %v4599 = vunpack.c.h.b16 %v1545
        %v4600 = vunpack.c.l.b16 %v1546
        %v4601 = vunpack.c.h.b16 %v1546
        %v4602 = vunpack.c.l.b16 %v1547
        %v4603 = vunpack.c.h.b16 %v1547
        %v4604 = vunpack.c.l.b16 %v1548
        %v4605 = vunpack.c.h.b16 %v1548
        %v4606 = vunpack.c.l.b16 %v1549
        %v4607 = vunpack.c.h.b16 %v1549
        %v4608 = vunpack.c.l.b16 %v1550
        %v4609 = vunpack.c.h.b16 %v1550
        %v4610 = vunpack.c.l.b16 %v1551
        %v4611 = vunpack.c.h.b16 %v1551
        %v4612 = vunpack.c.l.b16 %v1552
        %v4613 = vunpack.c.h.b16 %v1552
        %v4614 = vunpack.c.l.b16 %v1553
        %v4615 = vunpack.c.h.b16 %v1553
        %v4616 = vunpack.c.l.b16 %v1554
        %v4617 = vunpack.c.h.b16 %v1554
        %v4618 = vunpack.c.l.b16 %v1555
        %v4619 = vunpack.c.h.b16 %v1555
        %v4620 = vunpack.c.l.b16 %v1556
        %v4621 = vunpack.c.h.b16 %v1556
        %v4622 = vunpack.c.l.b16 %v1557
        %v4623 = vunpack.c.h.b16 %v1557
        %v4624 = vunpack.c.l.b16 %v1558
        %v4625 = vunpack.c.h.b16 %v1558
        %v4626 = vunpack.c.l.b16 %v1559
        %v4627 = vunpack.c.h.b16 %v1559
        %v4628 = vunpack.c.l.b16 %v1560
        %v4629 = vunpack.c.h.b16 %v1560
        %v4630 = vunpack.c.l.b16 %v1561
        %v4631 = vunpack.c.h.b16 %v1561
        %v4632 = vunpack.c.l.b16 %v1562
        %v4633 = vunpack.c.h.b16 %v1562
        %v4634 = vunpack.c.l.b16 %v1563
        %v4635 = vunpack.c.h.b16 %v1563
        %v4636 = vpack.c.b16 %v2596, %v2588
        %v4637 = vpack.c.b16 %v2597, %v2589
        %v4638 = vpack.c.b16 %v2598, %v2590
        %v4639 = vpack.c.b16 %v2599, %v2591
        %v4640 = vpack.c.b16 %v2600, %v2592
        %v4641 = vpack.c.b16 %v2601, %v2593
        %v4642 = vpack.c.b16 %v2602, %v2594
        %v4643 = vpack.c.b16 %v2603, %v2595
        %v4644 = vpack.c.b16 %v2612, %v2604
        %v4645 = vpack.c.b16 %v2613, %v2605
        %v4646 = vpack.c.b16 %v2614, %v2606
        %v4647 = vpack.c.b16 %v2615, %v2607
        %v4648 = vpack.c.b16 %v2616, %v2608
        %v4649 = vpack.c.b16 %v2617, %v2609
        %v4650 = vpack.c.b16 %v2618, %v2610
        %v4651 = vpack.c.b16 %v2619, %v2611
        %v4652 = vpack.c.b16 %v2628, %v2620
        %v4653 = vpack.c.b16 %v2629, %v2621
        %v4654 = vpack.c.b16 %v2630, %v2622
        %v4655 = vpack.c.b16 %v2631, %v2623
        %v4656 = vpack.c.b16 %v2632, %v2624
        %v4657 = vpack.c.b16 %v2633, %v2625
        %v4658 = vpack.c.b16 %v2634, %v2626
        %v4659 = vpack.c.b16 %v2635, %v2627
        %v4660 = vpack.c.b16 %v2644, %v2636
        %v4661 = vpack.c.b16 %v2645, %v2637
        %v4662 = vpack.c.b16 %v2646, %v2638
        %v4663 = vpack.c.b16 %v2647, %v2639
        %v4664 = vpack.c.b16 %v2648, %v2640
        %v4665 = vpack.c.b16 %v2649, %v2641
        %v4666 = vpack.c.b16 %v2650, %v2642
        %v4667 = vpack.c.b16 %v2651, %v2643
        %v4668 = vpack.c.b16 %v2660, %v2652
        %v4669 = vpack.c.b16 %v2661, %v2653
        %v4670 = vpack.c.b16 %v2662, %v2654
        %v4671 = vpack.c.b16 %v2663, %v2655
        %v4672 = vpack.c.b16 %v2664, %v2656
        %v4673 = vpack.c.b16 %v2665, %v2657
        %v4674 = vpack.c.b16 %v2666, %v2658
        %v4675 = vpack.c.b16 %v2667, %v2659
        %v4676 = vpack.c.b16 %v2676, %v2668
        %v4677 = vpack.c.b16 %v2677, %v2669
        %v4678 = vpack.c.b16 %v2678, %v2670
        %v4679 = vpack.c.b16 %v2679, %v2671
        %v4680 = vpack.c.b16 %v2680, %v2672
        %v4681 = vpack.c.b16 %v2681, %v2673
        %v4682 = vpack.c.b16 %v2682, %v2674
        %v4683 = vpack.c.b16 %v2683, %v2675
        %v4684 = vpack.c.b16 %v2692, %v2684
        %v4685 = vpack.c.b16 %v2693, %v2685
        %v4686 = vpack.c.b16 %v2694, %v2686
        %v4687 = vpack.c.b16 %v2695, %v2687
        %v4688 = vpack.c.b16 %v2696, %v2688
        %v4689 = vpack.c.b16 %v2697, %v2689
        %v4690 = vpack.c.b16 %v2698, %v2690
        %v4691 = vpack.c.b16 %v2699, %v2691
        %v4692 = vpack.c.b16 %v2708, %v2700
        %v4693 = vpack.c.b16 %v2709, %v2701
        %v4694 = vpack.c.b16 %v2710, %v2702
        %v4695 = vpack.c.b16 %v2711, %v2703
        %v4696 = vpack.c.b16 %v2712, %v2704
        %v4697 = vpack.c.b16 %v2713, %v2705
        %v4698 = vpack.c.b16 %v2714, %v2706
        %v4699 = vpack.c.b16 %v2715, %v2707
        %v4700 = vpack.c.b16 %v2724, %v2716
        %v4701 = vpack.c.b16 %v2725, %v2717
        %v4702 = vpack.c.b16 %v2726, %v2718
        %v4703 = vpack.c.b16 %v2727, %v2719
        %v4704 = vpack.c.b16 %v2728, %v2720
        %v4705 = vpack.c.b16 %v2729, %v2721
        %v4706 = vpack.c.b16 %v2730, %v2722
        %v4707 = vpack.c.b16 %v2731, %v2723
        %v4708 = vpack.c.b16 %v2740, %v2732
        %v4709 = vpack.c.b16 %v2741, %v2733
        %v4710 = vpack.c.b16 %v2742, %v2734
        %v4711 = vpack.c.b16 %v2743, %v2735
        %v4712 = vpack.c.b16 %v2744, %v2736
        %v4713 = vpack.c.b16 %v2745, %v2737
        %v4714 = vpack.c.b16 %v2746, %v2738
        %v4715 = vpack.c.b16 %v2747, %v2739
        %v4716 = vpack.c.b16 %v2756, %v2748
        %v4717 = vpack.c.b16 %v2757, %v2749
        %v4718 = vpack.c.b16 %v2758, %v2750
        %v4719 = vpack.c.b16 %v2759, %v2751
        %v4720 = vpack.c.b16 %v2760, %v2752
        %v4721 = vpack.c.b16 %v2761, %v2753
        %v4722 = vpack.c.b16 %v2762, %v2754
        %v4723 = vpack.c.b16 %v2763, %v2755
        %v4724 = vpack.c.b16 %v2772, %v2764
        %v4725 = vpack.c.b16 %v2773, %v2765
        %v4726 = vpack.c.b16 %v2774, %v2766
        %v4727 = vpack.c.b16 %v2775, %v2767
        %v4728 = vpack.c.b16 %v2776, %v2768
        %v4729 = vpack.c.b16 %v2777, %v2769
        %v4730 = vpack.c.b16 %v2778, %v2770
        %v4731 = vpack.c.b16 %v2779, %v2771
        %v4732 = vpack.c.b16 %v2788, %v2780
        %v4733 = vpack.c.b16 %v2789, %v2781
        %v4734 = vpack.c.b16 %v2790, %v2782
        %v4735 = vpack.c.b16 %v2791, %v2783
        %v4736 = vpack.c.b16 %v2792, %v2784
        %v4737 = vpack.c.b16 %v2793, %v2785
        %v4738 = vpack.c.b16 %v2794, %v2786
        %v4739 = vpack.c.b16 %v2795, %v2787
        %v4740 = vpack.c.b16 %v2804, %v2796
        %v4741 = vpack.c.b16 %v2805, %v2797
        %v4742 = vpack.c.b16 %v2806, %v2798
        %v4743 = vpack.c.b16 %v2807, %v2799
        %v4744 = vpack.c.b16 %v2808, %v2800
        %v4745 = vpack.c.b16 %v2809, %v2801
        %v4746 = vpack.c.b16 %v2810, %v2802
        %v4747 = vpack.c.b16 %v2811, %v2803
        %v4748 = vpack.c.b16 %v2820, %v2812
        %v4749 = vpack.c.b16 %v2821, %v2813
        %v4750 = vpack.c.b16 %v2822, %v2814
        %v4751 = vpack.c.b16 %v2823, %v2815
        %v4752 = vpack.c.b16 %v2824, %v2816
        %v4753 = vpack.c.b16 %v2825, %v2817
        %v4754 = vpack.c.b16 %v2826, %v2818
        %v4755 = vpack.c.b16 %v2827, %v2819
        %v4756 = vpack.c.b16 %v2836, %v2828
        %v4757 = vpack.c.b16 %v2837, %v2829
        %v4758 = vpack.c.b16 %v2838, %v2830
        %v4759 = vpack.c.b16 %v2839, %v2831
        %v4760 = vpack.c.b16 %v2840, %v2832
        %v4761 = vpack.c.b16 %v2841, %v2833
        %v4762 = vpack.c.b16 %v2842, %v2834
        %v4763 = vpack.c.b16 %v2843, %v2835
        %v4764 = vpack.c.b16 %v2852, %v2844
        %v4765 = vpack.c.b16 %v2853, %v2845
        %v4766 = vpack.c.b16 %v2854, %v2846
        %v4767 = vpack.c.b16 %v2855, %v2847
        %v4768 = vpack.c.b16 %v2856, %v2848
        %v4769 = vpack.c.b16 %v2857, %v2849
        %v4770 = vpack.c.b16 %v2858, %v2850
        %v4771 = vpack.c.b16 %v2859, %v2851
        %v4772 = vpack.c.b16 %v2868, %v2860
        %v4773 = vpack.c.b16 %v2869, %v2861
        %v4774 = vpack.c.b16 %v2870, %v2862
        %v4775 = vpack.c.b16 %v2871, %v2863
        %v4776 = vpack.c.b16 %v2872, %v2864
        %v4777 = vpack.c.b16 %v2873, %v2865
        %v4778 = vpack.c.b16 %v2874, %v2866
        %v4779 = vpack.c.b16 %v2875, %v2867
        %v4780 = vpack.c.b16 %v2884, %v2876
        %v4781 = vpack.c.b16 %v2885, %v2877
        %v4782 = vpack.c.b16 %v2886, %v2878
        %v4783 = vpack.c.b16 %v2887, %v2879
        %v4784 = vpack.c.b16 %v2888, %v2880
        %v4785 = vpack.c.b16 %v2889, %v2881
        %v4786 = vpack.c.b16 %v2890, %v2882
        %v4787 = vpack.c.b16 %v2891, %v2883
        %v4788 = vpack.c.b16 %v2900, %v2892
        %v4789 = vpack.c.b16 %v2901, %v2893
        %v4790 = vpack.c.b16 %v2902, %v2894
        %v4791 = vpack.c.b16 %v2903, %v2895
        %v4792 = vpack.c.b16 %v2904, %v2896
        %v4793 = vpack.c.b16 %v2905, %v2897
        %v4794 = vpack.c.b16 %v2906, %v2898
        %v4795 = vpack.c.b16 %v2907, %v2899
        %v4796 = vpack.c.b16 %v2916, %v2908
        %v4797 = vpack.c.b16 %v2917, %v2909
        %v4798 = vpack.c.b16 %v2918, %v2910
        %v4799 = vpack.c.b16 %v2919, %v2911
        %v4800 = vpack.c.b16 %v2920, %v2912
        %v4801 = vpack.c.b16 %v2921, %v2913
        %v4802 = vpack.c.b16 %v2922, %v2914
        %v4803 = vpack.c.b16 %v2923, %v2915
        %v4804 = vpack.c.b16 %v2932, %v2924
        %v4805 = vpack.c.b16 %v2933, %v2925
        %v4806 = vpack.c.b16 %v2934, %v2926
        %v4807 = vpack.c.b16 %v2935, %v2927
        %v4808 = vpack.c.b16 %v2936, %v2928
        %v4809 = vpack.c.b16 %v2937, %v2929
        %v4810 = vpack.c.b16 %v2938, %v2930
        %v4811 = vpack.c.b16 %v2939, %v2931
        %v4812 = vpack.c.b16 %v2948, %v2940
        %v4813 = vpack.c.b16 %v2949, %v2941
        %v4814 = vpack.c.b16 %v2950, %v2942
        %v4815 = vpack.c.b16 %v2951, %v2943
        %v4816 = vpack.c.b16 %v2952, %v2944
        %v4817 = vpack.c.b16 %v2953, %v2945
        %v4818 = vpack.c.b16 %v2954, %v2946
        %v4819 = vpack.c.b16 %v2955, %v2947
        %v4820 = vpack.c.b16 %v2964, %v2956
        %v4821 = vpack.c.b16 %v2965, %v2957
        %v4822 = vpack.c.b16 %v2966, %v2958
        %v4823 = vpack.c.b16 %v2967, %v2959
        %v4824 = vpack.c.b16 %v2968, %v2960
        %v4825 = vpack.c.b16 %v2969, %v2961
        %v4826 = vpack.c.b16 %v2970, %v2962
        %v4827 = vpack.c.b16 %v2971, %v2963
        %v4828 = vpack.c.b16 %v2980, %v2972
        %v4829 = vpack.c.b16 %v2981, %v2973
        %v4830 = vpack.c.b16 %v2982, %v2974
        %v4831 = vpack.c.b16 %v2983, %v2975
        %v4832 = vpack.c.b16 %v2984, %v2976
        %v4833 = vpack.c.b16 %v2985, %v2977
        %v4834 = vpack.c.b16 %v2986, %v2978
        %v4835 = vpack.c.b16 %v2987, %v2979
        %v4836 = vpack.c.b16 %v2996, %v2988
        %v4837 = vpack.c.b16 %v2997, %v2989
        %v4838 = vpack.c.b16 %v2998, %v2990
        %v4839 = vpack.c.b16 %v2999, %v2991
        %v4840 = vpack.c.b16 %v3000, %v2992
        %v4841 = vpack.c.b16 %v3001, %v2993
        %v4842 = vpack.c.b16 %v3002, %v2994
        %v4843 = vpack.c.b16 %v3003, %v2995
        %v4844 = vpack.c.b16 %v3012, %v3004
        %v4845 = vpack.c.b16 %v3013, %v3005
        %v4846 = vpack.c.b16 %v3014, %v3006
        %v4847 = vpack.c.b16 %v3015, %v3007
        %v4848 = vpack.c.b16 %v3016, %v3008
        %v4849 = vpack.c.b16 %v3017, %v3009
        %v4850 = vpack.c.b16 %v3018, %v3010
        %v4851 = vpack.c.b16 %v3019, %v3011
        %v4852 = vpack.c.b16 %v3028, %v3020
        %v4853 = vpack.c.b16 %v3029, %v3021
        %v4854 = vpack.c.b16 %v3030, %v3022
        %v4855 = vpack.c.b16 %v3031, %v3023
        %v4856 = vpack.c.b16 %v3032, %v3024
        %v4857 = vpack.c.b16 %v3033, %v3025
        %v4858 = vpack.c.b16 %v3034, %v3026
        %v4859 = vpack.c.b16 %v3035, %v3027
        %v4860 = vpack.c.b16 %v3044, %v3036
        %v4861 = vpack.c.b16 %v3045, %v3037
        %v4862 = vpack.c.b16 %v3046, %v3038
        %v4863 = vpack.c.b16 %v3047, %v3039
        %v4864 = vpack.c.b16 %v3048, %v3040
        %v4865 = vpack.c.b16 %v3049, %v3041
        %v4866 = vpack.c.b16 %v3050, %v3042
        %v4867 = vpack.c.b16 %v3051, %v3043
        %v4868 = vpack.c.b16 %v3060, %v3052
        %v4869 = vpack.c.b16 %v3061, %v3053
        %v4870 = vpack.c.b16 %v3062, %v3054
        %v4871 = vpack.c.b16 %v3063, %v3055
        %v4872 = vpack.c.b16 %v3064, %v3056
        %v4873 = vpack.c.b16 %v3065, %v3057
        %v4874 = vpack.c.b16 %v3066, %v3058
        %v4875 = vpack.c.b16 %v3067, %v3059
        %v4876 = vpack.c.b16 %v3076, %v3068
        %v4877 = vpack.c.b16 %v3077, %v3069
        %v4878 = vpack.c.b16 %v3078, %v3070
        %v4879 = vpack.c.b16 %v3079, %v3071
        %v4880 = vpack.c.b16 %v3080, %v3072
        %v4881 = vpack.c.b16 %v3081, %v3073
        %v4882 = vpack.c.b16 %v3082, %v3074
        %v4883 = vpack.c.b16 %v3083, %v3075
        %v4884 = vpack.c.b16 %v3092, %v3084
        %v4885 = vpack.c.b16 %v3093, %v3085
        %v4886 = vpack.c.b16 %v3094, %v3086
        %v4887 = vpack.c.b16 %v3095, %v3087
        %v4888 = vpack.c.b16 %v3096, %v3088
        %v4889 = vpack.c.b16 %v3097, %v3089
        %v4890 = vpack.c.b16 %v3098, %v3090
        %v4891 = vpack.c.b16 %v3099, %v3091
        %v4892 = vpack.c.b16 %v3108, %v3100
        %v4893 = vpack.c.b16 %v3109, %v3101
        %v4894 = vpack.c.b16 %v3110, %v3102
        %v4895 = vpack.c.b16 %v3111, %v3103
        %v4896 = vpack.c.b16 %v3112, %v3104
        %v4897 = vpack.c.b16 %v3113, %v3105
        %v4898 = vpack.c.b16 %v3114, %v3106
        %v4899 = vpack.c.b16 %v3115, %v3107
        %v4900 = vpack.c.b16 %v3124, %v3116
        %v4901 = vpack.c.b16 %v3125, %v3117
        %v4902 = vpack.c.b16 %v3126, %v3118
        %v4903 = vpack.c.b16 %v3127, %v3119
        %v4904 = vpack.c.b16 %v3128, %v3120
        %v4905 = vpack.c.b16 %v3129, %v3121
        %v4906 = vpack.c.b16 %v3130, %v3122
        %v4907 = vpack.c.b16 %v3131, %v3123
        %v4908 = vpack.c.b16 %v3140, %v3132
        %v4909 = vpack.c.b16 %v3141, %v3133
        %v4910 = vpack.c.b16 %v3142, %v3134
        %v4911 = vpack.c.b16 %v3143, %v3135
        %v4912 = vpack.c.b16 %v3144, %v3136
        %v4913 = vpack.c.b16 %v3145, %v3137
        %v4914 = vpack.c.b16 %v3146, %v3138
        %v4915 = vpack.c.b16 %v3147, %v3139
        %v4916 = vpack.c.b16 %v3156, %v3148
        %v4917 = vpack.c.b16 %v3157, %v3149
        %v4918 = vpack.c.b16 %v3158, %v3150
        %v4919 = vpack.c.b16 %v3159, %v3151
        %v4920 = vpack.c.b16 %v3160, %v3152
        %v4921 = vpack.c.b16 %v3161, %v3153
        %v4922 = vpack.c.b16 %v3162, %v3154
        %v4923 = vpack.c.b16 %v3163, %v3155
        %v4924 = vpack.c.b16 %v3172, %v3164
        %v4925 = vpack.c.b16 %v3173, %v3165
        %v4926 = vpack.c.b16 %v3174, %v3166
        %v4927 = vpack.c.b16 %v3175, %v3167
        %v4928 = vpack.c.b16 %v3176, %v3168
        %v4929 = vpack.c.b16 %v3177, %v3169
        %v4930 = vpack.c.b16 %v3178, %v3170
        %v4931 = vpack.c.b16 %v3179, %v3171
        %v4932 = vpack.c.b16 %v3188, %v3180
        %v4933 = vpack.c.b16 %v3189, %v3181
        %v4934 = vpack.c.b16 %v3190, %v3182
        %v4935 = vpack.c.b16 %v3191, %v3183
        %v4936 = vpack.c.b16 %v3192, %v3184
        %v4937 = vpack.c.b16 %v3193, %v3185
        %v4938 = vpack.c.b16 %v3194, %v3186
        %v4939 = vpack.c.b16 %v3195, %v3187
        %v4940 = vpack.c.b16 %v3204, %v3196
        %v4941 = vpack.c.b16 %v3205, %v3197
        %v4942 = vpack.c.b16 %v3206, %v3198
        %v4943 = vpack.c.b16 %v3207, %v3199
        %v4944 = vpack.c.b16 %v3208, %v3200
        %v4945 = vpack.c.b16 %v3209, %v3201
        %v4946 = vpack.c.b16 %v3210, %v3202
        %v4947 = vpack.c.b16 %v3211, %v3203
        %v4948 = vpack.c.b16 %v3220, %v3212
        %v4949 = vpack.c.b16 %v3221, %v3213
        %v4950 = vpack.c.b16 %v3222, %v3214
        %v4951 = vpack.c.b16 %v3223, %v3215
        %v4952 = vpack.c.b16 %v3224, %v3216
        %v4953 = vpack.c.b16 %v3225, %v3217
        %v4954 = vpack.c.b16 %v3226, %v3218
        %v4955 = vpack.c.b16 %v3227, %v3219
        %v4956 = vpack.c.b16 %v3236, %v3228
        %v4957 = vpack.c.b16 %v3237, %v3229
        %v4958 = vpack.c.b16 %v3238, %v3230
        %v4959 = vpack.c.b16 %v3239, %v3231
        %v4960 = vpack.c.b16 %v3240, %v3232
        %v4961 = vpack.c.b16 %v3241, %v3233
        %v4962 = vpack.c.b16 %v3242, %v3234
        %v4963 = vpack.c.b16 %v3243, %v3235
        %v4964 = vpack.c.b16 %v3252, %v3244
        %v4965 = vpack.c.b16 %v3253, %v3245
        %v4966 = vpack.c.b16 %v3254, %v3246
        %v4967 = vpack.c.b16 %v3255, %v3247
        %v4968 = vpack.c.b16 %v3256, %v3248
        %v4969 = vpack.c.b16 %v3257, %v3249
        %v4970 = vpack.c.b16 %v3258, %v3250
        %v4971 = vpack.c.b16 %v3259, %v3251
        %v4972 = vpack.c.b16 %v3268, %v3260
        %v4973 = vpack.c.b16 %v3269, %v3261
        %v4974 = vpack.c.b16 %v3270, %v3262
        %v4975 = vpack.c.b16 %v3271, %v3263
        %v4976 = vpack.c.b16 %v3272, %v3264
        %v4977 = vpack.c.b16 %v3273, %v3265
        %v4978 = vpack.c.b16 %v3274, %v3266
        %v4979 = vpack.c.b16 %v3275, %v3267
        %v4980 = vpack.c.b16 %v3284, %v3276
        %v4981 = vpack.c.b16 %v3285, %v3277
        %v4982 = vpack.c.b16 %v3286, %v3278
        %v4983 = vpack.c.b16 %v3287, %v3279
        %v4984 = vpack.c.b16 %v3288, %v3280
        %v4985 = vpack.c.b16 %v3289, %v3281
        %v4986 = vpack.c.b16 %v3290, %v3282
        %v4987 = vpack.c.b16 %v3291, %v3283
        %v4988 = vpack.c.b16 %v3300, %v3292
        %v4989 = vpack.c.b16 %v3301, %v3293
        %v4990 = vpack.c.b16 %v3302, %v3294
        %v4991 = vpack.c.b16 %v3303, %v3295
        %v4992 = vpack.c.b16 %v3304, %v3296
        %v4993 = vpack.c.b16 %v3305, %v3297
        %v4994 = vpack.c.b16 %v3306, %v3298
        %v4995 = vpack.c.b16 %v3307, %v3299
        %v4996 = vpack.c.b16 %v3316, %v3308
        %v4997 = vpack.c.b16 %v3317, %v3309
        %v4998 = vpack.c.b16 %v3318, %v3310
        %v4999 = vpack.c.b16 %v3319, %v3311
        %v5000 = vpack.c.b16 %v3320, %v3312
        %v5001 = vpack.c.b16 %v3321, %v3313
        %v5002 = vpack.c.b16 %v3322, %v3314
        %v5003 = vpack.c.b16 %v3323, %v3315
        %v5004 = vpack.c.b16 %v3332, %v3324
        %v5005 = vpack.c.b16 %v3333, %v3325
        %v5006 = vpack.c.b16 %v3334, %v3326
        %v5007 = vpack.c.b16 %v3335, %v3327
        %v5008 = vpack.c.b16 %v3336, %v3328
        %v5009 = vpack.c.b16 %v3337, %v3329
        %v5010 = vpack.c.b16 %v3338, %v3330
        %v5011 = vpack.c.b16 %v3339, %v3331
        %v5012 = vpack.c.b16 %v3348, %v3340
        %v5013 = vpack.c.b16 %v3349, %v3341
        %v5014 = vpack.c.b16 %v3350, %v3342
        %v5015 = vpack.c.b16 %v3351, %v3343
        %v5016 = vpack.c.b16 %v3352, %v3344
        %v5017 = vpack.c.b16 %v3353, %v3345
        %v5018 = vpack.c.b16 %v3354, %v3346
        %v5019 = vpack.c.b16 %v3355, %v3347
        %v5020 = vpack.c.b16 %v3364, %v3356
        %v5021 = vpack.c.b16 %v3365, %v3357
        %v5022 = vpack.c.b16 %v3366, %v3358
        %v5023 = vpack.c.b16 %v3367, %v3359
        %v5024 = vpack.c.b16 %v3368, %v3360
        %v5025 = vpack.c.b16 %v3369, %v3361
        %v5026 = vpack.c.b16 %v3370, %v3362
        %v5027 = vpack.c.b16 %v3371, %v3363
        %v5028 = vpack.c.b16 %v3380, %v3372
        %v5029 = vpack.c.b16 %v3381, %v3373
        %v5030 = vpack.c.b16 %v3382, %v3374
        %v5031 = vpack.c.b16 %v3383, %v3375
        %v5032 = vpack.c.b16 %v3384, %v3376
        %v5033 = vpack.c.b16 %v3385, %v3377
        %v5034 = vpack.c.b16 %v3386, %v3378
        %v5035 = vpack.c.b16 %v3387, %v3379
        %v5036 = vpack.c.b16 %v3396, %v3388
        %v5037 = vpack.c.b16 %v3397, %v3389
        %v5038 = vpack.c.b16 %v3398, %v3390
        %v5039 = vpack.c.b16 %v3399, %v3391
        %v5040 = vpack.c.b16 %v3400, %v3392
        %v5041 = vpack.c.b16 %v3401, %v3393
        %v5042 = vpack.c.b16 %v3402, %v3394
        %v5043 = vpack.c.b16 %v3403, %v3395
        %v5044 = vpack.c.b16 %v3412, %v3404
        %v5045 = vpack.c.b16 %v3413, %v3405
        %v5046 = vpack.c.b16 %v3414, %v3406
        %v5047 = vpack.c.b16 %v3415, %v3407
        %v5048 = vpack.c.b16 %v3416, %v3408
        %v5049 = vpack.c.b16 %v3417, %v3409
        %v5050 = vpack.c.b16 %v3418, %v3410
        %v5051 = vpack.c.b16 %v3419, %v3411
        %v5052 = vpack.c.b16 %v3428, %v3420
        %v5053 = vpack.c.b16 %v3429, %v3421
        %v5054 = vpack.c.b16 %v3430, %v3422
        %v5055 = vpack.c.b16 %v3431, %v3423
        %v5056 = vpack.c.b16 %v3432, %v3424
        %v5057 = vpack.c.b16 %v3433, %v3425
        %v5058 = vpack.c.b16 %v3434, %v3426
        %v5059 = vpack.c.b16 %v3435, %v3427
        %v5060 = vpack.c.b16 %v3444, %v3436
        %v5061 = vpack.c.b16 %v3445, %v3437
        %v5062 = vpack.c.b16 %v3446, %v3438
        %v5063 = vpack.c.b16 %v3447, %v3439
        %v5064 = vpack.c.b16 %v3448, %v3440
        %v5065 = vpack.c.b16 %v3449, %v3441
        %v5066 = vpack.c.b16 %v3450, %v3442
        %v5067 = vpack.c.b16 %v3451, %v3443
        %v5068 = vpack.c.b16 %v3460, %v3452
        %v5069 = vpack.c.b16 %v3461, %v3453
        %v5070 = vpack.c.b16 %v3462, %v3454
        %v5071 = vpack.c.b16 %v3463, %v3455
        %v5072 = vpack.c.b16 %v3464, %v3456
        %v5073 = vpack.c.b16 %v3465, %v3457
        %v5074 = vpack.c.b16 %v3466, %v3458
        %v5075 = vpack.c.b16 %v3467, %v3459
        %v5076 = vpack.c.b16 %v3476, %v3468
        %v5077 = vpack.c.b16 %v3477, %v3469
        %v5078 = vpack.c.b16 %v3478, %v3470
        %v5079 = vpack.c.b16 %v3479, %v3471
        %v5080 = vpack.c.b16 %v3480, %v3472
        %v5081 = vpack.c.b16 %v3481, %v3473
        %v5082 = vpack.c.b16 %v3482, %v3474
        %v5083 = vpack.c.b16 %v3483, %v3475
        %v5084 = vpack.c.b16 %v3492, %v3484
        %v5085 = vpack.c.b16 %v3493, %v3485
        %v5086 = vpack.c.b16 %v3494, %v3486
        %v5087 = vpack.c.b16 %v3495, %v3487
        %v5088 = vpack.c.b16 %v3496, %v3488
        %v5089 = vpack.c.b16 %v3497, %v3489
        %v5090 = vpack.c.b16 %v3498, %v3490
        %v5091 = vpack.c.b16 %v3499, %v3491
        %v5092 = vpack.c.b16 %v3508, %v3500
        %v5093 = vpack.c.b16 %v3509, %v3501
        %v5094 = vpack.c.b16 %v3510, %v3502
        %v5095 = vpack.c.b16 %v3511, %v3503
        %v5096 = vpack.c.b16 %v3512, %v3504
        %v5097 = vpack.c.b16 %v3513, %v3505
        %v5098 = vpack.c.b16 %v3514, %v3506
        %v5099 = vpack.c.b16 %v3515, %v3507
        %v5100 = vpack.c.b16 %v3524, %v3516
        %v5101 = vpack.c.b16 %v3525, %v3517
        %v5102 = vpack.c.b16 %v3526, %v3518
        %v5103 = vpack.c.b16 %v3527, %v3519
        %v5104 = vpack.c.b16 %v3528, %v3520
        %v5105 = vpack.c.b16 %v3529, %v3521
        %v5106 = vpack.c.b16 %v3530, %v3522
        %v5107 = vpack.c.b16 %v3531, %v3523
        %v5108 = vpack.c.b16 %v3540, %v3532
        %v5109 = vpack.c.b16 %v3541, %v3533
        %v5110 = vpack.c.b16 %v3542, %v3534
        %v5111 = vpack.c.b16 %v3543, %v3535
        %v5112 = vpack.c.b16 %v3544, %v3536
        %v5113 = vpack.c.b16 %v3545, %v3537
        %v5114 = vpack.c.b16 %v3546, %v3538
        %v5115 = vpack.c.b16 %v3547, %v3539
        %v5116 = vpack.c.b16 %v3556, %v3548
        %v5117 = vpack.c.b16 %v3557, %v3549
        %v5118 = vpack.c.b16 %v3558, %v3550
        %v5119 = vpack.c.b16 %v3559, %v3551
        %v5120 = vpack.c.b16 %v3560, %v3552
        %v5121 = vpack.c.b16 %v3561, %v3553
        %v5122 = vpack.c.b16 %v3562, %v3554
        %v5123 = vpack.c.b16 %v3563, %v3555
        %v5124 = vpack.c.b16 %v3572, %v3564
        %v5125 = vpack.c.b16 %v3573, %v3565
        %v5126 = vpack.c.b16 %v3574, %v3566
        %v5127 = vpack.c.b16 %v3575, %v3567
        %v5128 = vpack.c.b16 %v3576, %v3568
        %v5129 = vpack.c.b16 %v3577, %v3569
        %v5130 = vpack.c.b16 %v3578, %v3570
        %v5131 = vpack.c.b16 %v3579, %v3571
        %v5132 = vpack.c.b16 %v3588, %v3580
        %v5133 = vpack.c.b16 %v3589, %v3581
        %v5134 = vpack.c.b16 %v3590, %v3582
        %v5135 = vpack.c.b16 %v3591, %v3583
        %v5136 = vpack.c.b16 %v3592, %v3584
        %v5137 = vpack.c.b16 %v3593, %v3585
        %v5138 = vpack.c.b16 %v3594, %v3586
        %v5139 = vpack.c.b16 %v3595, %v3587
        %v5140 = vpack.c.b16 %v3604, %v3596
        %v5141 = vpack.c.b16 %v3605, %v3597
        %v5142 = vpack.c.b16 %v3606, %v3598
        %v5143 = vpack.c.b16 %v3607, %v3599
        %v5144 = vpack.c.b16 %v3608, %v3600
        %v5145 = vpack.c.b16 %v3609, %v3601
        %v5146 = vpack.c.b16 %v3610, %v3602
        %v5147 = vpack.c.b16 %v3611, %v3603
        %v5148 = vpack.c.b16 %v3620, %v3612
        %v5149 = vpack.c.b16 %v3621, %v3613
        %v5150 = vpack.c.b16 %v3622, %v3614
        %v5151 = vpack.c.b16 %v3623, %v3615
        %v5152 = vpack.c.b16 %v3624, %v3616
        %v5153 = vpack.c.b16 %v3625, %v3617
        %v5154 = vpack.c.b16 %v3626, %v3618
        %v5155 = vpack.c.b16 %v3627, %v3619
        %v5156 = vpack.c.b16 %v3636, %v3628
        %v5157 = vpack.c.b16 %v3637, %v3629
        %v5158 = vpack.c.b16 %v3638, %v3630
        %v5159 = vpack.c.b16 %v3639, %v3631
        %v5160 = vpack.c.b16 %v3640, %v3632
        %v5161 = vpack.c.b16 %v3641, %v3633
        %v5162 = vpack.c.b16 %v3642, %v3634
        %v5163 = vpack.c.b16 %v3643, %v3635
        %v5164 = vpack.c.b16 %v3652, %v3644
        %v5165 = vpack.c.b16 %v3653, %v3645
        %v5166 = vpack.c.b16 %v3654, %v3646
        %v5167 = vpack.c.b16 %v3655, %v3647
        %v5168 = vpack.c.b16 %v3656, %v3648
        %v5169 = vpack.c.b16 %v3657, %v3649
        %v5170 = vpack.c.b16 %v3658, %v3650
        %v5171 = vpack.c.b16 %v3659, %v3651
        %v5172 = vpack.c.b16 %v3668, %v3660
        %v5173 = vpack.c.b16 %v3669, %v3661
        %v5174 = vpack.c.b16 %v3670, %v3662
        %v5175 = vpack.c.b16 %v3671, %v3663
        %v5176 = vpack.c.b16 %v3672, %v3664
        %v5177 = vpack.c.b16 %v3673, %v3665
        %v5178 = vpack.c.b16 %v3674, %v3666
        %v5179 = vpack.c.b16 %v3675, %v3667
        %v5180 = vpack.c.b16 %v3684, %v3676
        %v5181 = vpack.c.b16 %v3685, %v3677
        %v5182 = vpack.c.b16 %v3686, %v3678
        %v5183 = vpack.c.b16 %v3687, %v3679
        %v5184 = vpack.c.b16 %v3688, %v3680
        %v5185 = vpack.c.b16 %v3689, %v3681
        %v5186 = vpack.c.b16 %v3690, %v3682
        %v5187 = vpack.c.b16 %v3691, %v3683
        %v5188 = vpack.c.b16 %v3700, %v3692
        %v5189 = vpack.c.b16 %v3701, %v3693
        %v5190 = vpack.c.b16 %v3702, %v3694
        %v5191 = vpack.c.b16 %v3703, %v3695
        %v5192 = vpack.c.b16 %v3704, %v3696
        %v5193 = vpack.c.b16 %v3705, %v3697
        %v5194 = vpack.c.b16 %v3706, %v3698
        %v5195 = vpack.c.b16 %v3707, %v3699
        %v5196 = vpack.c.b16 %v3716, %v3708
        %v5197 = vpack.c.b16 %v3717, %v3709
        %v5198 = vpack.c.b16 %v3718, %v3710
        %v5199 = vpack.c.b16 %v3719, %v3711
        %v5200 = vpack.c.b16 %v3720, %v3712
        %v5201 = vpack.c.b16 %v3721, %v3713
        %v5202 = vpack.c.b16 %v3722, %v3714
        %v5203 = vpack.c.b16 %v3723, %v3715
        %v5204 = vpack.c.b16 %v3732, %v3724
        %v5205 = vpack.c.b16 %v3733, %v3725
        %v5206 = vpack.c.b16 %v3734, %v3726
        %v5207 = vpack.c.b16 %v3735, %v3727
        %v5208 = vpack.c.b16 %v3736, %v3728
        %v5209 = vpack.c.b16 %v3737, %v3729
        %v5210 = vpack.c.b16 %v3738, %v3730
        %v5211 = vpack.c.b16 %v3739, %v3731
        %v5212 = vpack.c.b16 %v3748, %v3740
        %v5213 = vpack.c.b16 %v3749, %v3741
        %v5214 = vpack.c.b16 %v3750, %v3742
        %v5215 = vpack.c.b16 %v3751, %v3743
        %v5216 = vpack.c.b16 %v3752, %v3744
        %v5217 = vpack.c.b16 %v3753, %v3745
        %v5218 = vpack.c.b16 %v3754, %v3746
        %v5219 = vpack.c.b16 %v3755, %v3747
        %v5220 = vpack.c.b16 %v3764, %v3756
        %v5221 = vpack.c.b16 %v3765, %v3757
        %v5222 = vpack.c.b16 %v3766, %v3758
        %v5223 = vpack.c.b16 %v3767, %v3759
        %v5224 = vpack.c.b16 %v3768, %v3760
        %v5225 = vpack.c.b16 %v3769, %v3761
        %v5226 = vpack.c.b16 %v3770, %v3762
        %v5227 = vpack.c.b16 %v3771, %v3763
        %v5228 = vpack.c.b16 %v3780, %v3772
        %v5229 = vpack.c.b16 %v3781, %v3773
        %v5230 = vpack.c.b16 %v3782, %v3774
        %v5231 = vpack.c.b16 %v3783, %v3775
        %v5232 = vpack.c.b16 %v3784, %v3776
        %v5233 = vpack.c.b16 %v3785, %v3777
        %v5234 = vpack.c.b16 %v3786, %v3778
        %v5235 = vpack.c.b16 %v3787, %v3779
        %v5236 = vpack.c.b16 %v3796, %v3788
        %v5237 = vpack.c.b16 %v3797, %v3789
        %v5238 = vpack.c.b16 %v3798, %v3790
        %v5239 = vpack.c.b16 %v3799, %v3791
        %v5240 = vpack.c.b16 %v3800, %v3792
        %v5241 = vpack.c.b16 %v3801, %v3793
        %v5242 = vpack.c.b16 %v3802, %v3794
        %v5243 = vpack.c.b16 %v3803, %v3795
        %v5244 = vpack.c.b16 %v3812, %v3804
        %v5245 = vpack.c.b16 %v3813, %v3805
        %v5246 = vpack.c.b16 %v3814, %v3806
        %v5247 = vpack.c.b16 %v3815, %v3807
        %v5248 = vpack.c.b16 %v3816, %v3808
        %v5249 = vpack.c.b16 %v3817, %v3809
        %v5250 = vpack.c.b16 %v3818, %v3810
        %v5251 = vpack.c.b16 %v3819, %v3811
        %v5252 = vpack.c.b16 %v3828, %v3820
        %v5253 = vpack.c.b16 %v3829, %v3821
        %v5254 = vpack.c.b16 %v3830, %v3822
        %v5255 = vpack.c.b16 %v3831, %v3823
        %v5256 = vpack.c.b16 %v3832, %v3824
        %v5257 = vpack.c.b16 %v3833, %v3825
        %v5258 = vpack.c.b16 %v3834, %v3826
        %v5259 = vpack.c.b16 %v3835, %v3827
        %v5260 = vpack.c.b16 %v3844, %v3836
        %v5261 = vpack.c.b16 %v3845, %v3837
        %v5262 = vpack.c.b16 %v3846, %v3838
        %v5263 = vpack.c.b16 %v3847, %v3839
        %v5264 = vpack.c.b16 %v3848, %v3840
        %v5265 = vpack.c.b16 %v3849, %v3841
        %v5266 = vpack.c.b16 %v3850, %v3842
        %v5267 = vpack.c.b16 %v3851, %v3843
        %v5268 = vpack.c.b16 %v3860, %v3852
        %v5269 = vpack.c.b16 %v3861, %v3853
        %v5270 = vpack.c.b16 %v3862, %v3854
        %v5271 = vpack.c.b16 %v3863, %v3855
        %v5272 = vpack.c.b16 %v3864, %v3856
        %v5273 = vpack.c.b16 %v3865, %v3857
        %v5274 = vpack.c.b16 %v3866, %v3858
        %v5275 = vpack.c.b16 %v3867, %v3859
        %v5276 = vpack.c.b16 %v3876, %v3868
        %v5277 = vpack.c.b16 %v3877, %v3869
        %v5278 = vpack.c.b16 %v3878, %v3870
        %v5279 = vpack.c.b16 %v3879, %v3871
        %v5280 = vpack.c.b16 %v3880, %v3872
        %v5281 = vpack.c.b16 %v3881, %v3873
        %v5282 = vpack.c.b16 %v3882, %v3874
        %v5283 = vpack.c.b16 %v3883, %v3875
        %v5284 = vpack.c.b16 %v3892, %v3884
        %v5285 = vpack.c.b16 %v3893, %v3885
        %v5286 = vpack.c.b16 %v3894, %v3886
        %v5287 = vpack.c.b16 %v3895, %v3887
        %v5288 = vpack.c.b16 %v3896, %v3888
        %v5289 = vpack.c.b16 %v3897, %v3889
        %v5290 = vpack.c.b16 %v3898, %v3890
        %v5291 = vpack.c.b16 %v3899, %v3891
        %v5292 = vpack.c.b16 %v3908, %v3900
        %v5293 = vpack.c.b16 %v3909, %v3901
        %v5294 = vpack.c.b16 %v3910, %v3902
        %v5295 = vpack.c.b16 %v3911, %v3903
        %v5296 = vpack.c.b16 %v3912, %v3904
        %v5297 = vpack.c.b16 %v3913, %v3905
        %v5298 = vpack.c.b16 %v3914, %v3906
        %v5299 = vpack.c.b16 %v3915, %v3907
        %v5300 = vpack.c.b16 %v3924, %v3916
        %v5301 = vpack.c.b16 %v3925, %v3917
        %v5302 = vpack.c.b16 %v3926, %v3918
        %v5303 = vpack.c.b16 %v3927, %v3919
        %v5304 = vpack.c.b16 %v3928, %v3920
        %v5305 = vpack.c.b16 %v3929, %v3921
        %v5306 = vpack.c.b16 %v3930, %v3922
        %v5307 = vpack.c.b16 %v3931, %v3923
        %v5308 = vpack.c.b16 %v3940, %v3932
        %v5309 = vpack.c.b16 %v3941, %v3933
        %v5310 = vpack.c.b16 %v3942, %v3934
        %v5311 = vpack.c.b16 %v3943, %v3935
        %v5312 = vpack.c.b16 %v3944, %v3936
        %v5313 = vpack.c.b16 %v3945, %v3937
        %v5314 = vpack.c.b16 %v3946, %v3938
        %v5315 = vpack.c.b16 %v3947, %v3939
        %v5316 = vpack.c.b16 %v3956, %v3948
        %v5317 = vpack.c.b16 %v3957, %v3949
        %v5318 = vpack.c.b16 %v3958, %v3950
        %v5319 = vpack.c.b16 %v3959, %v3951
        %v5320 = vpack.c.b16 %v3960, %v3952
        %v5321 = vpack.c.b16 %v3961, %v3953
        %v5322 = vpack.c.b16 %v3962, %v3954
        %v5323 = vpack.c.b16 %v3963, %v3955
        %v5324 = vpack.c.b16 %v3972, %v3964
        %v5325 = vpack.c.b16 %v3973, %v3965
        %v5326 = vpack.c.b16 %v3974, %v3966
        %v5327 = vpack.c.b16 %v3975, %v3967
        %v5328 = vpack.c.b16 %v3976, %v3968
        %v5329 = vpack.c.b16 %v3977, %v3969
        %v5330 = vpack.c.b16 %v3978, %v3970
        %v5331 = vpack.c.b16 %v3979, %v3971
        %v5332 = vpack.c.b16 %v3988, %v3980
        %v5333 = vpack.c.b16 %v3989, %v3981
        %v5334 = vpack.c.b16 %v3990, %v3982
        %v5335 = vpack.c.b16 %v3991, %v3983
        %v5336 = vpack.c.b16 %v3992, %v3984
        %v5337 = vpack.c.b16 %v3993, %v3985
        %v5338 = vpack.c.b16 %v3994, %v3986
        %v5339 = vpack.c.b16 %v3995, %v3987
        %v5340 = vpack.c.b16 %v4004, %v3996
        %v5341 = vpack.c.b16 %v4005, %v3997
        %v5342 = vpack.c.b16 %v4006, %v3998
        %v5343 = vpack.c.b16 %v4007, %v3999
        %v5344 = vpack.c.b16 %v4008, %v4000
        %v5345 = vpack.c.b16 %v4009, %v4001
        %v5346 = vpack.c.b16 %v4010, %v4002
        %v5347 = vpack.c.b16 %v4011, %v4003
        %v5348 = vpack.c.b16 %v4020, %v4012
        %v5349 = vpack.c.b16 %v4021, %v4013
        %v5350 = vpack.c.b16 %v4022, %v4014
        %v5351 = vpack.c.b16 %v4023, %v4015
        %v5352 = vpack.c.b16 %v4024, %v4016
        %v5353 = vpack.c.b16 %v4025, %v4017
        %v5354 = vpack.c.b16 %v4026, %v4018
        %v5355 = vpack.c.b16 %v4027, %v4019
        %v5356 = vpack.c.b16 %v4036, %v4028
        %v5357 = vpack.c.b16 %v4037, %v4029
        %v5358 = vpack.c.b16 %v4038, %v4030
        %v5359 = vpack.c.b16 %v4039, %v4031
        %v5360 = vpack.c.b16 %v4040, %v4032
        %v5361 = vpack.c.b16 %v4041, %v4033
        %v5362 = vpack.c.b16 %v4042, %v4034
        %v5363 = vpack.c.b16 %v4043, %v4035
        %v5364 = vpack.c.b16 %v4052, %v4044
        %v5365 = vpack.c.b16 %v4053, %v4045
        %v5366 = vpack.c.b16 %v4054, %v4046
        %v5367 = vpack.c.b16 %v4055, %v4047
        %v5368 = vpack.c.b16 %v4056, %v4048
        %v5369 = vpack.c.b16 %v4057, %v4049
        %v5370 = vpack.c.b16 %v4058, %v4050
        %v5371 = vpack.c.b16 %v4059, %v4051
        %v5372 = vpack.c.b16 %v4068, %v4060
        %v5373 = vpack.c.b16 %v4069, %v4061
        %v5374 = vpack.c.b16 %v4070, %v4062
        %v5375 = vpack.c.b16 %v4071, %v4063
        %v5376 = vpack.c.b16 %v4072, %v4064
        %v5377 = vpack.c.b16 %v4073, %v4065
        %v5378 = vpack.c.b16 %v4074, %v4066
        %v5379 = vpack.c.b16 %v4075, %v4067
        %v5380 = vpack.c.b16 %v4084, %v4076
        %v5381 = vpack.c.b16 %v4085, %v4077
        %v5382 = vpack.c.b16 %v4086, %v4078
        %v5383 = vpack.c.b16 %v4087, %v4079
        %v5384 = vpack.c.b16 %v4088, %v4080
        %v5385 = vpack.c.b16 %v4089, %v4081
        %v5386 = vpack.c.b16 %v4090, %v4082
        %v5387 = vpack.c.b16 %v4091, %v4083
        %v5388 = vpack.c.b16 %v4100, %v4092
        %v5389 = vpack.c.b16 %v4101, %v4093
        %v5390 = vpack.c.b16 %v4102, %v4094
        %v5391 = vpack.c.b16 %v4103, %v4095
        %v5392 = vpack.c.b16 %v4104, %v4096
        %v5393 = vpack.c.b16 %v4105, %v4097
        %v5394 = vpack.c.b16 %v4106, %v4098
        %v5395 = vpack.c.b16 %v4107, %v4099
        %v5396 = vpack.c.b16 %v4116, %v4108
        %v5397 = vpack.c.b16 %v4117, %v4109
        %v5398 = vpack.c.b16 %v4118, %v4110
        %v5399 = vpack.c.b16 %v4119, %v4111
        %v5400 = vpack.c.b16 %v4120, %v4112
        %v5401 = vpack.c.b16 %v4121, %v4113
        %v5402 = vpack.c.b16 %v4122, %v4114
        %v5403 = vpack.c.b16 %v4123, %v4115
        %v5404 = vpack.c.b16 %v4132, %v4124
        %v5405 = vpack.c.b16 %v4133, %v4125
        %v5406 = vpack.c.b16 %v4134, %v4126
        %v5407 = vpack.c.b16 %v4135, %v4127
        %v5408 = vpack.c.b16 %v4136, %v4128
        %v5409 = vpack.c.b16 %v4137, %v4129
        %v5410 = vpack.c.b16 %v4138, %v4130
        %v5411 = vpack.c.b16 %v4139, %v4131
        %v5412 = vpack.c.b16 %v4148, %v4140
        %v5413 = vpack.c.b16 %v4149, %v4141
        %v5414 = vpack.c.b16 %v4150, %v4142
        %v5415 = vpack.c.b16 %v4151, %v4143
        %v5416 = vpack.c.b16 %v4152, %v4144
        %v5417 = vpack.c.b16 %v4153, %v4145
        %v5418 = vpack.c.b16 %v4154, %v4146
        %v5419 = vpack.c.b16 %v4155, %v4147
        %v5420 = vpack.c.b16 %v4164, %v4156
        %v5421 = vpack.c.b16 %v4165, %v4157
        %v5422 = vpack.c.b16 %v4166, %v4158
        %v5423 = vpack.c.b16 %v4167, %v4159
        %v5424 = vpack.c.b16 %v4168, %v4160
        %v5425 = vpack.c.b16 %v4169, %v4161
        %v5426 = vpack.c.b16 %v4170, %v4162
        %v5427 = vpack.c.b16 %v4171, %v4163
        %v5428 = vpack.c.b16 %v4180, %v4172
        %v5429 = vpack.c.b16 %v4181, %v4173
        %v5430 = vpack.c.b16 %v4182, %v4174
        %v5431 = vpack.c.b16 %v4183, %v4175
        %v5432 = vpack.c.b16 %v4184, %v4176
        %v5433 = vpack.c.b16 %v4185, %v4177
        %v5434 = vpack.c.b16 %v4186, %v4178
        %v5435 = vpack.c.b16 %v4187, %v4179
        %v5436 = vpack.c.b16 %v4196, %v4188
        %v5437 = vpack.c.b16 %v4197, %v4189
        %v5438 = vpack.c.b16 %v4198, %v4190
        %v5439 = vpack.c.b16 %v4199, %v4191
        %v5440 = vpack.c.b16 %v4200, %v4192
        %v5441 = vpack.c.b16 %v4201, %v4193
        %v5442 = vpack.c.b16 %v4202, %v4194
        %v5443 = vpack.c.b16 %v4203, %v4195
        %v5444 = vpack.c.b16 %v4212, %v4204
        %v5445 = vpack.c.b16 %v4213, %v4205
        %v5446 = vpack.c.b16 %v4214, %v4206
        %v5447 = vpack.c.b16 %v4215, %v4207
        %v5448 = vpack.c.b16 %v4216, %v4208
        %v5449 = vpack.c.b16 %v4217, %v4209
        %v5450 = vpack.c.b16 %v4218, %v4210
        %v5451 = vpack.c.b16 %v4219, %v4211
        %v5452 = vpack.c.b16 %v4228, %v4220
        %v5453 = vpack.c.b16 %v4229, %v4221
        %v5454 = vpack.c.b16 %v4230, %v4222
        %v5455 = vpack.c.b16 %v4231, %v4223
        %v5456 = vpack.c.b16 %v4232, %v4224
        %v5457 = vpack.c.b16 %v4233, %v4225
        %v5458 = vpack.c.b16 %v4234, %v4226
        %v5459 = vpack.c.b16 %v4235, %v4227
        %v5460 = vpack.c.b16 %v4244, %v4236
        %v5461 = vpack.c.b16 %v4245, %v4237
        %v5462 = vpack.c.b16 %v4246, %v4238
        %v5463 = vpack.c.b16 %v4247, %v4239
        %v5464 = vpack.c.b16 %v4248, %v4240
        %v5465 = vpack.c.b16 %v4249, %v4241
        %v5466 = vpack.c.b16 %v4250, %v4242
        %v5467 = vpack.c.b16 %v4251, %v4243
        %v5468 = vpack.c.b16 %v4260, %v4252
        %v5469 = vpack.c.b16 %v4261, %v4253
        %v5470 = vpack.c.b16 %v4262, %v4254
        %v5471 = vpack.c.b16 %v4263, %v4255
        %v5472 = vpack.c.b16 %v4264, %v4256
        %v5473 = vpack.c.b16 %v4265, %v4257
        %v5474 = vpack.c.b16 %v4266, %v4258
        %v5475 = vpack.c.b16 %v4267, %v4259
        %v5476 = vpack.c.b16 %v4276, %v4268
        %v5477 = vpack.c.b16 %v4277, %v4269
        %v5478 = vpack.c.b16 %v4278, %v4270
        %v5479 = vpack.c.b16 %v4279, %v4271
        %v5480 = vpack.c.b16 %v4280, %v4272
        %v5481 = vpack.c.b16 %v4281, %v4273
        %v5482 = vpack.c.b16 %v4282, %v4274
        %v5483 = vpack.c.b16 %v4283, %v4275
        %v5484 = vpack.c.b16 %v4292, %v4284
        %v5485 = vpack.c.b16 %v4293, %v4285
        %v5486 = vpack.c.b16 %v4294, %v4286
        %v5487 = vpack.c.b16 %v4295, %v4287
        %v5488 = vpack.c.b16 %v4296, %v4288
        %v5489 = vpack.c.b16 %v4297, %v4289
        %v5490 = vpack.c.b16 %v4298, %v4290
        %v5491 = vpack.c.b16 %v4299, %v4291
        %v5492 = vpack.c.b16 %v4308, %v4300
        %v5493 = vpack.c.b16 %v4309, %v4301
        %v5494 = vpack.c.b16 %v4310, %v4302
        %v5495 = vpack.c.b16 %v4311, %v4303
        %v5496 = vpack.c.b16 %v4312, %v4304
        %v5497 = vpack.c.b16 %v4313, %v4305
        %v5498 = vpack.c.b16 %v4314, %v4306
        %v5499 = vpack.c.b16 %v4315, %v4307
        %v5500 = vpack.c.b16 %v4324, %v4316
        %v5501 = vpack.c.b16 %v4325, %v4317
        %v5502 = vpack.c.b16 %v4326, %v4318
        %v5503 = vpack.c.b16 %v4327, %v4319
        %v5504 = vpack.c.b16 %v4328, %v4320
        %v5505 = vpack.c.b16 %v4329, %v4321
        %v5506 = vpack.c.b16 %v4330, %v4322
        %v5507 = vpack.c.b16 %v4331, %v4323
        %v5508 = vpack.c.b16 %v4340, %v4332
        %v5509 = vpack.c.b16 %v4341, %v4333
        %v5510 = vpack.c.b16 %v4342, %v4334
        %v5511 = vpack.c.b16 %v4343, %v4335
        %v5512 = vpack.c.b16 %v4344, %v4336
        %v5513 = vpack.c.b16 %v4345, %v4337
        %v5514 = vpack.c.b16 %v4346, %v4338
        %v5515 = vpack.c.b16 %v4347, %v4339
        %v5516 = vpack.c.b16 %v4356, %v4348
        %v5517 = vpack.c.b16 %v4357, %v4349
        %v5518 = vpack.c.b16 %v4358, %v4350
        %v5519 = vpack.c.b16 %v4359, %v4351
        %v5520 = vpack.c.b16 %v4360, %v4352
        %v5521 = vpack.c.b16 %v4361, %v4353
        %v5522 = vpack.c.b16 %v4362, %v4354
        %v5523 = vpack.c.b16 %v4363, %v4355
        %v5524 = vpack.c.b16 %v4372, %v4364
        %v5525 = vpack.c.b16 %v4373, %v4365
        %v5526 = vpack.c.b16 %v4374, %v4366
        %v5527 = vpack.c.b16 %v4375, %v4367
        %v5528 = vpack.c.b16 %v4376, %v4368
        %v5529 = vpack.c.b16 %v4377, %v4369
        %v5530 = vpack.c.b16 %v4378, %v4370
        %v5531 = vpack.c.b16 %v4379, %v4371
        %v5532 = vpack.c.b16 %v4388, %v4380
        %v5533 = vpack.c.b16 %v4389, %v4381
        %v5534 = vpack.c.b16 %v4390, %v4382
        %v5535 = vpack.c.b16 %v4391, %v4383
        %v5536 = vpack.c.b16 %v4392, %v4384
        %v5537 = vpack.c.b16 %v4393, %v4385
        %v5538 = vpack.c.b16 %v4394, %v4386
        %v5539 = vpack.c.b16 %v4395, %v4387
        %v5540 = vpack.c.b16 %v4404, %v4396
        %v5541 = vpack.c.b16 %v4405, %v4397
        %v5542 = vpack.c.b16 %v4406, %v4398
        %v5543 = vpack.c.b16 %v4407, %v4399
        %v5544 = vpack.c.b16 %v4408, %v4400
        %v5545 = vpack.c.b16 %v4409, %v4401
        %v5546 = vpack.c.b16 %v4410, %v4402
        %v5547 = vpack.c.b16 %v4411, %v4403
        %v5548 = vpack.c.b16 %v4420, %v4412
        %v5549 = vpack.c.b16 %v4421, %v4413
        %v5550 = vpack.c.b16 %v4422, %v4414
        %v5551 = vpack.c.b16 %v4423, %v4415
        %v5552 = vpack.c.b16 %v4424, %v4416
        %v5553 = vpack.c.b16 %v4425, %v4417
        %v5554 = vpack.c.b16 %v4426, %v4418
        %v5555 = vpack.c.b16 %v4427, %v4419
        %v5556 = vpack.c.b16 %v4436, %v4428
        %v5557 = vpack.c.b16 %v4437, %v4429
        %v5558 = vpack.c.b16 %v4438, %v4430
        %v5559 = vpack.c.b16 %v4439, %v4431
        %v5560 = vpack.c.b16 %v4440, %v4432
        %v5561 = vpack.c.b16 %v4441, %v4433
        %v5562 = vpack.c.b16 %v4442, %v4434
        %v5563 = vpack.c.b16 %v4443, %v4435
        %v5564 = vpack.c.b16 %v4452, %v4444
        %v5565 = vpack.c.b16 %v4453, %v4445
        %v5566 = vpack.c.b16 %v4454, %v4446
        %v5567 = vpack.c.b16 %v4455, %v4447
        %v5568 = vpack.c.b16 %v4456, %v4448
        %v5569 = vpack.c.b16 %v4457, %v4449
        %v5570 = vpack.c.b16 %v4458, %v4450
        %v5571 = vpack.c.b16 %v4459, %v4451
        %v5572 = vpack.c.b16 %v4468, %v4460
        %v5573 = vpack.c.b16 %v4469, %v4461
        %v5574 = vpack.c.b16 %v4470, %v4462
        %v5575 = vpack.c.b16 %v4471, %v4463
        %v5576 = vpack.c.b16 %v4472, %v4464
        %v5577 = vpack.c.b16 %v4473, %v4465
        %v5578 = vpack.c.b16 %v4474, %v4466
        %v5579 = vpack.c.b16 %v4475, %v4467
        %v5580 = vpack.c.b16 %v4484, %v4476
        %v5581 = vpack.c.b16 %v4485, %v4477
        %v5582 = vpack.c.b16 %v4486, %v4478
        %v5583 = vpack.c.b16 %v4487, %v4479
        %v5584 = vpack.c.b16 %v4488, %v4480
        %v5585 = vpack.c.b16 %v4489, %v4481
        %v5586 = vpack.c.b16 %v4490, %v4482
        %v5587 = vpack.c.b16 %v4491, %v4483
        %v5588 = vpack.c.b16 %v4500, %v4492
        %v5589 = vpack.c.b16 %v4501, %v4493
        %v5590 = vpack.c.b16 %v4502, %v4494
        %v5591 = vpack.c.b16 %v4503, %v4495
        %v5592 = vpack.c.b16 %v4504, %v4496
        %v5593 = vpack.c.b16 %v4505, %v4497
        %v5594 = vpack.c.b16 %v4506, %v4498
        %v5595 = vpack.c.b16 %v4507, %v4499
        %v5596 = vpack.c.b16 %v4516, %v4508
        %v5597 = vpack.c.b16 %v4517, %v4509
        %v5598 = vpack.c.b16 %v4518, %v4510
        %v5599 = vpack.c.b16 %v4519, %v4511
        %v5600 = vpack.c.b16 %v4520, %v4512
        %v5601 = vpack.c.b16 %v4521, %v4513
        %v5602 = vpack.c.b16 %v4522, %v4514
        %v5603 = vpack.c.b16 %v4523, %v4515
        %v5604 = vpack.c.b16 %v4532, %v4524
        %v5605 = vpack.c.b16 %v4533, %v4525
        %v5606 = vpack.c.b16 %v4534, %v4526
        %v5607 = vpack.c.b16 %v4535, %v4527
        %v5608 = vpack.c.b16 %v4536, %v4528
        %v5609 = vpack.c.b16 %v4537, %v4529
        %v5610 = vpack.c.b16 %v4538, %v4530
        %v5611 = vpack.c.b16 %v4539, %v4531
        %v5612 = vpack.c.b16 %v4548, %v4540
        %v5613 = vpack.c.b16 %v4549, %v4541
        %v5614 = vpack.c.b16 %v4550, %v4542
        %v5615 = vpack.c.b16 %v4551, %v4543
        %v5616 = vpack.c.b16 %v4552, %v4544
        %v5617 = vpack.c.b16 %v4553, %v4545
        %v5618 = vpack.c.b16 %v4554, %v4546
        %v5619 = vpack.c.b16 %v4555, %v4547
        %v5620 = vpack.c.b16 %v4564, %v4556
        %v5621 = vpack.c.b16 %v4565, %v4557
        %v5622 = vpack.c.b16 %v4566, %v4558
        %v5623 = vpack.c.b16 %v4567, %v4559
        %v5624 = vpack.c.b16 %v4568, %v4560
        %v5625 = vpack.c.b16 %v4569, %v4561
        %v5626 = vpack.c.b16 %v4570, %v4562
        %v5627 = vpack.c.b16 %v4571, %v4563
        %v5628 = vpack.c.b16 %v4580, %v4572
        %v5629 = vpack.c.b16 %v4581, %v4573
        %v5630 = vpack.c.b16 %v4582, %v4574
        %v5631 = vpack.c.b16 %v4583, %v4575
        %v5632 = vpack.c.b16 %v4584, %v4576
        %v5633 = vpack.c.b16 %v4585, %v4577
        %v5634 = vpack.c.b16 %v4586, %v4578
        %v5635 = vpack.c.b16 %v4587, %v4579
        %v5636 = vpack.c.b16 %v4596, %v4588
        %v5637 = vpack.c.b16 %v4597, %v4589
        %v5638 = vpack.c.b16 %v4598, %v4590
        %v5639 = vpack.c.b16 %v4599, %v4591
        %v5640 = vpack.c.b16 %v4600, %v4592
        %v5641 = vpack.c.b16 %v4601, %v4593
        %v5642 = vpack.c.b16 %v4602, %v4594
        %v5643 = vpack.c.b16 %v4603, %v4595
        %v5644 = vpack.c.b16 %v4612, %v4604
        %v5645 = vpack.c.b16 %v4613, %v4605
        %v5646 = vpack.c.b16 %v4614, %v4606
        %v5647 = vpack.c.b16 %v4615, %v4607
        %v5648 = vpack.c.b16 %v4616, %v4608
        %v5649 = vpack.c.b16 %v4617, %v4609
        %v5650 = vpack.c.b16 %v4618, %v4610
        %v5651 = vpack.c.b16 %v4619, %v4611
        %v5652 = vpack.c.b16 %v4628, %v4620
        %v5653 = vpack.c.b16 %v4629, %v4621
        %v5654 = vpack.c.b16 %v4630, %v4622
        %v5655 = vpack.c.b16 %v4631, %v4623
        %v5656 = vpack.c.b16 %v4632, %v4624
        %v5657 = vpack.c.b16 %v4633, %v4625
        %v5658 = vpack.c.b16 %v4634, %v4626
        %v5659 = vpack.c.b16 %v4635, %v4627
        %6684 = vmatprep.subr.bf16.mxu0 %v4637
        %6685 = vmatpush1.bf16.msra.mxu0 %v4636
        %6686 = vmatprep.subr.bf16.mxu0 %v4645
        %6687 = vmatpush1.bf16.msra.mxu0 %v4644
        %6688 = vmatprep.subr.bf16.mxu0 %v4653
        %6689 = vmatpush1.bf16.msra.mxu0 %v4652
        %6690 = vmatprep.subr.bf16.mxu0 %v4661
        %6691 = vmatpush1.bf16.msra.mxu0 %v4660
        %6692 = vmatprep.subr.bf16.mxu0 %v4669
        %6693 = vmatpush1.bf16.msra.mxu0 %v4668
        %6694 = vmatprep.subr.bf16.mxu0 %v4677
        %6695 = vmatpush1.bf16.msra.mxu0 %v4676
        %6696 = vmatprep.subr.bf16.mxu0 %v4685
        %6697 = vmatpush1.bf16.msra.mxu0 %v4684
        %6698 = vmatprep.subr.bf16.mxu0 %v4693
        %6699 = vmatpush1.bf16.msra.mxu0 %v4692
        %6700 = vmatprep.subr.bf16.mxu0 %v4701
        %6701 = vmatpush1.bf16.msra.mxu0 %v4700
        %6702 = vmatprep.subr.bf16.mxu0 %v4709
        %6703 = vmatpush1.bf16.msra.mxu0 %v4708
        %6704 = vmatprep.subr.bf16.mxu0 %v4717
        %6705 = vmatpush1.bf16.msra.mxu0 %v4716
        %6706 = vmatprep.subr.bf16.mxu0 %v4725
        %6707 = vmatpush1.bf16.msra.mxu0 %v4724
        %6708 = vmatprep.subr.bf16.mxu0 %v4733
        %6709 = vmatpush1.bf16.msra.mxu0 %v4732
        %6710 = vmatprep.subr.bf16.mxu0 %v4741
        %6711 = vmatpush1.bf16.msra.mxu0 %v4740
        %6712 = vmatprep.subr.bf16.mxu0 %v4749
        %6713 = vmatpush1.bf16.msra.mxu0 %v4748
        %6714 = vmatprep.subr.bf16.mxu0 %v4757
        %6715 = vmatpush1.bf16.msra.mxu0 %v4756
        %6716 = vmatprep.mubr.bf16.mxu0 %v523
        %6717 = vmatmul.mubr.bf16.gmra.mrb[0].mxu0 %v522
        %v6718 = vpop.f32.mrb[0].mxu0
        %v6719 = vadd.f32 0.0, %v6718
        %v6720 = vpop.f32.mrb[0].mxu0
        %v6721 = vadd.f32 0.0, %v6720
        %v6722 = vpop.f32.mrb[0].mxu0
        %v6723 = vpop.f32.mrb[0].mxu0
        %6724 = vdwg.mxu0
        %6725 = vmatprep.subr.bf16.mxu0 %v4765
        %6726 = vmatpush1.bf16.msra.mxu0 %v4764
        %6727 = vmatprep.subr.bf16.mxu0 %v4773
        %6728 = vmatpush1.bf16.msra.mxu0 %v4772
        %6729 = vmatprep.subr.bf16.mxu0 %v4781
        %6730 = vmatpush1.bf16.msra.mxu0 %v4780
        %6731 = vmatprep.subr.bf16.mxu0 %v4789
        %6732 = vmatpush1.bf16.msra.mxu0 %v4788
        %6733 = vmatprep.subr.bf16.mxu0 %v4797
        %6734 = vmatpush1.bf16.msra.mxu0 %v4796
        %6735 = vmatprep.subr.bf16.mxu0 %v4805
        %6736 = vmatpush1.bf16.msra.mxu0 %v4804
        %6737 = vmatprep.subr.bf16.mxu0 %v4813
        %6738 = vmatpush1.bf16.msra.mxu0 %v4812
        %6739 = vmatprep.subr.bf16.mxu0 %v4821
        %6740 = vmatpush1.bf16.msra.mxu0 %v4820
        %6741 = vmatprep.subr.bf16.mxu0 %v4829
        %6742 = vmatpush1.bf16.msra.mxu0 %v4828
        %6743 = vmatprep.subr.bf16.mxu0 %v4837
        %6744 = vmatpush1.bf16.msra.mxu0 %v4836
        %6745 = vmatprep.subr.bf16.mxu0 %v4845
        %6746 = vmatpush1.bf16.msra.mxu0 %v4844
        %6747 = vmatprep.subr.bf16.mxu0 %v4853
        %6748 = vmatpush1.bf16.msra.mxu0 %v4852
        %6749 = vmatprep.subr.bf16.mxu0 %v4861
        %6750 = vmatpush1.bf16.msra.mxu0 %v4860
        %6751 = vmatprep.subr.bf16.mxu0 %v4869
        %6752 = vmatpush1.bf16.msra.mxu0 %v4868
        %6753 = vmatprep.subr.bf16.mxu0 %v4877
        %6754 = vmatpush1.bf16.msra.mxu0 %v4876
        %6755 = vmatprep.subr.bf16.mxu0 %v4885
        %6756 = vmatpush1.bf16.msra.mxu0 %v4884
        %6757 = vmatprep.mubr.bf16.mxu0 %v525
        %6758 = vmatmul.mubr.bf16.gmra.mrb[0].mxu0 %v524
        %v6759 = vpop.f32.mrb[0].mxu0
        %v6760 = vadd.f32 %v6719, %v6759
        %v6761 = vpop.f32.mrb[0].mxu0
        %v6762 = vadd.f32 %v6721, %v6761
        %v6763 = vpop.f32.mrb[0].mxu0
        %v6764 = vpop.f32.mrb[0].mxu0
        %6765 = vdwg.mxu0
        %6766 = vmatprep.subr.bf16.mxu0 %v4893
        %6767 = vmatpush1.bf16.msra.mxu0 %v4892
        %6768 = vmatprep.subr.bf16.mxu0 %v4901
        %6769 = vmatpush1.bf16.msra.mxu0 %v4900
        %6770 = vmatprep.subr.bf16.mxu0 %v4909
        %6771 = vmatpush1.bf16.msra.mxu0 %v4908
        %6772 = vmatprep.subr.bf16.mxu0 %v4917
        %6773 = vmatpush1.bf16.msra.mxu0 %v4916
        %6774 = vmatprep.subr.bf16.mxu0 %v4925
        %6775 = vmatpush1.bf16.msra.mxu0 %v4924
        %6776 = vmatprep.subr.bf16.mxu0 %v4933
        %6777 = vmatpush1.bf16.msra.mxu0 %v4932
        %6778 = vmatprep.subr.bf16.mxu0 %v4941
        %6779 = vmatpush1.bf16.msra.mxu0 %v4940
        %6780 = vmatprep.subr.bf16.mxu0 %v4949
        %6781 = vmatpush1.bf16.msra.mxu0 %v4948
        %6782 = vmatprep.subr.bf16.mxu0 %v4957
        %6783 = vmatpush1.bf16.msra.mxu0 %v4956
        %6784 = vmatprep.subr.bf16.mxu0 %v4965
        %6785 = vmatpush1.bf16.msra.mxu0 %v4964
        %6786 = vmatprep.subr.bf16.mxu0 %v4973
        %6787 = vmatpush1.bf16.msra.mxu0 %v4972
        %6788 = vmatprep.subr.bf16.mxu0 %v4981
        %6789 = vmatpush1.bf16.msra.mxu0 %v4980
        %6790 = vmatprep.subr.bf16.mxu0 %v4989
        %6791 = vmatpush1.bf16.msra.mxu0 %v4988
        %6792 = vmatprep.subr.bf16.mxu0 %v4997
        %6793 = vmatpush1.bf16.msra.mxu0 %v4996
        %6794 = vmatprep.subr.bf16.mxu0 %v5005
        %6795 = vmatpush1.bf16.msra.mxu0 %v5004
        %6796 = vmatprep.subr.bf16.mxu0 %v5013
        %6797 = vmatpush1.bf16.msra.mxu0 %v5012
        %6798 = vmatprep.mubr.bf16.mxu0 %v527
        %6799 = vmatmul.mubr.bf16.gmra.mrb[0].mxu0 %v526
        %v6800 = vpop.f32.mrb[0].mxu0
        %v6801 = vadd.f32 %v6760, %v6800
        %v6802 = vpop.f32.mrb[0].mxu0
        %v6803 = vadd.f32 %v6762, %v6802
        %v6804 = vpop.f32.mrb[0].mxu0
        %v6805 = vpop.f32.mrb[0].mxu0
        %6806 = vdwg.mxu0
        %6807 = vmatprep.subr.bf16.mxu0 %v5021
        %6808 = vmatpush1.bf16.msra.mxu0 %v5020
        %6809 = vmatprep.subr.bf16.mxu0 %v5029
        %6810 = vmatpush1.bf16.msra.mxu0 %v5028
        %6811 = vmatprep.subr.bf16.mxu0 %v5037
        %6812 = vmatpush1.bf16.msra.mxu0 %v5036
        %6813 = vmatprep.subr.bf16.mxu0 %v5045
        %6814 = vmatpush1.bf16.msra.mxu0 %v5044
        %6815 = vmatprep.subr.bf16.mxu0 %v5053
        %6816 = vmatpush1.bf16.msra.mxu0 %v5052
        %6817 = vmatprep.subr.bf16.mxu0 %v5061
        %6818 = vmatpush1.bf16.msra.mxu0 %v5060
        %6819 = vmatprep.subr.bf16.mxu0 %v5069
        %6820 = vmatpush1.bf16.msra.mxu0 %v5068
        %6821 = vmatprep.subr.bf16.mxu0 %v5077
        %6822 = vmatpush1.bf16.msra.mxu0 %v5076
        %6823 = vmatprep.subr.bf16.mxu0 %v5085
        %6824 = vmatpush1.bf16.msra.mxu0 %v5084
        %6825 = vmatprep.subr.bf16.mxu0 %v5093
        %6826 = vmatpush1.bf16.msra.mxu0 %v5092
        %6827 = vmatprep.subr.bf16.mxu0 %v5101
        %6828 = vmatpush1.bf16.msra.mxu0 %v5100
        %6829 = vmatprep.subr.bf16.mxu0 %v5109
        %6830 = vmatpush1.bf16.msra.mxu0 %v5108
        %6831 = vmatprep.subr.bf16.mxu0 %v5117
        %6832 = vmatpush1.bf16.msra.mxu0 %v5116
        %6833 = vmatprep.subr.bf16.mxu0 %v5125
        %6834 = vmatpush1.bf16.msra.mxu0 %v5124
        %6835 = vmatprep.subr.bf16.mxu0 %v5133
        %6836 = vmatpush1.bf16.msra.mxu0 %v5132
        %6837 = vmatprep.subr.bf16.mxu0 %v5141
        %6838 = vmatpush1.bf16.msra.mxu0 %v5140
        %6839 = vmatprep.mubr.bf16.mxu0 %v529
        %6840 = vmatmul.mubr.bf16.gmra.mrb[0].mxu0 %v528
        %v6841 = vpop.f32.mrb[0].mxu0
        %v6842 = vadd.f32 %v6801, %v6841
        %v6843 = vpop.f32.mrb[0].mxu0
        %v6844 = vadd.f32 %v6803, %v6843
        %v6845 = vpop.f32.mrb[0].mxu0
        %v6846 = vpop.f32.mrb[0].mxu0
        %6847 = vdwg.mxu0
        %6848 = vmatprep.subr.bf16.mxu0 %v5149
        %6849 = vmatpush1.bf16.msra.mxu0 %v5148
        %6850 = vmatprep.subr.bf16.mxu0 %v5157
        %6851 = vmatpush1.bf16.msra.mxu0 %v5156
        %6852 = vmatprep.subr.bf16.mxu0 %v5165
        %6853 = vmatpush1.bf16.msra.mxu0 %v5164
        %6854 = vmatprep.subr.bf16.mxu0 %v5173
        %6855 = vmatpush1.bf16.msra.mxu0 %v5172
        %6856 = vmatprep.subr.bf16.mxu0 %v5181
        %6857 = vmatpush1.bf16.msra.mxu0 %v5180
        %6858 = vmatprep.subr.bf16.mxu0 %v5189
        %6859 = vmatpush1.bf16.msra.mxu0 %v5188
        %6860 = vmatprep.subr.bf16.mxu0 %v5197
        %6861 = vmatpush1.bf16.msra.mxu0 %v5196
        %6862 = vmatprep.subr.bf16.mxu0 %v5205
        %6863 = vmatpush1.bf16.msra.mxu0 %v5204
        %6864 = vmatprep.subr.bf16.mxu0 %v5213
        %6865 = vmatpush1.bf16.msra.mxu0 %v5212
        %6866 = vmatprep.subr.bf16.mxu0 %v5221
        %6867 = vmatpush1.bf16.msra.mxu0 %v5220
        %6868 = vmatprep.subr.bf16.mxu0 %v5229
        %6869 = vmatpush1.bf16.msra.mxu0 %v5228
        %6870 = vmatprep.subr.bf16.mxu0 %v5237
        %6871 = vmatpush1.bf16.msra.mxu0 %v5236
        %6872 = vmatprep.subr.bf16.mxu0 %v5245
        %6873 = vmatpush1.bf16.msra.mxu0 %v5244
        %6874 = vmatprep.subr.bf16.mxu0 %v5253
        %6875 = vmatpush1.bf16.msra.mxu0 %v5252
        %6876 = vmatprep.subr.bf16.mxu0 %v5261
        %6877 = vmatpush1.bf16.msra.mxu0 %v5260
        %6878 = vmatprep.subr.bf16.mxu0 %v5269
        %6879 = vmatpush1.bf16.msra.mxu0 %v5268
        %6880 = vmatprep.mubr.bf16.mxu0 %v531
        %6881 = vmatmul.mubr.bf16.gmra.mrb[0].mxu0 %v530
        %v6882 = vpop.f32.mrb[0].mxu0
        %v6883 = vadd.f32 %v6842, %v6882
        %v6884 = vpop.f32.mrb[0].mxu0
        %v6885 = vadd.f32 %v6844, %v6884
        %v6886 = vpop.f32.mrb[0].mxu0
        %v6887 = vpop.f32.mrb[0].mxu0
        %6888 = vdwg.mxu0
        %6889 = vmatprep.subr.bf16.mxu0 %v5277
        %6890 = vmatpush1.bf16.msra.mxu0 %v5276
        %6891 = vmatprep.subr.bf16.mxu0 %v5285
        %6892 = vmatpush1.bf16.msra.mxu0 %v5284
        %6893 = vmatprep.subr.bf16.mxu0 %v5293
        %6894 = vmatpush1.bf16.msra.mxu0 %v5292
        %6895 = vmatprep.subr.bf16.mxu0 %v5301
        %6896 = vmatpush1.bf16.msra.mxu0 %v5300
        %6897 = vmatprep.subr.bf16.mxu0 %v5309
        %6898 = vmatpush1.bf16.msra.mxu0 %v5308
        %6899 = vmatprep.subr.bf16.mxu0 %v5317
        %6900 = vmatpush1.bf16.msra.mxu0 %v5316
        %6901 = vmatprep.subr.bf16.mxu0 %v5325
        %6902 = vmatpush1.bf16.msra.mxu0 %v5324
        %6903 = vmatprep.subr.bf16.mxu0 %v5333
        %6904 = vmatpush1.bf16.msra.mxu0 %v5332
        %6905 = vmatprep.subr.bf16.mxu0 %v5341
        %6906 = vmatpush1.bf16.msra.mxu0 %v5340
        %6907 = vmatprep.subr.bf16.mxu0 %v5349
        %6908 = vmatpush1.bf16.msra.mxu0 %v5348
        %6909 = vmatprep.subr.bf16.mxu0 %v5357
        %6910 = vmatpush1.bf16.msra.mxu0 %v5356
        %6911 = vmatprep.subr.bf16.mxu0 %v5365
        %6912 = vmatpush1.bf16.msra.mxu0 %v5364
        %6913 = vmatprep.subr.bf16.mxu0 %v5373
        %6914 = vmatpush1.bf16.msra.mxu0 %v5372
        %6915 = vmatprep.subr.bf16.mxu0 %v5381
        %6916 = vmatpush1.bf16.msra.mxu0 %v5380
        %6917 = vmatprep.subr.bf16.mxu0 %v5389
        %6918 = vmatpush1.bf16.msra.mxu0 %v5388
        %6919 = vmatprep.subr.bf16.mxu0 %v5397
        %6920 = vmatpush1.bf16.msra.mxu0 %v5396
        %6921 = vmatprep.mubr.bf16.mxu0 %v533
        %6922 = vmatmul.mubr.bf16.gmra.mrb[0].mxu0 %v532
        %v6923 = vpop.f32.mrb[0].mxu0
        %v6924 = vadd.f32 %v6883, %v6923
        %v6925 = vpop.f32.mrb[0].mxu0
        %v6926 = vadd.f32 %v6885, %v6925
        %v6927 = vpop.f32.mrb[0].mxu0
        %v6928 = vpop.f32.mrb[0].mxu0
        %6929 = vdwg.mxu0
        %6930 = vmatprep.subr.bf16.mxu0 %v5405
        %6931 = vmatpush1.bf16.msra.mxu0 %v5404
        %6932 = vmatprep.subr.bf16.mxu0 %v5413
        %6933 = vmatpush1.bf16.msra.mxu0 %v5412
        %6934 = vmatprep.subr.bf16.mxu0 %v5421
        %6935 = vmatpush1.bf16.msra.mxu0 %v5420
        %6936 = vmatprep.subr.bf16.mxu0 %v5429
        %6937 = vmatpush1.bf16.msra.mxu0 %v5428
        %6938 = vmatprep.subr.bf16.mxu0 %v5437
        %6939 = vmatpush1.bf16.msra.mxu0 %v5436
        %6940 = vmatprep.subr.bf16.mxu0 %v5445
        %6941 = vmatpush1.bf16.msra.mxu0 %v5444
        %6942 = vmatprep.subr.bf16.mxu0 %v5453
        %6943 = vmatpush1.bf16.msra.mxu0 %v5452
        %6944 = vmatprep.subr.bf16.mxu0 %v5461
        %6945 = vmatpush1.bf16.msra.mxu0 %v5460
        %6946 = vmatprep.subr.bf16.mxu0 %v5469
        %6947 = vmatpush1.bf16.msra.mxu0 %v5468
        %6948 = vmatprep.subr.bf16.mxu0 %v5477
        %6949 = vmatpush1.bf16.msra.mxu0 %v5476
        %6950 = vmatprep.subr.bf16.mxu0 %v5485
        %6951 = vmatpush1.bf16.msra.mxu0 %v5484
        %6952 = vmatprep.subr.bf16.mxu0 %v5493
        %6953 = vmatpush1.bf16.msra.mxu0 %v5492
        %6954 = vmatprep.subr.bf16.mxu0 %v5501
        %6955 = vmatpush1.bf16.msra.mxu0 %v5500
        %6956 = vmatprep.subr.bf16.mxu0 %v5509
        %6957 = vmatpush1.bf16.msra.mxu0 %v5508
        %6958 = vmatprep.subr.bf16.mxu0 %v5517
        %6959 = vmatpush1.bf16.msra.mxu0 %v5516
        %6960 = vmatprep.subr.bf16.mxu0 %v5525
        %6961 = vmatpush1.bf16.msra.mxu0 %v5524
        %6962 = vmatprep.mubr.bf16.mxu0 %v535
        %6963 = vmatmul.mubr.bf16.gmra.mrb[0].mxu0 %v534
        %v6964 = vpop.f32.mrb[0].mxu0
        %v6965 = vadd.f32 %v6924, %v6964
        %v6966 = vpop.f32.mrb[0].mxu0
        %v6967 = vadd.f32 %v6926, %v6966
        %v6968 = vpop.f32.mrb[0].mxu0
        %v6969 = vpop.f32.mrb[0].mxu0
        %6970 = vdwg.mxu0
        %6971 = vmatprep.subr.bf16.mxu0 %v5533
        %6972 = vmatpush1.bf16.msra.mxu0 %v5532
        %6973 = vmatprep.subr.bf16.mxu0 %v5541
        %6974 = vmatpush1.bf16.msra.mxu0 %v5540
        %6975 = vmatprep.subr.bf16.mxu0 %v5549
        %6976 = vmatpush1.bf16.msra.mxu0 %v5548
        %6977 = vmatprep.subr.bf16.mxu0 %v5557
        %6978 = vmatpush1.bf16.msra.mxu0 %v5556
        %6979 = vmatprep.subr.bf16.mxu0 %v5565
        %6980 = vmatpush1.bf16.msra.mxu0 %v5564
        %6981 = vmatprep.subr.bf16.mxu0 %v5573
        %6982 = vmatpush1.bf16.msra.mxu0 %v5572
        %6983 = vmatprep.subr.bf16.mxu0 %v5581
        %6984 = vmatpush1.bf16.msra.mxu0 %v5580
        %6985 = vmatprep.subr.bf16.mxu0 %v5589
        %6986 = vmatpush1.bf16.msra.mxu0 %v5588
        %6987 = vmatprep.subr.bf16.mxu0 %v5597
        %6988 = vmatpush1.bf16.msra.mxu0 %v5596
        %6989 = vmatprep.subr.bf16.mxu0 %v5605
        %6990 = vmatpush1.bf16.msra.mxu0 %v5604
        %6991 = vmatprep.subr.bf16.mxu0 %v5613
        %6992 = vmatpush1.bf16.msra.mxu0 %v5612
        %6993 = vmatprep.subr.bf16.mxu0 %v5621
        %6994 = vmatpush1.bf16.msra.mxu0 %v5620
        %6995 = vmatprep.subr.bf16.mxu0 %v5629
        %6996 = vmatpush1.bf16.msra.mxu0 %v5628
        %6997 = vmatprep.subr.bf16.mxu0 %v5637
        %6998 = vmatpush1.bf16.msra.mxu0 %v5636
        %6999 = vmatprep.subr.bf16.mxu0 %v5645
        %7000 = vmatpush1.bf16.msra.mxu0 %v5644
        %7001 = vmatprep.subr.bf16.mxu0 %v5653
        %7002 = vmatpush1.bf16.msra.mxu0 %v5652
        %7003 = vmatprep.mubr.bf16.mxu0 %v537
        %7004 = vmatmul.mubr.bf16.gmra.mrb[0].mxu0 %v536
        %v7005 = vpop.f32.mrb[0].mxu0
        %v7006 = vadd.f32 %v6965, %v7005
        %v7007 = vpop.f32.mrb[0].mxu0
        %v7008 = vadd.f32 %v6967, %v7007
        %v7009 = vpop.f32.mrb[0].mxu0
        %v7010 = vpop.f32.mrb[0].mxu0
        %7011 = vdwg.mxu0
        %7012 = vmatprep.subr.bf16.mxu0 %v4639
        %7013 = vmatpush1.bf16.msra.mxu0 %v4638
        %7014 = vmatprep.subr.bf16.mxu0 %v4647
        %7015 = vmatpush1.bf16.msra.mxu0 %v4646
        %7016 = vmatprep.subr.bf16.mxu0 %v4655
        %7017 = vmatpush1.bf16.msra.mxu0 %v4654
        %7018 = vmatprep.subr.bf16.mxu0 %v4663
        %7019 = vmatpush1.bf16.msra.mxu0 %v4662
        %7020 = vmatprep.subr.bf16.mxu0 %v4671
        %7021 = vmatpush1.bf16.msra.mxu0 %v4670
        %7022 = vmatprep.subr.bf16.mxu0 %v4679
        %7023 = vmatpush1.bf16.msra.mxu0 %v4678
        %7024 = vmatprep.subr.bf16.mxu0 %v4687
        %7025 = vmatpush1.bf16.msra.mxu0 %v4686
        %7026 = vmatprep.subr.bf16.mxu0 %v4695
        %7027 = vmatpush1.bf16.msra.mxu0 %v4694
        %7028 = vmatprep.subr.bf16.mxu0 %v4703
        %7029 = vmatpush1.bf16.msra.mxu0 %v4702
        %7030 = vmatprep.subr.bf16.mxu0 %v4711
        %7031 = vmatpush1.bf16.msra.mxu0 %v4710
        %7032 = vmatprep.subr.bf16.mxu0 %v4719
        %7033 = vmatpush1.bf16.msra.mxu0 %v4718
        %7034 = vmatprep.subr.bf16.mxu0 %v4727
        %7035 = vmatpush1.bf16.msra.mxu0 %v4726
        %7036 = vmatprep.subr.bf16.mxu0 %v4735
        %7037 = vmatpush1.bf16.msra.mxu0 %v4734
        %7038 = vmatprep.subr.bf16.mxu0 %v4743
        %7039 = vmatpush1.bf16.msra.mxu0 %v4742
        %7040 = vmatprep.subr.bf16.mxu0 %v4751
        %7041 = vmatpush1.bf16.msra.mxu0 %v4750
        %7042 = vmatprep.subr.bf16.mxu0 %v4759
        %7043 = vmatpush1.bf16.msra.mxu0 %v4758
        %7044 = vmatprep.mubr.bf16.mxu0 %v523
        %7045 = vmatmul.mubr.bf16.gmra.mrb[0].mxu0 %v522
        %v7046 = vpop.f32.mrb[0].mxu0
        %v7047 = vadd.f32 0.0, %v7046
        %v7048 = vpop.f32.mrb[0].mxu0
        %v7049 = vadd.f32 0.0, %v7048
        %v7050 = vpop.f32.mrb[0].mxu0
        %v7051 = vpop.f32.mrb[0].mxu0
        %7052 = vdwg.mxu0
        %7053 = vmatprep.subr.bf16.mxu0 %v4767
        %7054 = vmatpush1.bf16.msra.mxu0 %v4766
        %7055 = vmatprep.subr.bf16.mxu0 %v4775
        %7056 = vmatpush1.bf16.msra.mxu0 %v4774
        %7057 = vmatprep.subr.bf16.mxu0 %v4783
        %7058 = vmatpush1.bf16.msra.mxu0 %v4782
        %7059 = vmatprep.subr.bf16.mxu0 %v4791
        %7060 = vmatpush1.bf16.msra.mxu0 %v4790
        %7061 = vmatprep.subr.bf16.mxu0 %v4799
        %7062 = vmatpush1.bf16.msra.mxu0 %v4798
        %7063 = vmatprep.subr.bf16.mxu0 %v4807
        %7064 = vmatpush1.bf16.msra.mxu0 %v4806
        %7065 = vmatprep.subr.bf16.mxu0 %v4815
        %7066 = vmatpush1.bf16.msra.mxu0 %v4814
        %7067 = vmatprep.subr.bf16.mxu0 %v4823
        %7068 = vmatpush1.bf16.msra.mxu0 %v4822
        %7069 = vmatprep.subr.bf16.mxu0 %v4831
        %7070 = vmatpush1.bf16.msra.mxu0 %v4830
        %7071 = vmatprep.subr.bf16.mxu0 %v4839
        %7072 = vmatpush1.bf16.msra.mxu0 %v4838
        %7073 = vmatprep.subr.bf16.mxu0 %v4847
        %7074 = vmatpush1.bf16.msra.mxu0 %v4846
        %7075 = vmatprep.subr.bf16.mxu0 %v4855
        %7076 = vmatpush1.bf16.msra.mxu0 %v4854
        %7077 = vmatprep.subr.bf16.mxu0 %v4863
        %7078 = vmatpush1.bf16.msra.mxu0 %v4862
        %7079 = vmatprep.subr.bf16.mxu0 %v4871
        %7080 = vmatpush1.bf16.msra.mxu0 %v4870
        %7081 = vmatprep.subr.bf16.mxu0 %v4879
        %7082 = vmatpush1.bf16.msra.mxu0 %v4878
        %7083 = vmatprep.subr.bf16.mxu0 %v4887
        %7084 = vmatpush1.bf16.msra.mxu0 %v4886
        %7085 = vmatprep.mubr.bf16.mxu0 %v525
        %7086 = vmatmul.mubr.bf16.gmra.mrb[0].mxu0 %v524
        %v7087 = vpop.f32.mrb[0].mxu0
        %v7088 = vadd.f32 %v7047, %v7087
        %v7089 = vpop.f32.mrb[0].mxu0
        %v7090 = vadd.f32 %v7049, %v7089
        %v7091 = vpop.f32.mrb[0].mxu0
        %v7092 = vpop.f32.mrb[0].mxu0
        %7093 = vdwg.mxu0
        %7094 = vmatprep.subr.bf16.mxu0 %v4895
        %7095 = vmatpush1.bf16.msra.mxu0 %v4894
        %7096 = vmatprep.subr.bf16.mxu0 %v4903
        %7097 = vmatpush1.bf16.msra.mxu0 %v4902
        %7098 = vmatprep.subr.bf16.mxu0 %v4911
        %7099 = vmatpush1.bf16.msra.mxu0 %v4910
        %7100 = vmatprep.subr.bf16.mxu0 %v4919
        %7101 = vmatpush1.bf16.msra.mxu0 %v4918
        %7102 = vmatprep.subr.bf16.mxu0 %v4927
        %7103 = vmatpush1.bf16.msra.mxu0 %v4926
        %7104 = vmatprep.subr.bf16.mxu0 %v4935
        %7105 = vmatpush1.bf16.msra.mxu0 %v4934
        %7106 = vmatprep.subr.bf16.mxu0 %v4943
        %7107 = vmatpush1.bf16.msra.mxu0 %v4942
        %7108 = vmatprep.subr.bf16.mxu0 %v4951
        %7109 = vmatpush1.bf16.msra.mxu0 %v4950
        %7110 = vmatprep.subr.bf16.mxu0 %v4959
        %7111 = vmatpush1.bf16.msra.mxu0 %v4958
        %7112 = vmatprep.subr.bf16.mxu0 %v4967
        %7113 = vmatpush1.bf16.msra.mxu0 %v4966
        %7114 = vmatprep.subr.bf16.mxu0 %v4975
        %7115 = vmatpush1.bf16.msra.mxu0 %v4974
        %7116 = vmatprep.subr.bf16.mxu0 %v4983
        %7117 = vmatpush1.bf16.msra.mxu0 %v4982
        %7118 = vmatprep.subr.bf16.mxu0 %v4991
        %7119 = vmatpush1.bf16.msra.mxu0 %v4990
        %7120 = vmatprep.subr.bf16.mxu0 %v4999
        %7121 = vmatpush1.bf16.msra.mxu0 %v4998
        %7122 = vmatprep.subr.bf16.mxu0 %v5007
        %7123 = vmatpush1.bf16.msra.mxu0 %v5006
        %7124 = vmatprep.subr.bf16.mxu0 %v5015
        %7125 = vmatpush1.bf16.msra.mxu0 %v5014
        %7126 = vmatprep.mubr.bf16.mxu0 %v527
        %7127 = vmatmul.mubr.bf16.gmra.mrb[0].mxu0 %v526
        %v7128 = vpop.f32.mrb[0].mxu0
        %v7129 = vadd.f32 %v7088, %v7128
        %v7130 = vpop.f32.mrb[0].mxu0
        %v7131 = vadd.f32 %v7090, %v7130
        %v7132 = vpop.f32.mrb[0].mxu0
        %v7133 = vpop.f32.mrb[0].mxu0
        %7134 = vdwg.mxu0
        %7135 = vmatprep.subr.bf16.mxu0 %v5023
        %7136 = vmatpush1.bf16.msra.mxu0 %v5022
        %7137 = vmatprep.subr.bf16.mxu0 %v5031
        %7138 = vmatpush1.bf16.msra.mxu0 %v5030
        %7139 = vmatprep.subr.bf16.mxu0 %v5039
        %7140 = vmatpush1.bf16.msra.mxu0 %v5038
        %7141 = vmatprep.subr.bf16.mxu0 %v5047
        %7142 = vmatpush1.bf16.msra.mxu0 %v5046
        %7143 = vmatprep.subr.bf16.mxu0 %v5055
        %7144 = vmatpush1.bf16.msra.mxu0 %v5054
        %7145 = vmatprep.subr.bf16.mxu0 %v5063
        %7146 = vmatpush1.bf16.msra.mxu0 %v5062
        %7147 = vmatprep.subr.bf16.mxu0 %v5071
        %7148 = vmatpush1.bf16.msra.mxu0 %v5070
        %7149 = vmatprep.subr.bf16.mxu0 %v5079
        %7150 = vmatpush1.bf16.msra.mxu0 %v5078
        %7151 = vmatprep.subr.bf16.mxu0 %v5087
        %7152 = vmatpush1.bf16.msra.mxu0 %v5086
        %7153 = vmatprep.subr.bf16.mxu0 %v5095
        %7154 = vmatpush1.bf16.msra.mxu0 %v5094
        %7155 = vmatprep.subr.bf16.mxu0 %v5103
        %7156 = vmatpush1.bf16.msra.mxu0 %v5102
        %7157 = vmatprep.subr.bf16.mxu0 %v5111
        %7158 = vmatpush1.bf16.msra.mxu0 %v5110
        %7159 = vmatprep.subr.bf16.mxu0 %v5119
        %7160 = vmatpush1.bf16.msra.mxu0 %v5118
        %7161 = vmatprep.subr.bf16.mxu0 %v5127
        %7162 = vmatpush1.bf16.msra.mxu0 %v5126
        %7163 = vmatprep.subr.bf16.mxu0 %v5135
        %7164 = vmatpush1.bf16.msra.mxu0 %v5134
        %7165 = vmatprep.subr.bf16.mxu0 %v5143
        %7166 = vmatpush1.bf16.msra.mxu0 %v5142
        %7167 = vmatprep.mubr.bf16.mxu0 %v529
        %7168 = vmatmul.mubr.bf16.gmra.mrb[0].mxu0 %v528
        %v7169 = vpop.f32.mrb[0].mxu0
        %v7170 = vadd.f32 %v7129, %v7169
        %v7171 = vpop.f32.mrb[0].mxu0
        %v7172 = vadd.f32 %v7131, %v7171
        %v7173 = vpop.f32.mrb[0].mxu0
        %v7174 = vpop.f32.mrb[0].mxu0
        %7175 = vdwg.mxu0
        %7176 = vmatprep.subr.bf16.mxu0 %v5151
        %7177 = vmatpush1.bf16.msra.mxu0 %v5150
        %7178 = vmatprep.subr.bf16.mxu0 %v5159
        %7179 = vmatpush1.bf16.msra.mxu0 %v5158
        %7180 = vmatprep.subr.bf16.mxu0 %v5167
        %7181 = vmatpush1.bf16.msra.mxu0 %v5166
        %7182 = vmatprep.subr.bf16.mxu0 %v5175
        %7183 = vmatpush1.bf16.msra.mxu0 %v5174
        %7184 = vmatprep.subr.bf16.mxu0 %v5183
        %7185 = vmatpush1.bf16.msra.mxu0 %v5182
        %7186 = vmatprep.subr.bf16.mxu0 %v5191
        %7187 = vmatpush1.bf16.msra.mxu0 %v5190
        %7188 = vmatprep.subr.bf16.mxu0 %v5199
        %7189 = vmatpush1.bf16.msra.mxu0 %v5198
        %7190 = vmatprep.subr.bf16.mxu0 %v5207
        %7191 = vmatpush1.bf16.msra.mxu0 %v5206
        %7192 = vmatprep.subr.bf16.mxu0 %v5215
        %7193 = vmatpush1.bf16.msra.mxu0 %v5214
        %7194 = vmatprep.subr.bf16.mxu0 %v5223
        %7195 = vmatpush1.bf16.msra.mxu0 %v5222
        %7196 = vmatprep.subr.bf16.mxu0 %v5231
        %7197 = vmatpush1.bf16.msra.mxu0 %v5230
        %7198 = vmatprep.subr.bf16.mxu0 %v5239
        %7199 = vmatpush1.bf16.msra.mxu0 %v5238
        %7200 = vmatprep.subr.bf16.mxu0 %v5247
        %7201 = vmatpush1.bf16.msra.mxu0 %v5246
        %7202 = vmatprep.subr.bf16.mxu0 %v5255
        %7203 = vmatpush1.bf16.msra.mxu0 %v5254
        %7204 = vmatprep.subr.bf16.mxu0 %v5263
        %7205 = vmatpush1.bf16.msra.mxu0 %v5262
        %7206 = vmatprep.subr.bf16.mxu0 %v5271
        %7207 = vmatpush1.bf16.msra.mxu0 %v5270
        %7208 = vmatprep.mubr.bf16.mxu0 %v531
        %7209 = vmatmul.mubr.bf16.gmra.mrb[0].mxu0 %v530
        %v7210 = vpop.f32.mrb[0].mxu0
        %v7211 = vadd.f32 %v7170, %v7210
        %v7212 = vpop.f32.mrb[0].mxu0
        %v7213 = vadd.f32 %v7172, %v7212
        %v7214 = vpop.f32.mrb[0].mxu0
        %v7215 = vpop.f32.mrb[0].mxu0
        %7216 = vdwg.mxu0
        %7217 = vmatprep.subr.bf16.mxu0 %v5279
        %7218 = vmatpush1.bf16.msra.mxu0 %v5278
        %7219 = vmatprep.subr.bf16.mxu0 %v5287
        %7220 = vmatpush1.bf16.msra.mxu0 %v5286
        %7221 = vmatprep.subr.bf16.mxu0 %v5295
        %7222 = vmatpush1.bf16.msra.mxu0 %v5294
        %7223 = vmatprep.subr.bf16.mxu0 %v5303
        %7224 = vmatpush1.bf16.msra.mxu0 %v5302
        %7225 = vmatprep.subr.bf16.mxu0 %v5311
        %7226 = vmatpush1.bf16.msra.mxu0 %v5310
        %7227 = vmatprep.subr.bf16.mxu0 %v5319
        %7228 = vmatpush1.bf16.msra.mxu0 %v5318
        %7229 = vmatprep.subr.bf16.mxu0 %v5327
        %7230 = vmatpush1.bf16.msra.mxu0 %v5326
        %7231 = vmatprep.subr.bf16.mxu0 %v5335
        %7232 = vmatpush1.bf16.msra.mxu0 %v5334
        %7233 = vmatprep.subr.bf16.mxu0 %v5343
        %7234 = vmatpush1.bf16.msra.mxu0 %v5342
        %7235 = vmatprep.subr.bf16.mxu0 %v5351
        %7236 = vmatpush1.bf16.msra.mxu0 %v5350
        %7237 = vmatprep.subr.bf16.mxu0 %v5359
        %7238 = vmatpush1.bf16.msra.mxu0 %v5358
        %7239 = vmatprep.subr.bf16.mxu0 %v5367
        %7240 = vmatpush1.bf16.msra.mxu0 %v5366
        %7241 = vmatprep.subr.bf16.mxu0 %v5375
        %7242 = vmatpush1.bf16.msra.mxu0 %v5374
        %7243 = vmatprep.subr.bf16.mxu0 %v5383
        %7244 = vmatpush1.bf16.msra.mxu0 %v5382
        %7245 = vmatprep.subr.bf16.mxu0 %v5391
        %7246 = vmatpush1.bf16.msra.mxu0 %v5390
        %7247 = vmatprep.subr.bf16.mxu0 %v5399
        %7248 = vmatpush1.bf16.msra.mxu0 %v5398
        %7249 = vmatprep.mubr.bf16.mxu0 %v533
        %7250 = vmatmul.mubr.bf16.gmra.mrb[0].mxu0 %v532
        %v7251 = vpop.f32.mrb[0].mxu0
        %v7252 = vadd.f32 %v7211, %v7251
        %v7253 = vpop.f32.mrb[0].mxu0
        %v7254 = vadd.f32 %v7213, %v7253
        %v7255 = vpop.f32.mrb[0].mxu0
        %v7256 = vpop.f32.mrb[0].mxu0
        %7257 = vdwg.mxu0
        %7258 = vmatprep.subr.bf16.mxu0 %v5407
        %7259 = vmatpush1.bf16.msra.mxu0 %v5406
        %7260 = vmatprep.subr.bf16.mxu0 %v5415
        %7261 = vmatpush1.bf16.msra.mxu0 %v5414
        %7262 = vmatprep.subr.bf16.mxu0 %v5423
        %7263 = vmatpush1.bf16.msra.mxu0 %v5422
        %7264 = vmatprep.subr.bf16.mxu0 %v5431
        %7265 = vmatpush1.bf16.msra.mxu0 %v5430
        %7266 = vmatprep.subr.bf16.mxu0 %v5439
        %7267 = vmatpush1.bf16.msra.mxu0 %v5438
        %7268 = vmatprep.subr.bf16.mxu0 %v5447
        %7269 = vmatpush1.bf16.msra.mxu0 %v5446
        %7270 = vmatprep.subr.bf16.mxu0 %v5455
        %7271 = vmatpush1.bf16.msra.mxu0 %v5454
        %7272 = vmatprep.subr.bf16.mxu0 %v5463
        %7273 = vmatpush1.bf16.msra.mxu0 %v5462
        %7274 = vmatprep.subr.bf16.mxu0 %v5471
        %7275 = vmatpush1.bf16.msra.mxu0 %v5470
        %7276 = vmatprep.subr.bf16.mxu0 %v5479
        %7277 = vmatpush1.bf16.msra.mxu0 %v5478
        %7278 = vmatprep.subr.bf16.mxu0 %v5487
        %7279 = vmatpush1.bf16.msra.mxu0 %v5486
        %7280 = vmatprep.subr.bf16.mxu0 %v5495
        %7281 = vmatpush1.bf16.msra.mxu0 %v5494
        %7282 = vmatprep.subr.bf16.mxu0 %v5503
        %7283 = vmatpush1.bf16.msra.mxu0 %v5502
        %7284 = vmatprep.subr.bf16.mxu0 %v5511
        %7285 = vmatpush1.bf16.msra.mxu0 %v5510
        %7286 = vmatprep.subr.bf16.mxu0 %v5519
        %7287 = vmatpush1.bf16.msra.mxu0 %v5518
        %7288 = vmatprep.subr.bf16.mxu0 %v5527
        %7289 = vmatpush1.bf16.msra.mxu0 %v5526
        %7290 = vmatprep.mubr.bf16.mxu0 %v535
        %7291 = vmatmul.mubr.bf16.gmra.mrb[0].mxu0 %v534
        %v7292 = vpop.f32.mrb[0].mxu0
        %v7293 = vadd.f32 %v7252, %v7292
        %v7294 = vpop.f32.mrb[0].mxu0
        %v7295 = vadd.f32 %v7254, %v7294
        %v7296 = vpop.f32.mrb[0].mxu0
        %v7297 = vpop.f32.mrb[0].mxu0
        %7298 = vdwg.mxu0
        %7299 = vmatprep.subr.bf16.mxu0 %v5535
        %7300 = vmatpush1.bf16.msra.mxu0 %v5534
        %7301 = vmatprep.subr.bf16.mxu0 %v5543
        %7302 = vmatpush1.bf16.msra.mxu0 %v5542
        %7303 = vmatprep.subr.bf16.mxu0 %v5551
        %7304 = vmatpush1.bf16.msra.mxu0 %v5550
        %7305 = vmatprep.subr.bf16.mxu0 %v5559
        %7306 = vmatpush1.bf16.msra.mxu0 %v5558
        %7307 = vmatprep.subr.bf16.mxu0 %v5567
        %7308 = vmatpush1.bf16.msra.mxu0 %v5566
        %7309 = vmatprep.subr.bf16.mxu0 %v5575
        %7310 = vmatpush1.bf16.msra.mxu0 %v5574
        %7311 = vmatprep.subr.bf16.mxu0 %v5583
        %7312 = vmatpush1.bf16.msra.mxu0 %v5582
        %7313 = vmatprep.subr.bf16.mxu0 %v5591
        %7314 = vmatpush1.bf16.msra.mxu0 %v5590
        %7315 = vmatprep.subr.bf16.mxu0 %v5599
        %7316 = vmatpush1.bf16.msra.mxu0 %v5598
        %7317 = vmatprep.subr.bf16.mxu0 %v5607
        %7318 = vmatpush1.bf16.msra.mxu0 %v5606
        %7319 = vmatprep.subr.bf16.mxu0 %v5615
        %7320 = vmatpush1.bf16.msra.mxu0 %v5614
        %7321 = vmatprep.subr.bf16.mxu0 %v5623
        %7322 = vmatpush1.bf16.msra.mxu0 %v5622
        %7323 = vmatprep.subr.bf16.mxu0 %v5631
        %7324 = vmatpush1.bf16.msra.mxu0 %v5630
        %7325 = vmatprep.subr.bf16.mxu0 %v5639
        %7326 = vmatpush1.bf16.msra.mxu0 %v5638
        %7327 = vmatprep.subr.bf16.mxu0 %v5647
        %7328 = vmatpush1.bf16.msra.mxu0 %v5646
        %7329 = vmatprep.subr.bf16.mxu0 %v5655
        %7330 = vmatpush1.bf16.msra.mxu0 %v5654
        %7331 = vmatprep.mubr.bf16.mxu0 %v537
        %7332 = vmatmul.mubr.bf16.gmra.mrb[0].mxu0 %v536
        %v7333 = vpop.f32.mrb[0].mxu0
        %v7334 = vadd.f32 %v7293, %v7333
        %v7335 = vpop.f32.mrb[0].mxu0
        %v7336 = vadd.f32 %v7295, %v7335
        %v7337 = vpop.f32.mrb[0].mxu0
        %v7338 = vpop.f32.mrb[0].mxu0
        %7339 = vdwg.mxu0
        %7340 = vmatprep.subr.bf16.mxu0 %v4641
        %7341 = vmatpush1.bf16.msra.mxu0 %v4640
        %7342 = vmatprep.subr.bf16.mxu0 %v4649
        %7343 = vmatpush1.bf16.msra.mxu0 %v4648
        %7344 = vmatprep.subr.bf16.mxu0 %v4657
        %7345 = vmatpush1.bf16.msra.mxu0 %v4656
        %7346 = vmatprep.subr.bf16.mxu0 %v4665
        %7347 = vmatpush1.bf16.msra.mxu0 %v4664
        %7348 = vmatprep.subr.bf16.mxu0 %v4673
        %7349 = vmatpush1.bf16.msra.mxu0 %v4672
        %7350 = vmatprep.subr.bf16.mxu0 %v4681
        %7351 = vmatpush1.bf16.msra.mxu0 %v4680
        %7352 = vmatprep.subr.bf16.mxu0 %v4689
        %7353 = vmatpush1.bf16.msra.mxu0 %v4688
        %7354 = vmatprep.subr.bf16.mxu0 %v4697
        %7355 = vmatpush1.bf16.msra.mxu0 %v4696
        %7356 = vmatprep.subr.bf16.mxu0 %v4705
        %7357 = vmatpush1.bf16.msra.mxu0 %v4704
        %7358 = vmatprep.subr.bf16.mxu0 %v4713
        %7359 = vmatpush1.bf16.msra.mxu0 %v4712
        %7360 = vmatprep.subr.bf16.mxu0 %v4721
        %7361 = vmatpush1.bf16.msra.mxu0 %v4720
        %7362 = vmatprep.subr.bf16.mxu0 %v4729
        %7363 = vmatpush1.bf16.msra.mxu0 %v4728
        %7364 = vmatprep.subr.bf16.mxu0 %v4737
        %7365 = vmatpush1.bf16.msra.mxu0 %v4736
        %7366 = vmatprep.subr.bf16.mxu0 %v4745
        %7367 = vmatpush1.bf16.msra.mxu0 %v4744
        %7368 = vmatprep.subr.bf16.mxu0 %v4753
        %7369 = vmatpush1.bf16.msra.mxu0 %v4752
        %7370 = vmatprep.subr.bf16.mxu0 %v4761
        %7371 = vmatpush1.bf16.msra.mxu0 %v4760
        %7372 = vmatprep.mubr.bf16.mxu0 %v523
        %7373 = vmatmul.mubr.bf16.gmra.mrb[0].mxu0 %v522
        %v7374 = vpop.f32.mrb[0].mxu0
        %v7375 = vadd.f32 0.0, %v7374
        %v7376 = vpop.f32.mrb[0].mxu0
        %v7377 = vadd.f32 0.0, %v7376
        %v7378 = vpop.f32.mrb[0].mxu0
        %v7379 = vpop.f32.mrb[0].mxu0
        %7380 = vdwg.mxu0
        %7381 = vmatprep.subr.bf16.mxu0 %v4769
        %7382 = vmatpush1.bf16.msra.mxu0 %v4768
        %7383 = vmatprep.subr.bf16.mxu0 %v4777
        %7384 = vmatpush1.bf16.msra.mxu0 %v4776
        %7385 = vmatprep.subr.bf16.mxu0 %v4785
        %7386 = vmatpush1.bf16.msra.mxu0 %v4784
        %7387 = vmatprep.subr.bf16.mxu0 %v4793
        %7388 = vmatpush1.bf16.msra.mxu0 %v4792
        %7389 = vmatprep.subr.bf16.mxu0 %v4801
        %7390 = vmatpush1.bf16.msra.mxu0 %v4800
        %7391 = vmatprep.subr.bf16.mxu0 %v4809
        %7392 = vmatpush1.bf16.msra.mxu0 %v4808
        %7393 = vmatprep.subr.bf16.mxu0 %v4817
        %7394 = vmatpush1.bf16.msra.mxu0 %v4816
        %7395 = vmatprep.subr.bf16.mxu0 %v4825
        %7396 = vmatpush1.bf16.msra.mxu0 %v4824
        %7397 = vmatprep.subr.bf16.mxu0 %v4833
        %7398 = vmatpush1.bf16.msra.mxu0 %v4832
        %7399 = vmatprep.subr.bf16.mxu0 %v4841
        %7400 = vmatpush1.bf16.msra.mxu0 %v4840
        %7401 = vmatprep.subr.bf16.mxu0 %v4849
        %7402 = vmatpush1.bf16.msra.mxu0 %v4848
        %7403 = vmatprep.subr.bf16.mxu0 %v4857
        %7404 = vmatpush1.bf16.msra.mxu0 %v4856
        %7405 = vmatprep.subr.bf16.mxu0 %v4865
        %7406 = vmatpush1.bf16.msra.mxu0 %v4864
        %7407 = vmatprep.subr.bf16.mxu0 %v4873
        %7408 = vmatpush1.bf16.msra.mxu0 %v4872
        %7409 = vmatprep.subr.bf16.mxu0 %v4881
        %7410 = vmatpush1.bf16.msra.mxu0 %v4880
        %7411 = vmatprep.subr.bf16.mxu0 %v4889
        %7412 = vmatpush1.bf16.msra.mxu0 %v4888
        %7413 = vmatprep.mubr.bf16.mxu0 %v525
        %7414 = vmatmul.mubr.bf16.gmra.mrb[0].mxu0 %v524
        %v7415 = vpop.f32.mrb[0].mxu0
        %v7416 = vadd.f32 %v7375, %v7415
        %v7417 = vpop.f32.mrb[0].mxu0
        %v7418 = vadd.f32 %v7377, %v7417
        %v7419 = vpop.f32.mrb[0].mxu0
        %v7420 = vpop.f32.mrb[0].mxu0
        %7421 = vdwg.mxu0
        %7422 = vmatprep.subr.bf16.mxu0 %v4897
        %7423 = vmatpush1.bf16.msra.mxu0 %v4896
        %7424 = vmatprep.subr.bf16.mxu0 %v4905
        %7425 = vmatpush1.bf16.msra.mxu0 %v4904
        %7426 = vmatprep.subr.bf16.mxu0 %v4913
        %7427 = vmatpush1.bf16.msra.mxu0 %v4912
        %7428 = vmatprep.subr.bf16.mxu0 %v4921
        %7429 = vmatpush1.bf16.msra.mxu0 %v4920
        %7430 = vmatprep.subr.bf16.mxu0 %v4929
        %7431 = vmatpush1.bf16.msra.mxu0 %v4928
        %7432 = vmatprep.subr.bf16.mxu0 %v4937
        %7433 = vmatpush1.bf16.msra.mxu0 %v4936
        %7434 = vmatprep.subr.bf16.mxu0 %v4945
        %7435 = vmatpush1.bf16.msra.mxu0 %v4944
        %7436 = vmatprep.subr.bf16.mxu0 %v4953
        %7437 = vmatpush1.bf16.msra.mxu0 %v4952
        %7438 = vmatprep.subr.bf16.mxu0 %v4961
        %7439 = vmatpush1.bf16.msra.mxu0 %v4960
        %7440 = vmatprep.subr.bf16.mxu0 %v4969
        %7441 = vmatpush1.bf16.msra.mxu0 %v4968
        %7442 = vmatprep.subr.bf16.mxu0 %v4977
        %7443 = vmatpush1.bf16.msra.mxu0 %v4976
        %7444 = vmatprep.subr.bf16.mxu0 %v4985
        %7445 = vmatpush1.bf16.msra.mxu0 %v4984
        %7446 = vmatprep.subr.bf16.mxu0 %v4993
        %7447 = vmatpush1.bf16.msra.mxu0 %v4992
        %7448 = vmatprep.subr.bf16.mxu0 %v5001
        %7449 = vmatpush1.bf16.msra.mxu0 %v5000
        %7450 = vmatprep.subr.bf16.mxu0 %v5009
        %7451 = vmatpush1.bf16.msra.mxu0 %v5008
        %7452 = vmatprep.subr.bf16.mxu0 %v5017
        %7453 = vmatpush1.bf16.msra.mxu0 %v5016
        %7454 = vmatprep.mubr.bf16.mxu0 %v527
        %7455 = vmatmul.mubr.bf16.gmra.mrb[0].mxu0 %v526
        %v7456 = vpop.f32.mrb[0].mxu0
        %v7457 = vadd.f32 %v7416, %v7456
        %v7458 = vpop.f32.mrb[0].mxu0
        %v7459 = vadd.f32 %v7418, %v7458
        %v7460 = vpop.f32.mrb[0].mxu0
        %v7461 = vpop.f32.mrb[0].mxu0
        %7462 = vdwg.mxu0
        %7463 = vmatprep.subr.bf16.mxu0 %v5025
        %7464 = vmatpush1.bf16.msra.mxu0 %v5024
        %7465 = vmatprep.subr.bf16.mxu0 %v5033
        %7466 = vmatpush1.bf16.msra.mxu0 %v5032
        %7467 = vmatprep.subr.bf16.mxu0 %v5041
        %7468 = vmatpush1.bf16.msra.mxu0 %v5040
        %7469 = vmatprep.subr.bf16.mxu0 %v5049
        %7470 = vmatpush1.bf16.msra.mxu0 %v5048
        %7471 = vmatprep.subr.bf16.mxu0 %v5057
        %7472 = vmatpush1.bf16.msra.mxu0 %v5056
        %7473 = vmatprep.subr.bf16.mxu0 %v5065
        %7474 = vmatpush1.bf16.msra.mxu0 %v5064
        %7475 = vmatprep.subr.bf16.mxu0 %v5073
        %7476 = vmatpush1.bf16.msra.mxu0 %v5072
        %7477 = vmatprep.subr.bf16.mxu0 %v5081
        %7478 = vmatpush1.bf16.msra.mxu0 %v5080
        %7479 = vmatprep.subr.bf16.mxu0 %v5089
        %7480 = vmatpush1.bf16.msra.mxu0 %v5088
        %7481 = vmatprep.subr.bf16.mxu0 %v5097
        %7482 = vmatpush1.bf16.msra.mxu0 %v5096
        %7483 = vmatprep.subr.bf16.mxu0 %v5105
        %7484 = vmatpush1.bf16.msra.mxu0 %v5104
        %7485 = vmatprep.subr.bf16.mxu0 %v5113
        %7486 = vmatpush1.bf16.msra.mxu0 %v5112
        %7487 = vmatprep.subr.bf16.mxu0 %v5121
        %7488 = vmatpush1.bf16.msra.mxu0 %v5120
        %7489 = vmatprep.subr.bf16.mxu0 %v5129
        %7490 = vmatpush1.bf16.msra.mxu0 %v5128
        %7491 = vmatprep.subr.bf16.mxu0 %v5137
        %7492 = vmatpush1.bf16.msra.mxu0 %v5136
        %7493 = vmatprep.subr.bf16.mxu0 %v5145
        %7494 = vmatpush1.bf16.msra.mxu0 %v5144
        %7495 = vmatprep.mubr.bf16.mxu0 %v529
        %7496 = vmatmul.mubr.bf16.gmra.mrb[0].mxu0 %v528
        %v7497 = vpop.f32.mrb[0].mxu0
        %v7498 = vadd.f32 %v7457, %v7497
        %v7499 = vpop.f32.mrb[0].mxu0
        %v7500 = vadd.f32 %v7459, %v7499
        %v7501 = vpop.f32.mrb[0].mxu0
        %v7502 = vpop.f32.mrb[0].mxu0
        %7503 = vdwg.mxu0
        %7504 = vmatprep.subr.bf16.mxu0 %v5153
        %7505 = vmatpush1.bf16.msra.mxu0 %v5152
        %7506 = vmatprep.subr.bf16.mxu0 %v5161
        %7507 = vmatpush1.bf16.msra.mxu0 %v5160
        %7508 = vmatprep.subr.bf16.mxu0 %v5169
        %7509 = vmatpush1.bf16.msra.mxu0 %v5168
        %7510 = vmatprep.subr.bf16.mxu0 %v5177
        %7511 = vmatpush1.bf16.msra.mxu0 %v5176
        %7512 = vmatprep.subr.bf16.mxu0 %v5185
        %7513 = vmatpush1.bf16.msra.mxu0 %v5184
        %7514 = vmatprep.subr.bf16.mxu0 %v5193
        %7515 = vmatpush1.bf16.msra.mxu0 %v5192
        %7516 = vmatprep.subr.bf16.mxu0 %v5201
        %7517 = vmatpush1.bf16.msra.mxu0 %v5200
        %7518 = vmatprep.subr.bf16.mxu0 %v5209
        %7519 = vmatpush1.bf16.msra.mxu0 %v5208
        %7520 = vmatprep.subr.bf16.mxu0 %v5217
        %7521 = vmatpush1.bf16.msra.mxu0 %v5216
        %7522 = vmatprep.subr.bf16.mxu0 %v5225
        %7523 = vmatpush1.bf16.msra.mxu0 %v5224
        %7524 = vmatprep.subr.bf16.mxu0 %v5233
        %7525 = vmatpush1.bf16.msra.mxu0 %v5232
        %7526 = vmatprep.subr.bf16.mxu0 %v5241
        %7527 = vmatpush1.bf16.msra.mxu0 %v5240
        %7528 = vmatprep.subr.bf16.mxu0 %v5249
        %7529 = vmatpush1.bf16.msra.mxu0 %v5248
        %7530 = vmatprep.subr.bf16.mxu0 %v5257
        %7531 = vmatpush1.bf16.msra.mxu0 %v5256
        %7532 = vmatprep.subr.bf16.mxu0 %v5265
        %7533 = vmatpush1.bf16.msra.mxu0 %v5264
        %7534 = vmatprep.subr.bf16.mxu0 %v5273
        %7535 = vmatpush1.bf16.msra.mxu0 %v5272
        %7536 = vmatprep.mubr.bf16.mxu0 %v531
        %7537 = vmatmul.mubr.bf16.gmra.mrb[0].mxu0 %v530
        %v7538 = vpop.f32.mrb[0].mxu0
        %v7539 = vadd.f32 %v7498, %v7538
        %v7540 = vpop.f32.mrb[0].mxu0
        %v7541 = vadd.f32 %v7500, %v7540
        %v7542 = vpop.f32.mrb[0].mxu0
        %v7543 = vpop.f32.mrb[0].mxu0
        %7544 = vdwg.mxu0
        %7545 = vmatprep.subr.bf16.mxu0 %v5281
        %7546 = vmatpush1.bf16.msra.mxu0 %v5280
        %7547 = vmatprep.subr.bf16.mxu0 %v5289
        %7548 = vmatpush1.bf16.msra.mxu0 %v5288
        %7549 = vmatprep.subr.bf16.mxu0 %v5297
        %7550 = vmatpush1.bf16.msra.mxu0 %v5296
        %7551 = vmatprep.subr.bf16.mxu0 %v5305
        %7552 = vmatpush1.bf16.msra.mxu0 %v5304
        %7553 = vmatprep.subr.bf16.mxu0 %v5313
        %7554 = vmatpush1.bf16.msra.mxu0 %v5312
        %7555 = vmatprep.subr.bf16.mxu0 %v5321
        %7556 = vmatpush1.bf16.msra.mxu0 %v5320
        %7557 = vmatprep.subr.bf16.mxu0 %v5329
        %7558 = vmatpush1.bf16.msra.mxu0 %v5328
        %7559 = vmatprep.subr.bf16.mxu0 %v5337
        %7560 = vmatpush1.bf16.msra.mxu0 %v5336
        %7561 = vmatprep.subr.bf16.mxu0 %v5345
        %7562 = vmatpush1.bf16.msra.mxu0 %v5344
        %7563 = vmatprep.subr.bf16.mxu0 %v5353
        %7564 = vmatpush1.bf16.msra.mxu0 %v5352
        %7565 = vmatprep.subr.bf16.mxu0 %v5361
        %7566 = vmatpush1.bf16.msra.mxu0 %v5360
        %7567 = vmatprep.subr.bf16.mxu0 %v5369
        %7568 = vmatpush1.bf16.msra.mxu0 %v5368
        %7569 = vmatprep.subr.bf16.mxu0 %v5377
        %7570 = vmatpush1.bf16.msra.mxu0 %v5376
        %7571 = vmatprep.subr.bf16.mxu0 %v5385
        %7572 = vmatpush1.bf16.msra.mxu0 %v5384
        %7573 = vmatprep.subr.bf16.mxu0 %v5393
        %7574 = vmatpush1.bf16.msra.mxu0 %v5392
        %7575 = vmatprep.subr.bf16.mxu0 %v5401
        %7576 = vmatpush1.bf16.msra.mxu0 %v5400
        %7577 = vmatprep.mubr.bf16.mxu0 %v533
        %7578 = vmatmul.mubr.bf16.gmra.mrb[0].mxu0 %v532
        %v7579 = vpop.f32.mrb[0].mxu0
        %v7580 = vadd.f32 %v7539, %v7579
        %v7581 = vpop.f32.mrb[0].mxu0
        %v7582 = vadd.f32 %v7541, %v7581
        %v7583 = vpop.f32.mrb[0].mxu0
        %v7584 = vpop.f32.mrb[0].mxu0
        %7585 = vdwg.mxu0
        %7586 = vmatprep.subr.bf16.mxu0 %v5409
        %7587 = vmatpush1.bf16.msra.mxu0 %v5408
        %7588 = vmatprep.subr.bf16.mxu0 %v5417
        %7589 = vmatpush1.bf16.msra.mxu0 %v5416
        %7590 = vmatprep.subr.bf16.mxu0 %v5425
        %7591 = vmatpush1.bf16.msra.mxu0 %v5424
        %7592 = vmatprep.subr.bf16.mxu0 %v5433
        %7593 = vmatpush1.bf16.msra.mxu0 %v5432
        %7594 = vmatprep.subr.bf16.mxu0 %v5441
        %7595 = vmatpush1.bf16.msra.mxu0 %v5440
        %7596 = vmatprep.subr.bf16.mxu0 %v5449
        %7597 = vmatpush1.bf16.msra.mxu0 %v5448
        %7598 = vmatprep.subr.bf16.mxu0 %v5457
        %7599 = vmatpush1.bf16.msra.mxu0 %v5456
        %7600 = vmatprep.subr.bf16.mxu0 %v5465
        %7601 = vmatpush1.bf16.msra.mxu0 %v5464
        %7602 = vmatprep.subr.bf16.mxu0 %v5473
        %7603 = vmatpush1.bf16.msra.mxu0 %v5472
        %7604 = vmatprep.subr.bf16.mxu0 %v5481
        %7605 = vmatpush1.bf16.msra.mxu0 %v5480
        %7606 = vmatprep.subr.bf16.mxu0 %v5489
        %7607 = vmatpush1.bf16.msra.mxu0 %v5488
        %7608 = vmatprep.subr.bf16.mxu0 %v5497
        %7609 = vmatpush1.bf16.msra.mxu0 %v5496
        %7610 = vmatprep.subr.bf16.mxu0 %v5505
        %7611 = vmatpush1.bf16.msra.mxu0 %v5504
        %7612 = vmatprep.subr.bf16.mxu0 %v5513
        %7613 = vmatpush1.bf16.msra.mxu0 %v5512
        %7614 = vmatprep.subr.bf16.mxu0 %v5521
        %7615 = vmatpush1.bf16.msra.mxu0 %v5520
        %7616 = vmatprep.subr.bf16.mxu0 %v5529
        %7617 = vmatpush1.bf16.msra.mxu0 %v5528
        %7618 = vmatprep.mubr.bf16.mxu0 %v535
        %7619 = vmatmul.mubr.bf16.gmra.mrb[0].mxu0 %v534
        %v7620 = vpop.f32.mrb[0].mxu0
        %v7621 = vadd.f32 %v7580, %v7620
        %v7622 = vpop.f32.mrb[0].mxu0
        %v7623 = vadd.f32 %v7582, %v7622
        %v7624 = vpop.f32.mrb[0].mxu0
        %v7625 = vpop.f32.mrb[0].mxu0
        %7626 = vdwg.mxu0
        %7627 = vmatprep.subr.bf16.mxu0 %v5537
        %7628 = vmatpush1.bf16.msra.mxu0 %v5536
        %7629 = vmatprep.subr.bf16.mxu0 %v5545
        %7630 = vmatpush1.bf16.msra.mxu0 %v5544
        %7631 = vmatprep.subr.bf16.mxu0 %v5553
        %7632 = vmatpush1.bf16.msra.mxu0 %v5552
        %7633 = vmatprep.subr.bf16.mxu0 %v5561
        %7634 = vmatpush1.bf16.msra.mxu0 %v5560
        %7635 = vmatprep.subr.bf16.mxu0 %v5569
        %7636 = vmatpush1.bf16.msra.mxu0 %v5568
        %7637 = vmatprep.subr.bf16.mxu0 %v5577
        %7638 = vmatpush1.bf16.msra.mxu0 %v5576
        %7639 = vmatprep.subr.bf16.mxu0 %v5585
        %7640 = vmatpush1.bf16.msra.mxu0 %v5584
        %7641 = vmatprep.subr.bf16.mxu0 %v5593
        %7642 = vmatpush1.bf16.msra.mxu0 %v5592
        %7643 = vmatprep.subr.bf16.mxu0 %v5601
        %7644 = vmatpush1.bf16.msra.mxu0 %v5600
        %7645 = vmatprep.subr.bf16.mxu0 %v5609
        %7646 = vmatpush1.bf16.msra.mxu0 %v5608
        %7647 = vmatprep.subr.bf16.mxu0 %v5617
        %7648 = vmatpush1.bf16.msra.mxu0 %v5616
        %7649 = vmatprep.subr.bf16.mxu0 %v5625
        %7650 = vmatpush1.bf16.msra.mxu0 %v5624
        %7651 = vmatprep.subr.bf16.mxu0 %v5633
        %7652 = vmatpush1.bf16.msra.mxu0 %v5632
        %7653 = vmatprep.subr.bf16.mxu0 %v5641
        %7654 = vmatpush1.bf16.msra.mxu0 %v5640
        %7655 = vmatprep.subr.bf16.mxu0 %v5649
        %7656 = vmatpush1.bf16.msra.mxu0 %v5648
        %7657 = vmatprep.subr.bf16.mxu0 %v5657
        %7658 = vmatpush1.bf16.msra.mxu0 %v5656
        %7659 = vmatprep.mubr.bf16.mxu0 %v537
        %7660 = vmatmul.mubr.bf16.gmra.mrb[0].mxu0 %v536
        %v7661 = vpop.f32.mrb[0].mxu0
        %v7662 = vadd.f32 %v7621, %v7661
        %v7663 = vpop.f32.mrb[0].mxu0
        %v7664 = vadd.f32 %v7623, %v7663
        %v7665 = vpop.f32.mrb[0].mxu0
        %v7666 = vpop.f32.mrb[0].mxu0
        %7667 = vdwg.mxu0
        %7668 = vmatprep.subr.bf16.mxu0 %v4643
        %7669 = vmatpush1.bf16.msra.mxu0 %v4642
        %7670 = vmatprep.subr.bf16.mxu0 %v4651
        %7671 = vmatpush1.bf16.msra.mxu0 %v4650
        %7672 = vmatprep.subr.bf16.mxu0 %v4659
        %7673 = vmatpush1.bf16.msra.mxu0 %v4658
        %7674 = vmatprep.subr.bf16.mxu0 %v4667
        %7675 = vmatpush1.bf16.msra.mxu0 %v4666
        %7676 = vmatprep.subr.bf16.mxu0 %v4675
        %7677 = vmatpush1.bf16.msra.mxu0 %v4674
        %7678 = vmatprep.subr.bf16.mxu0 %v4683
        %7679 = vmatpush1.bf16.msra.mxu0 %v4682
        %7680 = vmatprep.subr.bf16.mxu0 %v4691
        %7681 = vmatpush1.bf16.msra.mxu0 %v4690
        %7682 = vmatprep.subr.bf16.mxu0 %v4699
        %7683 = vmatpush1.bf16.msra.mxu0 %v4698
        %7684 = vmatprep.subr.bf16.mxu0 %v4707
        %7685 = vmatpush1.bf16.msra.mxu0 %v4706
        %7686 = vmatprep.subr.bf16.mxu0 %v4715
        %7687 = vmatpush1.bf16.msra.mxu0 %v4714
        %7688 = vmatprep.subr.bf16.mxu0 %v4723
        %7689 = vmatpush1.bf16.msra.mxu0 %v4722
        %7690 = vmatprep.subr.bf16.mxu0 %v4731
        %7691 = vmatpush1.bf16.msra.mxu0 %v4730
        %7692 = vmatprep.subr.bf16.mxu0 %v4739
        %7693 = vmatpush1.bf16.msra.mxu0 %v4738
        %7694 = vmatprep.subr.bf16.mxu0 %v4747
        %7695 = vmatpush1.bf16.msra.mxu0 %v4746
        %7696 = vmatprep.subr.bf16.mxu0 %v4755
        %7697 = vmatpush1.bf16.msra.mxu0 %v4754
        %7698 = vmatprep.subr.bf16.mxu0 %v4763
        %7699 = vmatpush1.bf16.msra.mxu0 %v4762
        %7700 = vmatprep.mubr.bf16.mxu0 %v523
        %7701 = vmatmul.mubr.bf16.gmra.mrb[0].mxu0 %v522
        %v7702 = vpop.f32.mrb[0].mxu0
        %v7703 = vadd.f32 0.0, %v7702
        %v7704 = vpop.f32.mrb[0].mxu0
        %v7705 = vadd.f32 0.0, %v7704
        %v7706 = vpop.f32.mrb[0].mxu0
        %v7707 = vpop.f32.mrb[0].mxu0
        %7708 = vdwg.mxu0
        %7709 = vmatprep.subr.bf16.mxu0 %v4771
        %7710 = vmatpush1.bf16.msra.mxu0 %v4770
        %7711 = vmatprep.subr.bf16.mxu0 %v4779
        %7712 = vmatpush1.bf16.msra.mxu0 %v4778
        %7713 = vmatprep.subr.bf16.mxu0 %v4787
        %7714 = vmatpush1.bf16.msra.mxu0 %v4786
        %7715 = vmatprep.subr.bf16.mxu0 %v4795
        %7716 = vmatpush1.bf16.msra.mxu0 %v4794
        %7717 = vmatprep.subr.bf16.mxu0 %v4803
        %7718 = vmatpush1.bf16.msra.mxu0 %v4802
        %7719 = vmatprep.subr.bf16.mxu0 %v4811
        %7720 = vmatpush1.bf16.msra.mxu0 %v4810
        %7721 = vmatprep.subr.bf16.mxu0 %v4819
        %7722 = vmatpush1.bf16.msra.mxu0 %v4818
        %7723 = vmatprep.subr.bf16.mxu0 %v4827
        %7724 = vmatpush1.bf16.msra.mxu0 %v4826
        %7725 = vmatprep.subr.bf16.mxu0 %v4835
        %7726 = vmatpush1.bf16.msra.mxu0 %v4834
        %7727 = vmatprep.subr.bf16.mxu0 %v4843
        %7728 = vmatpush1.bf16.msra.mxu0 %v4842
        %7729 = vmatprep.subr.bf16.mxu0 %v4851
        %7730 = vmatpush1.bf16.msra.mxu0 %v4850
        %7731 = vmatprep.subr.bf16.mxu0 %v4859
        %7732 = vmatpush1.bf16.msra.mxu0 %v4858
        %7733 = vmatprep.subr.bf16.mxu0 %v4867
        %7734 = vmatpush1.bf16.msra.mxu0 %v4866
        %7735 = vmatprep.subr.bf16.mxu0 %v4875
        %7736 = vmatpush1.bf16.msra.mxu0 %v4874
        %7737 = vmatprep.subr.bf16.mxu0 %v4883
        %7738 = vmatpush1.bf16.msra.mxu0 %v4882
        %7739 = vmatprep.subr.bf16.mxu0 %v4891
        %7740 = vmatpush1.bf16.msra.mxu0 %v4890
        %7741 = vmatprep.mubr.bf16.mxu0 %v525
        %7742 = vmatmul.mubr.bf16.gmra.mrb[0].mxu0 %v524
        %v7743 = vpop.f32.mrb[0].mxu0
        %v7744 = vadd.f32 %v7703, %v7743
        %v7745 = vpop.f32.mrb[0].mxu0
        %v7746 = vadd.f32 %v7705, %v7745
        %v7747 = vpop.f32.mrb[0].mxu0
        %v7748 = vpop.f32.mrb[0].mxu0
        %7749 = vdwg.mxu0
        %7750 = vmatprep.subr.bf16.mxu0 %v4899
        %7751 = vmatpush1.bf16.msra.mxu0 %v4898
        %7752 = vmatprep.subr.bf16.mxu0 %v4907
        %7753 = vmatpush1.bf16.msra.mxu0 %v4906
        %7754 = vmatprep.subr.bf16.mxu0 %v4915
        %7755 = vmatpush1.bf16.msra.mxu0 %v4914
        %7756 = vmatprep.subr.bf16.mxu0 %v4923
        %7757 = vmatpush1.bf16.msra.mxu0 %v4922
        %7758 = vmatprep.subr.bf16.mxu0 %v4931
        %7759 = vmatpush1.bf16.msra.mxu0 %v4930
        %7760 = vmatprep.subr.bf16.mxu0 %v4939
        %7761 = vmatpush1.bf16.msra.mxu0 %v4938
        %7762 = vmatprep.subr.bf16.mxu0 %v4947
        %7763 = vmatpush1.bf16.msra.mxu0 %v4946
        %7764 = vmatprep.subr.bf16.mxu0 %v4955
        %7765 = vmatpush1.bf16.msra.mxu0 %v4954
        %7766 = vmatprep.subr.bf16.mxu0 %v4963
        %7767 = vmatpush1.bf16.msra.mxu0 %v4962
        %7768 = vmatprep.subr.bf16.mxu0 %v4971
        %7769 = vmatpush1.bf16.msra.mxu0 %v4970
        %7770 = vmatprep.subr.bf16.mxu0 %v4979
        %7771 = vmatpush1.bf16.msra.mxu0 %v4978
        %7772 = vmatprep.subr.bf16.mxu0 %v4987
        %7773 = vmatpush1.bf16.msra.mxu0 %v4986
        %7774 = vmatprep.subr.bf16.mxu0 %v4995
        %7775 = vmatpush1.bf16.msra.mxu0 %v4994
        %7776 = vmatprep.subr.bf16.mxu0 %v5003
        %7777 = vmatpush1.bf16.msra.mxu0 %v5002
        %7778 = vmatprep.subr.bf16.mxu0 %v5011
        %7779 = vmatpush1.bf16.msra.mxu0 %v5010
        %7780 = vmatprep.subr.bf16.mxu0 %v5019
        %7781 = vmatpush1.bf16.msra.mxu0 %v5018
        %7782 = vmatprep.mubr.bf16.mxu0 %v527
        %7783 = vmatmul.mubr.bf16.gmra.mrb[0].mxu0 %v526
        %v7784 = vpop.f32.mrb[0].mxu0
        %v7785 = vadd.f32 %v7744, %v7784
        %v7786 = vpop.f32.mrb[0].mxu0
        %v7787 = vadd.f32 %v7746, %v7786
        %v7788 = vpop.f32.mrb[0].mxu0
        %v7789 = vpop.f32.mrb[0].mxu0
        %7790 = vdwg.mxu0
        %7791 = vmatprep.subr.bf16.mxu0 %v5027
        %7792 = vmatpush1.bf16.msra.mxu0 %v5026
        %7793 = vmatprep.subr.bf16.mxu0 %v5035
        %7794 = vmatpush1.bf16.msra.mxu0 %v5034
        %7795 = vmatprep.subr.bf16.mxu0 %v5043
        %7796 = vmatpush1.bf16.msra.mxu0 %v5042
        %7797 = vmatprep.subr.bf16.mxu0 %v5051
        %7798 = vmatpush1.bf16.msra.mxu0 %v5050
        %7799 = vmatprep.subr.bf16.mxu0 %v5059
        %7800 = vmatpush1.bf16.msra.mxu0 %v5058
        %7801 = vmatprep.subr.bf16.mxu0 %v5067
        %7802 = vmatpush1.bf16.msra.mxu0 %v5066
        %7803 = vmatprep.subr.bf16.mxu0 %v5075
        %7804 = vmatpush1.bf16.msra.mxu0 %v5074
        %7805 = vmatprep.subr.bf16.mxu0 %v5083
        %7806 = vmatpush1.bf16.msra.mxu0 %v5082
        %7807 = vmatprep.subr.bf16.mxu0 %v5091
        %7808 = vmatpush1.bf16.msra.mxu0 %v5090
        %7809 = vmatprep.subr.bf16.mxu0 %v5099
        %7810 = vmatpush1.bf16.msra.mxu0 %v5098
        %7811 = vmatprep.subr.bf16.mxu0 %v5107
        %7812 = vmatpush1.bf16.msra.mxu0 %v5106
        %7813 = vmatprep.subr.bf16.mxu0 %v5115
        %7814 = vmatpush1.bf16.msra.mxu0 %v5114
        %7815 = vmatprep.subr.bf16.mxu0 %v5123
        %7816 = vmatpush1.bf16.msra.mxu0 %v5122
        %7817 = vmatprep.subr.bf16.mxu0 %v5131
        %7818 = vmatpush1.bf16.msra.mxu0 %v5130
        %7819 = vmatprep.subr.bf16.mxu0 %v5139
        %7820 = vmatpush1.bf16.msra.mxu0 %v5138
        %7821 = vmatprep.subr.bf16.mxu0 %v5147
        %7822 = vmatpush1.bf16.msra.mxu0 %v5146
        %7823 = vmatprep.mubr.bf16.mxu0 %v529
        %7824 = vmatmul.mubr.bf16.gmra.mrb[0].mxu0 %v528
        %v7825 = vpop.f32.mrb[0].mxu0
        %v7826 = vadd.f32 %v7785, %v7825
        %v7827 = vpop.f32.mrb[0].mxu0
        %v7828 = vadd.f32 %v7787, %v7827
        %v7829 = vpop.f32.mrb[0].mxu0
        %v7830 = vpop.f32.mrb[0].mxu0
        %7831 = vdwg.mxu0
        %7832 = vmatprep.subr.bf16.mxu0 %v5155
        %7833 = vmatpush1.bf16.msra.mxu0 %v5154
        %7834 = vmatprep.subr.bf16.mxu0 %v5163
        %7835 = vmatpush1.bf16.msra.mxu0 %v5162
        %7836 = vmatprep.subr.bf16.mxu0 %v5171
        %7837 = vmatpush1.bf16.msra.mxu0 %v5170
        %7838 = vmatprep.subr.bf16.mxu0 %v5179
        %7839 = vmatpush1.bf16.msra.mxu0 %v5178
        %7840 = vmatprep.subr.bf16.mxu0 %v5187
        %7841 = vmatpush1.bf16.msra.mxu0 %v5186
        %7842 = vmatprep.subr.bf16.mxu0 %v5195
        %7843 = vmatpush1.bf16.msra.mxu0 %v5194
        %7844 = vmatprep.subr.bf16.mxu0 %v5203
        %7845 = vmatpush1.bf16.msra.mxu0 %v5202
        %7846 = vmatprep.subr.bf16.mxu0 %v5211
        %7847 = vmatpush1.bf16.msra.mxu0 %v5210
        %7848 = vmatprep.subr.bf16.mxu0 %v5219
        %7849 = vmatpush1.bf16.msra.mxu0 %v5218
        %7850 = vmatprep.subr.bf16.mxu0 %v5227
        %7851 = vmatpush1.bf16.msra.mxu0 %v5226
        %7852 = vmatprep.subr.bf16.mxu0 %v5235
        %7853 = vmatpush1.bf16.msra.mxu0 %v5234
        %7854 = vmatprep.subr.bf16.mxu0 %v5243
        %7855 = vmatpush1.bf16.msra.mxu0 %v5242
        %7856 = vmatprep.subr.bf16.mxu0 %v5251
        %7857 = vmatpush1.bf16.msra.mxu0 %v5250
        %7858 = vmatprep.subr.bf16.mxu0 %v5259
        %7859 = vmatpush1.bf16.msra.mxu0 %v5258
        %7860 = vmatprep.subr.bf16.mxu0 %v5267
        %7861 = vmatpush1.bf16.msra.mxu0 %v5266
        %7862 = vmatprep.subr.bf16.mxu0 %v5275
        %7863 = vmatpush1.bf16.msra.mxu0 %v5274
        %7864 = vmatprep.mubr.bf16.mxu0 %v531
        %7865 = vmatmul.mubr.bf16.gmra.mrb[0].mxu0 %v530
        %v7866 = vpop.f32.mrb[0].mxu0
        %v7867 = vadd.f32 %v7826, %v7866
        %v7868 = vpop.f32.mrb[0].mxu0
        %v7869 = vadd.f32 %v7828, %v7868
        %v7870 = vpop.f32.mrb[0].mxu0
        %v7871 = vpop.f32.mrb[0].mxu0
        %7872 = vdwg.mxu0
        %7873 = vmatprep.subr.bf16.mxu0 %v5283
        %7874 = vmatpush1.bf16.msra.mxu0 %v5282
        %7875 = vmatprep.subr.bf16.mxu0 %v5291
        %7876 = vmatpush1.bf16.msra.mxu0 %v5290
        %7877 = vmatprep.subr.bf16.mxu0 %v5299
        %7878 = vmatpush1.bf16.msra.mxu0 %v5298
        %7879 = vmatprep.subr.bf16.mxu0 %v5307
        %7880 = vmatpush1.bf16.msra.mxu0 %v5306
        %7881 = vmatprep.subr.bf16.mxu0 %v5315
        %7882 = vmatpush1.bf16.msra.mxu0 %v5314
        %7883 = vmatprep.subr.bf16.mxu0 %v5323
        %7884 = vmatpush1.bf16.msra.mxu0 %v5322
        %7885 = vmatprep.subr.bf16.mxu0 %v5331
        %7886 = vmatpush1.bf16.msra.mxu0 %v5330
        %7887 = vmatprep.subr.bf16.mxu0 %v5339
        %7888 = vmatpush1.bf16.msra.mxu0 %v5338
        %7889 = vmatprep.subr.bf16.mxu0 %v5347
        %7890 = vmatpush1.bf16.msra.mxu0 %v5346
        %7891 = vmatprep.subr.bf16.mxu0 %v5355
        %7892 = vmatpush1.bf16.msra.mxu0 %v5354
        %7893 = vmatprep.subr.bf16.mxu0 %v5363
        %7894 = vmatpush1.bf16.msra.mxu0 %v5362
        %7895 = vmatprep.subr.bf16.mxu0 %v5371
        %7896 = vmatpush1.bf16.msra.mxu0 %v5370
        %7897 = vmatprep.subr.bf16.mxu0 %v5379
        %7898 = vmatpush1.bf16.msra.mxu0 %v5378
        %7899 = vmatprep.subr.bf16.mxu0 %v5387
        %7900 = vmatpush1.bf16.msra.mxu0 %v5386
        %7901 = vmatprep.subr.bf16.mxu0 %v5395
        %7902 = vmatpush1.bf16.msra.mxu0 %v5394
        %7903 = vmatprep.subr.bf16.mxu0 %v5403
        %7904 = vmatpush1.bf16.msra.mxu0 %v5402
        %7905 = vmatprep.mubr.bf16.mxu0 %v533
        %7906 = vmatmul.mubr.bf16.gmra.mrb[0].mxu0 %v532
        %v7907 = vpop.f32.mrb[0].mxu0
        %v7908 = vadd.f32 %v7867, %v7907
        %v7909 = vpop.f32.mrb[0].mxu0
        %v7910 = vadd.f32 %v7869, %v7909
        %v7911 = vpop.f32.mrb[0].mxu0
        %v7912 = vpop.f32.mrb[0].mxu0
        %7913 = vdwg.mxu0
        %7914 = vmatprep.subr.bf16.mxu0 %v5411
        %7915 = vmatpush1.bf16.msra.mxu0 %v5410
        %7916 = vmatprep.subr.bf16.mxu0 %v5419
        %7917 = vmatpush1.bf16.msra.mxu0 %v5418
        %7918 = vmatprep.subr.bf16.mxu0 %v5427
        %7919 = vmatpush1.bf16.msra.mxu0 %v5426
        %7920 = vmatprep.subr.bf16.mxu0 %v5435
        %7921 = vmatpush1.bf16.msra.mxu0 %v5434
        %7922 = vmatprep.subr.bf16.mxu0 %v5443
        %7923 = vmatpush1.bf16.msra.mxu0 %v5442
        %7924 = vmatprep.subr.bf16.mxu0 %v5451
        %7925 = vmatpush1.bf16.msra.mxu0 %v5450
        %7926 = vmatprep.subr.bf16.mxu0 %v5459
        %7927 = vmatpush1.bf16.msra.mxu0 %v5458
        %7928 = vmatprep.subr.bf16.mxu0 %v5467
        %7929 = vmatpush1.bf16.msra.mxu0 %v5466
        %7930 = vmatprep.subr.bf16.mxu0 %v5475
        %7931 = vmatpush1.bf16.msra.mxu0 %v5474
        %7932 = vmatprep.subr.bf16.mxu0 %v5483
        %7933 = vmatpush1.bf16.msra.mxu0 %v5482
        %7934 = vmatprep.subr.bf16.mxu0 %v5491
        %7935 = vmatpush1.bf16.msra.mxu0 %v5490
        %7936 = vmatprep.subr.bf16.mxu0 %v5499
        %7937 = vmatpush1.bf16.msra.mxu0 %v5498
        %7938 = vmatprep.subr.bf16.mxu0 %v5507
        %7939 = vmatpush1.bf16.msra.mxu0 %v5506
        %7940 = vmatprep.subr.bf16.mxu0 %v5515
        %7941 = vmatpush1.bf16.msra.mxu0 %v5514
        %7942 = vmatprep.subr.bf16.mxu0 %v5523
        %7943 = vmatpush1.bf16.msra.mxu0 %v5522
        %7944 = vmatprep.subr.bf16.mxu0 %v5531
        %7945 = vmatpush1.bf16.msra.mxu0 %v5530
        %7946 = vmatprep.mubr.bf16.mxu0 %v535
        %7947 = vmatmul.mubr.bf16.gmra.mrb[0].mxu0 %v534
        %v7948 = vpop.f32.mrb[0].mxu0
        %v7949 = vadd.f32 %v7908, %v7948
        %v7950 = vpop.f32.mrb[0].mxu0
        %v7951 = vadd.f32 %v7910, %v7950
        %v7952 = vpop.f32.mrb[0].mxu0
        %v7953 = vpop.f32.mrb[0].mxu0
        %7954 = vdwg.mxu0
        %7955 = vmatprep.subr.bf16.mxu0 %v5539
        %7956 = vmatpush1.bf16.msra.mxu0 %v5538
        %7957 = vmatprep.subr.bf16.mxu0 %v5547
        %7958 = vmatpush1.bf16.msra.mxu0 %v5546
        %7959 = vmatprep.subr.bf16.mxu0 %v5555
        %7960 = vmatpush1.bf16.msra.mxu0 %v5554
        %7961 = vmatprep.subr.bf16.mxu0 %v5563
        %7962 = vmatpush1.bf16.msra.mxu0 %v5562
        %7963 = vmatprep.subr.bf16.mxu0 %v5571
        %7964 = vmatpush1.bf16.msra.mxu0 %v5570
        %7965 = vmatprep.subr.bf16.mxu0 %v5579
        %7966 = vmatpush1.bf16.msra.mxu0 %v5578
        %7967 = vmatprep.subr.bf16.mxu0 %v5587
        %7968 = vmatpush1.bf16.msra.mxu0 %v5586
        %7969 = vmatprep.subr.bf16.mxu0 %v5595
        %7970 = vmatpush1.bf16.msra.mxu0 %v5594
        %7971 = vmatprep.subr.bf16.mxu0 %v5603
        %7972 = vmatpush1.bf16.msra.mxu0 %v5602
        %7973 = vmatprep.subr.bf16.mxu0 %v5611
        %7974 = vmatpush1.bf16.msra.mxu0 %v5610
        %7975 = vmatprep.subr.bf16.mxu0 %v5619
        %7976 = vmatpush1.bf16.msra.mxu0 %v5618
        %7977 = vmatprep.subr.bf16.mxu0 %v5627
        %7978 = vmatpush1.bf16.msra.mxu0 %v5626
        %7979 = vmatprep.subr.bf16.mxu0 %v5635
        %7980 = vmatpush1.bf16.msra.mxu0 %v5634
        %7981 = vmatprep.subr.bf16.mxu0 %v5643
        %7982 = vmatpush1.bf16.msra.mxu0 %v5642
        %7983 = vmatprep.subr.bf16.mxu0 %v5651
        %7984 = vmatpush1.bf16.msra.mxu0 %v5650
        %7985 = vmatprep.subr.bf16.mxu0 %v5659
        %7986 = vmatpush1.bf16.msra.mxu0 %v5658
        %7987 = vmatprep.mubr.bf16.mxu0 %v537
        %7988 = vmatmul.mubr.bf16.gmra.mrb[0].mxu0 %v536
        %v7989 = vpop.f32.mrb[0].mxu0
        %v7990 = vadd.f32 %v7949, %v7989
        %v7991 = vpop.f32.mrb[0].mxu0
        %v7992 = vadd.f32 %v7951, %v7991
        %v7993 = vpop.f32.mrb[0].mxu0
        %v7994 = vpop.f32.mrb[0].mxu0
        %7995 = vdwg.mxu0
        %v8004 = vcombine.low %v7006, %v7008
        %v8005 = vcombine.low %v7334, %v7336
        %v8007 = vunpack.c.l.s4 1983009808
        %v8008 = vunpack.c.0.s8 %v8007
        %v8009 = vlaneseq
        %v8010 = vshrl.u32 %v8009, 7
        %v8011 = vsub.s32 %v8008, %v8010
        %v8012 = vrot.slane %v8004, %v8011
        %v8014 = vunpack.c.l.s4 1983009808
        %v8015 = vunpack.c.0.s8 %v8014
        %v8016 = vlaneseq
        %v8017 = vshrl.u32 %v8016, 7
        %v8018 = vsub.s32 %v8015, %v8017
        %v8019 = vrot.slane %v8005, %v8018
        %v8020 = vcombine.low %v8012, %v8019
        %v8021 = vcombine.low %v7662, %v7664
        %v8022 = vcombine.low %v7990, %v7992
        %v8024 = vunpack.c.l.s4 1983009808
        %v8025 = vunpack.c.0.s8 %v8024
        %v8026 = vlaneseq
        %v8027 = vshrl.u32 %v8026, 7
        %v8028 = vsub.s32 %v8025, %v8027
        %v8029 = vrot.slane %v8021, %v8028
        %v8031 = vunpack.c.l.s4 1983009808
        %v8032 = vunpack.c.0.s8 %v8031
        %v8033 = vlaneseq
        %v8034 = vshrl.u32 %v8033, 7
        %v8035 = vsub.s32 %v8032, %v8034
        %v8036 = vrot.slane %v8022, %v8035
        %v8037 = vcombine.low %v8029, %v8036
        %v8040 = vadd.f32 %v538, %v8020
        %v8041 = vadd.f32 %v539, %v8037
        %8042 = vst [vmem:[#allocation2] sm:$0xff] %v8040
        %8043 = vst [vmem:[#allocation2 + $0x8] sm:$0xff] %v8041
        %p8044 = scmp.eq.s32.totalorder %s27, 1
        // Predicated region
        $region89: #{tpu_custom_call.1} parent=55 // pred_check
          %p8045 = pneg %p8044
        $region90: #{tpu_custom_call.1} parent=55 // pred_check_branch
          %8047 = sbr.rel (%p8045) target = $region92
        $region91: #{tpu_custom_call.1} parent=55 // pred_region
          %v8048 = vld [vmem:[#allocation2] sm:$0xff]
          %v8049 = vld [vmem:[#allocation2 + $0x8] sm:$0xff]
          %v8050 = vld [vmem:[#allocation8] sm:$0xff]
          %v8052 = vlaneseq
          %v8053 = vshrl.u32 %v8052, 7
          %v8054 = vsub.s32 0, %v8053
          %v8055 = vrot.slane %v8050, %v8054
          %v8056 = vlaneseq
          %v8057 = vshrl.u32 %v8056, 7
          %v8058 = vsub.s32 1, %v8057
          %v8059 = vrot.slane %v8050, %v8058
          %v8060 = vlaneseq
          %v8061 = vshrl.u32 %v8060, 7
          %v8062 = vsub.s32 2, %v8061
          %v8063 = vrot.slane %v8050, %v8062
          %v8064 = vlaneseq
          %v8065 = vshrl.u32 %v8064, 7
          %v8066 = vsub.s32 3, %v8065
          %v8067 = vrot.slane %v8050, %v8066
          %v8068 = vlaneseq
          %v8069 = vshrl.u32 %v8068, 7
          %v8070 = vsub.s32 4, %v8069
          %v8071 = vrot.slane %v8050, %v8070
          %v8072 = vlaneseq
          %v8073 = vshrl.u32 %v8072, 7
          %v8074 = vsub.s32 5, %v8073
          %v8075 = vrot.slane %v8050, %v8074
          %v8076 = vlaneseq
          %v8077 = vshrl.u32 %v8076, 7
          %v8078 = vsub.s32 6, %v8077
          %v8079 = vrot.slane %v8050, %v8078
          %v8080 = vlaneseq
          %v8081 = vshrl.u32 %v8080, 7
          %v8082 = vsub.s32 7, %v8081
          %v8083 = vrot.slane %v8050, %v8082
          %v8084 = vcombine.low %v8055, %v8059
          %v8085 = vcombine.low %v8063, %v8067
          %v8087 = vunpack.c.l.s4 1983009808
          %v8088 = vunpack.c.0.s8 %v8087
          %v8089 = vlaneseq
          %v8090 = vshrl.u32 %v8089, 7
          %v8091 = vsub.s32 %v8088, %v8090
          %v8092 = vrot.slane %v8084, %v8091
          %v8094 = vunpack.c.l.s4 1983009808
          %v8095 = vunpack.c.0.s8 %v8094
          %v8096 = vlaneseq
          %v8097 = vshrl.u32 %v8096, 7
          %v8098 = vsub.s32 %v8095, %v8097
          %v8099 = vrot.slane %v8085, %v8098
          %v8100 = vcombine.low %v8092, %v8099
          %v8101 = vcombine.low %v8071, %v8075
          %v8102 = vcombine.low %v8079, %v8083
          %v8104 = vunpack.c.l.s4 1983009808
          %v8105 = vunpack.c.0.s8 %v8104
          %v8106 = vlaneseq
          %v8107 = vshrl.u32 %v8106, 7
          %v8108 = vsub.s32 %v8105, %v8107
          %v8109 = vrot.slane %v8101, %v8108
          %v8111 = vunpack.c.l.s4 1983009808
          %v8112 = vunpack.c.0.s8 %v8111
          %v8113 = vlaneseq
          %v8114 = vshrl.u32 %v8113, 7
          %v8115 = vsub.s32 %v8112, %v8114
          %v8116 = vrot.slane %v8102, %v8115
          %v8117 = vcombine.low %v8109, %v8116
          %v8120 = vadd.f32 %v8048, %v8100
          %v8121 = vadd.f32 %v8049, %v8117
          %v8122 = vmax.f32 %v8120, 0.0
          %v8123 = vmax.f32 %v8121, 0.0
          %v8126 = vcombine.high %v8122, %v8122
          %v8128 = vunpack.c.l.s4 1983009808
          %v8129 = vunpack.c.0.s8 %v8128
          %v8130 = vlaneseq
          %v8131 = vshrl.u32 %v8130, 7
          %v8132 = vsub.s32 %v8129, %v8131
          %v8133 = vrot.slane %v8122, %v8132
          %v8135 = vunpack.c.l.s4 1983009808
          %v8136 = vunpack.c.0.s8 %v8135
          %v8137 = vlaneseq
          %v8138 = vshrl.u32 %v8137, 7
          %v8139 = vsub.s32 %v8136, %v8138
          %v8140 = vrot.slane %v8126, %v8139
          %v8141 = vcombine.high %v8133, %v8133
          %v8142 = vcombine.high %v8140, %v8140
          %v8143 = vcombine.high %v8123, %v8123
          %v8145 = vunpack.c.l.s4 1983009808
          %v8146 = vunpack.c.0.s8 %v8145
          %v8147 = vlaneseq
          %v8148 = vshrl.u32 %v8147, 7
          %v8149 = vsub.s32 %v8146, %v8148
          %v8150 = vrot.slane %v8123, %v8149
          %v8152 = vunpack.c.l.s4 1983009808
          %v8153 = vunpack.c.0.s8 %v8152
          %v8154 = vlaneseq
          %v8155 = vshrl.u32 %v8154, 7
          %v8156 = vsub.s32 %v8153, %v8155
          %v8157 = vrot.slane %v8143, %v8156
          %v8158 = vcombine.high %v8150, %v8150
          %v8159 = vcombine.high %v8157, %v8157
          %v8168 = vpack.c.bf16 %v8133, %v8133
          %v8169 = vpack.c.bf16 %v8141, %v8141
          %v8170 = vpack.c.bf16 %v8140, %v8140
          %v8171 = vpack.c.bf16 %v8142, %v8142
          %v8172 = vpack.c.bf16 %v8150, %v8150
          %v8173 = vpack.c.bf16 %v8158, %v8158
          %v8174 = vpack.c.bf16 %v8157, %v8157
          %v8175 = vpack.c.bf16 %v8159, %v8159
          %v8176 = vld [vmem:[#allocation9] sm:$0xff]
          %v8177 = vld [vmem:[#allocation9 + $0x8] sm:$0xff]
          %v8178 = vld [vmem:[#allocation9 + $0x10] sm:$0xff]
          %v8179 = vld [vmem:[#allocation9 + $0x18] sm:$0xff]
          %v8180 = vld [vmem:[#allocation9 + $0x20] sm:$0xff]
          %v8181 = vld [vmem:[#allocation9 + $0x28] sm:$0xff]
          %v8182 = vld [vmem:[#allocation9 + $0x30] sm:$0xff]
          %v8183 = vld [vmem:[#allocation9 + $0x38] sm:$0xff]
          %v8184 = vld [vmem:[#allocation9 + $0x40] sm:$0xff]
          %v8185 = vld [vmem:[#allocation9 + $0x48] sm:$0xff]
          %v8186 = vld [vmem:[#allocation9 + $0x50] sm:$0xff]
          %v8187 = vld [vmem:[#allocation9 + $0x58] sm:$0xff]
          %v8188 = vld [vmem:[#allocation9 + $0x60] sm:$0xff]
          %v8189 = vld [vmem:[#allocation9 + $0x68] sm:$0xff]
          %v8190 = vld [vmem:[#allocation9 + $0x70] sm:$0xff]
          %v8191 = vld [vmem:[#allocation9 + $0x78] sm:$0xff]
          %v8192 = vld [vmem:[#allocation9 + $0x80] sm:$0xff]
          %v8193 = vld [vmem:[#allocation9 + $0x88] sm:$0xff]
          %v8194 = vld [vmem:[#allocation9 + $0x90] sm:$0xff]
          %v8195 = vld [vmem:[#allocation9 + $0x98] sm:$0xff]
          %v8196 = vld [vmem:[#allocation9 + $0xa0] sm:$0xff]
          %v8197 = vld [vmem:[#allocation9 + $0xa8] sm:$0xff]
          %v8198 = vld [vmem:[#allocation9 + $0xb0] sm:$0xff]
          %v8199 = vld [vmem:[#allocation9 + $0xb8] sm:$0xff]
          %v8200 = vld [vmem:[#allocation9 + $0xc0] sm:$0xff]
          %v8201 = vld [vmem:[#allocation9 + $0xc8] sm:$0xff]
          %v8202 = vld [vmem:[#allocation9 + $0xd0] sm:$0xff]
          %v8203 = vld [vmem:[#allocation9 + $0xd8] sm:$0xff]
          %v8204 = vld [vmem:[#allocation9 + $0xe0] sm:$0xff]
          %v8205 = vld [vmem:[#allocation9 + $0xe8] sm:$0xff]
          %v8206 = vld [vmem:[#allocation9 + $0xf0] sm:$0xff]
          %v8207 = vld [vmem:[#allocation9 + $0xf8] sm:$0xff]
          %v8208 = vld [vmem:[#allocation9 + $0x100] sm:$0xff]
          %v8209 = vld [vmem:[#allocation9 + $0x108] sm:$0xff]
          %v8210 = vld [vmem:[#allocation9 + $0x110] sm:$0xff]
          %v8211 = vld [vmem:[#allocation9 + $0x118] sm:$0xff]
          %v8212 = vld [vmem:[#allocation9 + $0x120] sm:$0xff]
          %v8213 = vld [vmem:[#allocation9 + $0x128] sm:$0xff]
          %v8214 = vld [vmem:[#allocation9 + $0x130] sm:$0xff]
          %v8215 = vld [vmem:[#allocation9 + $0x138] sm:$0xff]
          %v8216 = vld [vmem:[#allocation9 + $0x140] sm:$0xff]
          %v8217 = vld [vmem:[#allocation9 + $0x148] sm:$0xff]
          %v8218 = vld [vmem:[#allocation9 + $0x150] sm:$0xff]
          %v8219 = vld [vmem:[#allocation9 + $0x158] sm:$0xff]
          %v8220 = vld [vmem:[#allocation9 + $0x160] sm:$0xff]
          %v8221 = vld [vmem:[#allocation9 + $0x168] sm:$0xff]
          %v8222 = vld [vmem:[#allocation9 + $0x170] sm:$0xff]
          %v8223 = vld [vmem:[#allocation9 + $0x178] sm:$0xff]
          %v8224 = vld [vmem:[#allocation9 + $0x180] sm:$0xff]
          %v8225 = vld [vmem:[#allocation9 + $0x188] sm:$0xff]
          %v8226 = vld [vmem:[#allocation9 + $0x190] sm:$0xff]
          %v8227 = vld [vmem:[#allocation9 + $0x198] sm:$0xff]
          %v8228 = vld [vmem:[#allocation9 + $0x1a0] sm:$0xff]
          %v8229 = vld [vmem:[#allocation9 + $0x1a8] sm:$0xff]
          %v8230 = vld [vmem:[#allocation9 + $0x1b0] sm:$0xff]
          %v8231 = vld [vmem:[#allocation9 + $0x1b8] sm:$0xff]
          %v8232 = vld [vmem:[#allocation9 + $0x1c0] sm:$0xff]
          %v8233 = vld [vmem:[#allocation9 + $0x1c8] sm:$0xff]
          %v8234 = vld [vmem:[#allocation9 + $0x1d0] sm:$0xff]
          %v8235 = vld [vmem:[#allocation9 + $0x1d8] sm:$0xff]
          %v8236 = vld [vmem:[#allocation9 + $0x1e0] sm:$0xff]
          %v8237 = vld [vmem:[#allocation9 + $0x1e8] sm:$0xff]
          %v8238 = vld [vmem:[#allocation9 + $0x1f0] sm:$0xff]
          %v8239 = vld [vmem:[#allocation9 + $0x1f8] sm:$0xff]
          %v8240 = vld [vmem:[#allocation9 + $0x200] sm:$0xff]
          %v8241 = vld [vmem:[#allocation9 + $0x208] sm:$0xff]
          %v8242 = vld [vmem:[#allocation9 + $0x210] sm:$0xff]
          %v8243 = vld [vmem:[#allocation9 + $0x218] sm:$0xff]
          %v8244 = vld [vmem:[#allocation9 + $0x220] sm:$0xff]
          %v8245 = vld [vmem:[#allocation9 + $0x228] sm:$0xff]
          %v8246 = vld [vmem:[#allocation9 + $0x230] sm:$0xff]
          %v8247 = vld [vmem:[#allocation9 + $0x238] sm:$0xff]
          %v8248 = vld [vmem:[#allocation9 + $0x240] sm:$0xff]
          %v8249 = vld [vmem:[#allocation9 + $0x248] sm:$0xff]
          %v8250 = vld [vmem:[#allocation9 + $0x250] sm:$0xff]
          %v8251 = vld [vmem:[#allocation9 + $0x258] sm:$0xff]
          %v8252 = vld [vmem:[#allocation9 + $0x260] sm:$0xff]
          %v8253 = vld [vmem:[#allocation9 + $0x268] sm:$0xff]
          %v8254 = vld [vmem:[#allocation9 + $0x270] sm:$0xff]
          %v8255 = vld [vmem:[#allocation9 + $0x278] sm:$0xff]
          %v8256 = vld [vmem:[#allocation9 + $0x280] sm:$0xff]
          %v8257 = vld [vmem:[#allocation9 + $0x288] sm:$0xff]
          %v8258 = vld [vmem:[#allocation9 + $0x290] sm:$0xff]
          %v8259 = vld [vmem:[#allocation9 + $0x298] sm:$0xff]
          %v8260 = vld [vmem:[#allocation9 + $0x2a0] sm:$0xff]
          %v8261 = vld [vmem:[#allocation9 + $0x2a8] sm:$0xff]
          %v8262 = vld [vmem:[#allocation9 + $0x2b0] sm:$0xff]
          %v8263 = vld [vmem:[#allocation9 + $0x2b8] sm:$0xff]
          %v8264 = vld [vmem:[#allocation9 + $0x2c0] sm:$0xff]
          %v8265 = vld [vmem:[#allocation9 + $0x2c8] sm:$0xff]
          %v8266 = vld [vmem:[#allocation9 + $0x2d0] sm:$0xff]
          %v8267 = vld [vmem:[#allocation9 + $0x2d8] sm:$0xff]
          %v8268 = vld [vmem:[#allocation9 + $0x2e0] sm:$0xff]
          %v8269 = vld [vmem:[#allocation9 + $0x2e8] sm:$0xff]
          %v8270 = vld [vmem:[#allocation9 + $0x2f0] sm:$0xff]
          %v8271 = vld [vmem:[#allocation9 + $0x2f8] sm:$0xff]
          %v8272 = vld [vmem:[#allocation9 + $0x300] sm:$0xff]
          %v8273 = vld [vmem:[#allocation9 + $0x308] sm:$0xff]
          %v8274 = vld [vmem:[#allocation9 + $0x310] sm:$0xff]
          %v8275 = vld [vmem:[#allocation9 + $0x318] sm:$0xff]
          %v8276 = vld [vmem:[#allocation9 + $0x320] sm:$0xff]
          %v8277 = vld [vmem:[#allocation9 + $0x328] sm:$0xff]
          %v8278 = vld [vmem:[#allocation9 + $0x330] sm:$0xff]
          %v8279 = vld [vmem:[#allocation9 + $0x338] sm:$0xff]
          %v8280 = vld [vmem:[#allocation9 + $0x340] sm:$0xff]
          %v8281 = vld [vmem:[#allocation9 + $0x348] sm:$0xff]
          %v8282 = vld [vmem:[#allocation9 + $0x350] sm:$0xff]
          %v8283 = vld [vmem:[#allocation9 + $0x358] sm:$0xff]
          %v8284 = vld [vmem:[#allocation9 + $0x360] sm:$0xff]
          %v8285 = vld [vmem:[#allocation9 + $0x368] sm:$0xff]
          %v8286 = vld [vmem:[#allocation9 + $0x370] sm:$0xff]
          %v8287 = vld [vmem:[#allocation9 + $0x378] sm:$0xff]
          %v8288 = vld [vmem:[#allocation9 + $0x380] sm:$0xff]
          %v8289 = vld [vmem:[#allocation9 + $0x388] sm:$0xff]
          %v8290 = vld [vmem:[#allocation9 + $0x390] sm:$0xff]
          %v8291 = vld [vmem:[#allocation9 + $0x398] sm:$0xff]
          %v8292 = vld [vmem:[#allocation9 + $0x3a0] sm:$0xff]
          %v8293 = vld [vmem:[#allocation9 + $0x3a8] sm:$0xff]
          %v8294 = vld [vmem:[#allocation9 + $0x3b0] sm:$0xff]
          %v8295 = vld [vmem:[#allocation9 + $0x3b8] sm:$0xff]
          %v8296 = vld [vmem:[#allocation9 + $0x3c0] sm:$0xff]
          %v8297 = vld [vmem:[#allocation9 + $0x3c8] sm:$0xff]
          %v8298 = vld [vmem:[#allocation9 + $0x3d0] sm:$0xff]
          %v8299 = vld [vmem:[#allocation9 + $0x3d8] sm:$0xff]
          %v8300 = vld [vmem:[#allocation9 + $0x3e0] sm:$0xff]
          %v8301 = vld [vmem:[#allocation9 + $0x3e8] sm:$0xff]
          %v8302 = vld [vmem:[#allocation9 + $0x3f0] sm:$0xff]
          %v8303 = vld [vmem:[#allocation9 + $0x3f8] sm:$0xff]
          %v8304 = vld [vmem:[#allocation11] sm:$0x3]
          %v8306 = vlaneseq
          %v8307 = vshrl.u32 %v8306, 7
          %v8308 = vsub.s32 0, %v8307
          %v8309 = vrot.slane %v8304, %v8308
          %v8310 = vlaneseq
          %v8311 = vshrl.u32 %v8310, 7
          %v8312 = vsub.s32 1, %v8311
          %v8313 = vrot.slane %v8304, %v8312
          %v8444 = vunpack.c.l.b16 %v8176
          %v8445 = vunpack.c.h.b16 %v8176
          %v8446 = vunpack.c.l.b16 %v8177
          %v8447 = vunpack.c.h.b16 %v8177
          %v8448 = vunpack.c.l.b16 %v8178
          %v8449 = vunpack.c.h.b16 %v8178
          %v8450 = vunpack.c.l.b16 %v8179
          %v8451 = vunpack.c.h.b16 %v8179
          %v8452 = vunpack.c.l.b16 %v8180
          %v8453 = vunpack.c.h.b16 %v8180
          %v8454 = vunpack.c.l.b16 %v8181
          %v8455 = vunpack.c.h.b16 %v8181
          %v8456 = vunpack.c.l.b16 %v8182
          %v8457 = vunpack.c.h.b16 %v8182
          %v8458 = vunpack.c.l.b16 %v8183
          %v8459 = vunpack.c.h.b16 %v8183
          %v8460 = vunpack.c.l.b16 %v8184
          %v8461 = vunpack.c.h.b16 %v8184
          %v8462 = vunpack.c.l.b16 %v8185
          %v8463 = vunpack.c.h.b16 %v8185
          %v8464 = vunpack.c.l.b16 %v8186
          %v8465 = vunpack.c.h.b16 %v8186
          %v8466 = vunpack.c.l.b16 %v8187
          %v8467 = vunpack.c.h.b16 %v8187
          %v8468 = vunpack.c.l.b16 %v8188
          %v8469 = vunpack.c.h.b16 %v8188
          %v8470 = vunpack.c.l.b16 %v8189
          %v8471 = vunpack.c.h.b16 %v8189
          %v8472 = vunpack.c.l.b16 %v8190
          %v8473 = vunpack.c.h.b16 %v8190
          %v8474 = vunpack.c.l.b16 %v8191
          %v8475 = vunpack.c.h.b16 %v8191
          %v8476 = vunpack.c.l.b16 %v8192
          %v8477 = vunpack.c.h.b16 %v8192
          %v8478 = vunpack.c.l.b16 %v8193
          %v8479 = vunpack.c.h.b16 %v8193
          %v8480 = vunpack.c.l.b16 %v8194
          %v8481 = vunpack.c.h.b16 %v8194
          %v8482 = vunpack.c.l.b16 %v8195
          %v8483 = vunpack.c.h.b16 %v8195
          %v8484 = vunpack.c.l.b16 %v8196
          %v8485 = vunpack.c.h.b16 %v8196
          %v8486 = vunpack.c.l.b16 %v8197
          %v8487 = vunpack.c.h.b16 %v8197
          %v8488 = vunpack.c.l.b16 %v8198
          %v8489 = vunpack.c.h.b16 %v8198
          %v8490 = vunpack.c.l.b16 %v8199
          %v8491 = vunpack.c.h.b16 %v8199
          %v8492 = vunpack.c.l.b16 %v8200
          %v8493 = vunpack.c.h.b16 %v8200
          %v8494 = vunpack.c.l.b16 %v8201
          %v8495 = vunpack.c.h.b16 %v8201
          %v8496 = vunpack.c.l.b16 %v8202
          %v8497 = vunpack.c.h.b16 %v8202
          %v8498 = vunpack.c.l.b16 %v8203
          %v8499 = vunpack.c.h.b16 %v8203
          %v8500 = vunpack.c.l.b16 %v8204
          %v8501 = vunpack.c.h.b16 %v8204
          %v8502 = vunpack.c.l.b16 %v8205
          %v8503 = vunpack.c.h.b16 %v8205
          %v8504 = vunpack.c.l.b16 %v8206
          %v8505 = vunpack.c.h.b16 %v8206
          %v8506 = vunpack.c.l.b16 %v8207
          %v8507 = vunpack.c.h.b16 %v8207
          %v8508 = vunpack.c.l.b16 %v8208
          %v8509 = vunpack.c.h.b16 %v8208
          %v8510 = vunpack.c.l.b16 %v8209
          %v8511 = vunpack.c.h.b16 %v8209
          %v8512 = vunpack.c.l.b16 %v8210
          %v8513 = vunpack.c.h.b16 %v8210
          %v8514 = vunpack.c.l.b16 %v8211
          %v8515 = vunpack.c.h.b16 %v8211
          %v8516 = vunpack.c.l.b16 %v8212
          %v8517 = vunpack.c.h.b16 %v8212
          %v8518 = vunpack.c.l.b16 %v8213
          %v8519 = vunpack.c.h.b16 %v8213
          %v8520 = vunpack.c.l.b16 %v8214
          %v8521 = vunpack.c.h.b16 %v8214
          %v8522 = vunpack.c.l.b16 %v8215
          %v8523 = vunpack.c.h.b16 %v8215
          %v8524 = vunpack.c.l.b16 %v8216
          %v8525 = vunpack.c.h.b16 %v8216
          %v8526 = vunpack.c.l.b16 %v8217
          %v8527 = vunpack.c.h.b16 %v8217
          %v8528 = vunpack.c.l.b16 %v8218
          %v8529 = vunpack.c.h.b16 %v8218
          %v8530 = vunpack.c.l.b16 %v8219
          %v8531 = vunpack.c.h.b16 %v8219
          %v8532 = vunpack.c.l.b16 %v8220
          %v8533 = vunpack.c.h.b16 %v8220
          %v8534 = vunpack.c.l.b16 %v8221
          %v8535 = vunpack.c.h.b16 %v8221
          %v8536 = vunpack.c.l.b16 %v8222
          %v8537 = vunpack.c.h.b16 %v8222
          %v8538 = vunpack.c.l.b16 %v8223
          %v8539 = vunpack.c.h.b16 %v8223
          %v8540 = vunpack.c.l.b16 %v8224
          %v8541 = vunpack.c.h.b16 %v8224
          %v8542 = vunpack.c.l.b16 %v8225
          %v8543 = vunpack.c.h.b16 %v8225
          %v8544 = vunpack.c.l.b16 %v8226
          %v8545 = vunpack.c.h.b16 %v8226
          %v8546 = vunpack.c.l.b16 %v8227
          %v8547 = vunpack.c.h.b16 %v8227
          %v8548 = vunpack.c.l.b16 %v8228
          %v8549 = vunpack.c.h.b16 %v8228
          %v8550 = vunpack.c.l.b16 %v8229
          %v8551 = vunpack.c.h.b16 %v8229
          %v8552 = vunpack.c.l.b16 %v8230
          %v8553 = vunpack.c.h.b16 %v8230
          %v8554 = vunpack.c.l.b16 %v8231
          %v8555 = vunpack.c.h.b16 %v8231
          %v8556 = vunpack.c.l.b16 %v8232
          %v8557 = vunpack.c.h.b16 %v8232
          %v8558 = vunpack.c.l.b16 %v8233
          %v8559 = vunpack.c.h.b16 %v8233
          %v8560 = vunpack.c.l.b16 %v8234
          %v8561 = vunpack.c.h.b16 %v8234
          %v8562 = vunpack.c.l.b16 %v8235
          %v8563 = vunpack.c.h.b16 %v8235
          %v8564 = vunpack.c.l.b16 %v8236
          %v8565 = vunpack.c.h.b16 %v8236
          %v8566 = vunpack.c.l.b16 %v8237
          %v8567 = vunpack.c.h.b16 %v8237
          %v8568 = vunpack.c.l.b16 %v8238
          %v8569 = vunpack.c.h.b16 %v8238
          %v8570 = vunpack.c.l.b16 %v8239
          %v8571 = vunpack.c.h.b16 %v8239
          %v8572 = vunpack.c.l.b16 %v8240
          %v8573 = vunpack.c.h.b16 %v8240
          %v8574 = vunpack.c.l.b16 %v8241
          %v8575 = vunpack.c.h.b16 %v8241
          %v8576 = vunpack.c.l.b16 %v8242
          %v8577 = vunpack.c.h.b16 %v8242
          %v8578 = vunpack.c.l.b16 %v8243
          %v8579 = vunpack.c.h.b16 %v8243
          %v8580 = vunpack.c.l.b16 %v8244
          %v8581 = vunpack.c.h.b16 %v8244
          %v8582 = vunpack.c.l.b16 %v8245
          %v8583 = vunpack.c.h.b16 %v8245
          %v8584 = vunpack.c.l.b16 %v8246
          %v8585 = vunpack.c.h.b16 %v8246
          %v8586 = vunpack.c.l.b16 %v8247
          %v8587 = vunpack.c.h.b16 %v8247
          %v8588 = vunpack.c.l.b16 %v8248
          %v8589 = vunpack.c.h.b16 %v8248
          %v8590 = vunpack.c.l.b16 %v8249
          %v8591 = vunpack.c.h.b16 %v8249
          %v8592 = vunpack.c.l.b16 %v8250
          %v8593 = vunpack.c.h.b16 %v8250
          %v8594 = vunpack.c.l.b16 %v8251
          %v8595 = vunpack.c.h.b16 %v8251
          %v8596 = vunpack.c.l.b16 %v8252
          %v8597 = vunpack.c.h.b16 %v8252
          %v8598 = vunpack.c.l.b16 %v8253
          %v8599 = vunpack.c.h.b16 %v8253
          %v8600 = vunpack.c.l.b16 %v8254
          %v8601 = vunpack.c.h.b16 %v8254
          %v8602 = vunpack.c.l.b16 %v8255
          %v8603 = vunpack.c.h.b16 %v8255
          %v8604 = vunpack.c.l.b16 %v8256
          %v8605 = vunpack.c.h.b16 %v8256
          %v8606 = vunpack.c.l.b16 %v8257
          %v8607 = vunpack.c.h.b16 %v8257
          %v8608 = vunpack.c.l.b16 %v8258
          %v8609 = vunpack.c.h.b16 %v8258
          %v8610 = vunpack.c.l.b16 %v8259
          %v8611 = vunpack.c.h.b16 %v8259
          %v8612 = vunpack.c.l.b16 %v8260
          %v8613 = vunpack.c.h.b16 %v8260
          %v8614 = vunpack.c.l.b16 %v8261
          %v8615 = vunpack.c.h.b16 %v8261
          %v8616 = vunpack.c.l.b16 %v8262
          %v8617 = vunpack.c.h.b16 %v8262
          %v8618 = vunpack.c.l.b16 %v8263
          %v8619 = vunpack.c.h.b16 %v8263
          %v8620 = vunpack.c.l.b16 %v8264
          %v8621 = vunpack.c.h.b16 %v8264
          %v8622 = vunpack.c.l.b16 %v8265
          %v8623 = vunpack.c.h.b16 %v8265
          %v8624 = vunpack.c.l.b16 %v8266
          %v8625 = vunpack.c.h.b16 %v8266
          %v8626 = vunpack.c.l.b16 %v8267
          %v8627 = vunpack.c.h.b16 %v8267
          %v8628 = vunpack.c.l.b16 %v8268
          %v8629 = vunpack.c.h.b16 %v8268
          %v8630 = vunpack.c.l.b16 %v8269
          %v8631 = vunpack.c.h.b16 %v8269
          %v8632 = vunpack.c.l.b16 %v8270
          %v8633 = vunpack.c.h.b16 %v8270
          %v8634 = vunpack.c.l.b16 %v8271
          %v8635 = vunpack.c.h.b16 %v8271
          %v8636 = vunpack.c.l.b16 %v8272
          %v8637 = vunpack.c.h.b16 %v8272
          %v8638 = vunpack.c.l.b16 %v8273
          %v8639 = vunpack.c.h.b16 %v8273
          %v8640 = vunpack.c.l.b16 %v8274
          %v8641 = vunpack.c.h.b16 %v8274
          %v8642 = vunpack.c.l.b16 %v8275
          %v8643 = vunpack.c.h.b16 %v8275
          %v8644 = vunpack.c.l.b16 %v8276
          %v8645 = vunpack.c.h.b16 %v8276
          %v8646 = vunpack.c.l.b16 %v8277
          %v8647 = vunpack.c.h.b16 %v8277
          %v8648 = vunpack.c.l.b16 %v8278
          %v8649 = vunpack.c.h.b16 %v8278
          %v8650 = vunpack.c.l.b16 %v8279
          %v8651 = vunpack.c.h.b16 %v8279
          %v8652 = vunpack.c.l.b16 %v8280
          %v8653 = vunpack.c.h.b16 %v8280
          %v8654 = vunpack.c.l.b16 %v8281
          %v8655 = vunpack.c.h.b16 %v8281
          %v8656 = vunpack.c.l.b16 %v8282
          %v8657 = vunpack.c.h.b16 %v8282
          %v8658 = vunpack.c.l.b16 %v8283
          %v8659 = vunpack.c.h.b16 %v8283
          %v8660 = vunpack.c.l.b16 %v8284
          %v8661 = vunpack.c.h.b16 %v8284
          %v8662 = vunpack.c.l.b16 %v8285
          %v8663 = vunpack.c.h.b16 %v8285
          %v8664 = vunpack.c.l.b16 %v8286
          %v8665 = vunpack.c.h.b16 %v8286
          %v8666 = vunpack.c.l.b16 %v8287
          %v8667 = vunpack.c.h.b16 %v8287
          %v8668 = vunpack.c.l.b16 %v8288
          %v8669 = vunpack.c.h.b16 %v8288
          %v8670 = vunpack.c.l.b16 %v8289
          %v8671 = vunpack.c.h.b16 %v8289
          %v8672 = vunpack.c.l.b16 %v8290
          %v8673 = vunpack.c.h.b16 %v8290
          %v8674 = vunpack.c.l.b16 %v8291
          %v8675 = vunpack.c.h.b16 %v8291
          %v8676 = vunpack.c.l.b16 %v8292
          %v8677 = vunpack.c.h.b16 %v8292
          %v8678 = vunpack.c.l.b16 %v8293
          %v8679 = vunpack.c.h.b16 %v8293
          %v8680 = vunpack.c.l.b16 %v8294
          %v8681 = vunpack.c.h.b16 %v8294
          %v8682 = vunpack.c.l.b16 %v8295
          %v8683 = vunpack.c.h.b16 %v8295
          %v8684 = vunpack.c.l.b16 %v8296
          %v8685 = vunpack.c.h.b16 %v8296
          %v8686 = vunpack.c.l.b16 %v8297
          %v8687 = vunpack.c.h.b16 %v8297
          %v8688 = vunpack.c.l.b16 %v8298
          %v8689 = vunpack.c.h.b16 %v8298
          %v8690 = vunpack.c.l.b16 %v8299
          %v8691 = vunpack.c.h.b16 %v8299
          %v8692 = vunpack.c.l.b16 %v8300
          %v8693 = vunpack.c.h.b16 %v8300
          %v8694 = vunpack.c.l.b16 %v8301
          %v8695 = vunpack.c.h.b16 %v8301
          %v8696 = vunpack.c.l.b16 %v8302
          %v8697 = vunpack.c.h.b16 %v8302
          %v8698 = vunpack.c.l.b16 %v8303
          %v8699 = vunpack.c.h.b16 %v8303
          %v8700 = vpack.c.b16 %v8446, %v8444
          %v8701 = vpack.c.b16 %v8447, %v8445
          %v8702 = vpack.c.b16 %v8450, %v8448
          %v8703 = vpack.c.b16 %v8451, %v8449
          %v8704 = vpack.c.b16 %v8454, %v8452
          %v8705 = vpack.c.b16 %v8455, %v8453
          %v8706 = vpack.c.b16 %v8458, %v8456
          %v8707 = vpack.c.b16 %v8459, %v8457
          %v8708 = vpack.c.b16 %v8462, %v8460
          %v8709 = vpack.c.b16 %v8463, %v8461
          %v8710 = vpack.c.b16 %v8466, %v8464
          %v8711 = vpack.c.b16 %v8467, %v8465
          %v8712 = vpack.c.b16 %v8470, %v8468
          %v8713 = vpack.c.b16 %v8471, %v8469
          %v8714 = vpack.c.b16 %v8474, %v8472
          %v8715 = vpack.c.b16 %v8475, %v8473
          %v8716 = vpack.c.b16 %v8478, %v8476
          %v8717 = vpack.c.b16 %v8479, %v8477
          %v8718 = vpack.c.b16 %v8482, %v8480
          %v8719 = vpack.c.b16 %v8483, %v8481
          %v8720 = vpack.c.b16 %v8486, %v8484
          %v8721 = vpack.c.b16 %v8487, %v8485
          %v8722 = vpack.c.b16 %v8490, %v8488
          %v8723 = vpack.c.b16 %v8491, %v8489
          %v8724 = vpack.c.b16 %v8494, %v8492
          %v8725 = vpack.c.b16 %v8495, %v8493
          %v8726 = vpack.c.b16 %v8498, %v8496
          %v8727 = vpack.c.b16 %v8499, %v8497
          %v8728 = vpack.c.b16 %v8502, %v8500
          %v8729 = vpack.c.b16 %v8503, %v8501
          %v8730 = vpack.c.b16 %v8506, %v8504
          %v8731 = vpack.c.b16 %v8507, %v8505
          %v8732 = vpack.c.b16 %v8510, %v8508
          %v8733 = vpack.c.b16 %v8511, %v8509
          %v8734 = vpack.c.b16 %v8514, %v8512
          %v8735 = vpack.c.b16 %v8515, %v8513
          %v8736 = vpack.c.b16 %v8518, %v8516
          %v8737 = vpack.c.b16 %v8519, %v8517
          %v8738 = vpack.c.b16 %v8522, %v8520
          %v8739 = vpack.c.b16 %v8523, %v8521
          %v8740 = vpack.c.b16 %v8526, %v8524
          %v8741 = vpack.c.b16 %v8527, %v8525
          %v8742 = vpack.c.b16 %v8530, %v8528
          %v8743 = vpack.c.b16 %v8531, %v8529
          %v8744 = vpack.c.b16 %v8534, %v8532
          %v8745 = vpack.c.b16 %v8535, %v8533
          %v8746 = vpack.c.b16 %v8538, %v8536
          %v8747 = vpack.c.b16 %v8539, %v8537
          %v8748 = vpack.c.b16 %v8542, %v8540
          %v8749 = vpack.c.b16 %v8543, %v8541
          %v8750 = vpack.c.b16 %v8546, %v8544
          %v8751 = vpack.c.b16 %v8547, %v8545
          %v8752 = vpack.c.b16 %v8550, %v8548
          %v8753 = vpack.c.b16 %v8551, %v8549
          %v8754 = vpack.c.b16 %v8554, %v8552
          %v8755 = vpack.c.b16 %v8555, %v8553
          %v8756 = vpack.c.b16 %v8558, %v8556
          %v8757 = vpack.c.b16 %v8559, %v8557
          %v8758 = vpack.c.b16 %v8562, %v8560
          %v8759 = vpack.c.b16 %v8563, %v8561
          %v8760 = vpack.c.b16 %v8566, %v8564
          %v8761 = vpack.c.b16 %v8567, %v8565
          %v8762 = vpack.c.b16 %v8570, %v8568
          %v8763 = vpack.c.b16 %v8571, %v8569
          %v8764 = vpack.c.b16 %v8574, %v8572
          %v8765 = vpack.c.b16 %v8575, %v8573
          %v8766 = vpack.c.b16 %v8578, %v8576
          %v8767 = vpack.c.b16 %v8579, %v8577
          %v8768 = vpack.c.b16 %v8582, %v8580
          %v8769 = vpack.c.b16 %v8583, %v8581
          %v8770 = vpack.c.b16 %v8586, %v8584
          %v8771 = vpack.c.b16 %v8587, %v8585
          %v8772 = vpack.c.b16 %v8590, %v8588
          %v8773 = vpack.c.b16 %v8591, %v8589
          %v8774 = vpack.c.b16 %v8594, %v8592
          %v8775 = vpack.c.b16 %v8595, %v8593
          %v8776 = vpack.c.b16 %v8598, %v8596
          %v8777 = vpack.c.b16 %v8599, %v8597
          %v8778 = vpack.c.b16 %v8602, %v8600
          %v8779 = vpack.c.b16 %v8603, %v8601
          %v8780 = vpack.c.b16 %v8606, %v8604
          %v8781 = vpack.c.b16 %v8607, %v8605
          %v8782 = vpack.c.b16 %v8610, %v8608
          %v8783 = vpack.c.b16 %v8611, %v8609
          %v8784 = vpack.c.b16 %v8614, %v8612
          %v8785 = vpack.c.b16 %v8615, %v8613
          %v8786 = vpack.c.b16 %v8618, %v8616
          %v8787 = vpack.c.b16 %v8619, %v8617
          %v8788 = vpack.c.b16 %v8622, %v8620
          %v8789 = vpack.c.b16 %v8623, %v8621
          %v8790 = vpack.c.b16 %v8626, %v8624
          %v8791 = vpack.c.b16 %v8627, %v8625
          %v8792 = vpack.c.b16 %v8630, %v8628
          %v8793 = vpack.c.b16 %v8631, %v8629
          %v8794 = vpack.c.b16 %v8634, %v8632
          %v8795 = vpack.c.b16 %v8635, %v8633
          %v8796 = vpack.c.b16 %v8638, %v8636
          %v8797 = vpack.c.b16 %v8639, %v8637
          %v8798 = vpack.c.b16 %v8642, %v8640
          %v8799 = vpack.c.b16 %v8643, %v8641
          %v8800 = vpack.c.b16 %v8646, %v8644
          %v8801 = vpack.c.b16 %v8647, %v8645
          %v8802 = vpack.c.b16 %v8650, %v8648
          %v8803 = vpack.c.b16 %v8651, %v8649
          %v8804 = vpack.c.b16 %v8654, %v8652
          %v8805 = vpack.c.b16 %v8655, %v8653
          %v8806 = vpack.c.b16 %v8658, %v8656
          %v8807 = vpack.c.b16 %v8659, %v8657
          %v8808 = vpack.c.b16 %v8662, %v8660
          %v8809 = vpack.c.b16 %v8663, %v8661
          %v8810 = vpack.c.b16 %v8666, %v8664
          %v8811 = vpack.c.b16 %v8667, %v8665
          %v8812 = vpack.c.b16 %v8670, %v8668
          %v8813 = vpack.c.b16 %v8671, %v8669
          %v8814 = vpack.c.b16 %v8674, %v8672
          %v8815 = vpack.c.b16 %v8675, %v8673
          %v8816 = vpack.c.b16 %v8678, %v8676
          %v8817 = vpack.c.b16 %v8679, %v8677
          %v8818 = vpack.c.b16 %v8682, %v8680
          %v8819 = vpack.c.b16 %v8683, %v8681
          %v8820 = vpack.c.b16 %v8686, %v8684
          %v8821 = vpack.c.b16 %v8687, %v8685
          %v8822 = vpack.c.b16 %v8690, %v8688
          %v8823 = vpack.c.b16 %v8691, %v8689
          %v8824 = vpack.c.b16 %v8694, %v8692
          %v8825 = vpack.c.b16 %v8695, %v8693
          %v8826 = vpack.c.b16 %v8698, %v8696
          %v8827 = vpack.c.b16 %v8699, %v8697
          %8956 = vmatprep.subr.bf16.mxu0 %v8701
          %8957 = vmatpush1.bf16.msra.mxu0 %v8700
          %8958 = vmatprep.subr.bf16.mxu0 %v8703
          %8959 = vmatpush1.bf16.msra.mxu0 %v8702
          %8960 = vmatprep.subr.bf16.mxu0 %v8705
          %8961 = vmatpush1.bf16.msra.mxu0 %v8704
          %8962 = vmatprep.subr.bf16.mxu0 %v8707
          %8963 = vmatpush1.bf16.msra.mxu0 %v8706
          %8964 = vmatprep.subr.bf16.mxu0 %v8709
          %8965 = vmatpush1.bf16.msra.mxu0 %v8708
          %8966 = vmatprep.subr.bf16.mxu0 %v8711
          %8967 = vmatpush1.bf16.msra.mxu0 %v8710
          %8968 = vmatprep.subr.bf16.mxu0 %v8713
          %8969 = vmatpush1.bf16.msra.mxu0 %v8712
          %8970 = vmatprep.subr.bf16.mxu0 %v8715
          %8971 = vmatpush1.bf16.msra.mxu0 %v8714
          %8972 = vmatprep.subr.bf16.mxu0 %v8717
          %8973 = vmatpush1.bf16.msra.mxu0 %v8716
          %8974 = vmatprep.subr.bf16.mxu0 %v8719
          %8975 = vmatpush1.bf16.msra.mxu0 %v8718
          %8976 = vmatprep.subr.bf16.mxu0 %v8721
          %8977 = vmatpush1.bf16.msra.mxu0 %v8720
          %8978 = vmatprep.subr.bf16.mxu0 %v8723
          %8979 = vmatpush1.bf16.msra.mxu0 %v8722
          %8980 = vmatprep.subr.bf16.mxu0 %v8725
          %8981 = vmatpush1.bf16.msra.mxu0 %v8724
          %8982 = vmatprep.subr.bf16.mxu0 %v8727
          %8983 = vmatpush1.bf16.msra.mxu0 %v8726
          %8984 = vmatprep.subr.bf16.mxu0 %v8729
          %8985 = vmatpush1.bf16.msra.mxu0 %v8728
          %8986 = vmatprep.subr.bf16.mxu0 %v8731
          %8987 = vmatpush1.bf16.msra.mxu0 %v8730
          %8988 = vmatprep.mubr.bf16.mxu0 %v8169
          %8989 = vmatmul.mubr.bf16.gmra.mrb[0].mxu0 %v8168
          %v8990 = vpop.f32.mrb[0].mxu0
          %v8991 = vadd.f32 %v8309, %v8990
          %v8992 = vpop.f32.mrb[0].mxu0
          %v8993 = vadd.f32 %v8313, %v8992
          %v8994 = vpop.f32.mrb[0].mxu0
          %v8995 = vpop.f32.mrb[0].mxu0
          %8996 = vdwg.mxu0
          %8997 = vmatprep.subr.bf16.mxu0 %v8733
          %8998 = vmatpush1.bf16.msra.mxu0 %v8732
          %8999 = vmatprep.subr.bf16.mxu0 %v8735
          %9000 = vmatpush1.bf16.msra.mxu0 %v8734
          %9001 = vmatprep.subr.bf16.mxu0 %v8737
          %9002 = vmatpush1.bf16.msra.mxu0 %v8736
          %9003 = vmatprep.subr.bf16.mxu0 %v8739
          %9004 = vmatpush1.bf16.msra.mxu0 %v8738
          %9005 = vmatprep.subr.bf16.mxu0 %v8741
          %9006 = vmatpush1.bf16.msra.mxu0 %v8740
          %9007 = vmatprep.subr.bf16.mxu0 %v8743
          %9008 = vmatpush1.bf16.msra.mxu0 %v8742
          %9009 = vmatprep.subr.bf16.mxu0 %v8745
          %9010 = vmatpush1.bf16.msra.mxu0 %v8744
          %9011 = vmatprep.subr.bf16.mxu0 %v8747
          %9012 = vmatpush1.bf16.msra.mxu0 %v8746
          %9013 = vmatprep.subr.bf16.mxu0 %v8749
          %9014 = vmatpush1.bf16.msra.mxu0 %v8748
          %9015 = vmatprep.subr.bf16.mxu0 %v8751
          %9016 = vmatpush1.bf16.msra.mxu0 %v8750
          %9017 = vmatprep.subr.bf16.mxu0 %v8753
          %9018 = vmatpush1.bf16.msra.mxu0 %v8752
          %9019 = vmatprep.subr.bf16.mxu0 %v8755
          %9020 = vmatpush1.bf16.msra.mxu0 %v8754
          %9021 = vmatprep.subr.bf16.mxu0 %v8757
          %9022 = vmatpush1.bf16.msra.mxu0 %v8756
          %9023 = vmatprep.subr.bf16.mxu0 %v8759
          %9024 = vmatpush1.bf16.msra.mxu0 %v8758
          %9025 = vmatprep.subr.bf16.mxu0 %v8761
          %9026 = vmatpush1.bf16.msra.mxu0 %v8760
          %9027 = vmatprep.subr.bf16.mxu0 %v8763
          %9028 = vmatpush1.bf16.msra.mxu0 %v8762
          %9029 = vmatprep.mubr.bf16.mxu0 %v8171
          %9030 = vmatmul.mubr.bf16.gmra.mrb[0].mxu0 %v8170
          %v9031 = vpop.f32.mrb[0].mxu0
          %v9032 = vadd.f32 %v8991, %v9031
          %v9033 = vpop.f32.mrb[0].mxu0
          %v9034 = vadd.f32 %v8993, %v9033
          %v9035 = vpop.f32.mrb[0].mxu0
          %v9036 = vpop.f32.mrb[0].mxu0
          %9037 = vdwg.mxu0
          %9038 = vmatprep.subr.bf16.mxu0 %v8765
          %9039 = vmatpush1.bf16.msra.mxu0 %v8764
          %9040 = vmatprep.subr.bf16.mxu0 %v8767
          %9041 = vmatpush1.bf16.msra.mxu0 %v8766
          %9042 = vmatprep.subr.bf16.mxu0 %v8769
          %9043 = vmatpush1.bf16.msra.mxu0 %v8768
          %9044 = vmatprep.subr.bf16.mxu0 %v8771
          %9045 = vmatpush1.bf16.msra.mxu0 %v8770
          %9046 = vmatprep.subr.bf16.mxu0 %v8773
          %9047 = vmatpush1.bf16.msra.mxu0 %v8772
          %9048 = vmatprep.subr.bf16.mxu0 %v8775
          %9049 = vmatpush1.bf16.msra.mxu0 %v8774
          %9050 = vmatprep.subr.bf16.mxu0 %v8777
          %9051 = vmatpush1.bf16.msra.mxu0 %v8776
          %9052 = vmatprep.subr.bf16.mxu0 %v8779
          %9053 = vmatpush1.bf16.msra.mxu0 %v8778
          %9054 = vmatprep.subr.bf16.mxu0 %v8781
          %9055 = vmatpush1.bf16.msra.mxu0 %v8780
          %9056 = vmatprep.subr.bf16.mxu0 %v8783
          %9057 = vmatpush1.bf16.msra.mxu0 %v8782
          %9058 = vmatprep.subr.bf16.mxu0 %v8785
          %9059 = vmatpush1.bf16.msra.mxu0 %v8784
          %9060 = vmatprep.subr.bf16.mxu0 %v8787
          %9061 = vmatpush1.bf16.msra.mxu0 %v8786
          %9062 = vmatprep.subr.bf16.mxu0 %v8789
          %9063 = vmatpush1.bf16.msra.mxu0 %v8788
          %9064 = vmatprep.subr.bf16.mxu0 %v8791
          %9065 = vmatpush1.bf16.msra.mxu0 %v8790
          %9066 = vmatprep.subr.bf16.mxu0 %v8793
          %9067 = vmatpush1.bf16.msra.mxu0 %v8792
          %9068 = vmatprep.subr.bf16.mxu0 %v8795
          %9069 = vmatpush1.bf16.msra.mxu0 %v8794
          %9070 = vmatprep.mubr.bf16.mxu0 %v8173
          %9071 = vmatmul.mubr.bf16.gmra.mrb[0].mxu0 %v8172
          %v9072 = vpop.f32.mrb[0].mxu0
          %v9073 = vadd.f32 %v9032, %v9072
          %v9074 = vpop.f32.mrb[0].mxu0
          %v9075 = vadd.f32 %v9034, %v9074
          %v9076 = vpop.f32.mrb[0].mxu0
          %v9077 = vpop.f32.mrb[0].mxu0
          %9078 = vdwg.mxu0
          %9079 = vmatprep.subr.bf16.mxu0 %v8797
          %9080 = vmatpush1.bf16.msra.mxu0 %v8796
          %9081 = vmatprep.subr.bf16.mxu0 %v8799
          %9082 = vmatpush1.bf16.msra.mxu0 %v8798
          %9083 = vmatprep.subr.bf16.mxu0 %v8801
          %9084 = vmatpush1.bf16.msra.mxu0 %v8800
          %9085 = vmatprep.subr.bf16.mxu0 %v8803
          %9086 = vmatpush1.bf16.msra.mxu0 %v8802
          %9087 = vmatprep.subr.bf16.mxu0 %v8805
          %9088 = vmatpush1.bf16.msra.mxu0 %v8804
          %9089 = vmatprep.subr.bf16.mxu0 %v8807
          %9090 = vmatpush1.bf16.msra.mxu0 %v8806
          %9091 = vmatprep.subr.bf16.mxu0 %v8809
          %9092 = vmatpush1.bf16.msra.mxu0 %v8808
          %9093 = vmatprep.subr.bf16.mxu0 %v8811
          %9094 = vmatpush1.bf16.msra.mxu0 %v8810
          %9095 = vmatprep.subr.bf16.mxu0 %v8813
          %9096 = vmatpush1.bf16.msra.mxu0 %v8812
          %9097 = vmatprep.subr.bf16.mxu0 %v8815
          %9098 = vmatpush1.bf16.msra.mxu0 %v8814
          %9099 = vmatprep.subr.bf16.mxu0 %v8817
          %9100 = vmatpush1.bf16.msra.mxu0 %v8816
          %9101 = vmatprep.subr.bf16.mxu0 %v8819
          %9102 = vmatpush1.bf16.msra.mxu0 %v8818
          %9103 = vmatprep.subr.bf16.mxu0 %v8821
          %9104 = vmatpush1.bf16.msra.mxu0 %v8820
          %9105 = vmatprep.subr.bf16.mxu0 %v8823
          %9106 = vmatpush1.bf16.msra.mxu0 %v8822
          %9107 = vmatprep.subr.bf16.mxu0 %v8825
          %9108 = vmatpush1.bf16.msra.mxu0 %v8824
          %9109 = vmatprep.subr.bf16.mxu0 %v8827
          %9110 = vmatpush1.bf16.msra.mxu0 %v8826
          %9111 = vmatprep.mubr.bf16.mxu0 %v8175
          %9112 = vmatmul.mubr.bf16.gmra.mrb[0].mxu0 %v8174
          %v9113 = vpop.f32.mrb[0].mxu0
          %v9114 = vadd.f32 %v9073, %v9113
          %v9115 = vpop.f32.mrb[0].mxu0
          %v9116 = vadd.f32 %v9075, %v9115
          %v9117 = vpop.f32.mrb[0].mxu0
          %v9118 = vpop.f32.mrb[0].mxu0
          %9119 = vdwg.mxu0
          %v9120 = vmax.f32 %v9114, 0.0
          %v9121 = vmax.f32 %v9116, 0.0
          %v9122 = vpack.c.bf16 %v9120, %v9120
          %v9123 = vpack.c.bf16 %v9121, %v9121
          %v9124 = vld [vmem:[%s5] sm:$0xf]
          %v9125 = vld [vmem:[%s5 + $0x4] sm:$0xf]
          %v9126 = vld [vmem:[%s5 + $0x8] sm:$0xf]
          %v9127 = vld [vmem:[%s5 + $0xc] sm:$0xf]
          %v9128 = vld [vmem:[%s5 + $0x10] sm:$0xf]
          %v9129 = vld [vmem:[%s5 + $0x14] sm:$0xf]
          %v9130 = vld [vmem:[%s5 + $0x18] sm:$0xf]
          %v9131 = vld [vmem:[%s5 + $0x1c] sm:$0xf]
          %v9132 = vld [vmem:[%s5 + $0x20] sm:$0xf]
          %v9133 = vld [vmem:[%s5 + $0x24] sm:$0xf]
          %v9134 = vld [vmem:[%s5 + $0x28] sm:$0xf]
          %v9135 = vld [vmem:[%s5 + $0x2c] sm:$0xf]
          %v9136 = vld [vmem:[%s5 + $0x30] sm:$0xf]
          %v9137 = vld [vmem:[%s5 + $0x34] sm:$0xf]
          %v9138 = vld [vmem:[%s5 + $0x38] sm:$0xf]
          %v9139 = vld [vmem:[%s5 + $0x3c] sm:$0xf]
          %v9140 = vld [vmem:[%s5 + $0x40] sm:$0xf]
          %v9141 = vld [vmem:[%s5 + $0x44] sm:$0xf]
          %v9142 = vld [vmem:[%s5 + $0x48] sm:$0xf]
          %v9143 = vld [vmem:[%s5 + $0x4c] sm:$0xf]
          %v9144 = vld [vmem:[%s5 + $0x50] sm:$0xf]
          %v9145 = vld [vmem:[%s5 + $0x54] sm:$0xf]
          %v9146 = vld [vmem:[%s5 + $0x58] sm:$0xf]
          %v9147 = vld [vmem:[%s5 + $0x5c] sm:$0xf]
          %v9148 = vld [vmem:[%s5 + $0x60] sm:$0xf]
          %v9149 = vld [vmem:[%s5 + $0x64] sm:$0xf]
          %v9150 = vld [vmem:[%s5 + $0x68] sm:$0xf]
          %v9151 = vld [vmem:[%s5 + $0x6c] sm:$0xf]
          %v9152 = vld [vmem:[%s5 + $0x70] sm:$0xf]
          %v9153 = vld [vmem:[%s5 + $0x74] sm:$0xf]
          %v9154 = vld [vmem:[%s5 + $0x78] sm:$0xf]
          %v9155 = vld [vmem:[%s5 + $0x7c] sm:$0xf]
          %v9156 = vld [vmem:[#allocation12] sm:$0x1]
          %v9158 = vlaneseq
          %v9159 = vshrl.u32 %v9158, 7
          %v9160 = vsub.s32 0, %v9159
          %v9161 = vrot.slane %v9156, %v9160
          %v9195 = vunpack.c.l.b16 %v9124
          %v9196 = vunpack.c.l.b16 %v9125
          %v9197 = vunpack.c.l.b16 %v9126
          %v9198 = vunpack.c.l.b16 %v9127
          %v9199 = vunpack.c.l.b16 %v9128
          %v9200 = vunpack.c.l.b16 %v9129
          %v9201 = vunpack.c.l.b16 %v9130
          %v9202 = vunpack.c.l.b16 %v9131
          %v9203 = vunpack.c.l.b16 %v9132
          %v9204 = vunpack.c.l.b16 %v9133
          %v9205 = vunpack.c.l.b16 %v9134
          %v9206 = vunpack.c.l.b16 %v9135
          %v9207 = vunpack.c.l.b16 %v9136
          %v9208 = vunpack.c.l.b16 %v9137
          %v9209 = vunpack.c.l.b16 %v9138
          %v9210 = vunpack.c.l.b16 %v9139
          %v9211 = vunpack.c.l.b16 %v9140
          %v9212 = vunpack.c.l.b16 %v9141
          %v9213 = vunpack.c.l.b16 %v9142
          %v9214 = vunpack.c.l.b16 %v9143
          %v9215 = vunpack.c.l.b16 %v9144
          %v9216 = vunpack.c.l.b16 %v9145
          %v9217 = vunpack.c.l.b16 %v9146
          %v9218 = vunpack.c.l.b16 %v9147
          %v9219 = vunpack.c.l.b16 %v9148
          %v9220 = vunpack.c.l.b16 %v9149
          %v9221 = vunpack.c.l.b16 %v9150
          %v9222 = vunpack.c.l.b16 %v9151
          %v9223 = vunpack.c.l.b16 %v9152
          %v9224 = vunpack.c.l.b16 %v9153
          %v9225 = vunpack.c.l.b16 %v9154
          %v9226 = vunpack.c.l.b16 %v9155
          %v9227 = vpack.c.b16 %v9196, %v9195
          %v9228 = vpack.c.b16 %v9198, %v9197
          %v9229 = vpack.c.b16 %v9200, %v9199
          %v9230 = vpack.c.b16 %v9202, %v9201
          %v9231 = vpack.c.b16 %v9204, %v9203
          %v9232 = vpack.c.b16 %v9206, %v9205
          %v9233 = vpack.c.b16 %v9208, %v9207
          %v9234 = vpack.c.b16 %v9210, %v9209
          %v9235 = vpack.c.b16 %v9212, %v9211
          %v9236 = vpack.c.b16 %v9214, %v9213
          %v9237 = vpack.c.b16 %v9216, %v9215
          %v9238 = vpack.c.b16 %v9218, %v9217
          %v9239 = vpack.c.b16 %v9220, %v9219
          %v9240 = vpack.c.b16 %v9222, %v9221
          %v9241 = vpack.c.b16 %v9224, %v9223
          %v9242 = vpack.c.b16 %v9226, %v9225
          %9259 = vmatprep.subr.bf16.mxu0 0
          %9260 = vmatpush1.bf16.msra.mxu0 %v9227
          %9261 = vmatprep.subr.bf16.mxu0 0
          %9262 = vmatpush1.bf16.msra.mxu0 %v9228
          %9263 = vmatprep.subr.bf16.mxu0 0
          %9264 = vmatpush1.bf16.msra.mxu0 %v9229
          %9265 = vmatprep.subr.bf16.mxu0 0
          %9266 = vmatpush1.bf16.msra.mxu0 %v9230
          %9267 = vmatprep.subr.bf16.mxu0 0
          %9268 = vmatpush1.bf16.msra.mxu0 %v9231
          %9269 = vmatprep.subr.bf16.mxu0 0
          %9270 = vmatpush1.bf16.msra.mxu0 %v9232
          %9271 = vmatprep.subr.bf16.mxu0 0
          %9272 = vmatpush1.bf16.msra.mxu0 %v9233
          %9273 = vmatprep.subr.bf16.mxu0 0
          %9274 = vmatpush1.bf16.msra.mxu0 %v9234
          %9275 = vmatprep.subr.bf16.mxu0 0
          %9276 = vmatpush1.bf16.msra.mxu0 %v9235
          %9277 = vmatprep.subr.bf16.mxu0 0
          %9278 = vmatpush1.bf16.msra.mxu0 %v9236
          %9279 = vmatprep.subr.bf16.mxu0 0
          %9280 = vmatpush1.bf16.msra.mxu0 %v9237
          %9281 = vmatprep.subr.bf16.mxu0 0
          %9282 = vmatpush1.bf16.msra.mxu0 %v9238
          %9283 = vmatprep.subr.bf16.mxu0 0
          %9284 = vmatpush1.bf16.msra.mxu0 %v9239
          %9285 = vmatprep.subr.bf16.mxu0 0
          %9286 = vmatpush1.bf16.msra.mxu0 %v9240
          %9287 = vmatprep.subr.bf16.mxu0 0
          %9288 = vmatpush1.bf16.msra.mxu0 %v9241
          %9289 = vmatprep.subr.bf16.mxu0 0
          %9290 = vmatpush1.bf16.msra.mxu0 %v9242
          %9291 = vmatprep.mubr.bf16.mxu0 %v9123
          %9292 = vmatmul.mubr.bf16.gmra.mrb[0].mxu0 %v9122
          %v9293 = vpop.f32.mrb[0].mxu0
          %v9294 = vadd.f32 %v9161, %v9293
          %v9295 = vpop.f32.mrb[0].mxu0
          %v9296 = vpop.f32.mrb[0].mxu0
          %v9297 = vpop.f32.mrb[0].mxu0
          %9298 = vdwg.mxu0
          %v9299 = vmax.f32 %v9294, 0.0
          %v9300 = vpack.c.bf16 %v9299, %v9299
          %v9301 = vld [vmem:[%s7] sm:$0xf]
          %v9302 = vld [vmem:[%s7 + $0x4] sm:$0xf]
          %v9303 = vld [vmem:[%s7 + $0x8] sm:$0xf]
          %v9304 = vld [vmem:[%s7 + $0xc] sm:$0xf]
          %v9305 = vld [vmem:[%s7 + $0x10] sm:$0xf]
          %v9306 = vld [vmem:[%s7 + $0x14] sm:$0xf]
          %v9307 = vld [vmem:[%s7 + $0x18] sm:$0xf]
          %v9308 = vld [vmem:[%s7 + $0x1c] sm:$0xf]
          %v9309 = vld [vmem:[#allocation14] sm:$0x1]
          %v9311 = vlaneseq
          %v9312 = vshrl.u32 %v9311, 7
          %v9313 = vsub.s32 0, %v9312
          %v9314 = vrot.slane %v9309, %v9313
          %v9324 = vunpack.c.l.b16 %v9301
          %v9325 = vunpack.c.l.b16 %v9302
          %v9326 = vunpack.c.l.b16 %v9303
          %v9327 = vunpack.c.l.b16 %v9304
          %v9328 = vunpack.c.l.b16 %v9305
          %v9329 = vunpack.c.l.b16 %v9306
          %v9330 = vunpack.c.l.b16 %v9307
          %v9331 = vunpack.c.l.b16 %v9308
          %v9332 = vpack.c.b16 %v9325, %v9324
          %v9333 = vpack.c.b16 %v9327, %v9326
          %v9334 = vpack.c.b16 %v9329, %v9328
          %v9335 = vpack.c.b16 %v9331, %v9330
          %vm9340 = vcmask 523264
          %v9342 = vsel %vm9340, %v9300, 0
          %9344 = vmatprep.subr.bf16.mxu0 0
          %9345 = vmatpush1.bf16.msra.mxu0 %v9332
          %9346 = vmatprep.subr.bf16.mxu0 0
          %9347 = vmatpush1.bf16.msra.mxu0 %v9333
          %9348 = vmatprep.subr.bf16.mxu0 0
          %9349 = vmatpush1.bf16.msra.mxu0 %v9334
          %9350 = vmatprep.subr.bf16.mxu0 0
          %9351 = vmatpush1.bf16.msra.mxu0 %v9335
          %9352 = vmatprep.subr.bf16.mxu0 0
          %9353 = vmatpush1.bf16.msra.mxu0 0
          %9354 = vmatprep.subr.bf16.mxu0 0
          %9355 = vmatpush1.bf16.msra.mxu0 0
          %9356 = vmatprep.subr.bf16.mxu0 0
          %9357 = vmatpush1.bf16.msra.mxu0 0
          %9358 = vmatprep.subr.bf16.mxu0 0
          %9359 = vmatpush1.bf16.msra.mxu0 0
          %9360 = vmatprep.subr.bf16.mxu0 0
          %9361 = vmatpush1.bf16.msra.mxu0 0
          %9362 = vmatprep.subr.bf16.mxu0 0
          %9363 = vmatpush1.bf16.msra.mxu0 0
          %9364 = vmatprep.subr.bf16.mxu0 0
          %9365 = vmatpush1.bf16.msra.mxu0 0
          %9366 = vmatprep.subr.bf16.mxu0 0
          %9367 = vmatpush1.bf16.msra.mxu0 0
          %9368 = vmatprep.subr.bf16.mxu0 0
          %9369 = vmatpush1.bf16.msra.mxu0 0
          %9370 = vmatprep.subr.bf16.mxu0 0
          %9371 = vmatpush1.bf16.msra.mxu0 0
          %9372 = vmatprep.subr.bf16.mxu0 0
          %9373 = vmatpush1.bf16.msra.mxu0 0
          %9374 = vmatprep.subr.bf16.mxu0 0
          %9375 = vmatpush1.bf16.msra.mxu0 0
          %9376 = vmatprep.mubr.bf16.mxu0 0
          %9377 = vmatmul.mubr.bf16.gmra.mrb[0].mxu0 %v9342
          %v9378 = vpop.f32.mrb[0].mxu0
          %v9379 = vadd.f32 %v9314, %v9378
          %v9380 = vpop.f32.mrb[0].mxu0
          %v9381 = vpop.f32.mrb[0].mxu0
          %v9382 = vpop.f32.mrb[0].mxu0
          %9383 = vdwg.mxu0
          %vm9384 = vcmask 41984
          %v9385 = vsel %vm9384, %v9379, -inf
          %9386 = vmax.xlane.f32.xlu0 %v9385
          %v9387 = vpop.xlane.xlu0 %9386
          %v9388 = vsub.f32 %v9379, %v9387
          %v9389 = vmul.f32 %v9388, 1.442695
          %v9390 = vpow.pop %v9389
          %v9391 = vsel %vm9384, %v9390, 0.0
          %9392 = vadd.xlane.f32.xlu0 %v9391
          %v9393 = vpop.xlane.xlu0 %9392
          %v9394 = vlog2.pop %v9393
          %v9395 = vmul.f32 %v9394, 0.6931472
          %v9396 = vsub.f32 %v9388, %v9395
          %9397 = vst.msk [vmem:[#allocation15] sm:$0x3] %vm9384, %v9396
        $region92: #{tpu_custom_call.1} parent=55 // pred_fallthru
          _
        // Predicated region
        $region93: #{tpu_custom_call.1} parent=55 // pred_check
          %p9398 = pneg %p234
        $region94: #{tpu_custom_call.1} parent=55 // pred_check_branch
          %9400 = sbr.rel (%p9398) target = $region96
        $region95: #{tpu_custom_call.1} parent=55 // pred_region
          %s9402 = ssub.s32 32, 32
          %9403 = vsyncadd [#allocation5], %s9402
          %s9405 = sshll.u32 [#allocation15], 4
          %s9406 = int_to_ptr.vmem [resolvable:$true] %s9405
          %9408 = dma.vmem_to_hbm [thread:$0]  %s9406, 32, %s9, [#allocation5]
        $region96: #{tpu_custom_call.1} parent=55 // pred_fallthru
          _
        // Predicated region
        $region97: #{tpu_custom_call.1} parent=55 // pred_check
          %p9409 = pneg %p234
        $region98: #{tpu_custom_call.1} parent=55 // pred_check_branch
          %9411 = sbr.rel (%p9409) target = $region100
        $region99: #{tpu_custom_call.1} parent=55 // pred_region
          %9412 = dma.done [#allocation5], 32
        $region100: #{tpu_custom_call.1} parent=55 // pred_fallthru
          _
      $region56: #{tpu_custom_call.1} parent=5 // pred_fallthru
        _
      %p9413 = scmp.le.s32.totalorder 2, %s22
      // Predicated region
      $region101: #{tpu_custom_call.1} parent=5 // pred_check
        %p9414 = pneg %p9413
      $region102: #{tpu_custom_call.1} parent=5 // pred_check_branch
        %9416 = sbr.rel (%p9414) target = $region104
      $region103: #{tpu_custom_call.1} parent=5 // pred_region
        %s9417 = ssub.s32 %s22, 2
      $region104: #{tpu_custom_call.1} parent=5 // pred_fallthru
        _
    $region6: #{tpu_custom_call.1} parent=1 // loop_footer
      %s26 = sadd.s32 1, %s22
    $region7: #{tpu_custom_call.1} parent=1 // loop_footer_branch
      %21 = sbr.rel target = $region3
    $region8: #{tpu_custom_call.1} parent=1 // loop_exit
      _
    %9418 = vsyncpa [#allocation4], 1
    %s9419 = scalar_lea.sflag [#allocation4], 1
    %9420 = vsyncpa %s9419, 1
    %9421 = vsyncpa [#allocation7], 1
    %s9422 = scalar_lea.sflag [#allocation7], 1
    %9423 = vsyncpa %s9422, 1
    %9424 = vsyncpa [#allocation10], 1
    %9425 = vsyncpa [#allocation13], 1
    %9426 = vsyncpa [#allocation5], 1
    %s9427 = scalar_lea.sflag [#allocation5], 1
    %9428 = vsyncpa %s9427, 1

</llo_original>
